<compile_context>
chip_gen: v6e
topology: v6e:2x2x1
jax: 0.10.0
libtpu: 0.0.40
codegen_flags: <defaults>
</compile_context>

<pallas_src>
import inspect

import jax
import jax.numpy as jnp
from jax.experimental import pallas as pl
from jax.experimental.pallas import tpu as pltpu

D_IN = 1024        # fc1 in / fc1 out / fc2 in
D_H_REAL = 1000    # real fc2 out / fc3 in
D_H = 1024         # padded fc2 out / fc3 in  (lane-aligned)
D_OUT_REAL = 2     # real fc3 out
D_OUT_PAD = 128    # padded fc3 out (lane-dense output store)
MAX_BLOCK_B = 512  # upper bound on rows per grid step

# Per-spec buffer-count control is a newer BlockSpec kwarg; fall back to the
# default double-buffering (still correct, just uses ~4 MiB more VMEM) if the
# installed JAX does not expose it.
_HAS_PIPELINE_MODE = "pipeline_mode" in inspect.signature(pl.BlockSpec).parameters


def _leaky_relu(x, slope=0.1):
    return jnp.where(x > 0, x, slope * x)


def mlp_kernel(x_ref, w1_ref, b1_ref, w2_ref, b2_ref, w3_ref, b3_ref, o_ref):
    # fp32 -> bf16 cast of the activation tile happens on the VPU (hidden under
    # the MXU); x streams from HBM exactly once, in its original dtype.
    x = x_ref[...].astype(jnp.bfloat16)
    # fc1: bf16 MXU matmul, fp32 accumulation; elementwise stays fp32.
    h1 = jnp.dot(x, w1_ref[...], preferred_element_type=jnp.float32)
    h1 = _leaky_relu(h1 + b1_ref[...])
    # fc2 (out dim zero-padded 1000 -> 1024; zero pad keeps the math identical).
    h2 = jnp.dot(h1.astype(jnp.bfloat16), w2_ref[...],
                 preferred_element_type=jnp.float32)
    h2 = _leaky_relu(h2 + b2_ref[...])
    # fc3 (out dim zero-padded 2 -> 128); only columns 0/1 carry real params.
    logits = jnp.dot(h2.astype(jnp.bfloat16), w3_ref[...],
                     preferred_element_type=jnp.float32) + b3_ref[...]
    # 2-class softmax == sigmoid of the logit difference (VPU+EUP only, no
    # masked 2-wide XLU reductions).  Clamp so exp() never overflows to inf
    # (|d| > 30 already saturates the probability to ~1e-13).
    l0 = logits[:, 0:1]
    l1 = logits[:, 1:2]
    d = jnp.clip(l0 - l1, -30.0, 30.0)
    p1 = pl.reciprocal(1.0 + jnp.exp(d), approx=True)   # = sigmoid(l1 - l0)
    p0 = 1.0 - p1                                       # rows sum to exactly 1
    col = jax.lax.broadcasted_iota(jnp.int32, logits.shape, 1)
    o_ref[...] = jnp.where(col == 0, p0, jnp.where(col == 1, p1, 0.0))


def _resident_spec(shape):
    # Constant index_map -> fetched once, stays VMEM-resident across batch
    # tiles; single-buffer it when supported (no re-DMA ever happens anyway).
    kwargs = {"pipeline_mode": pl.Buffered(1)} if _HAS_PIPELINE_MODE else {}
    return pl.BlockSpec(shape, lambda i: (0, 0), **kwargs)


def _pick_block_b(B, max_block=MAX_BLOCK_B):
    """Rows per grid step: big enough to fill the MXU M-dim / amortize per-step
    overhead, small enough that grid_b >= 2 (so v7x megacore uses both TCs)."""
    if B <= 8:
        return B
    half = (B + 1) // 2
    return min(max_block, ((half + 7) // 8) * 8)


def sex_forward(x, packed_params, *, block_b=None):
    """x: [B, 1024]. packed_params from pack_params(). Returns [B, 2] float32."""
    w1, b1, w2, b2, w3, b3 = packed_params
    B = x.shape[0]
    if block_b is None:
        block_b = _pick_block_b(B)
    grid_b = pl.cdiv(B, block_b)   # partial last block handled by Pallas

    out = pl.pallas_call(
        mlp_kernel,
        out_shape=jax.ShapeDtypeStruct((B, D_OUT_PAD), jnp.float32),
        grid=(grid_b,),
        in_specs=[
            pl.BlockSpec((block_b, D_IN), lambda i: (i, 0)),  # x tile (fp32)
            _resident_spec((D_IN, D_IN)),                     # w1 (bf16)
            _resident_spec((1, D_IN)),                        # b1 (fp32)
            _resident_spec((D_IN, D_H)),                      # w2 padded (bf16)
            _resident_spec((1, D_H)),                         # b2 padded (fp32)
            _resident_spec((D_H, D_OUT_PAD)),                 # w3 padded (bf16)
            _resident_spec((1, D_OUT_PAD)),                   # b3 padded (fp32)
        ],
        out_specs=pl.BlockSpec((block_b, D_OUT_PAD), lambda i: (i, 0)),
        compiler_params=pltpu.CompilerParams(
            dimension_semantics=("parallel",),
            vmem_limit_bytes=48 * 1024 * 1024,
        ),
    )(x, w1, b1, w2, b2, w3, b3)
    return out[:, :D_OUT_REAL]


def init_params(key):
    # Deterministic init mimicking nn.Linear's uniform(-1/sqrt(fan_in), +1/sqrt(fan_in)).
    # Stored as [in, out] so the kernel computes x @ W + b (== torch x @ W.T + b).
    def linear(k, fan_in, fan_out):
        kw, kb = jax.random.split(k)
        bound = float(fan_in) ** -0.5
        w = jax.random.uniform(kw, (fan_in, fan_out), jnp.float32, -bound, bound)
        b = jax.random.uniform(kb, (1, fan_out), jnp.float32, -bound, bound)
        return w, b

    k1, k2, k3 = jax.random.split(key, 3)
    w1, b1 = linear(k1, D_IN, D_IN)
    w2, b2 = linear(k2, D_IN, D_H_REAL)
    w3, b3 = linear(k3, D_H_REAL, D_OUT_REAL)
    return (w1, b1, w2, b2, w3, b3)


def pack_params(params):
    # Zero-pad 1000 -> 1024 and 2 -> 128 (zero padding keeps the math identical),
    # quantize the weight stream to bf16, keep biases fp32.
    w1, b1, w2, b2, w3, b3 = params
    bf = jnp.bfloat16
    w2p = jnp.zeros((D_IN, D_H), jnp.float32).at[:, :D_H_REAL].set(w2)
    b2p = jnp.zeros((1, D_H), jnp.float32).at[:, :D_H_REAL].set(b2)
    w3p = jnp.zeros((D_H, D_OUT_PAD), jnp.float32).at[:D_H_REAL, :D_OUT_REAL].set(w3)
    b3p = jnp.zeros((1, D_OUT_PAD), jnp.float32).at[:, :D_OUT_REAL].set(b3)
    return (w1.astype(bf), b1, w2p.astype(bf), b2p, w3p.astype(bf), b3p)


def reference_forward(x, params):
    # Pure-JAX reference with the same bf16 weight quantization / fp32 accumulation.
    w1, b1, w2, b2, w3, b3 = params
    bf = jnp.bfloat16
    h1 = _leaky_relu(jnp.dot(x.astype(bf), w1.astype(bf),
                             preferred_element_type=jnp.float32) + b1)
    h2 = _leaky_relu(jnp.dot(h1.astype(bf), w2.astype(bf),
                             preferred_element_type=jnp.float32) + b2)
    logits = jnp.dot(h2.astype(bf), w3.astype(bf),
                     preferred_element_type=jnp.float32) + b3
    return jax.nn.softmax(logits, axis=-1)


if __name__ == "__main__":
    key = jax.random.PRNGKey(0)
    kx, kp = jax.random.split(key)
    params = init_params(kp)
    packed = pack_params(params)

    # B=256: clean tiling, 2 grid steps (megacore).  B=200: ragged batch,
    # exercises Pallas partial last-block handling (no wrapper-side padding).
    for B in (256, 200):
        x = jax.random.normal(jax.random.fold_in(kx, B), (B, D_IN), jnp.float32)
        out = jax.block_until_ready(sex_forward(x, packed))
        ref = reference_forward(x, params)

        assert out.shape == (B, D_OUT_REAL), out.shape
        assert out.dtype == jnp.float32
        max_err = float(jnp.max(jnp.abs(out - ref)))
        assert max_err < 5e-3, f"B={B}: mismatch vs. bf16 JAX ref, max abs err {max_err}"
        assert jnp.allclose(jnp.sum(out, axis=-1), 1.0, atol=1e-5), \
            f"B={B}: softmax rows must sum to 1"

    print("KERNEL_OK")
</pallas_src>

<mosaic_0001>
module attributes {stable_mosaic.version = 11 : i64} {
  func.func @mlp_kernel(%arg0: i32, %arg1: memref<128x1024xf32, #tpu.memory_space<vmem>>, %arg2: memref<1024x1024xbf16, #tpu.memory_space<vmem>>, %arg3: memref<1x1024xf32, #tpu.memory_space<vmem>>, %arg4: memref<1024x1024xbf16, #tpu.memory_space<vmem>>, %arg5: memref<1x1024xf32, #tpu.memory_space<vmem>>, %arg6: memref<1024x128xbf16, #tpu.memory_space<vmem>>, %arg7: memref<1x128xf32, #tpu.memory_space<vmem>>, %arg8: memref<128x128xf32, #tpu.memory_space<vmem>>) attributes {dimension_semantics = [#tpu.dimension_semantics<parallel>], iteration_bounds = array<i64: 2>, scalar_prefetch = 0 : i64, scratch_operands = 0 : i64, tpu.core_type = #tpu.core_type<tc>, window_params = [{transform_indices = @transform_0, window_bounds = array<i64: 128, 1024>}, {pipeline_mode = #tpu.pipeline_mode<synchronous>, transform_indices = @transform_1, window_bounds = array<i64: 1024, 1024>}, {pipeline_mode = #tpu.pipeline_mode<synchronous>, transform_indices = @transform_2, window_bounds = array<i64: 1, 1024>}, {pipeline_mode = #tpu.pipeline_mode<synchronous>, transform_indices = @transform_3, window_bounds = array<i64: 1024, 1024>}, {pipeline_mode = #tpu.pipeline_mode<synchronous>, transform_indices = @transform_4, window_bounds = array<i64: 1, 1024>}, {pipeline_mode = #tpu.pipeline_mode<synchronous>, transform_indices = @transform_5, window_bounds = array<i64: 1024, 128>}, {pipeline_mode = #tpu.pipeline_mode<synchronous>, transform_indices = @transform_6, window_bounds = array<i64: 1, 128>}, {transform_indices = @transform_7, window_bounds = array<i64: 128, 128>}]} {
    %c0 = arith.constant 0 : index
    %c0_0 = arith.constant 0 : index
    %0 = vector.load %arg1[%c0, %c0_0] : memref<128x1024xf32, #tpu.memory_space<vmem>>, vector<128x1024xf32>
    %1 = arith.truncf %0 : vector<128x1024xf32> to vector<128x1024xbf16>
    %c0_1 = arith.constant 0 : index
    %c0_2 = arith.constant 0 : index
    %2 = vector.load %arg2[%c0_1, %c0_2] : memref<1024x1024xbf16, #tpu.memory_space<vmem>>, vector<1024x1024xbf16>
    %cst = arith.constant dense<0.000000e+00> : vector<128x1024xf32>
    %3 = tpu.matmul %1, %2, %cst {dimension_numbers = #tpu.dot_dimension_numbers<[1], [0], [0], [1], [0, 0, 1, 1], [], []>} : vector<128x1024xbf16>, vector<1024x1024xbf16>, vector<128x1024xf32> -> vector<128x1024xf32>
    %c0_3 = arith.constant 0 : index
    %c0_4 = arith.constant 0 : index
    %4 = vector.load %arg3[%c0_3, %c0_4] : memref<1x1024xf32, #tpu.memory_space<vmem>>, vector<1x1024xf32>
    %5 = vector.broadcast %4 : vector<1x1024xf32> to vector<128x1024xf32>
    %6 = arith.addf %3, %5 : vector<128x1024xf32>
    %cst_5 = arith.constant 0.000000e+00 : f32
    %7 = vector.broadcast %cst_5 : f32 to vector<128x1024xf32>
    %8 = arith.cmpf ogt, %6, %7 : vector<128x1024xf32>
    %cst_6 = arith.constant 1.000000e-01 : f32
    %9 = vector.broadcast %cst_6 : f32 to vector<128x1024xf32>
    %10 = arith.mulf %9, %6 : vector<128x1024xf32>
    %11 = arith.select %8, %6, %10 : vector<128x1024xi1>, vector<128x1024xf32>
    %12 = arith.truncf %11 : vector<128x1024xf32> to vector<128x1024xbf16>
    %c0_7 = arith.constant 0 : index
    %c0_8 = arith.constant 0 : index
    %13 = vector.load %arg4[%c0_7, %c0_8] : memref<1024x1024xbf16, #tpu.memory_space<vmem>>, vector<1024x1024xbf16>
    %cst_9 = arith.constant dense<0.000000e+00> : vector<128x1024xf32>
    %14 = tpu.matmul %12, %13, %cst_9 {dimension_numbers = #tpu.dot_dimension_numbers<[1], [0], [0], [1], [0, 0, 1, 1], [], []>} : vector<128x1024xbf16>, vector<1024x1024xbf16>, vector<128x1024xf32> -> vector<128x1024xf32>
    %c0_10 = arith.constant 0 : index
    %c0_11 = arith.constant 0 : index
    %15 = vector.load %arg5[%c0_10, %c0_11] : memref<1x1024xf32, #tpu.memory_space<vmem>>, vector<1x1024xf32>
    %16 = vector.broadcast %15 : vector<1x1024xf32> to vector<128x1024xf32>
    %17 = arith.addf %14, %16 : vector<128x1024xf32>
    %cst_12 = arith.constant 0.000000e+00 : f32
    %18 = vector.broadcast %cst_12 : f32 to vector<128x1024xf32>
    %19 = arith.cmpf ogt, %17, %18 : vector<128x1024xf32>
    %cst_13 = arith.constant 1.000000e-01 : f32
    %20 = vector.broadcast %cst_13 : f32 to vector<128x1024xf32>
    %21 = arith.mulf %20, %17 : vector<128x1024xf32>
    %22 = arith.select %19, %17, %21 : vector<128x1024xi1>, vector<128x1024xf32>
    %23 = arith.truncf %22 : vector<128x1024xf32> to vector<128x1024xbf16>
    %c0_14 = arith.constant 0 : index
    %c0_15 = arith.constant 0 : index
    %24 = vector.load %arg6[%c0_14, %c0_15] : memref<1024x128xbf16, #tpu.memory_space<vmem>>, vector<1024x128xbf16>
    %cst_16 = arith.constant dense<0.000000e+00> : vector<128x128xf32>
    %25 = tpu.matmul %23, %24, %cst_16 {dimension_numbers = #tpu.dot_dimension_numbers<[1], [0], [0], [1], [0, 0, 1, 1], [], []>} : vector<128x1024xbf16>, vector<1024x128xbf16>, vector<128x128xf32> -> vector<128x128xf32>
    %c0_17 = arith.constant 0 : index
    %c0_18 = arith.constant 0 : index
    %26 = vector.load %arg7[%c0_17, %c0_18] : memref<1x128xf32, #tpu.memory_space<vmem>>, vector<1x128xf32>
    %27 = vector.broadcast %26 : vector<1x128xf32> to vector<128x128xf32>
    %28 = arith.addf %25, %27 : vector<128x128xf32>
    %29 = vector.extract_strided_slice %28 {offsets = [0, 0], sizes = [128, 1], strides = [1, 1]} : vector<128x128xf32> to vector<128x1xf32>
    %30 = vector.extract_strided_slice %28 {offsets = [0, 1], sizes = [128, 1], strides = [1, 1]} : vector<128x128xf32> to vector<128x1xf32>
    %31 = arith.subf %29, %30 : vector<128x1xf32>
    %cst_19 = arith.constant -3.000000e+01 : f32
    %cst_20 = arith.constant 3.000000e+01 : f32
    %32 = vector.broadcast %cst_19 : f32 to vector<128x1xf32>
    %33 = arith.maximumf %32, %31 : vector<128x1xf32>
    %34 = vector.broadcast %cst_20 : f32 to vector<128x1xf32>
    %35 = arith.minimumf %34, %33 : vector<128x1xf32>
    %36 = math.exp %35 : vector<128x1xf32>
    %cst_21 = arith.constant 1.000000e+00 : f32
    %37 = vector.broadcast %cst_21 : f32 to vector<128x1xf32>
    %38 = arith.addf %37, %36 : vector<128x1xf32>
    %39 = tpu.reciprocal %38 {approx = true} : vector<128x1xf32> -> vector<128x1xf32>
    %cst_22 = arith.constant 1.000000e+00 : f32
    %40 = vector.broadcast %cst_22 : f32 to vector<128x1xf32>
    %41 = arith.subf %40, %39 : vector<128x1xf32>
    %42 = tpu.iota {dimensions = array<i32: 1>} : vector<128x128xi32>
    %c0_i32 = arith.constant 0 : i32
    %43 = vector.broadcast %c0_i32 : i32 to vector<128x128xi32>
    %44 = arith.cmpi eq, %42, %43 : vector<128x128xi32>
    %c1_i32 = arith.constant 1 : i32
    %45 = vector.broadcast %c1_i32 : i32 to vector<128x128xi32>
    %46 = arith.cmpi eq, %42, %45 : vector<128x128xi32>
    %cst_23 = arith.constant 0.000000e+00 : f32
    %47 = vector.shape_cast %39 : vector<128x1xf32> to vector<128x1xf32>
    %48 = vector.broadcast %47 : vector<128x1xf32> to vector<128x128xf32>
    %49 = vector.broadcast %cst_23 : f32 to vector<128x128xf32>
    %50 = arith.select %46, %48, %49 : vector<128x128xi1>, vector<128x128xf32>
    %51 = vector.shape_cast %41 : vector<128x1xf32> to vector<128x1xf32>
    %52 = vector.broadcast %51 : vector<128x1xf32> to vector<128x128xf32>
    %53 = arith.select %44, %52, %50 : vector<128x128xi1>, vector<128x128xf32>
    %c0_24 = arith.constant 0 : index
    %c0_25 = arith.constant 0 : index
    %54 = vector.load %arg8[%c0_24, %c0_25] : memref<128x128xf32, #tpu.memory_space<vmem>>, vector<128x128xf32>
    tpu.vector_store %arg8[%c0_24, %c0_25], %53 {strides = array<i32>} : memref<128x128xf32, #tpu.memory_space<vmem>>, vector<128x128xf32>,
    return
  }
  func.func @transform_0(%arg0: i32) -> (i32, i32) {
    %c0_i32 = arith.constant 0 : i32
    %c0_i32_0 = arith.constant 0 : i32
    return %arg0, %c0_i32 : i32, i32
  }
  func.func @transform_1(%arg0: i32) -> (i32, i32) {
    %c0_i32 = arith.constant 0 : i32
    %c0_i32_0 = arith.constant 0 : i32
    %c0_i32_1 = arith.constant 0 : i32
    return %c0_i32, %c0_i32_0 : i32, i32
  }
  func.func @transform_2(%arg0: i32) -> (i32, i32) {
    %c0_i32 = arith.constant 0 : i32
    %c0_i32_0 = arith.constant 0 : i32
    %c0_i32_1 = arith.constant 0 : i32
    return %c0_i32, %c0_i32_0 : i32, i32
  }
  func.func @transform_3(%arg0: i32) -> (i32, i32) {
    %c0_i32 = arith.constant 0 : i32
    %c0_i32_0 = arith.constant 0 : i32
    %c0_i32_1 = arith.constant 0 : i32
    return %c0_i32, %c0_i32_0 : i32, i32
  }
  func.func @transform_4(%arg0: i32) -> (i32, i32) {
    %c0_i32 = arith.constant 0 : i32
    %c0_i32_0 = arith.constant 0 : i32
    %c0_i32_1 = arith.constant 0 : i32
    return %c0_i32, %c0_i32_0 : i32, i32
  }
  func.func @transform_5(%arg0: i32) -> (i32, i32) {
    %c0_i32 = arith.constant 0 : i32
    %c0_i32_0 = arith.constant 0 : i32
    %c0_i32_1 = arith.constant 0 : i32
    return %c0_i32, %c0_i32_0 : i32, i32
  }
  func.func @transform_6(%arg0: i32) -> (i32, i32) {
    %c0_i32 = arith.constant 0 : i32
    %c0_i32_0 = arith.constant 0 : i32
    %c0_i32_1 = arith.constant 0 : i32
    return %c0_i32, %c0_i32_0 : i32, i32
  }
  func.func @transform_7(%arg0: i32) -> (i32, i32) {
    %c0_i32 = arith.constant 0 : i32
    %c0_i32_0 = arith.constant 0 : i32
    return %arg0, %c0_i32 : i32, i32
  }
}

</mosaic_0001>

<llo_original>
// kernel: tpu_custom_call.1
$region0: #{tpu_custom_call.1}
  #allocation0 [shape = 'u32[]', space=smem, size = 0x4, offset = 0x4, fixed_abs, tag = 'smem constant byte address 0x4 - core index']
  #allocation1 [shape = 'u32[144,128]{1,0:T(1,128)}', space=vmem, size = 0x12000, scoped, tag = 'internal scratch']
  %s0 = inlined_call_operand.hbm [shape: f32[256,1024], index: 0, kind: input, shape index: {}]
  %s1 = inlined_call_operand.hbm [shape: bf16[1024,1024], index: 1, kind: input, shape index: {}]
  %s2 = inlined_call_operand.hbm [shape: f32[1,1024], index: 2, kind: input, shape index: {}]
  %s3 = inlined_call_operand.hbm [shape: bf16[1024,1024], index: 3, kind: input, shape index: {}]
  %s4 = inlined_call_operand.hbm [shape: f32[1,1024], index: 4, kind: input, shape index: {}]
  %s5 = inlined_call_operand.hbm [shape: bf16[1024,128], index: 5, kind: input, shape index: {}]
  %s6 = inlined_call_operand.hbm [shape: f32[1,128], index: 6, kind: input, shape index: {}]
  %s7 = inlined_call_operand.hbm [shape: f32[256,128], index: 7, kind: output, shape index: {}]
  %s8 = sld [smem:[#allocation0]]
  $region89: #{tpu_custom_call.1} parent=0
    _
  %s10 = ssub.s32 1, %s8
  %s11 = scalar_select 0, %s10, %s8
  $region1: #{tpu_custom_call.1} parent=0
    #allocation2 [shape = 'u8[1048576]{0}', space=vmem, size = 0x100000, scoped, tag = 'input window, operand 0']
    #allocation3 [shape = 's32[2]{0}', space=sflag, size = 0x8, scoped, tag = 'scoped memory for tpu_custom_call.1']
    #allocation4 [shape = 's32[2]{0}', space=sflag, size = 0x8, scoped, tag = 'scoped memory for tpu_custom_call.1']
    #allocation5 [shape = 'u8[2097152]{0}', space=vmem, size = 0x200000, scoped, tag = 'input window, operand 1, single buffered']
    #allocation6 [shape = 's32[1]{0}', space=sflag, size = 0x4, scoped, tag = 'scoped memory for tpu_custom_call.1']
    #allocation7 [shape = 'u8[4096]{0}', space=vmem, size = 0x1000, scoped, tag = 'input window, operand 2, single buffered']
    #allocation8 [shape = 'u8[2097152]{0}', space=vmem, size = 0x200000, scoped, tag = 'input window, operand 3, single buffered']
    #allocation9 [shape = 's32[1]{0}', space=sflag, size = 0x4, scoped, tag = 'scoped memory for tpu_custom_call.1']
    #allocation10 [shape = 'u8[4096]{0}', space=vmem, size = 0x1000, scoped, tag = 'input window, operand 4, single buffered']
    #allocation11 [shape = 'u8[262144]{0}', space=vmem, size = 0x40000, scoped, tag = 'input window, operand 5, single buffered']
    #allocation12 [shape = 's32[1]{0}', space=sflag, size = 0x4, scoped, tag = 'scoped memory for tpu_custom_call.1']
    #allocation13 [shape = 'u8[512]{0}', space=vmem, size = 0x400, scoped, tag = 'input window, operand 6, single buffered']
    #allocation14 [shape = 'u8[131072]{0}', space=vmem, size = 0x20000, scoped, tag = 'output window, operand 0']
    %12 = vsyncpa [#allocation3], 0
    %s13 = scalar_lea.sflag [#allocation3], 1
    %14 = vsyncpa %s13, 0
    %15 = vsyncpa [#allocation6], 0
    %16 = vsyncpa [#allocation9], 0
    %17 = vsyncpa [#allocation12], 0
    %18 = vsyncpa [#allocation4], 0
    %s19 = scalar_lea.sflag [#allocation4], 1
    %20 = vsyncpa %s19, 0
    loop: start=0, step=1, limit=4
    $region2: #{tpu_custom_call.1} parent=1 // loop_pre_header
      _
    $region3: #{tpu_custom_call.1} parent=1 // loop_header
      %s22 = sphi 0, %s26
      %p23 = scmp.ge.s32.totalorder %s22, 4
      %s32 = sphi 0, %s34
      %s35 = sphi 0, %s32
      %s36 = sphi 0, %s35
      %s52 = sphi 0, %s36
      %s56 = sphi 0, %s56
      %s58 = sphi 0, %s56
      %s59 = sphi 0, %s58
      %s73 = sphi 0, %s59
      %s77 = sphi 0, %s77
      %s79 = sphi 0, %s77
      %s80 = sphi 0, %s79
      %s94 = sphi 0, %s80
      %s98 = sphi 0, %s98
      %s100 = sphi 0, %s98
      %s101 = sphi 0, %s100
      %s115 = sphi 0, %s101
      %s119 = sphi 0, %s119
      %s121 = sphi 0, %s119
      %s122 = sphi 0, %s121
      %s136 = sphi 0, %s122
      %s140 = sphi 0, %s140
      %s142 = sphi 0, %s140
      %s143 = sphi 0, %s142
      %s157 = sphi 0, %s143
      %s161 = sphi 0, %s161
      %s163 = sphi 0, %s161
      %s164 = sphi 0, %s163
      %s178 = sphi 0, %s164
      %s184 = sphi 0, %s186
      %s187 = sphi 0, %s184
      %s188 = sphi 0, %s187
      %s204 = sphi 0, %s188
    $region4: #{tpu_custom_call.1} parent=1 // loop_header_branch
      %25 = sbr.rel (%p23) target = $region8
    $region5: #{tpu_custom_call.1} parent=1 // loop_body
      %s27 = ssub.s32 %s22, 1
      %s28 = ssub.s32 %s22, 2
      %s29 = sadd.s32 %s22, 1
      %s30 = ssub.s32 %s22, %s29
      %p31 = scmp.eq.s32.totalorder %s30, 0
      %s33 = sadd.s32 %s32, 1
      %s34 = scalar_select %p31, %s32, %s33
      %p37 = pneg %p31
      %p38 = scmp.eq.s32.totalorder %s22, 1
      %p39 = por %p37, %p38
      %p40 = scmp.ne.s32.totalorder %s32, %s35
      %p41 = scmp.eq.s32.totalorder %s22, 0
      %p42 = por %p40, %p41
      %p43 = scmp.ne.s32.totalorder %s32, %s35
      %p44 = scmp.eq.s32.totalorder %s27, 1
      %p45 = por %p43, %p44
      %p46 = scmp.ne.s32.totalorder %s35, %s36
      %p47 = scmp.eq.s32.totalorder %s27, 0
      %p48 = por %p46, %p47
      %p49 = scmp.ne.s32.totalorder %s35, %s36
      %p50 = scmp.eq.s32.totalorder %s28, 1
      %p51 = por %p49, %p50
      %p53 = scmp.ne.s32.totalorder %s36, %s52
      %p54 = scmp.eq.s32.totalorder %s28, 0
      %p55 = por %p53, %p54
      %s57 = sadd.s32 %s56, 1
      %p60 = scmp.eq.s32.totalorder %s22, 1
      %p61 = scmp.ne.s32.totalorder %s56, %s58
      %p62 = scmp.eq.s32.totalorder %s22, 0
      %p63 = por %p61, %p62
      %p64 = scmp.ne.s32.totalorder %s56, %s58
      %p65 = scmp.eq.s32.totalorder %s27, 1
      %p66 = por %p64, %p65
      %p67 = scmp.ne.s32.totalorder %s58, %s59
      %p68 = scmp.eq.s32.totalorder %s27, 0
      %p69 = por %p67, %p68
      %p70 = scmp.ne.s32.totalorder %s58, %s59
      %p71 = scmp.eq.s32.totalorder %s28, 1
      %p72 = por %p70, %p71
      %p74 = scmp.ne.s32.totalorder %s59, %s73
      %p75 = scmp.eq.s32.totalorder %s28, 0
      %p76 = por %p74, %p75
      %s78 = sadd.s32 %s77, 1
      %p81 = scmp.eq.s32.totalorder %s22, 1
      %p82 = scmp.ne.s32.totalorder %s77, %s79
      %p83 = scmp.eq.s32.totalorder %s22, 0
      %p84 = por %p82, %p83
      %p85 = scmp.ne.s32.totalorder %s77, %s79
      %p86 = scmp.eq.s32.totalorder %s27, 1
      %p87 = por %p85, %p86
      %p88 = scmp.ne.s32.totalorder %s79, %s80
      %p89 = scmp.eq.s32.totalorder %s27, 0
      %p90 = por %p88, %p89
      %p91 = scmp.ne.s32.totalorder %s79, %s80
      %p92 = scmp.eq.s32.totalorder %s28, 1
      %p93 = por %p91, %p92
      %p95 = scmp.ne.s32.totalorder %s80, %s94
      %p96 = scmp.eq.s32.totalorder %s28, 0
      %p97 = por %p95, %p96
      %s99 = sadd.s32 %s98, 1
      %p102 = scmp.eq.s32.totalorder %s22, 1
      %p103 = scmp.ne.s32.totalorder %s98, %s100
      %p104 = scmp.eq.s32.totalorder %s22, 0
      %p105 = por %p103, %p104
      %p106 = scmp.ne.s32.totalorder %s98, %s100
      %p107 = scmp.eq.s32.totalorder %s27, 1
      %p108 = por %p106, %p107
      %p109 = scmp.ne.s32.totalorder %s100, %s101
      %p110 = scmp.eq.s32.totalorder %s27, 0
      %p111 = por %p109, %p110
      %p112 = scmp.ne.s32.totalorder %s100, %s101
      %p113 = scmp.eq.s32.totalorder %s28, 1
      %p114 = por %p112, %p113
      %p116 = scmp.ne.s32.totalorder %s101, %s115
      %p117 = scmp.eq.s32.totalorder %s28, 0
      %p118 = por %p116, %p117
      %s120 = sadd.s32 %s119, 1
      %p123 = scmp.eq.s32.totalorder %s22, 1
      %p124 = scmp.ne.s32.totalorder %s119, %s121
      %p125 = scmp.eq.s32.totalorder %s22, 0
      %p126 = por %p124, %p125
      %p127 = scmp.ne.s32.totalorder %s119, %s121
      %p128 = scmp.eq.s32.totalorder %s27, 1
      %p129 = por %p127, %p128
      %p130 = scmp.ne.s32.totalorder %s121, %s122
      %p131 = scmp.eq.s32.totalorder %s27, 0
      %p132 = por %p130, %p131
      %p133 = scmp.ne.s32.totalorder %s121, %s122
      %p134 = scmp.eq.s32.totalorder %s28, 1
      %p135 = por %p133, %p134
      %p137 = scmp.ne.s32.totalorder %s122, %s136
      %p138 = scmp.eq.s32.totalorder %s28, 0
      %p139 = por %p137, %p138
      %s141 = sadd.s32 %s140, 1
      %p144 = scmp.eq.s32.totalorder %s22, 1
      %p145 = scmp.ne.s32.totalorder %s140, %s142
      %p146 = scmp.eq.s32.totalorder %s22, 0
      %p147 = por %p145, %p146
      %p148 = scmp.ne.s32.totalorder %s140, %s142
      %p149 = scmp.eq.s32.totalorder %s27, 1
      %p150 = por %p148, %p149
      %p151 = scmp.ne.s32.totalorder %s142, %s143
      %p152 = scmp.eq.s32.totalorder %s27, 0
      %p153 = por %p151, %p152
      %p154 = scmp.ne.s32.totalorder %s142, %s143
      %p155 = scmp.eq.s32.totalorder %s28, 1
      %p156 = por %p154, %p155
      %p158 = scmp.ne.s32.totalorder %s143, %s157
      %p159 = scmp.eq.s32.totalorder %s28, 0
      %p160 = por %p158, %p159
      %s162 = sadd.s32 %s161, 1
      %p165 = scmp.eq.s32.totalorder %s22, 1
      %p166 = scmp.ne.s32.totalorder %s161, %s163
      %p167 = scmp.eq.s32.totalorder %s22, 0
      %p168 = por %p166, %p167
      %p169 = scmp.ne.s32.totalorder %s161, %s163
      %p170 = scmp.eq.s32.totalorder %s27, 1
      %p171 = por %p169, %p170
      %p172 = scmp.ne.s32.totalorder %s163, %s164
      %p173 = scmp.eq.s32.totalorder %s27, 0
      %p174 = por %p172, %p173
      %p175 = scmp.ne.s32.totalorder %s163, %s164
      %p176 = scmp.eq.s32.totalorder %s28, 1
      %p177 = por %p175, %p176
      %p179 = scmp.ne.s32.totalorder %s164, %s178
      %p180 = scmp.eq.s32.totalorder %s28, 0
      %p181 = por %p179, %p180
      %s182 = ssub.s32 %s22, %s29
      %p183 = scmp.eq.s32.totalorder %s182, 0
      %s185 = sadd.s32 %s184, 1
      %s186 = scalar_select %p183, %s184, %s185
      %p189 = pneg %p183
      %p190 = scmp.eq.s32.totalorder %s22, 1
      %p191 = por %p189, %p190
      %p192 = scmp.ne.s32.totalorder %s184, %s187
      %p193 = scmp.eq.s32.totalorder %s22, 0
      %p194 = por %p192, %p193
      %p195 = scmp.ne.s32.totalorder %s184, %s187
      %p196 = scmp.eq.s32.totalorder %s27, 1
      %p197 = por %p195, %p196
      %p198 = scmp.ne.s32.totalorder %s187, %s188
      %p199 = scmp.eq.s32.totalorder %s27, 0
      %p200 = por %p198, %p199
      %p201 = scmp.ne.s32.totalorder %s187, %s188
      %p202 = scmp.eq.s32.totalorder %s28, 1
      %p203 = por %p201, %p202
      %p205 = scmp.ne.s32.totalorder %s188, %s204
      %p206 = scmp.eq.s32.totalorder %s28, 0
      %p207 = por %p205, %p206
      %p208 = scmp.le.s32.totalorder 1, %s22
      %p209 = scmp.lt.s32.totalorder %s22, 3
      %p210 = pnand %p208, %p209
      %p211 = pneg %p210
      // Predicated region
      $region9: #{tpu_custom_call.1} parent=5 // pred_check
        _
      $region10: #{tpu_custom_call.1} parent=5 // pred_check_branch
        %213 = sbr.rel (%p210) target = $region12
      $region11: #{tpu_custom_call.1} parent=5 // pred_region
        %s214 = ssub.s32 %s22, 1
        // Predicated region
        $region13: #{tpu_custom_call.1} parent=11 // pred_check
          %p215 = pneg %p69
        $region14: #{tpu_custom_call.1} parent=11 // pred_check_branch
          %217 = sbr.rel (%p215) target = $region16
        $region15: #{tpu_custom_call.1} parent=11 // pred_region
          %s219 = ssub.s32 65536, 65536
          %220 = vsyncadd [#allocation6], %s219
          %s221 = sshll.u32 [#allocation5], 4
          %s222 = int_to_ptr.vmem [resolvable:$true] %s221
          %227 = dma.hbm_to_vmem [thread:$0]  %s1, 65536, %s222, [#allocation6], 512, 512, 32
        $region16: #{tpu_custom_call.1} parent=11 // pred_fallthru
          _
        // Predicated region
        $region17: #{tpu_custom_call.1} parent=11 // pred_check
          %p228 = pneg %p90
        $region18: #{tpu_custom_call.1} parent=11 // pred_check_branch
          %230 = sbr.rel (%p228) target = $region20
        $region19: #{tpu_custom_call.1} parent=11 // pred_region
          %s232 = ssub.s32 128, 128
          %233 = vsyncadd [#allocation6], %s232
          %s235 = sshll.u32 [#allocation7], 4
          %s236 = int_to_ptr.vmem [resolvable:$true] %s235
          %238 = dma.hbm_to_vmem [thread:$0]  %s2, 128, %s236, [#allocation6]
        $region20: #{tpu_custom_call.1} parent=11 // pred_fallthru
          _
        // Predicated region
        $region21: #{tpu_custom_call.1} parent=11 // pred_check
          %p239 = pneg %p111
        $region22: #{tpu_custom_call.1} parent=11 // pred_check_branch
          %241 = sbr.rel (%p239) target = $region24
        $region23: #{tpu_custom_call.1} parent=11 // pred_region
          %s243 = ssub.s32 65536, 65536
          %244 = vsyncadd [#allocation9], %s243
          %s245 = sshll.u32 [#allocation8], 4
          %s246 = int_to_ptr.vmem [resolvable:$true] %s245
          %251 = dma.hbm_to_vmem [thread:$0]  %s3, 65536, %s246, [#allocation9], 512, 512, 32
        $region24: #{tpu_custom_call.1} parent=11 // pred_fallthru
          _
        // Predicated region
        $region25: #{tpu_custom_call.1} parent=11 // pred_check
          %p252 = pneg %p132
        $region26: #{tpu_custom_call.1} parent=11 // pred_check_branch
          %254 = sbr.rel (%p252) target = $region28
        $region27: #{tpu_custom_call.1} parent=11 // pred_region
          %s256 = ssub.s32 128, 128
          %257 = vsyncadd [#allocation9], %s256
          %s259 = sshll.u32 [#allocation10], 4
          %s260 = int_to_ptr.vmem [resolvable:$true] %s259
          %262 = dma.hbm_to_vmem [thread:$0]  %s4, 128, %s260, [#allocation9]
        $region28: #{tpu_custom_call.1} parent=11 // pred_fallthru
          _
        // Predicated region
        $region29: #{tpu_custom_call.1} parent=11 // pred_check
          %p263 = pneg %p153
        $region30: #{tpu_custom_call.1} parent=11 // pred_check_branch
          %265 = sbr.rel (%p263) target = $region32
        $region31: #{tpu_custom_call.1} parent=11 // pred_region
          %s267 = ssub.s32 8192, 8192
          %268 = vsyncadd [#allocation12], %s267
          %s269 = sshll.u32 [#allocation11], 4
          %s270 = int_to_ptr.vmem [resolvable:$true] %s269
          %275 = dma.hbm_to_vmem [thread:$0]  %s5, 8192, %s270, [#allocation12], 64, 64, 4
        $region32: #{tpu_custom_call.1} parent=11 // pred_fallthru
          _
        // Predicated region
        $region33: #{tpu_custom_call.1} parent=11 // pred_check
          %p276 = pneg %p174
        $region34: #{tpu_custom_call.1} parent=11 // pred_check_branch
          %278 = sbr.rel (%p276) target = $region36
        $region35: #{tpu_custom_call.1} parent=11 // pred_region
          %s280 = ssub.s32 16, 16
          %281 = vsyncadd [#allocation12], %s280
          %s283 = sshll.u32 [#allocation13], 4
          %s284 = int_to_ptr.vmem [resolvable:$true] %s283
          %286 = dma.hbm_to_vmem [thread:$0]  %s6, 16, %s284, [#allocation12]
        $region36: #{tpu_custom_call.1} parent=11 // pred_fallthru
          _
      $region12: #{tpu_custom_call.1} parent=5 // pred_fallthru
        _
      %p287 = scmp.lt.s32.totalorder %s22, 2
      // Predicated region
      $region37: #{tpu_custom_call.1} parent=5 // pred_check
        %p288 = pneg %p287
      $region38: #{tpu_custom_call.1} parent=5 // pred_check_branch
        %290 = sbr.rel (%p288) target = $region40
      $region39: #{tpu_custom_call.1} parent=5 // pred_region
        // Predicated region
        $region41: #{tpu_custom_call.1} parent=39 // pred_check
          %p291 = pneg %p42
        $region42: #{tpu_custom_call.1} parent=39 // pred_check_branch
          %293 = sbr.rel (%p291) target = $region44
        $region43: #{tpu_custom_call.1} parent=39 // pred_region
          %s294 = sand.u32 %s32, 1
          %s295 = scalar_lea.sflag [#allocation3], %s294
          %s296 = sand.u32 %s32, 1
          %s297 = smul.addr %s296, 1024
          %s298 = scalar_lea.vmem [#allocation2], %s297
          %s299 = smul.u32 16, %s22
          %s301 = ssub.s32 16384, 16384
          %302 = vsyncadd %s295, %s301
          %s303 = smul.addr %s299, 8
          %s304 = smul.addr %s303, 128
          %s305 = scalar_lea.hbm %s0, %s304
          %s306 = sshll.u32 %s298, 4
          %s307 = int_to_ptr.vmem [resolvable:$true] %s306
          %312 = dma.hbm_to_vmem [thread:$0]  %s305, 16384, %s307, %s295, 1024, 1024, 64
        $region44: #{tpu_custom_call.1} parent=39 // pred_fallthru
          _
      $region40: #{tpu_custom_call.1} parent=5 // pred_fallthru
        _
      %p313 = scmp.le.s32.totalorder 1, %s22
      %p314 = scmp.lt.s32.totalorder %s22, 3
      %p315 = pnand %p313, %p314
      %p316 = pneg %p315
      // Predicated region
      $region45: #{tpu_custom_call.1} parent=5 // pred_check
        _
      $region46: #{tpu_custom_call.1} parent=5 // pred_check_branch
        %318 = sbr.rel (%p315) target = $region48
      $region47: #{tpu_custom_call.1} parent=5 // pred_region
        %s319 = ssub.s32 %s22, 1
        %s320 = sand.u32 %s35, 1
        %s321 = scalar_lea.sflag [#allocation3], %s320
        %s322 = sand.u32 %s35, 1
        %s323 = smul.addr %s322, 1024
        %s324 = scalar_lea.vmem [#allocation2], %s323
        // Predicated region
        $region49: #{tpu_custom_call.1} parent=47 // pred_check
          %p325 = pneg %p48
        $region50: #{tpu_custom_call.1} parent=47 // pred_check_branch
          %327 = sbr.rel (%p325) target = $region52
        $region51: #{tpu_custom_call.1} parent=47 // pred_region
          %328 = dma.done %s321, 16384
        $region52: #{tpu_custom_call.1} parent=47 // pred_fallthru
          _
        // Predicated region
        $region53: #{tpu_custom_call.1} parent=47 // pred_check
          %p329 = pneg %p69
        $region54: #{tpu_custom_call.1} parent=47 // pred_check_branch
          %331 = sbr.rel (%p329) target = $region56
        $region55: #{tpu_custom_call.1} parent=47 // pred_region
          %332 = dma.done [#allocation6], 65536
        $region56: #{tpu_custom_call.1} parent=47 // pred_fallthru
          _
        // Predicated region
        $region57: #{tpu_custom_call.1} parent=47 // pred_check
          %p333 = pneg %p90
        $region58: #{tpu_custom_call.1} parent=47 // pred_check_branch
          %335 = sbr.rel (%p333) target = $region60
        $region59: #{tpu_custom_call.1} parent=47 // pred_region
          %336 = dma.done [#allocation6], 128
        $region60: #{tpu_custom_call.1} parent=47 // pred_fallthru
          _
        // Predicated region
        $region61: #{tpu_custom_call.1} parent=47 // pred_check
          %p337 = pneg %p111
        $region62: #{tpu_custom_call.1} parent=47 // pred_check_branch
          %339 = sbr.rel (%p337) target = $region64
        $region63: #{tpu_custom_call.1} parent=47 // pred_region
          %340 = dma.done [#allocation9], 65536
        $region64: #{tpu_custom_call.1} parent=47 // pred_fallthru
          _
        // Predicated region
        $region65: #{tpu_custom_call.1} parent=47 // pred_check
          %p341 = pneg %p132
        $region66: #{tpu_custom_call.1} parent=47 // pred_check_branch
          %343 = sbr.rel (%p341) target = $region68
        $region67: #{tpu_custom_call.1} parent=47 // pred_region
          %344 = dma.done [#allocation9], 128
        $region68: #{tpu_custom_call.1} parent=47 // pred_fallthru
          _
        // Predicated region
        $region69: #{tpu_custom_call.1} parent=47 // pred_check
          %p345 = pneg %p153
        $region70: #{tpu_custom_call.1} parent=47 // pred_check_branch
          %347 = sbr.rel (%p345) target = $region72
        $region71: #{tpu_custom_call.1} parent=47 // pred_region
          %348 = dma.done [#allocation12], 8192
        $region72: #{tpu_custom_call.1} parent=47 // pred_fallthru
          _
        // Predicated region
        $region73: #{tpu_custom_call.1} parent=47 // pred_check
          %p349 = pneg %p174
        $region74: #{tpu_custom_call.1} parent=47 // pred_check_branch
          %351 = sbr.rel (%p349) target = $region76
        $region75: #{tpu_custom_call.1} parent=47 // pred_region
          %352 = dma.done [#allocation12], 16
        $region76: #{tpu_custom_call.1} parent=47 // pred_fallthru
          _
        %s353 = sand.u32 %s35, 1
        %s354 = scalar_lea.sflag [#allocation3], %s353
        %s355 = sand.u32 %s35, 1
        %s356 = smul.addr %s355, 1024
        %s357 = scalar_lea.vmem [#allocation2], %s356
        %p358 = pneg %p48
        %p359 = pneg %p45
        %p360 = pneg %p69
        %p361 = pneg %p66
        %p362 = pneg %p90
        %p363 = pneg %p87
        %p364 = pneg %p111
        %p365 = pneg %p108
        %p366 = pneg %p132
        %p367 = pneg %p129
        %p368 = pneg %p153
        %p369 = pneg %p150
        %p370 = pneg %p174
        %p371 = pneg %p171
        %p372 = pneg %p200
        %p373 = pneg %p197
        %s374 = sand.u32 %s187, 1
        %s375 = scalar_lea.sflag [#allocation4], %s374
        %s376 = sand.u32 %s187, 1
        %s377 = smul.addr %s376, 128
        %s378 = scalar_lea.vmem [#allocation14], %s377
        %s379 = smul.u32 16, %s27
        %s380 = smul.u32 16, %s27
        %v382 = vld [vmem:[%s324] sm:$0xff]
        %v383 = vld [vmem:[%s324 + $0x8] sm:$0xff]
        %v384 = vld [vmem:[%s324 + $0x10] sm:$0xff]
        %v385 = vld [vmem:[%s324 + $0x18] sm:$0xff]
        %v386 = vld [vmem:[%s324 + $0x20] sm:$0xff]
        %v387 = vld [vmem:[%s324 + $0x28] sm:$0xff]
        %v388 = vld [vmem:[%s324 + $0x30] sm:$0xff]
        %v389 = vld [vmem:[%s324 + $0x38] sm:$0xff]
        %v390 = vld [vmem:[%s324 + $0x40] sm:$0xff]
        %v391 = vld [vmem:[%s324 + $0x48] sm:$0xff]
        %v392 = vld [vmem:[%s324 + $0x50] sm:$0xff]
        %v393 = vld [vmem:[%s324 + $0x58] sm:$0xff]
        %v394 = vld [vmem:[%s324 + $0x60] sm:$0xff]
        %v395 = vld [vmem:[%s324 + $0x68] sm:$0xff]
        %v396 = vld [vmem:[%s324 + $0x70] sm:$0xff]
        %v397 = vld [vmem:[%s324 + $0x78] sm:$0xff]
        %v398 = vld [vmem:[%s324 + $0x80] sm:$0xff]
        %v399 = vld [vmem:[%s324 + $0x88] sm:$0xff]
        %v400 = vld [vmem:[%s324 + $0x90] sm:$0xff]
        %v401 = vld [vmem:[%s324 + $0x98] sm:$0xff]
        %v402 = vld [vmem:[%s324 + $0xa0] sm:$0xff]
        %v403 = vld [vmem:[%s324 + $0xa8] sm:$0xff]
        %v404 = vld [vmem:[%s324 + $0xb0] sm:$0xff]
        %v405 = vld [vmem:[%s324 + $0xb8] sm:$0xff]
        %v406 = vld [vmem:[%s324 + $0xc0] sm:$0xff]
        %v407 = vld [vmem:[%s324 + $0xc8] sm:$0xff]
        %v408 = vld [vmem:[%s324 + $0xd0] sm:$0xff]
        %v409 = vld [vmem:[%s324 + $0xd8] sm:$0xff]
        %v410 = vld [vmem:[%s324 + $0xe0] sm:$0xff]
        %v411 = vld [vmem:[%s324 + $0xe8] sm:$0xff]
        %v412 = vld [vmem:[%s324 + $0xf0] sm:$0xff]
        %v413 = vld [vmem:[%s324 + $0xf8] sm:$0xff]
        %v414 = vld [vmem:[%s324 + $0x100] sm:$0xff]
        %v415 = vld [vmem:[%s324 + $0x108] sm:$0xff]
        %v416 = vld [vmem:[%s324 + $0x110] sm:$0xff]
        %v417 = vld [vmem:[%s324 + $0x118] sm:$0xff]
        %v418 = vld [vmem:[%s324 + $0x120] sm:$0xff]
        %v419 = vld [vmem:[%s324 + $0x128] sm:$0xff]
        %v420 = vld [vmem:[%s324 + $0x130] sm:$0xff]
        %v421 = vld [vmem:[%s324 + $0x138] sm:$0xff]
        %v422 = vld [vmem:[%s324 + $0x140] sm:$0xff]
        %v423 = vld [vmem:[%s324 + $0x148] sm:$0xff]
        %v424 = vld [vmem:[%s324 + $0x150] sm:$0xff]
        %v425 = vld [vmem:[%s324 + $0x158] sm:$0xff]
        %v426 = vld [vmem:[%s324 + $0x160] sm:$0xff]
        %v427 = vld [vmem:[%s324 + $0x168] sm:$0xff]
        %v428 = vld [vmem:[%s324 + $0x170] sm:$0xff]
        %v429 = vld [vmem:[%s324 + $0x178] sm:$0xff]
        %v430 = vld [vmem:[%s324 + $0x180] sm:$0xff]
        %v431 = vld [vmem:[%s324 + $0x188] sm:$0xff]
        %v432 = vld [vmem:[%s324 + $0x190] sm:$0xff]
        %v433 = vld [vmem:[%s324 + $0x198] sm:$0xff]
        %v434 = vld [vmem:[%s324 + $0x1a0] sm:$0xff]
        %v435 = vld [vmem:[%s324 + $0x1a8] sm:$0xff]
        %v436 = vld [vmem:[%s324 + $0x1b0] sm:$0xff]
        %v437 = vld [vmem:[%s324 + $0x1b8] sm:$0xff]
        %v438 = vld [vmem:[%s324 + $0x1c0] sm:$0xff]
        %v439 = vld [vmem:[%s324 + $0x1c8] sm:$0xff]
        %v440 = vld [vmem:[%s324 + $0x1d0] sm:$0xff]
        %v441 = vld [vmem:[%s324 + $0x1d8] sm:$0xff]
        %v442 = vld [vmem:[%s324 + $0x1e0] sm:$0xff]
        %v443 = vld [vmem:[%s324 + $0x1e8] sm:$0xff]
        %v444 = vld [vmem:[%s324 + $0x1f0] sm:$0xff]
        %v445 = vld [vmem:[%s324 + $0x1f8] sm:$0xff]
        %v446 = vld [vmem:[%s324 + $0x200] sm:$0xff]
        %v447 = vld [vmem:[%s324 + $0x208] sm:$0xff]
        %v448 = vld [vmem:[%s324 + $0x210] sm:$0xff]
        %v449 = vld [vmem:[%s324 + $0x218] sm:$0xff]
        %v450 = vld [vmem:[%s324 + $0x220] sm:$0xff]
        %v451 = vld [vmem:[%s324 + $0x228] sm:$0xff]
        %v452 = vld [vmem:[%s324 + $0x230] sm:$0xff]
        %v453 = vld [vmem:[%s324 + $0x238] sm:$0xff]
        %v454 = vld [vmem:[%s324 + $0x240] sm:$0xff]
        %v455 = vld [vmem:[%s324 + $0x248] sm:$0xff]
        %v456 = vld [vmem:[%s324 + $0x250] sm:$0xff]
        %v457 = vld [vmem:[%s324 + $0x258] sm:$0xff]
        %v458 = vld [vmem:[%s324 + $0x260] sm:$0xff]
        %v459 = vld [vmem:[%s324 + $0x268] sm:$0xff]
        %v460 = vld [vmem:[%s324 + $0x270] sm:$0xff]
        %v461 = vld [vmem:[%s324 + $0x278] sm:$0xff]
        %v462 = vld [vmem:[%s324 + $0x280] sm:$0xff]
        %v463 = vld [vmem:[%s324 + $0x288] sm:$0xff]
        %v464 = vld [vmem:[%s324 + $0x290] sm:$0xff]
        %v465 = vld [vmem:[%s324 + $0x298] sm:$0xff]
        %v466 = vld [vmem:[%s324 + $0x2a0] sm:$0xff]
        %v467 = vld [vmem:[%s324 + $0x2a8] sm:$0xff]
        %v468 = vld [vmem:[%s324 + $0x2b0] sm:$0xff]
        %v469 = vld [vmem:[%s324 + $0x2b8] sm:$0xff]
        %v470 = vld [vmem:[%s324 + $0x2c0] sm:$0xff]
        %v471 = vld [vmem:[%s324 + $0x2c8] sm:$0xff]
        %v472 = vld [vmem:[%s324 + $0x2d0] sm:$0xff]
        %v473 = vld [vmem:[%s324 + $0x2d8] sm:$0xff]
        %v474 = vld [vmem:[%s324 + $0x2e0] sm:$0xff]
        %v475 = vld [vmem:[%s324 + $0x2e8] sm:$0xff]
        %v476 = vld [vmem:[%s324 + $0x2f0] sm:$0xff]
        %v477 = vld [vmem:[%s324 + $0x2f8] sm:$0xff]
        %v478 = vld [vmem:[%s324 + $0x300] sm:$0xff]
        %v479 = vld [vmem:[%s324 + $0x308] sm:$0xff]
        %v480 = vld [vmem:[%s324 + $0x310] sm:$0xff]
        %v481 = vld [vmem:[%s324 + $0x318] sm:$0xff]
        %v482 = vld [vmem:[%s324 + $0x320] sm:$0xff]
        %v483 = vld [vmem:[%s324 + $0x328] sm:$0xff]
        %v484 = vld [vmem:[%s324 + $0x330] sm:$0xff]
        %v485 = vld [vmem:[%s324 + $0x338] sm:$0xff]
        %v486 = vld [vmem:[%s324 + $0x340] sm:$0xff]
        %v487 = vld [vmem:[%s324 + $0x348] sm:$0xff]
        %v488 = vld [vmem:[%s324 + $0x350] sm:$0xff]
        %v489 = vld [vmem:[%s324 + $0x358] sm:$0xff]
        %v490 = vld [vmem:[%s324 + $0x360] sm:$0xff]
        %v491 = vld [vmem:[%s324 + $0x368] sm:$0xff]
        %v492 = vld [vmem:[%s324 + $0x370] sm:$0xff]
        %v493 = vld [vmem:[%s324 + $0x378] sm:$0xff]
        %v494 = vld [vmem:[%s324 + $0x380] sm:$0xff]
        %v495 = vld [vmem:[%s324 + $0x388] sm:$0xff]
        %v496 = vld [vmem:[%s324 + $0x390] sm:$0xff]
        %v497 = vld [vmem:[%s324 + $0x398] sm:$0xff]
        %v498 = vld [vmem:[%s324 + $0x3a0] sm:$0xff]
        %v499 = vld [vmem:[%s324 + $0x3a8] sm:$0xff]
        %v500 = vld [vmem:[%s324 + $0x3b0] sm:$0xff]
        %v501 = vld [vmem:[%s324 + $0x3b8] sm:$0xff]
        %v502 = vld [vmem:[%s324 + $0x3c0] sm:$0xff]
        %v503 = vld [vmem:[%s324 + $0x3c8] sm:$0xff]
        %v504 = vld [vmem:[%s324 + $0x3d0] sm:$0xff]
        %v505 = vld [vmem:[%s324 + $0x3d8] sm:$0xff]
        %v506 = vld [vmem:[%s324 + $0x3e0] sm:$0xff]
        %v507 = vld [vmem:[%s324 + $0x3e8] sm:$0xff]
        %v508 = vld [vmem:[%s324 + $0x3f0] sm:$0xff]
        %v509 = vld [vmem:[%s324 + $0x3f8] sm:$0xff]
        %v510 = vpack.c.bf16 %v390, %v382
        %v511 = vpack.c.bf16 %v391, %v383
        %v512 = vpack.c.bf16 %v392, %v384
        %v513 = vpack.c.bf16 %v393, %v385
        %v514 = vpack.c.bf16 %v394, %v386
        %v515 = vpack.c.bf16 %v395, %v387
        %v516 = vpack.c.bf16 %v396, %v388
        %v517 = vpack.c.bf16 %v397, %v389
        %v518 = vpack.c.bf16 %v406, %v398
        %v519 = vpack.c.bf16 %v407, %v399
        %v520 = vpack.c.bf16 %v408, %v400
        %v521 = vpack.c.bf16 %v409, %v401
        %v522 = vpack.c.bf16 %v410, %v402
        %v523 = vpack.c.bf16 %v411, %v403
        %v524 = vpack.c.bf16 %v412, %v404
        %v525 = vpack.c.bf16 %v413, %v405
        %v526 = vpack.c.bf16 %v422, %v414
        %v527 = vpack.c.bf16 %v423, %v415
        %v528 = vpack.c.bf16 %v424, %v416
        %v529 = vpack.c.bf16 %v425, %v417
        %v530 = vpack.c.bf16 %v426, %v418
        %v531 = vpack.c.bf16 %v427, %v419
        %v532 = vpack.c.bf16 %v428, %v420
        %v533 = vpack.c.bf16 %v429, %v421
        %v534 = vpack.c.bf16 %v438, %v430
        %v535 = vpack.c.bf16 %v439, %v431
        %v536 = vpack.c.bf16 %v440, %v432
        %v537 = vpack.c.bf16 %v441, %v433
        %v538 = vpack.c.bf16 %v442, %v434
        %v539 = vpack.c.bf16 %v443, %v435
        %v540 = vpack.c.bf16 %v444, %v436
        %v541 = vpack.c.bf16 %v445, %v437
        %v542 = vpack.c.bf16 %v454, %v446
        %v543 = vpack.c.bf16 %v455, %v447
        %v544 = vpack.c.bf16 %v456, %v448
        %v545 = vpack.c.bf16 %v457, %v449
        %v546 = vpack.c.bf16 %v458, %v450
        %v547 = vpack.c.bf16 %v459, %v451
        %v548 = vpack.c.bf16 %v460, %v452
        %v549 = vpack.c.bf16 %v461, %v453
        %v550 = vpack.c.bf16 %v470, %v462
        %v551 = vpack.c.bf16 %v471, %v463
        %v552 = vpack.c.bf16 %v472, %v464
        %v553 = vpack.c.bf16 %v473, %v465
        %v554 = vpack.c.bf16 %v474, %v466
        %v555 = vpack.c.bf16 %v475, %v467
        %v556 = vpack.c.bf16 %v476, %v468
        %v557 = vpack.c.bf16 %v477, %v469
        %v558 = vpack.c.bf16 %v486, %v478
        %v559 = vpack.c.bf16 %v487, %v479
        %v560 = vpack.c.bf16 %v488, %v480
        %v561 = vpack.c.bf16 %v489, %v481
        %v562 = vpack.c.bf16 %v490, %v482
        %v563 = vpack.c.bf16 %v491, %v483
        %v564 = vpack.c.bf16 %v492, %v484
        %v565 = vpack.c.bf16 %v493, %v485
        %v566 = vpack.c.bf16 %v502, %v494
        %v567 = vpack.c.bf16 %v503, %v495
        %v568 = vpack.c.bf16 %v504, %v496
        %v569 = vpack.c.bf16 %v505, %v497
        %v570 = vpack.c.bf16 %v506, %v498
        %v571 = vpack.c.bf16 %v507, %v499
        %v572 = vpack.c.bf16 %v508, %v500
        %v573 = vpack.c.bf16 %v509, %v501
        %v574 = vld [vmem:[#allocation5] sm:$0xff]
        %v575 = vld [vmem:[#allocation5 + $0x8] sm:$0xff]
        %v576 = vld [vmem:[#allocation5 + $0x10] sm:$0xff]
        %v577 = vld [vmem:[#allocation5 + $0x18] sm:$0xff]
        %v578 = vld [vmem:[#allocation5 + $0x20] sm:$0xff]
        %v579 = vld [vmem:[#allocation5 + $0x28] sm:$0xff]
        %v580 = vld [vmem:[#allocation5 + $0x30] sm:$0xff]
        %v581 = vld [vmem:[#allocation5 + $0x38] sm:$0xff]
        %v582 = vld [vmem:[#allocation5 + $0x40] sm:$0xff]
        %v583 = vld [vmem:[#allocation5 + $0x48] sm:$0xff]
        %v584 = vld [vmem:[#allocation5 + $0x50] sm:$0xff]
        %v585 = vld [vmem:[#allocation5 + $0x58] sm:$0xff]
        %v586 = vld [vmem:[#allocation5 + $0x60] sm:$0xff]
        %v587 = vld [vmem:[#allocation5 + $0x68] sm:$0xff]
        %v588 = vld [vmem:[#allocation5 + $0x70] sm:$0xff]
        %v589 = vld [vmem:[#allocation5 + $0x78] sm:$0xff]
        %v590 = vld [vmem:[#allocation5 + $0x80] sm:$0xff]
        %v591 = vld [vmem:[#allocation5 + $0x88] sm:$0xff]
        %v592 = vld [vmem:[#allocation5 + $0x90] sm:$0xff]
        %v593 = vld [vmem:[#allocation5 + $0x98] sm:$0xff]
        %v594 = vld [vmem:[#allocation5 + $0xa0] sm:$0xff]
        %v595 = vld [vmem:[#allocation5 + $0xa8] sm:$0xff]
        %v596 = vld [vmem:[#allocation5 + $0xb0] sm:$0xff]
        %v597 = vld [vmem:[#allocation5 + $0xb8] sm:$0xff]
        %v598 = vld [vmem:[#allocation5 + $0xc0] sm:$0xff]
        %v599 = vld [vmem:[#allocation5 + $0xc8] sm:$0xff]
        %v600 = vld [vmem:[#allocation5 + $0xd0] sm:$0xff]
        %v601 = vld [vmem:[#allocation5 + $0xd8] sm:$0xff]
        %v602 = vld [vmem:[#allocation5 + $0xe0] sm:$0xff]
        %v603 = vld [vmem:[#allocation5 + $0xe8] sm:$0xff]
        %v604 = vld [vmem:[#allocation5 + $0xf0] sm:$0xff]
        %v605 = vld [vmem:[#allocation5 + $0xf8] sm:$0xff]
        %v606 = vld [vmem:[#allocation5 + $0x100] sm:$0xff]
        %v607 = vld [vmem:[#allocation5 + $0x108] sm:$0xff]
        %v608 = vld [vmem:[#allocation5 + $0x110] sm:$0xff]
        %v609 = vld [vmem:[#allocation5 + $0x118] sm:$0xff]
        %v610 = vld [vmem:[#allocation5 + $0x120] sm:$0xff]
        %v611 = vld [vmem:[#allocation5 + $0x128] sm:$0xff]
        %v612 = vld [vmem:[#allocation5 + $0x130] sm:$0xff]
        %v613 = vld [vmem:[#allocation5 + $0x138] sm:$0xff]
        %v614 = vld [vmem:[#allocation5 + $0x140] sm:$0xff]
        %v615 = vld [vmem:[#allocation5 + $0x148] sm:$0xff]
        %v616 = vld [vmem:[#allocation5 + $0x150] sm:$0xff]
        %v617 = vld [vmem:[#allocation5 + $0x158] sm:$0xff]
        %v618 = vld [vmem:[#allocation5 + $0x160] sm:$0xff]
        %v619 = vld [vmem:[#allocation5 + $0x168] sm:$0xff]
        %v620 = vld [vmem:[#allocation5 + $0x170] sm:$0xff]
        %v621 = vld [vmem:[#allocation5 + $0x178] sm:$0xff]
        %v622 = vld [vmem:[#allocation5 + $0x180] sm:$0xff]
        %v623 = vld [vmem:[#allocation5 + $0x188] sm:$0xff]
        %v624 = vld [vmem:[#allocation5 + $0x190] sm:$0xff]
        %v625 = vld [vmem:[#allocation5 + $0x198] sm:$0xff]
        %v626 = vld [vmem:[#allocation5 + $0x1a0] sm:$0xff]
        %v627 = vld [vmem:[#allocation5 + $0x1a8] sm:$0xff]
        %v628 = vld [vmem:[#allocation5 + $0x1b0] sm:$0xff]
        %v629 = vld [vmem:[#allocation5 + $0x1b8] sm:$0xff]
        %v630 = vld [vmem:[#allocation5 + $0x1c0] sm:$0xff]
        %v631 = vld [vmem:[#allocation5 + $0x1c8] sm:$0xff]
        %v632 = vld [vmem:[#allocation5 + $0x1d0] sm:$0xff]
        %v633 = vld [vmem:[#allocation5 + $0x1d8] sm:$0xff]
        %v634 = vld [vmem:[#allocation5 + $0x1e0] sm:$0xff]
        %v635 = vld [vmem:[#allocation5 + $0x1e8] sm:$0xff]
        %v636 = vld [vmem:[#allocation5 + $0x1f0] sm:$0xff]
        %v637 = vld [vmem:[#allocation5 + $0x1f8] sm:$0xff]
        %v638 = vld [vmem:[#allocation5 + $0x200] sm:$0xff]
        %v639 = vld [vmem:[#allocation5 + $0x208] sm:$0xff]
        %v640 = vld [vmem:[#allocation5 + $0x210] sm:$0xff]
        %v641 = vld [vmem:[#allocation5 + $0x218] sm:$0xff]
        %v642 = vld [vmem:[#allocation5 + $0x220] sm:$0xff]
        %v643 = vld [vmem:[#allocation5 + $0x228] sm:$0xff]
        %v644 = vld [vmem:[#allocation5 + $0x230] sm:$0xff]
        %v645 = vld [vmem:[#allocation5 + $0x238] sm:$0xff]
        %v646 = vld [vmem:[#allocation5 + $0x240] sm:$0xff]
        %v647 = vld [vmem:[#allocation5 + $0x248] sm:$0xff]
        %v648 = vld [vmem:[#allocation5 + $0x250] sm:$0xff]
        %v649 = vld [vmem:[#allocation5 + $0x258] sm:$0xff]
        %v650 = vld [vmem:[#allocation5 + $0x260] sm:$0xff]
        %v651 = vld [vmem:[#allocation5 + $0x268] sm:$0xff]
        %v652 = vld [vmem:[#allocation5 + $0x270] sm:$0xff]
        %v653 = vld [vmem:[#allocation5 + $0x278] sm:$0xff]
        %v654 = vld [vmem:[#allocation5 + $0x280] sm:$0xff]
        %v655 = vld [vmem:[#allocation5 + $0x288] sm:$0xff]
        %v656 = vld [vmem:[#allocation5 + $0x290] sm:$0xff]
        %v657 = vld [vmem:[#allocation5 + $0x298] sm:$0xff]
        %v658 = vld [vmem:[#allocation5 + $0x2a0] sm:$0xff]
        %v659 = vld [vmem:[#allocation5 + $0x2a8] sm:$0xff]
        %v660 = vld [vmem:[#allocation5 + $0x2b0] sm:$0xff]
        %v661 = vld [vmem:[#allocation5 + $0x2b8] sm:$0xff]
        %v662 = vld [vmem:[#allocation5 + $0x2c0] sm:$0xff]
        %v663 = vld [vmem:[#allocation5 + $0x2c8] sm:$0xff]
        %v664 = vld [vmem:[#allocation5 + $0x2d0] sm:$0xff]
        %v665 = vld [vmem:[#allocation5 + $0x2d8] sm:$0xff]
        %v666 = vld [vmem:[#allocation5 + $0x2e0] sm:$0xff]
        %v667 = vld [vmem:[#allocation5 + $0x2e8] sm:$0xff]
        %v668 = vld [vmem:[#allocation5 + $0x2f0] sm:$0xff]
        %v669 = vld [vmem:[#allocation5 + $0x2f8] sm:$0xff]
        %v670 = vld [vmem:[#allocation5 + $0x300] sm:$0xff]
        %v671 = vld [vmem:[#allocation5 + $0x308] sm:$0xff]
        %v672 = vld [vmem:[#allocation5 + $0x310] sm:$0xff]
        %v673 = vld [vmem:[#allocation5 + $0x318] sm:$0xff]
        %v674 = vld [vmem:[#allocation5 + $0x320] sm:$0xff]
        %v675 = vld [vmem:[#allocation5 + $0x328] sm:$0xff]
        %v676 = vld [vmem:[#allocation5 + $0x330] sm:$0xff]
        %v677 = vld [vmem:[#allocation5 + $0x338] sm:$0xff]
        %v678 = vld [vmem:[#allocation5 + $0x340] sm:$0xff]
        %v679 = vld [vmem:[#allocation5 + $0x348] sm:$0xff]
        %v680 = vld [vmem:[#allocation5 + $0x350] sm:$0xff]
        %v681 = vld [vmem:[#allocation5 + $0x358] sm:$0xff]
        %v682 = vld [vmem:[#allocation5 + $0x360] sm:$0xff]
        %v683 = vld [vmem:[#allocation5 + $0x368] sm:$0xff]
        %v684 = vld [vmem:[#allocation5 + $0x370] sm:$0xff]
        %v685 = vld [vmem:[#allocation5 + $0x378] sm:$0xff]
        %v686 = vld [vmem:[#allocation5 + $0x380] sm:$0xff]
        %v687 = vld [vmem:[#allocation5 + $0x388] sm:$0xff]
        %v688 = vld [vmem:[#allocation5 + $0x390] sm:$0xff]
        %v689 = vld [vmem:[#allocation5 + $0x398] sm:$0xff]
        %v690 = vld [vmem:[#allocation5 + $0x3a0] sm:$0xff]
        %v691 = vld [vmem:[#allocation5 + $0x3a8] sm:$0xff]
        %v692 = vld [vmem:[#allocation5 + $0x3b0] sm:$0xff]
        %v693 = vld [vmem:[#allocation5 + $0x3b8] sm:$0xff]
        %v694 = vld [vmem:[#allocation5 + $0x3c0] sm:$0xff]
        %v695 = vld [vmem:[#allocation5 + $0x3c8] sm:$0xff]
        %v696 = vld [vmem:[#allocation5 + $0x3d0] sm:$0xff]
        %v697 = vld [vmem:[#allocation5 + $0x3d8] sm:$0xff]
        %v698 = vld [vmem:[#allocation5 + $0x3e0] sm:$0xff]
        %v699 = vld [vmem:[#allocation5 + $0x3e8] sm:$0xff]
        %v700 = vld [vmem:[#allocation5 + $0x3f0] sm:$0xff]
        %v701 = vld [vmem:[#allocation5 + $0x3f8] sm:$0xff]
        %v702 = vld [vmem:[#allocation5 + $0x400] sm:$0xff]
        %v703 = vld [vmem:[#allocation5 + $0x408] sm:$0xff]
        %v704 = vld [vmem:[#allocation5 + $0x410] sm:$0xff]
        %v705 = vld [vmem:[#allocation5 + $0x418] sm:$0xff]
        %v706 = vld [vmem:[#allocation5 + $0x420] sm:$0xff]
        %v707 = vld [vmem:[#allocation5 + $0x428] sm:$0xff]
        %v708 = vld [vmem:[#allocation5 + $0x430] sm:$0xff]
        %v709 = vld [vmem:[#allocation5 + $0x438] sm:$0xff]
        %v710 = vld [vmem:[#allocation5 + $0x440] sm:$0xff]
        %v711 = vld [vmem:[#allocation5 + $0x448] sm:$0xff]
        %v712 = vld [vmem:[#allocation5 + $0x450] sm:$0xff]
        %v713 = vld [vmem:[#allocation5 + $0x458] sm:$0xff]
        %v714 = vld [vmem:[#allocation5 + $0x460] sm:$0xff]
        %v715 = vld [vmem:[#allocation5 + $0x468] sm:$0xff]
        %v716 = vld [vmem:[#allocation5 + $0x470] sm:$0xff]
        %v717 = vld [vmem:[#allocation5 + $0x478] sm:$0xff]
        %v718 = vld [vmem:[#allocation5 + $0x480] sm:$0xff]
        %v719 = vld [vmem:[#allocation5 + $0x488] sm:$0xff]
        %v720 = vld [vmem:[#allocation5 + $0x490] sm:$0xff]
        %v721 = vld [vmem:[#allocation5 + $0x498] sm:$0xff]
        %v722 = vld [vmem:[#allocation5 + $0x4a0] sm:$0xff]
        %v723 = vld [vmem:[#allocation5 + $0x4a8] sm:$0xff]
        %v724 = vld [vmem:[#allocation5 + $0x4b0] sm:$0xff]
        %v725 = vld [vmem:[#allocation5 + $0x4b8] sm:$0xff]
        %v726 = vld [vmem:[#allocation5 + $0x4c0] sm:$0xff]
        %v727 = vld [vmem:[#allocation5 + $0x4c8] sm:$0xff]
        %v728 = vld [vmem:[#allocation5 + $0x4d0] sm:$0xff]
        %v729 = vld [vmem:[#allocation5 + $0x4d8] sm:$0xff]
        %v730 = vld [vmem:[#allocation5 + $0x4e0] sm:$0xff]
        %v731 = vld [vmem:[#allocation5 + $0x4e8] sm:$0xff]
        %v732 = vld [vmem:[#allocation5 + $0x4f0] sm:$0xff]
        %v733 = vld [vmem:[#allocation5 + $0x4f8] sm:$0xff]
        %v734 = vld [vmem:[#allocation5 + $0x500] sm:$0xff]
        %v735 = vld [vmem:[#allocation5 + $0x508] sm:$0xff]
        %v736 = vld [vmem:[#allocation5 + $0x510] sm:$0xff]
        %v737 = vld [vmem:[#allocation5 + $0x518] sm:$0xff]
        %v738 = vld [vmem:[#allocation5 + $0x520] sm:$0xff]
        %v739 = vld [vmem:[#allocation5 + $0x528] sm:$0xff]
        %v740 = vld [vmem:[#allocation5 + $0x530] sm:$0xff]
        %v741 = vld [vmem:[#allocation5 + $0x538] sm:$0xff]
        %v742 = vld [vmem:[#allocation5 + $0x540] sm:$0xff]
        %v743 = vld [vmem:[#allocation5 + $0x548] sm:$0xff]
        %v744 = vld [vmem:[#allocation5 + $0x550] sm:$0xff]
        %v745 = vld [vmem:[#allocation5 + $0x558] sm:$0xff]
        %v746 = vld [vmem:[#allocation5 + $0x560] sm:$0xff]
        %v747 = vld [vmem:[#allocation5 + $0x568] sm:$0xff]
        %v748 = vld [vmem:[#allocation5 + $0x570] sm:$0xff]
        %v749 = vld [vmem:[#allocation5 + $0x578] sm:$0xff]
        %v750 = vld [vmem:[#allocation5 + $0x580] sm:$0xff]
        %v751 = vld [vmem:[#allocation5 + $0x588] sm:$0xff]
        %v752 = vld [vmem:[#allocation5 + $0x590] sm:$0xff]
        %v753 = vld [vmem:[#allocation5 + $0x598] sm:$0xff]
        %v754 = vld [vmem:[#allocation5 + $0x5a0] sm:$0xff]
        %v755 = vld [vmem:[#allocation5 + $0x5a8] sm:$0xff]
        %v756 = vld [vmem:[#allocation5 + $0x5b0] sm:$0xff]
        %v757 = vld [vmem:[#allocation5 + $0x5b8] sm:$0xff]
        %v758 = vld [vmem:[#allocation5 + $0x5c0] sm:$0xff]
        %v759 = vld [vmem:[#allocation5 + $0x5c8] sm:$0xff]
        %v760 = vld [vmem:[#allocation5 + $0x5d0] sm:$0xff]
        %v761 = vld [vmem:[#allocation5 + $0x5d8] sm:$0xff]
        %v762 = vld [vmem:[#allocation5 + $0x5e0] sm:$0xff]
        %v763 = vld [vmem:[#allocation5 + $0x5e8] sm:$0xff]
        %v764 = vld [vmem:[#allocation5 + $0x5f0] sm:$0xff]
        %v765 = vld [vmem:[#allocation5 + $0x5f8] sm:$0xff]
        %v766 = vld [vmem:[#allocation5 + $0x600] sm:$0xff]
        %v767 = vld [vmem:[#allocation5 + $0x608] sm:$0xff]
        %v768 = vld [vmem:[#allocation5 + $0x610] sm:$0xff]
        %v769 = vld [vmem:[#allocation5 + $0x618] sm:$0xff]
        %v770 = vld [vmem:[#allocation5 + $0x620] sm:$0xff]
        %v771 = vld [vmem:[#allocation5 + $0x628] sm:$0xff]
        %v772 = vld [vmem:[#allocation5 + $0x630] sm:$0xff]
        %v773 = vld [vmem:[#allocation5 + $0x638] sm:$0xff]
        %v774 = vld [vmem:[#allocation5 + $0x640] sm:$0xff]
        %v775 = vld [vmem:[#allocation5 + $0x648] sm:$0xff]
        %v776 = vld [vmem:[#allocation5 + $0x650] sm:$0xff]
        %v777 = vld [vmem:[#allocation5 + $0x658] sm:$0xff]
        %v778 = vld [vmem:[#allocation5 + $0x660] sm:$0xff]
        %v779 = vld [vmem:[#allocation5 + $0x668] sm:$0xff]
        %v780 = vld [vmem:[#allocation5 + $0x670] sm:$0xff]
        %v781 = vld [vmem:[#allocation5 + $0x678] sm:$0xff]
        %v782 = vld [vmem:[#allocation5 + $0x680] sm:$0xff]
        %v783 = vld [vmem:[#allocation5 + $0x688] sm:$0xff]
        %v784 = vld [vmem:[#allocation5 + $0x690] sm:$0xff]
        %v785 = vld [vmem:[#allocation5 + $0x698] sm:$0xff]
        %v786 = vld [vmem:[#allocation5 + $0x6a0] sm:$0xff]
        %v787 = vld [vmem:[#allocation5 + $0x6a8] sm:$0xff]
        %v788 = vld [vmem:[#allocation5 + $0x6b0] sm:$0xff]
        %v789 = vld [vmem:[#allocation5 + $0x6b8] sm:$0xff]
        %v790 = vld [vmem:[#allocation5 + $0x6c0] sm:$0xff]
        %v791 = vld [vmem:[#allocation5 + $0x6c8] sm:$0xff]
        %v792 = vld [vmem:[#allocation5 + $0x6d0] sm:$0xff]
        %v793 = vld [vmem:[#allocation5 + $0x6d8] sm:$0xff]
        %v794 = vld [vmem:[#allocation5 + $0x6e0] sm:$0xff]
        %v795 = vld [vmem:[#allocation5 + $0x6e8] sm:$0xff]
        %v796 = vld [vmem:[#allocation5 + $0x6f0] sm:$0xff]
        %v797 = vld [vmem:[#allocation5 + $0x6f8] sm:$0xff]
        %v798 = vld [vmem:[#allocation5 + $0x700] sm:$0xff]
        %v799 = vld [vmem:[#allocation5 + $0x708] sm:$0xff]
        %v800 = vld [vmem:[#allocation5 + $0x710] sm:$0xff]
        %v801 = vld [vmem:[#allocation5 + $0x718] sm:$0xff]
        %v802 = vld [vmem:[#allocation5 + $0x720] sm:$0xff]
        %v803 = vld [vmem:[#allocation5 + $0x728] sm:$0xff]
        %v804 = vld [vmem:[#allocation5 + $0x730] sm:$0xff]
        %v805 = vld [vmem:[#allocation5 + $0x738] sm:$0xff]
        %v806 = vld [vmem:[#allocation5 + $0x740] sm:$0xff]
        %v807 = vld [vmem:[#allocation5 + $0x748] sm:$0xff]
        %v808 = vld [vmem:[#allocation5 + $0x750] sm:$0xff]
        %v809 = vld [vmem:[#allocation5 + $0x758] sm:$0xff]
        %v810 = vld [vmem:[#allocation5 + $0x760] sm:$0xff]
        %v811 = vld [vmem:[#allocation5 + $0x768] sm:$0xff]
        %v812 = vld [vmem:[#allocation5 + $0x770] sm:$0xff]
        %v813 = vld [vmem:[#allocation5 + $0x778] sm:$0xff]
        %v814 = vld [vmem:[#allocation5 + $0x780] sm:$0xff]
        %v815 = vld [vmem:[#allocation5 + $0x788] sm:$0xff]
        %v816 = vld [vmem:[#allocation5 + $0x790] sm:$0xff]
        %v817 = vld [vmem:[#allocation5 + $0x798] sm:$0xff]
        %v818 = vld [vmem:[#allocation5 + $0x7a0] sm:$0xff]
        %v819 = vld [vmem:[#allocation5 + $0x7a8] sm:$0xff]
        %v820 = vld [vmem:[#allocation5 + $0x7b0] sm:$0xff]
        %v821 = vld [vmem:[#allocation5 + $0x7b8] sm:$0xff]
        %v822 = vld [vmem:[#allocation5 + $0x7c0] sm:$0xff]
        %v823 = vld [vmem:[#allocation5 + $0x7c8] sm:$0xff]
        %v824 = vld [vmem:[#allocation5 + $0x7d0] sm:$0xff]
        %v825 = vld [vmem:[#allocation5 + $0x7d8] sm:$0xff]
        %v826 = vld [vmem:[#allocation5 + $0x7e0] sm:$0xff]
        %v827 = vld [vmem:[#allocation5 + $0x7e8] sm:$0xff]
        %v828 = vld [vmem:[#allocation5 + $0x7f0] sm:$0xff]
        %v829 = vld [vmem:[#allocation5 + $0x7f8] sm:$0xff]
        %v830 = vld [vmem:[#allocation5 + $0x800] sm:$0xff]
        %v831 = vld [vmem:[#allocation5 + $0x808] sm:$0xff]
        %v832 = vld [vmem:[#allocation5 + $0x810] sm:$0xff]
        %v833 = vld [vmem:[#allocation5 + $0x818] sm:$0xff]
        %v834 = vld [vmem:[#allocation5 + $0x820] sm:$0xff]
        %v835 = vld [vmem:[#allocation5 + $0x828] sm:$0xff]
        %v836 = vld [vmem:[#allocation5 + $0x830] sm:$0xff]
        %v837 = vld [vmem:[#allocation5 + $0x838] sm:$0xff]
        %v838 = vld [vmem:[#allocation5 + $0x840] sm:$0xff]
        %v839 = vld [vmem:[#allocation5 + $0x848] sm:$0xff]
        %v840 = vld [vmem:[#allocation5 + $0x850] sm:$0xff]
        %v841 = vld [vmem:[#allocation5 + $0x858] sm:$0xff]
        %v842 = vld [vmem:[#allocation5 + $0x860] sm:$0xff]
        %v843 = vld [vmem:[#allocation5 + $0x868] sm:$0xff]
        %v844 = vld [vmem:[#allocation5 + $0x870] sm:$0xff]
        %v845 = vld [vmem:[#allocation5 + $0x878] sm:$0xff]
        %v846 = vld [vmem:[#allocation5 + $0x880] sm:$0xff]
        %v847 = vld [vmem:[#allocation5 + $0x888] sm:$0xff]
        %v848 = vld [vmem:[#allocation5 + $0x890] sm:$0xff]
        %v849 = vld [vmem:[#allocation5 + $0x898] sm:$0xff]
        %v850 = vld [vmem:[#allocation5 + $0x8a0] sm:$0xff]
        %v851 = vld [vmem:[#allocation5 + $0x8a8] sm:$0xff]
        %v852 = vld [vmem:[#allocation5 + $0x8b0] sm:$0xff]
        %v853 = vld [vmem:[#allocation5 + $0x8b8] sm:$0xff]
        %v854 = vld [vmem:[#allocation5 + $0x8c0] sm:$0xff]
        %v855 = vld [vmem:[#allocation5 + $0x8c8] sm:$0xff]
        %v856 = vld [vmem:[#allocation5 + $0x8d0] sm:$0xff]
        %v857 = vld [vmem:[#allocation5 + $0x8d8] sm:$0xff]
        %v858 = vld [vmem:[#allocation5 + $0x8e0] sm:$0xff]
        %v859 = vld [vmem:[#allocation5 + $0x8e8] sm:$0xff]
        %v860 = vld [vmem:[#allocation5 + $0x8f0] sm:$0xff]
        %v861 = vld [vmem:[#allocation5 + $0x8f8] sm:$0xff]
        %v862 = vld [vmem:[#allocation5 + $0x900] sm:$0xff]
        %v863 = vld [vmem:[#allocation5 + $0x908] sm:$0xff]
        %v864 = vld [vmem:[#allocation5 + $0x910] sm:$0xff]
        %v865 = vld [vmem:[#allocation5 + $0x918] sm:$0xff]
        %v866 = vld [vmem:[#allocation5 + $0x920] sm:$0xff]
        %v867 = vld [vmem:[#allocation5 + $0x928] sm:$0xff]
        %v868 = vld [vmem:[#allocation5 + $0x930] sm:$0xff]
        %v869 = vld [vmem:[#allocation5 + $0x938] sm:$0xff]
        %v870 = vld [vmem:[#allocation5 + $0x940] sm:$0xff]
        %v871 = vld [vmem:[#allocation5 + $0x948] sm:$0xff]
        %v872 = vld [vmem:[#allocation5 + $0x950] sm:$0xff]
        %v873 = vld [vmem:[#allocation5 + $0x958] sm:$0xff]
        %v874 = vld [vmem:[#allocation5 + $0x960] sm:$0xff]
        %v875 = vld [vmem:[#allocation5 + $0x968] sm:$0xff]
        %v876 = vld [vmem:[#allocation5 + $0x970] sm:$0xff]
        %v877 = vld [vmem:[#allocation5 + $0x978] sm:$0xff]
        %v878 = vld [vmem:[#allocation5 + $0x980] sm:$0xff]
        %v879 = vld [vmem:[#allocation5 + $0x988] sm:$0xff]
        %v880 = vld [vmem:[#allocation5 + $0x990] sm:$0xff]
        %v881 = vld [vmem:[#allocation5 + $0x998] sm:$0xff]
        %v882 = vld [vmem:[#allocation5 + $0x9a0] sm:$0xff]
        %v883 = vld [vmem:[#allocation5 + $0x9a8] sm:$0xff]
        %v884 = vld [vmem:[#allocation5 + $0x9b0] sm:$0xff]
        %v885 = vld [vmem:[#allocation5 + $0x9b8] sm:$0xff]
        %v886 = vld [vmem:[#allocation5 + $0x9c0] sm:$0xff]
        %v887 = vld [vmem:[#allocation5 + $0x9c8] sm:$0xff]
        %v888 = vld [vmem:[#allocation5 + $0x9d0] sm:$0xff]
        %v889 = vld [vmem:[#allocation5 + $0x9d8] sm:$0xff]
        %v890 = vld [vmem:[#allocation5 + $0x9e0] sm:$0xff]
        %v891 = vld [vmem:[#allocation5 + $0x9e8] sm:$0xff]
        %v892 = vld [vmem:[#allocation5 + $0x9f0] sm:$0xff]
        %v893 = vld [vmem:[#allocation5 + $0x9f8] sm:$0xff]
        %v894 = vld [vmem:[#allocation5 + $0xa00] sm:$0xff]
        %v895 = vld [vmem:[#allocation5 + $0xa08] sm:$0xff]
        %v896 = vld [vmem:[#allocation5 + $0xa10] sm:$0xff]
        %v897 = vld [vmem:[#allocation5 + $0xa18] sm:$0xff]
        %v898 = vld [vmem:[#allocation5 + $0xa20] sm:$0xff]
        %v899 = vld [vmem:[#allocation5 + $0xa28] sm:$0xff]
        %v900 = vld [vmem:[#allocation5 + $0xa30] sm:$0xff]
        %v901 = vld [vmem:[#allocation5 + $0xa38] sm:$0xff]
        %v902 = vld [vmem:[#allocation5 + $0xa40] sm:$0xff]
        %v903 = vld [vmem:[#allocation5 + $0xa48] sm:$0xff]
        %v904 = vld [vmem:[#allocation5 + $0xa50] sm:$0xff]
        %v905 = vld [vmem:[#allocation5 + $0xa58] sm:$0xff]
        %v906 = vld [vmem:[#allocation5 + $0xa60] sm:$0xff]
        %v907 = vld [vmem:[#allocation5 + $0xa68] sm:$0xff]
        %v908 = vld [vmem:[#allocation5 + $0xa70] sm:$0xff]
        %v909 = vld [vmem:[#allocation5 + $0xa78] sm:$0xff]
        %v910 = vld [vmem:[#allocation5 + $0xa80] sm:$0xff]
        %v911 = vld [vmem:[#allocation5 + $0xa88] sm:$0xff]
        %v912 = vld [vmem:[#allocation5 + $0xa90] sm:$0xff]
        %v913 = vld [vmem:[#allocation5 + $0xa98] sm:$0xff]
        %v914 = vld [vmem:[#allocation5 + $0xaa0] sm:$0xff]
        %v915 = vld [vmem:[#allocation5 + $0xaa8] sm:$0xff]
        %v916 = vld [vmem:[#allocation5 + $0xab0] sm:$0xff]
        %v917 = vld [vmem:[#allocation5 + $0xab8] sm:$0xff]
        %v918 = vld [vmem:[#allocation5 + $0xac0] sm:$0xff]
        %v919 = vld [vmem:[#allocation5 + $0xac8] sm:$0xff]
        %v920 = vld [vmem:[#allocation5 + $0xad0] sm:$0xff]
        %v921 = vld [vmem:[#allocation5 + $0xad8] sm:$0xff]
        %v922 = vld [vmem:[#allocation5 + $0xae0] sm:$0xff]
        %v923 = vld [vmem:[#allocation5 + $0xae8] sm:$0xff]
        %v924 = vld [vmem:[#allocation5 + $0xaf0] sm:$0xff]
        %v925 = vld [vmem:[#allocation5 + $0xaf8] sm:$0xff]
        %v926 = vld [vmem:[#allocation5 + $0xb00] sm:$0xff]
        %v927 = vld [vmem:[#allocation5 + $0xb08] sm:$0xff]
        %v928 = vld [vmem:[#allocation5 + $0xb10] sm:$0xff]
        %v929 = vld [vmem:[#allocation5 + $0xb18] sm:$0xff]
        %v930 = vld [vmem:[#allocation5 + $0xb20] sm:$0xff]
        %v931 = vld [vmem:[#allocation5 + $0xb28] sm:$0xff]
        %v932 = vld [vmem:[#allocation5 + $0xb30] sm:$0xff]
        %v933 = vld [vmem:[#allocation5 + $0xb38] sm:$0xff]
        %v934 = vld [vmem:[#allocation5 + $0xb40] sm:$0xff]
        %v935 = vld [vmem:[#allocation5 + $0xb48] sm:$0xff]
        %v936 = vld [vmem:[#allocation5 + $0xb50] sm:$0xff]
        %v937 = vld [vmem:[#allocation5 + $0xb58] sm:$0xff]
        %v938 = vld [vmem:[#allocation5 + $0xb60] sm:$0xff]
        %v939 = vld [vmem:[#allocation5 + $0xb68] sm:$0xff]
        %v940 = vld [vmem:[#allocation5 + $0xb70] sm:$0xff]
        %v941 = vld [vmem:[#allocation5 + $0xb78] sm:$0xff]
        %v942 = vld [vmem:[#allocation5 + $0xb80] sm:$0xff]
        %v943 = vld [vmem:[#allocation5 + $0xb88] sm:$0xff]
        %v944 = vld [vmem:[#allocation5 + $0xb90] sm:$0xff]
        %v945 = vld [vmem:[#allocation5 + $0xb98] sm:$0xff]
        %v946 = vld [vmem:[#allocation5 + $0xba0] sm:$0xff]
        %v947 = vld [vmem:[#allocation5 + $0xba8] sm:$0xff]
        %v948 = vld [vmem:[#allocation5 + $0xbb0] sm:$0xff]
        %v949 = vld [vmem:[#allocation5 + $0xbb8] sm:$0xff]
        %v950 = vld [vmem:[#allocation5 + $0xbc0] sm:$0xff]
        %v951 = vld [vmem:[#allocation5 + $0xbc8] sm:$0xff]
        %v952 = vld [vmem:[#allocation5 + $0xbd0] sm:$0xff]
        %v953 = vld [vmem:[#allocation5 + $0xbd8] sm:$0xff]
        %v954 = vld [vmem:[#allocation5 + $0xbe0] sm:$0xff]
        %v955 = vld [vmem:[#allocation5 + $0xbe8] sm:$0xff]
        %v956 = vld [vmem:[#allocation5 + $0xbf0] sm:$0xff]
        %v957 = vld [vmem:[#allocation5 + $0xbf8] sm:$0xff]
        %v958 = vld [vmem:[#allocation5 + $0xc00] sm:$0xff]
        %v959 = vld [vmem:[#allocation5 + $0xc08] sm:$0xff]
        %v960 = vld [vmem:[#allocation5 + $0xc10] sm:$0xff]
        %v961 = vld [vmem:[#allocation5 + $0xc18] sm:$0xff]
        %v962 = vld [vmem:[#allocation5 + $0xc20] sm:$0xff]
        %v963 = vld [vmem:[#allocation5 + $0xc28] sm:$0xff]
        %v964 = vld [vmem:[#allocation5 + $0xc30] sm:$0xff]
        %v965 = vld [vmem:[#allocation5 + $0xc38] sm:$0xff]
        %v966 = vld [vmem:[#allocation5 + $0xc40] sm:$0xff]
        %v967 = vld [vmem:[#allocation5 + $0xc48] sm:$0xff]
        %v968 = vld [vmem:[#allocation5 + $0xc50] sm:$0xff]
        %v969 = vld [vmem:[#allocation5 + $0xc58] sm:$0xff]
        %v970 = vld [vmem:[#allocation5 + $0xc60] sm:$0xff]
        %v971 = vld [vmem:[#allocation5 + $0xc68] sm:$0xff]
        %v972 = vld [vmem:[#allocation5 + $0xc70] sm:$0xff]
        %v973 = vld [vmem:[#allocation5 + $0xc78] sm:$0xff]
        %v974 = vld [vmem:[#allocation5 + $0xc80] sm:$0xff]
        %v975 = vld [vmem:[#allocation5 + $0xc88] sm:$0xff]
        %v976 = vld [vmem:[#allocation5 + $0xc90] sm:$0xff]
        %v977 = vld [vmem:[#allocation5 + $0xc98] sm:$0xff]
        %v978 = vld [vmem:[#allocation5 + $0xca0] sm:$0xff]
        %v979 = vld [vmem:[#allocation5 + $0xca8] sm:$0xff]
        %v980 = vld [vmem:[#allocation5 + $0xcb0] sm:$0xff]
        %v981 = vld [vmem:[#allocation5 + $0xcb8] sm:$0xff]
        %v982 = vld [vmem:[#allocation5 + $0xcc0] sm:$0xff]
        %v983 = vld [vmem:[#allocation5 + $0xcc8] sm:$0xff]
        %v984 = vld [vmem:[#allocation5 + $0xcd0] sm:$0xff]
        %v985 = vld [vmem:[#allocation5 + $0xcd8] sm:$0xff]
        %v986 = vld [vmem:[#allocation5 + $0xce0] sm:$0xff]
        %v987 = vld [vmem:[#allocation5 + $0xce8] sm:$0xff]
        %v988 = vld [vmem:[#allocation5 + $0xcf0] sm:$0xff]
        %v989 = vld [vmem:[#allocation5 + $0xcf8] sm:$0xff]
        %v990 = vld [vmem:[#allocation5 + $0xd00] sm:$0xff]
        %v991 = vld [vmem:[#allocation5 + $0xd08] sm:$0xff]
        %v992 = vld [vmem:[#allocation5 + $0xd10] sm:$0xff]
        %v993 = vld [vmem:[#allocation5 + $0xd18] sm:$0xff]
        %v994 = vld [vmem:[#allocation5 + $0xd20] sm:$0xff]
        %v995 = vld [vmem:[#allocation5 + $0xd28] sm:$0xff]
        %v996 = vld [vmem:[#allocation5 + $0xd30] sm:$0xff]
        %v997 = vld [vmem:[#allocation5 + $0xd38] sm:$0xff]
        %v998 = vld [vmem:[#allocation5 + $0xd40] sm:$0xff]
        %v999 = vld [vmem:[#allocation5 + $0xd48] sm:$0xff]
        %v1000 = vld [vmem:[#allocation5 + $0xd50] sm:$0xff]
        %v1001 = vld [vmem:[#allocation5 + $0xd58] sm:$0xff]
        %v1002 = vld [vmem:[#allocation5 + $0xd60] sm:$0xff]
        %v1003 = vld [vmem:[#allocation5 + $0xd68] sm:$0xff]
        %v1004 = vld [vmem:[#allocation5 + $0xd70] sm:$0xff]
        %v1005 = vld [vmem:[#allocation5 + $0xd78] sm:$0xff]
        %v1006 = vld [vmem:[#allocation5 + $0xd80] sm:$0xff]
        %v1007 = vld [vmem:[#allocation5 + $0xd88] sm:$0xff]
        %v1008 = vld [vmem:[#allocation5 + $0xd90] sm:$0xff]
        %v1009 = vld [vmem:[#allocation5 + $0xd98] sm:$0xff]
        %v1010 = vld [vmem:[#allocation5 + $0xda0] sm:$0xff]
        %v1011 = vld [vmem:[#allocation5 + $0xda8] sm:$0xff]
        %v1012 = vld [vmem:[#allocation5 + $0xdb0] sm:$0xff]
        %v1013 = vld [vmem:[#allocation5 + $0xdb8] sm:$0xff]
        %v1014 = vld [vmem:[#allocation5 + $0xdc0] sm:$0xff]
        %v1015 = vld [vmem:[#allocation5 + $0xdc8] sm:$0xff]
        %v1016 = vld [vmem:[#allocation5 + $0xdd0] sm:$0xff]
        %v1017 = vld [vmem:[#allocation5 + $0xdd8] sm:$0xff]
        %v1018 = vld [vmem:[#allocation5 + $0xde0] sm:$0xff]
        %v1019 = vld [vmem:[#allocation5 + $0xde8] sm:$0xff]
        %v1020 = vld [vmem:[#allocation5 + $0xdf0] sm:$0xff]
        %v1021 = vld [vmem:[#allocation5 + $0xdf8] sm:$0xff]
        %v1022 = vld [vmem:[#allocation5 + $0xe00] sm:$0xff]
        %v1023 = vld [vmem:[#allocation5 + $0xe08] sm:$0xff]
        %v1024 = vld [vmem:[#allocation5 + $0xe10] sm:$0xff]
        %v1025 = vld [vmem:[#allocation5 + $0xe18] sm:$0xff]
        %v1026 = vld [vmem:[#allocation5 + $0xe20] sm:$0xff]
        %v1027 = vld [vmem:[#allocation5 + $0xe28] sm:$0xff]
        %v1028 = vld [vmem:[#allocation5 + $0xe30] sm:$0xff]
        %v1029 = vld [vmem:[#allocation5 + $0xe38] sm:$0xff]
        %v1030 = vld [vmem:[#allocation5 + $0xe40] sm:$0xff]
        %v1031 = vld [vmem:[#allocation5 + $0xe48] sm:$0xff]
        %v1032 = vld [vmem:[#allocation5 + $0xe50] sm:$0xff]
        %v1033 = vld [vmem:[#allocation5 + $0xe58] sm:$0xff]
        %v1034 = vld [vmem:[#allocation5 + $0xe60] sm:$0xff]
        %v1035 = vld [vmem:[#allocation5 + $0xe68] sm:$0xff]
        %v1036 = vld [vmem:[#allocation5 + $0xe70] sm:$0xff]
        %v1037 = vld [vmem:[#allocation5 + $0xe78] sm:$0xff]
        %v1038 = vld [vmem:[#allocation5 + $0xe80] sm:$0xff]
        %v1039 = vld [vmem:[#allocation5 + $0xe88] sm:$0xff]
        %v1040 = vld [vmem:[#allocation5 + $0xe90] sm:$0xff]
        %v1041 = vld [vmem:[#allocation5 + $0xe98] sm:$0xff]
        %v1042 = vld [vmem:[#allocation5 + $0xea0] sm:$0xff]
        %v1043 = vld [vmem:[#allocation5 + $0xea8] sm:$0xff]
        %v1044 = vld [vmem:[#allocation5 + $0xeb0] sm:$0xff]
        %v1045 = vld [vmem:[#allocation5 + $0xeb8] sm:$0xff]
        %v1046 = vld [vmem:[#allocation5 + $0xec0] sm:$0xff]
        %v1047 = vld [vmem:[#allocation5 + $0xec8] sm:$0xff]
        %v1048 = vld [vmem:[#allocation5 + $0xed0] sm:$0xff]
        %v1049 = vld [vmem:[#allocation5 + $0xed8] sm:$0xff]
        %v1050 = vld [vmem:[#allocation5 + $0xee0] sm:$0xff]
        %v1051 = vld [vmem:[#allocation5 + $0xee8] sm:$0xff]
        %v1052 = vld [vmem:[#allocation5 + $0xef0] sm:$0xff]
        %v1053 = vld [vmem:[#allocation5 + $0xef8] sm:$0xff]
        %v1054 = vld [vmem:[#allocation5 + $0xf00] sm:$0xff]
        %v1055 = vld [vmem:[#allocation5 + $0xf08] sm:$0xff]
        %v1056 = vld [vmem:[#allocation5 + $0xf10] sm:$0xff]
        %v1057 = vld [vmem:[#allocation5 + $0xf18] sm:$0xff]
        %v1058 = vld [vmem:[#allocation5 + $0xf20] sm:$0xff]
        %v1059 = vld [vmem:[#allocation5 + $0xf28] sm:$0xff]
        %v1060 = vld [vmem:[#allocation5 + $0xf30] sm:$0xff]
        %v1061 = vld [vmem:[#allocation5 + $0xf38] sm:$0xff]
        %v1062 = vld [vmem:[#allocation5 + $0xf40] sm:$0xff]
        %v1063 = vld [vmem:[#allocation5 + $0xf48] sm:$0xff]
        %v1064 = vld [vmem:[#allocation5 + $0xf50] sm:$0xff]
        %v1065 = vld [vmem:[#allocation5 + $0xf58] sm:$0xff]
        %v1066 = vld [vmem:[#allocation5 + $0xf60] sm:$0xff]
        %v1067 = vld [vmem:[#allocation5 + $0xf68] sm:$0xff]
        %v1068 = vld [vmem:[#allocation5 + $0xf70] sm:$0xff]
        %v1069 = vld [vmem:[#allocation5 + $0xf78] sm:$0xff]
        %v1070 = vld [vmem:[#allocation5 + $0xf80] sm:$0xff]
        %v1071 = vld [vmem:[#allocation5 + $0xf88] sm:$0xff]
        %v1072 = vld [vmem:[#allocation5 + $0xf90] sm:$0xff]
        %v1073 = vld [vmem:[#allocation5 + $0xf98] sm:$0xff]
        %v1074 = vld [vmem:[#allocation5 + $0xfa0] sm:$0xff]
        %v1075 = vld [vmem:[#allocation5 + $0xfa8] sm:$0xff]
        %v1076 = vld [vmem:[#allocation5 + $0xfb0] sm:$0xff]
        %v1077 = vld [vmem:[#allocation5 + $0xfb8] sm:$0xff]
        %v1078 = vld [vmem:[#allocation5 + $0xfc0] sm:$0xff]
        %v1079 = vld [vmem:[#allocation5 + $0xfc8] sm:$0xff]
        %v1080 = vld [vmem:[#allocation5 + $0xfd0] sm:$0xff]
        %v1081 = vld [vmem:[#allocation5 + $0xfd8] sm:$0xff]
        %v1082 = vld [vmem:[#allocation5 + $0xfe0] sm:$0xff]
        %v1083 = vld [vmem:[#allocation5 + $0xfe8] sm:$0xff]
        %v1084 = vld [vmem:[#allocation5 + $0xff0] sm:$0xff]
        %v1085 = vld [vmem:[#allocation5 + $0xff8] sm:$0xff]
        %v1086 = vld [vmem:[#allocation7] sm:$0xff]
        %v1088 = vlaneseq
        %v1089 = vshrl.u32 %v1088, 7
        %v1090 = vsub.s32 0, %v1089
        %v1091 = vrot.slane %v1086, %v1090
        %v1092 = vlaneseq
        %v1093 = vshrl.u32 %v1092, 7
        %v1094 = vsub.s32 1, %v1093
        %v1095 = vrot.slane %v1086, %v1094
        %v1096 = vlaneseq
        %v1097 = vshrl.u32 %v1096, 7
        %v1098 = vsub.s32 2, %v1097
        %v1099 = vrot.slane %v1086, %v1098
        %v1100 = vlaneseq
        %v1101 = vshrl.u32 %v1100, 7
        %v1102 = vsub.s32 3, %v1101
        %v1103 = vrot.slane %v1086, %v1102
        %v1104 = vlaneseq
        %v1105 = vshrl.u32 %v1104, 7
        %v1106 = vsub.s32 4, %v1105
        %v1107 = vrot.slane %v1086, %v1106
        %v1108 = vlaneseq
        %v1109 = vshrl.u32 %v1108, 7
        %v1110 = vsub.s32 5, %v1109
        %v1111 = vrot.slane %v1086, %v1110
        %v1112 = vlaneseq
        %v1113 = vshrl.u32 %v1112, 7
        %v1114 = vsub.s32 6, %v1113
        %v1115 = vrot.slane %v1086, %v1114
        %v1116 = vlaneseq
        %v1117 = vshrl.u32 %v1116, 7
        %v1118 = vsub.s32 7, %v1117
        %v1119 = vrot.slane %v1086, %v1118
        %v1640 = vunpack.c.l.b16 %v574
        %v1641 = vunpack.c.h.b16 %v574
        %v1642 = vunpack.c.l.b16 %v575
        %v1643 = vunpack.c.h.b16 %v575
        %v1644 = vunpack.c.l.b16 %v576
        %v1645 = vunpack.c.h.b16 %v576
        %v1646 = vunpack.c.l.b16 %v577
        %v1647 = vunpack.c.h.b16 %v577
        %v1648 = vunpack.c.l.b16 %v578
        %v1649 = vunpack.c.h.b16 %v578
        %v1650 = vunpack.c.l.b16 %v579
        %v1651 = vunpack.c.h.b16 %v579
        %v1652 = vunpack.c.l.b16 %v580
        %v1653 = vunpack.c.h.b16 %v580
        %v1654 = vunpack.c.l.b16 %v581
        %v1655 = vunpack.c.h.b16 %v581
        %v1656 = vunpack.c.l.b16 %v582
        %v1657 = vunpack.c.h.b16 %v582
        %v1658 = vunpack.c.l.b16 %v583
        %v1659 = vunpack.c.h.b16 %v583
        %v1660 = vunpack.c.l.b16 %v584
        %v1661 = vunpack.c.h.b16 %v584
        %v1662 = vunpack.c.l.b16 %v585
        %v1663 = vunpack.c.h.b16 %v585
        %v1664 = vunpack.c.l.b16 %v586
        %v1665 = vunpack.c.h.b16 %v586
        %v1666 = vunpack.c.l.b16 %v587
        %v1667 = vunpack.c.h.b16 %v587
        %v1668 = vunpack.c.l.b16 %v588
        %v1669 = vunpack.c.h.b16 %v588
        %v1670 = vunpack.c.l.b16 %v589
        %v1671 = vunpack.c.h.b16 %v589
        %v1672 = vunpack.c.l.b16 %v590
        %v1673 = vunpack.c.h.b16 %v590
        %v1674 = vunpack.c.l.b16 %v591
        %v1675 = vunpack.c.h.b16 %v591
        %v1676 = vunpack.c.l.b16 %v592
        %v1677 = vunpack.c.h.b16 %v592
        %v1678 = vunpack.c.l.b16 %v593
        %v1679 = vunpack.c.h.b16 %v593
        %v1680 = vunpack.c.l.b16 %v594
        %v1681 = vunpack.c.h.b16 %v594
        %v1682 = vunpack.c.l.b16 %v595
        %v1683 = vunpack.c.h.b16 %v595
        %v1684 = vunpack.c.l.b16 %v596
        %v1685 = vunpack.c.h.b16 %v596
        %v1686 = vunpack.c.l.b16 %v597
        %v1687 = vunpack.c.h.b16 %v597
        %v1688 = vunpack.c.l.b16 %v598
        %v1689 = vunpack.c.h.b16 %v598
        %v1690 = vunpack.c.l.b16 %v599
        %v1691 = vunpack.c.h.b16 %v599
        %v1692 = vunpack.c.l.b16 %v600
        %v1693 = vunpack.c.h.b16 %v600
        %v1694 = vunpack.c.l.b16 %v601
        %v1695 = vunpack.c.h.b16 %v601
        %v1696 = vunpack.c.l.b16 %v602
        %v1697 = vunpack.c.h.b16 %v602
        %v1698 = vunpack.c.l.b16 %v603
        %v1699 = vunpack.c.h.b16 %v603
        %v1700 = vunpack.c.l.b16 %v604
        %v1701 = vunpack.c.h.b16 %v604
        %v1702 = vunpack.c.l.b16 %v605
        %v1703 = vunpack.c.h.b16 %v605
        %v1704 = vunpack.c.l.b16 %v606
        %v1705 = vunpack.c.h.b16 %v606
        %v1706 = vunpack.c.l.b16 %v607
        %v1707 = vunpack.c.h.b16 %v607
        %v1708 = vunpack.c.l.b16 %v608
        %v1709 = vunpack.c.h.b16 %v608
        %v1710 = vunpack.c.l.b16 %v609
        %v1711 = vunpack.c.h.b16 %v609
        %v1712 = vunpack.c.l.b16 %v610
        %v1713 = vunpack.c.h.b16 %v610
        %v1714 = vunpack.c.l.b16 %v611
        %v1715 = vunpack.c.h.b16 %v611
        %v1716 = vunpack.c.l.b16 %v612
        %v1717 = vunpack.c.h.b16 %v612
        %v1718 = vunpack.c.l.b16 %v613
        %v1719 = vunpack.c.h.b16 %v613
        %v1720 = vunpack.c.l.b16 %v614
        %v1721 = vunpack.c.h.b16 %v614
        %v1722 = vunpack.c.l.b16 %v615
        %v1723 = vunpack.c.h.b16 %v615
        %v1724 = vunpack.c.l.b16 %v616
        %v1725 = vunpack.c.h.b16 %v616
        %v1726 = vunpack.c.l.b16 %v617
        %v1727 = vunpack.c.h.b16 %v617
        %v1728 = vunpack.c.l.b16 %v618
        %v1729 = vunpack.c.h.b16 %v618
        %v1730 = vunpack.c.l.b16 %v619
        %v1731 = vunpack.c.h.b16 %v619
        %v1732 = vunpack.c.l.b16 %v620
        %v1733 = vunpack.c.h.b16 %v620
        %v1734 = vunpack.c.l.b16 %v621
        %v1735 = vunpack.c.h.b16 %v621
        %v1736 = vunpack.c.l.b16 %v622
        %v1737 = vunpack.c.h.b16 %v622
        %v1738 = vunpack.c.l.b16 %v623
        %v1739 = vunpack.c.h.b16 %v623
        %v1740 = vunpack.c.l.b16 %v624
        %v1741 = vunpack.c.h.b16 %v624
        %v1742 = vunpack.c.l.b16 %v625
        %v1743 = vunpack.c.h.b16 %v625
        %v1744 = vunpack.c.l.b16 %v626
        %v1745 = vunpack.c.h.b16 %v626
        %v1746 = vunpack.c.l.b16 %v627
        %v1747 = vunpack.c.h.b16 %v627
        %v1748 = vunpack.c.l.b16 %v628
        %v1749 = vunpack.c.h.b16 %v628
        %v1750 = vunpack.c.l.b16 %v629
        %v1751 = vunpack.c.h.b16 %v629
        %v1752 = vunpack.c.l.b16 %v630
        %v1753 = vunpack.c.h.b16 %v630
        %v1754 = vunpack.c.l.b16 %v631
        %v1755 = vunpack.c.h.b16 %v631
        %v1756 = vunpack.c.l.b16 %v632
        %v1757 = vunpack.c.h.b16 %v632
        %v1758 = vunpack.c.l.b16 %v633
        %v1759 = vunpack.c.h.b16 %v633
        %v1760 = vunpack.c.l.b16 %v634
        %v1761 = vunpack.c.h.b16 %v634
        %v1762 = vunpack.c.l.b16 %v635
        %v1763 = vunpack.c.h.b16 %v635
        %v1764 = vunpack.c.l.b16 %v636
        %v1765 = vunpack.c.h.b16 %v636
        %v1766 = vunpack.c.l.b16 %v637
        %v1767 = vunpack.c.h.b16 %v637
        %v1768 = vunpack.c.l.b16 %v638
        %v1769 = vunpack.c.h.b16 %v638
        %v1770 = vunpack.c.l.b16 %v639
        %v1771 = vunpack.c.h.b16 %v639
        %v1772 = vunpack.c.l.b16 %v640
        %v1773 = vunpack.c.h.b16 %v640
        %v1774 = vunpack.c.l.b16 %v641
        %v1775 = vunpack.c.h.b16 %v641
        %v1776 = vunpack.c.l.b16 %v642
        %v1777 = vunpack.c.h.b16 %v642
        %v1778 = vunpack.c.l.b16 %v643
        %v1779 = vunpack.c.h.b16 %v643
        %v1780 = vunpack.c.l.b16 %v644
        %v1781 = vunpack.c.h.b16 %v644
        %v1782 = vunpack.c.l.b16 %v645
        %v1783 = vunpack.c.h.b16 %v645
        %v1784 = vunpack.c.l.b16 %v646
        %v1785 = vunpack.c.h.b16 %v646
        %v1786 = vunpack.c.l.b16 %v647
        %v1787 = vunpack.c.h.b16 %v647
        %v1788 = vunpack.c.l.b16 %v648
        %v1789 = vunpack.c.h.b16 %v648
        %v1790 = vunpack.c.l.b16 %v649
        %v1791 = vunpack.c.h.b16 %v649
        %v1792 = vunpack.c.l.b16 %v650
        %v1793 = vunpack.c.h.b16 %v650
        %v1794 = vunpack.c.l.b16 %v651
        %v1795 = vunpack.c.h.b16 %v651
        %v1796 = vunpack.c.l.b16 %v652
        %v1797 = vunpack.c.h.b16 %v652
        %v1798 = vunpack.c.l.b16 %v653
        %v1799 = vunpack.c.h.b16 %v653
        %v1800 = vunpack.c.l.b16 %v654
        %v1801 = vunpack.c.h.b16 %v654
        %v1802 = vunpack.c.l.b16 %v655
        %v1803 = vunpack.c.h.b16 %v655
        %v1804 = vunpack.c.l.b16 %v656
        %v1805 = vunpack.c.h.b16 %v656
        %v1806 = vunpack.c.l.b16 %v657
        %v1807 = vunpack.c.h.b16 %v657
        %v1808 = vunpack.c.l.b16 %v658
        %v1809 = vunpack.c.h.b16 %v658
        %v1810 = vunpack.c.l.b16 %v659
        %v1811 = vunpack.c.h.b16 %v659
        %v1812 = vunpack.c.l.b16 %v660
        %v1813 = vunpack.c.h.b16 %v660
        %v1814 = vunpack.c.l.b16 %v661
        %v1815 = vunpack.c.h.b16 %v661
        %v1816 = vunpack.c.l.b16 %v662
        %v1817 = vunpack.c.h.b16 %v662
        %v1818 = vunpack.c.l.b16 %v663
        %v1819 = vunpack.c.h.b16 %v663
        %v1820 = vunpack.c.l.b16 %v664
        %v1821 = vunpack.c.h.b16 %v664
        %v1822 = vunpack.c.l.b16 %v665
        %v1823 = vunpack.c.h.b16 %v665
        %v1824 = vunpack.c.l.b16 %v666
        %v1825 = vunpack.c.h.b16 %v666
        %v1826 = vunpack.c.l.b16 %v667
        %v1827 = vunpack.c.h.b16 %v667
        %v1828 = vunpack.c.l.b16 %v668
        %v1829 = vunpack.c.h.b16 %v668
        %v1830 = vunpack.c.l.b16 %v669
        %v1831 = vunpack.c.h.b16 %v669
        %v1832 = vunpack.c.l.b16 %v670
        %v1833 = vunpack.c.h.b16 %v670
        %v1834 = vunpack.c.l.b16 %v671
        %v1835 = vunpack.c.h.b16 %v671
        %v1836 = vunpack.c.l.b16 %v672
        %v1837 = vunpack.c.h.b16 %v672
        %v1838 = vunpack.c.l.b16 %v673
        %v1839 = vunpack.c.h.b16 %v673
        %v1840 = vunpack.c.l.b16 %v674
        %v1841 = vunpack.c.h.b16 %v674
        %v1842 = vunpack.c.l.b16 %v675
        %v1843 = vunpack.c.h.b16 %v675
        %v1844 = vunpack.c.l.b16 %v676
        %v1845 = vunpack.c.h.b16 %v676
        %v1846 = vunpack.c.l.b16 %v677
        %v1847 = vunpack.c.h.b16 %v677
        %v1848 = vunpack.c.l.b16 %v678
        %v1849 = vunpack.c.h.b16 %v678
        %v1850 = vunpack.c.l.b16 %v679
        %v1851 = vunpack.c.h.b16 %v679
        %v1852 = vunpack.c.l.b16 %v680
        %v1853 = vunpack.c.h.b16 %v680
        %v1854 = vunpack.c.l.b16 %v681
        %v1855 = vunpack.c.h.b16 %v681
        %v1856 = vunpack.c.l.b16 %v682
        %v1857 = vunpack.c.h.b16 %v682
        %v1858 = vunpack.c.l.b16 %v683
        %v1859 = vunpack.c.h.b16 %v683
        %v1860 = vunpack.c.l.b16 %v684
        %v1861 = vunpack.c.h.b16 %v684
        %v1862 = vunpack.c.l.b16 %v685
        %v1863 = vunpack.c.h.b16 %v685
        %v1864 = vunpack.c.l.b16 %v686
        %v1865 = vunpack.c.h.b16 %v686
        %v1866 = vunpack.c.l.b16 %v687
        %v1867 = vunpack.c.h.b16 %v687
        %v1868 = vunpack.c.l.b16 %v688
        %v1869 = vunpack.c.h.b16 %v688
        %v1870 = vunpack.c.l.b16 %v689
        %v1871 = vunpack.c.h.b16 %v689
        %v1872 = vunpack.c.l.b16 %v690
        %v1873 = vunpack.c.h.b16 %v690
        %v1874 = vunpack.c.l.b16 %v691
        %v1875 = vunpack.c.h.b16 %v691
        %v1876 = vunpack.c.l.b16 %v692
        %v1877 = vunpack.c.h.b16 %v692
        %v1878 = vunpack.c.l.b16 %v693
        %v1879 = vunpack.c.h.b16 %v693
        %v1880 = vunpack.c.l.b16 %v694
        %v1881 = vunpack.c.h.b16 %v694
        %v1882 = vunpack.c.l.b16 %v695
        %v1883 = vunpack.c.h.b16 %v695
        %v1884 = vunpack.c.l.b16 %v696
        %v1885 = vunpack.c.h.b16 %v696
        %v1886 = vunpack.c.l.b16 %v697
        %v1887 = vunpack.c.h.b16 %v697
        %v1888 = vunpack.c.l.b16 %v698
        %v1889 = vunpack.c.h.b16 %v698
        %v1890 = vunpack.c.l.b16 %v699
        %v1891 = vunpack.c.h.b16 %v699
        %v1892 = vunpack.c.l.b16 %v700
        %v1893 = vunpack.c.h.b16 %v700
        %v1894 = vunpack.c.l.b16 %v701
        %v1895 = vunpack.c.h.b16 %v701
        %v1896 = vunpack.c.l.b16 %v702
        %v1897 = vunpack.c.h.b16 %v702
        %v1898 = vunpack.c.l.b16 %v703
        %v1899 = vunpack.c.h.b16 %v703
        %v1900 = vunpack.c.l.b16 %v704
        %v1901 = vunpack.c.h.b16 %v704
        %v1902 = vunpack.c.l.b16 %v705
        %v1903 = vunpack.c.h.b16 %v705
        %v1904 = vunpack.c.l.b16 %v706
        %v1905 = vunpack.c.h.b16 %v706
        %v1906 = vunpack.c.l.b16 %v707
        %v1907 = vunpack.c.h.b16 %v707
        %v1908 = vunpack.c.l.b16 %v708
        %v1909 = vunpack.c.h.b16 %v708
        %v1910 = vunpack.c.l.b16 %v709
        %v1911 = vunpack.c.h.b16 %v709
        %v1912 = vunpack.c.l.b16 %v710
        %v1913 = vunpack.c.h.b16 %v710
        %v1914 = vunpack.c.l.b16 %v711
        %v1915 = vunpack.c.h.b16 %v711
        %v1916 = vunpack.c.l.b16 %v712
        %v1917 = vunpack.c.h.b16 %v712
        %v1918 = vunpack.c.l.b16 %v713
        %v1919 = vunpack.c.h.b16 %v713
        %v1920 = vunpack.c.l.b16 %v714
        %v1921 = vunpack.c.h.b16 %v714
        %v1922 = vunpack.c.l.b16 %v715
        %v1923 = vunpack.c.h.b16 %v715
        %v1924 = vunpack.c.l.b16 %v716
        %v1925 = vunpack.c.h.b16 %v716
        %v1926 = vunpack.c.l.b16 %v717
        %v1927 = vunpack.c.h.b16 %v717
        %v1928 = vunpack.c.l.b16 %v718
        %v1929 = vunpack.c.h.b16 %v718
        %v1930 = vunpack.c.l.b16 %v719
        %v1931 = vunpack.c.h.b16 %v719
        %v1932 = vunpack.c.l.b16 %v720
        %v1933 = vunpack.c.h.b16 %v720
        %v1934 = vunpack.c.l.b16 %v721
        %v1935 = vunpack.c.h.b16 %v721
        %v1936 = vunpack.c.l.b16 %v722
        %v1937 = vunpack.c.h.b16 %v722
        %v1938 = vunpack.c.l.b16 %v723
        %v1939 = vunpack.c.h.b16 %v723
        %v1940 = vunpack.c.l.b16 %v724
        %v1941 = vunpack.c.h.b16 %v724
        %v1942 = vunpack.c.l.b16 %v725
        %v1943 = vunpack.c.h.b16 %v725
        %v1944 = vunpack.c.l.b16 %v726
        %v1945 = vunpack.c.h.b16 %v726
        %v1946 = vunpack.c.l.b16 %v727
        %v1947 = vunpack.c.h.b16 %v727
        %v1948 = vunpack.c.l.b16 %v728
        %v1949 = vunpack.c.h.b16 %v728
        %v1950 = vunpack.c.l.b16 %v729
        %v1951 = vunpack.c.h.b16 %v729
        %v1952 = vunpack.c.l.b16 %v730
        %v1953 = vunpack.c.h.b16 %v730
        %v1954 = vunpack.c.l.b16 %v731
        %v1955 = vunpack.c.h.b16 %v731
        %v1956 = vunpack.c.l.b16 %v732
        %v1957 = vunpack.c.h.b16 %v732
        %v1958 = vunpack.c.l.b16 %v733
        %v1959 = vunpack.c.h.b16 %v733
        %v1960 = vunpack.c.l.b16 %v734
        %v1961 = vunpack.c.h.b16 %v734
        %v1962 = vunpack.c.l.b16 %v735
        %v1963 = vunpack.c.h.b16 %v735
        %v1964 = vunpack.c.l.b16 %v736
        %v1965 = vunpack.c.h.b16 %v736
        %v1966 = vunpack.c.l.b16 %v737
        %v1967 = vunpack.c.h.b16 %v737
        %v1968 = vunpack.c.l.b16 %v738
        %v1969 = vunpack.c.h.b16 %v738
        %v1970 = vunpack.c.l.b16 %v739
        %v1971 = vunpack.c.h.b16 %v739
        %v1972 = vunpack.c.l.b16 %v740
        %v1973 = vunpack.c.h.b16 %v740
        %v1974 = vunpack.c.l.b16 %v741
        %v1975 = vunpack.c.h.b16 %v741
        %v1976 = vunpack.c.l.b16 %v742
        %v1977 = vunpack.c.h.b16 %v742
        %v1978 = vunpack.c.l.b16 %v743
        %v1979 = vunpack.c.h.b16 %v743
        %v1980 = vunpack.c.l.b16 %v744
        %v1981 = vunpack.c.h.b16 %v744
        %v1982 = vunpack.c.l.b16 %v745
        %v1983 = vunpack.c.h.b16 %v745
        %v1984 = vunpack.c.l.b16 %v746
        %v1985 = vunpack.c.h.b16 %v746
        %v1986 = vunpack.c.l.b16 %v747
        %v1987 = vunpack.c.h.b16 %v747
        %v1988 = vunpack.c.l.b16 %v748
        %v1989 = vunpack.c.h.b16 %v748
        %v1990 = vunpack.c.l.b16 %v749
        %v1991 = vunpack.c.h.b16 %v749
        %v1992 = vunpack.c.l.b16 %v750
        %v1993 = vunpack.c.h.b16 %v750
        %v1994 = vunpack.c.l.b16 %v751
        %v1995 = vunpack.c.h.b16 %v751
        %v1996 = vunpack.c.l.b16 %v752
        %v1997 = vunpack.c.h.b16 %v752
        %v1998 = vunpack.c.l.b16 %v753
        %v1999 = vunpack.c.h.b16 %v753
        %v2000 = vunpack.c.l.b16 %v754
        %v2001 = vunpack.c.h.b16 %v754
        %v2002 = vunpack.c.l.b16 %v755
        %v2003 = vunpack.c.h.b16 %v755
        %v2004 = vunpack.c.l.b16 %v756
        %v2005 = vunpack.c.h.b16 %v756
        %v2006 = vunpack.c.l.b16 %v757
        %v2007 = vunpack.c.h.b16 %v757
        %v2008 = vunpack.c.l.b16 %v758
        %v2009 = vunpack.c.h.b16 %v758
        %v2010 = vunpack.c.l.b16 %v759
        %v2011 = vunpack.c.h.b16 %v759
        %v2012 = vunpack.c.l.b16 %v760
        %v2013 = vunpack.c.h.b16 %v760
        %v2014 = vunpack.c.l.b16 %v761
        %v2015 = vunpack.c.h.b16 %v761
        %v2016 = vunpack.c.l.b16 %v762
        %v2017 = vunpack.c.h.b16 %v762
        %v2018 = vunpack.c.l.b16 %v763
        %v2019 = vunpack.c.h.b16 %v763
        %v2020 = vunpack.c.l.b16 %v764
        %v2021 = vunpack.c.h.b16 %v764
        %v2022 = vunpack.c.l.b16 %v765
        %v2023 = vunpack.c.h.b16 %v765
        %v2024 = vunpack.c.l.b16 %v766
        %v2025 = vunpack.c.h.b16 %v766
        %v2026 = vunpack.c.l.b16 %v767
        %v2027 = vunpack.c.h.b16 %v767
        %v2028 = vunpack.c.l.b16 %v768
        %v2029 = vunpack.c.h.b16 %v768
        %v2030 = vunpack.c.l.b16 %v769
        %v2031 = vunpack.c.h.b16 %v769
        %v2032 = vunpack.c.l.b16 %v770
        %v2033 = vunpack.c.h.b16 %v770
        %v2034 = vunpack.c.l.b16 %v771
        %v2035 = vunpack.c.h.b16 %v771
        %v2036 = vunpack.c.l.b16 %v772
        %v2037 = vunpack.c.h.b16 %v772
        %v2038 = vunpack.c.l.b16 %v773
        %v2039 = vunpack.c.h.b16 %v773
        %v2040 = vunpack.c.l.b16 %v774
        %v2041 = vunpack.c.h.b16 %v774
        %v2042 = vunpack.c.l.b16 %v775
        %v2043 = vunpack.c.h.b16 %v775
        %v2044 = vunpack.c.l.b16 %v776
        %v2045 = vunpack.c.h.b16 %v776
        %v2046 = vunpack.c.l.b16 %v777
        %v2047 = vunpack.c.h.b16 %v777
        %v2048 = vunpack.c.l.b16 %v778
        %v2049 = vunpack.c.h.b16 %v778
        %v2050 = vunpack.c.l.b16 %v779
        %v2051 = vunpack.c.h.b16 %v779
        %v2052 = vunpack.c.l.b16 %v780
        %v2053 = vunpack.c.h.b16 %v780
        %v2054 = vunpack.c.l.b16 %v781
        %v2055 = vunpack.c.h.b16 %v781
        %v2056 = vunpack.c.l.b16 %v782
        %v2057 = vunpack.c.h.b16 %v782
        %v2058 = vunpack.c.l.b16 %v783
        %v2059 = vunpack.c.h.b16 %v783
        %v2060 = vunpack.c.l.b16 %v784
        %v2061 = vunpack.c.h.b16 %v784
        %v2062 = vunpack.c.l.b16 %v785
        %v2063 = vunpack.c.h.b16 %v785
        %v2064 = vunpack.c.l.b16 %v786
        %v2065 = vunpack.c.h.b16 %v786
        %v2066 = vunpack.c.l.b16 %v787
        %v2067 = vunpack.c.h.b16 %v787
        %v2068 = vunpack.c.l.b16 %v788
        %v2069 = vunpack.c.h.b16 %v788
        %v2070 = vunpack.c.l.b16 %v789
        %v2071 = vunpack.c.h.b16 %v789
        %v2072 = vunpack.c.l.b16 %v790
        %v2073 = vunpack.c.h.b16 %v790
        %v2074 = vunpack.c.l.b16 %v791
        %v2075 = vunpack.c.h.b16 %v791
        %v2076 = vunpack.c.l.b16 %v792
        %v2077 = vunpack.c.h.b16 %v792
        %v2078 = vunpack.c.l.b16 %v793
        %v2079 = vunpack.c.h.b16 %v793
        %v2080 = vunpack.c.l.b16 %v794
        %v2081 = vunpack.c.h.b16 %v794
        %v2082 = vunpack.c.l.b16 %v795
        %v2083 = vunpack.c.h.b16 %v795
        %v2084 = vunpack.c.l.b16 %v796
        %v2085 = vunpack.c.h.b16 %v796
        %v2086 = vunpack.c.l.b16 %v797
        %v2087 = vunpack.c.h.b16 %v797
        %v2088 = vunpack.c.l.b16 %v798
        %v2089 = vunpack.c.h.b16 %v798
        %v2090 = vunpack.c.l.b16 %v799
        %v2091 = vunpack.c.h.b16 %v799
        %v2092 = vunpack.c.l.b16 %v800
        %v2093 = vunpack.c.h.b16 %v800
        %v2094 = vunpack.c.l.b16 %v801
        %v2095 = vunpack.c.h.b16 %v801
        %v2096 = vunpack.c.l.b16 %v802
        %v2097 = vunpack.c.h.b16 %v802
        %v2098 = vunpack.c.l.b16 %v803
        %v2099 = vunpack.c.h.b16 %v803
        %v2100 = vunpack.c.l.b16 %v804
        %v2101 = vunpack.c.h.b16 %v804
        %v2102 = vunpack.c.l.b16 %v805
        %v2103 = vunpack.c.h.b16 %v805
        %v2104 = vunpack.c.l.b16 %v806
        %v2105 = vunpack.c.h.b16 %v806
        %v2106 = vunpack.c.l.b16 %v807
        %v2107 = vunpack.c.h.b16 %v807
        %v2108 = vunpack.c.l.b16 %v808
        %v2109 = vunpack.c.h.b16 %v808
        %v2110 = vunpack.c.l.b16 %v809
        %v2111 = vunpack.c.h.b16 %v809
        %v2112 = vunpack.c.l.b16 %v810
        %v2113 = vunpack.c.h.b16 %v810
        %v2114 = vunpack.c.l.b16 %v811
        %v2115 = vunpack.c.h.b16 %v811
        %v2116 = vunpack.c.l.b16 %v812
        %v2117 = vunpack.c.h.b16 %v812
        %v2118 = vunpack.c.l.b16 %v813
        %v2119 = vunpack.c.h.b16 %v813
        %v2120 = vunpack.c.l.b16 %v814
        %v2121 = vunpack.c.h.b16 %v814
        %v2122 = vunpack.c.l.b16 %v815
        %v2123 = vunpack.c.h.b16 %v815
        %v2124 = vunpack.c.l.b16 %v816
        %v2125 = vunpack.c.h.b16 %v816
        %v2126 = vunpack.c.l.b16 %v817
        %v2127 = vunpack.c.h.b16 %v817
        %v2128 = vunpack.c.l.b16 %v818
        %v2129 = vunpack.c.h.b16 %v818
        %v2130 = vunpack.c.l.b16 %v819
        %v2131 = vunpack.c.h.b16 %v819
        %v2132 = vunpack.c.l.b16 %v820
        %v2133 = vunpack.c.h.b16 %v820
        %v2134 = vunpack.c.l.b16 %v821
        %v2135 = vunpack.c.h.b16 %v821
        %v2136 = vunpack.c.l.b16 %v822
        %v2137 = vunpack.c.h.b16 %v822
        %v2138 = vunpack.c.l.b16 %v823
        %v2139 = vunpack.c.h.b16 %v823
        %v2140 = vunpack.c.l.b16 %v824
        %v2141 = vunpack.c.h.b16 %v824
        %v2142 = vunpack.c.l.b16 %v825
        %v2143 = vunpack.c.h.b16 %v825
        %v2144 = vunpack.c.l.b16 %v826
        %v2145 = vunpack.c.h.b16 %v826
        %v2146 = vunpack.c.l.b16 %v827
        %v2147 = vunpack.c.h.b16 %v827
        %v2148 = vunpack.c.l.b16 %v828
        %v2149 = vunpack.c.h.b16 %v828
        %v2150 = vunpack.c.l.b16 %v829
        %v2151 = vunpack.c.h.b16 %v829
        %v2152 = vunpack.c.l.b16 %v830
        %v2153 = vunpack.c.h.b16 %v830
        %v2154 = vunpack.c.l.b16 %v831
        %v2155 = vunpack.c.h.b16 %v831
        %v2156 = vunpack.c.l.b16 %v832
        %v2157 = vunpack.c.h.b16 %v832
        %v2158 = vunpack.c.l.b16 %v833
        %v2159 = vunpack.c.h.b16 %v833
        %v2160 = vunpack.c.l.b16 %v834
        %v2161 = vunpack.c.h.b16 %v834
        %v2162 = vunpack.c.l.b16 %v835
        %v2163 = vunpack.c.h.b16 %v835
        %v2164 = vunpack.c.l.b16 %v836
        %v2165 = vunpack.c.h.b16 %v836
        %v2166 = vunpack.c.l.b16 %v837
        %v2167 = vunpack.c.h.b16 %v837
        %v2168 = vunpack.c.l.b16 %v838
        %v2169 = vunpack.c.h.b16 %v838
        %v2170 = vunpack.c.l.b16 %v839
        %v2171 = vunpack.c.h.b16 %v839
        %v2172 = vunpack.c.l.b16 %v840
        %v2173 = vunpack.c.h.b16 %v840
        %v2174 = vunpack.c.l.b16 %v841
        %v2175 = vunpack.c.h.b16 %v841
        %v2176 = vunpack.c.l.b16 %v842
        %v2177 = vunpack.c.h.b16 %v842
        %v2178 = vunpack.c.l.b16 %v843
        %v2179 = vunpack.c.h.b16 %v843
        %v2180 = vunpack.c.l.b16 %v844
        %v2181 = vunpack.c.h.b16 %v844
        %v2182 = vunpack.c.l.b16 %v845
        %v2183 = vunpack.c.h.b16 %v845
        %v2184 = vunpack.c.l.b16 %v846
        %v2185 = vunpack.c.h.b16 %v846
        %v2186 = vunpack.c.l.b16 %v847
        %v2187 = vunpack.c.h.b16 %v847
        %v2188 = vunpack.c.l.b16 %v848
        %v2189 = vunpack.c.h.b16 %v848
        %v2190 = vunpack.c.l.b16 %v849
        %v2191 = vunpack.c.h.b16 %v849
        %v2192 = vunpack.c.l.b16 %v850
        %v2193 = vunpack.c.h.b16 %v850
        %v2194 = vunpack.c.l.b16 %v851
        %v2195 = vunpack.c.h.b16 %v851
        %v2196 = vunpack.c.l.b16 %v852
        %v2197 = vunpack.c.h.b16 %v852
        %v2198 = vunpack.c.l.b16 %v853
        %v2199 = vunpack.c.h.b16 %v853
        %v2200 = vunpack.c.l.b16 %v854
        %v2201 = vunpack.c.h.b16 %v854
        %v2202 = vunpack.c.l.b16 %v855
        %v2203 = vunpack.c.h.b16 %v855
        %v2204 = vunpack.c.l.b16 %v856
        %v2205 = vunpack.c.h.b16 %v856
        %v2206 = vunpack.c.l.b16 %v857
        %v2207 = vunpack.c.h.b16 %v857
        %v2208 = vunpack.c.l.b16 %v858
        %v2209 = vunpack.c.h.b16 %v858
        %v2210 = vunpack.c.l.b16 %v859
        %v2211 = vunpack.c.h.b16 %v859
        %v2212 = vunpack.c.l.b16 %v860
        %v2213 = vunpack.c.h.b16 %v860
        %v2214 = vunpack.c.l.b16 %v861
        %v2215 = vunpack.c.h.b16 %v861
        %v2216 = vunpack.c.l.b16 %v862
        %v2217 = vunpack.c.h.b16 %v862
        %v2218 = vunpack.c.l.b16 %v863
        %v2219 = vunpack.c.h.b16 %v863
        %v2220 = vunpack.c.l.b16 %v864
        %v2221 = vunpack.c.h.b16 %v864
        %v2222 = vunpack.c.l.b16 %v865
        %v2223 = vunpack.c.h.b16 %v865
        %v2224 = vunpack.c.l.b16 %v866
        %v2225 = vunpack.c.h.b16 %v866
        %v2226 = vunpack.c.l.b16 %v867
        %v2227 = vunpack.c.h.b16 %v867
        %v2228 = vunpack.c.l.b16 %v868
        %v2229 = vunpack.c.h.b16 %v868
        %v2230 = vunpack.c.l.b16 %v869
        %v2231 = vunpack.c.h.b16 %v869
        %v2232 = vunpack.c.l.b16 %v870
        %v2233 = vunpack.c.h.b16 %v870
        %v2234 = vunpack.c.l.b16 %v871
        %v2235 = vunpack.c.h.b16 %v871
        %v2236 = vunpack.c.l.b16 %v872
        %v2237 = vunpack.c.h.b16 %v872
        %v2238 = vunpack.c.l.b16 %v873
        %v2239 = vunpack.c.h.b16 %v873
        %v2240 = vunpack.c.l.b16 %v874
        %v2241 = vunpack.c.h.b16 %v874
        %v2242 = vunpack.c.l.b16 %v875
        %v2243 = vunpack.c.h.b16 %v875
        %v2244 = vunpack.c.l.b16 %v876
        %v2245 = vunpack.c.h.b16 %v876
        %v2246 = vunpack.c.l.b16 %v877
        %v2247 = vunpack.c.h.b16 %v877
        %v2248 = vunpack.c.l.b16 %v878
        %v2249 = vunpack.c.h.b16 %v878
        %v2250 = vunpack.c.l.b16 %v879
        %v2251 = vunpack.c.h.b16 %v879
        %v2252 = vunpack.c.l.b16 %v880
        %v2253 = vunpack.c.h.b16 %v880
        %v2254 = vunpack.c.l.b16 %v881
        %v2255 = vunpack.c.h.b16 %v881
        %v2256 = vunpack.c.l.b16 %v882
        %v2257 = vunpack.c.h.b16 %v882
        %v2258 = vunpack.c.l.b16 %v883
        %v2259 = vunpack.c.h.b16 %v883
        %v2260 = vunpack.c.l.b16 %v884
        %v2261 = vunpack.c.h.b16 %v884
        %v2262 = vunpack.c.l.b16 %v885
        %v2263 = vunpack.c.h.b16 %v885
        %v2264 = vunpack.c.l.b16 %v886
        %v2265 = vunpack.c.h.b16 %v886
        %v2266 = vunpack.c.l.b16 %v887
        %v2267 = vunpack.c.h.b16 %v887
        %v2268 = vunpack.c.l.b16 %v888
        %v2269 = vunpack.c.h.b16 %v888
        %v2270 = vunpack.c.l.b16 %v889
        %v2271 = vunpack.c.h.b16 %v889
        %v2272 = vunpack.c.l.b16 %v890
        %v2273 = vunpack.c.h.b16 %v890
        %v2274 = vunpack.c.l.b16 %v891
        %v2275 = vunpack.c.h.b16 %v891
        %v2276 = vunpack.c.l.b16 %v892
        %v2277 = vunpack.c.h.b16 %v892
        %v2278 = vunpack.c.l.b16 %v893
        %v2279 = vunpack.c.h.b16 %v893
        %v2280 = vunpack.c.l.b16 %v894
        %v2281 = vunpack.c.h.b16 %v894
        %v2282 = vunpack.c.l.b16 %v895
        %v2283 = vunpack.c.h.b16 %v895
        %v2284 = vunpack.c.l.b16 %v896
        %v2285 = vunpack.c.h.b16 %v896
        %v2286 = vunpack.c.l.b16 %v897
        %v2287 = vunpack.c.h.b16 %v897
        %v2288 = vunpack.c.l.b16 %v898
        %v2289 = vunpack.c.h.b16 %v898
        %v2290 = vunpack.c.l.b16 %v899
        %v2291 = vunpack.c.h.b16 %v899
        %v2292 = vunpack.c.l.b16 %v900
        %v2293 = vunpack.c.h.b16 %v900
        %v2294 = vunpack.c.l.b16 %v901
        %v2295 = vunpack.c.h.b16 %v901
        %v2296 = vunpack.c.l.b16 %v902
        %v2297 = vunpack.c.h.b16 %v902
        %v2298 = vunpack.c.l.b16 %v903
        %v2299 = vunpack.c.h.b16 %v903
        %v2300 = vunpack.c.l.b16 %v904
        %v2301 = vunpack.c.h.b16 %v904
        %v2302 = vunpack.c.l.b16 %v905
        %v2303 = vunpack.c.h.b16 %v905
        %v2304 = vunpack.c.l.b16 %v906
        %v2305 = vunpack.c.h.b16 %v906
        %v2306 = vunpack.c.l.b16 %v907
        %v2307 = vunpack.c.h.b16 %v907
        %v2308 = vunpack.c.l.b16 %v908
        %v2309 = vunpack.c.h.b16 %v908
        %v2310 = vunpack.c.l.b16 %v909
        %v2311 = vunpack.c.h.b16 %v909
        %v2312 = vunpack.c.l.b16 %v910
        %v2313 = vunpack.c.h.b16 %v910
        %v2314 = vunpack.c.l.b16 %v911
        %v2315 = vunpack.c.h.b16 %v911
        %v2316 = vunpack.c.l.b16 %v912
        %v2317 = vunpack.c.h.b16 %v912
        %v2318 = vunpack.c.l.b16 %v913
        %v2319 = vunpack.c.h.b16 %v913
        %v2320 = vunpack.c.l.b16 %v914
        %v2321 = vunpack.c.h.b16 %v914
        %v2322 = vunpack.c.l.b16 %v915
        %v2323 = vunpack.c.h.b16 %v915
        %v2324 = vunpack.c.l.b16 %v916
        %v2325 = vunpack.c.h.b16 %v916
        %v2326 = vunpack.c.l.b16 %v917
        %v2327 = vunpack.c.h.b16 %v917
        %v2328 = vunpack.c.l.b16 %v918
        %v2329 = vunpack.c.h.b16 %v918
        %v2330 = vunpack.c.l.b16 %v919
        %v2331 = vunpack.c.h.b16 %v919
        %v2332 = vunpack.c.l.b16 %v920
        %v2333 = vunpack.c.h.b16 %v920
        %v2334 = vunpack.c.l.b16 %v921
        %v2335 = vunpack.c.h.b16 %v921
        %v2336 = vunpack.c.l.b16 %v922
        %v2337 = vunpack.c.h.b16 %v922
        %v2338 = vunpack.c.l.b16 %v923
        %v2339 = vunpack.c.h.b16 %v923
        %v2340 = vunpack.c.l.b16 %v924
        %v2341 = vunpack.c.h.b16 %v924
        %v2342 = vunpack.c.l.b16 %v925
        %v2343 = vunpack.c.h.b16 %v925
        %v2344 = vunpack.c.l.b16 %v926
        %v2345 = vunpack.c.h.b16 %v926
        %v2346 = vunpack.c.l.b16 %v927
        %v2347 = vunpack.c.h.b16 %v927
        %v2348 = vunpack.c.l.b16 %v928
        %v2349 = vunpack.c.h.b16 %v928
        %v2350 = vunpack.c.l.b16 %v929
        %v2351 = vunpack.c.h.b16 %v929
        %v2352 = vunpack.c.l.b16 %v930
        %v2353 = vunpack.c.h.b16 %v930
        %v2354 = vunpack.c.l.b16 %v931
        %v2355 = vunpack.c.h.b16 %v931
        %v2356 = vunpack.c.l.b16 %v932
        %v2357 = vunpack.c.h.b16 %v932
        %v2358 = vunpack.c.l.b16 %v933
        %v2359 = vunpack.c.h.b16 %v933
        %v2360 = vunpack.c.l.b16 %v934
        %v2361 = vunpack.c.h.b16 %v934
        %v2362 = vunpack.c.l.b16 %v935
        %v2363 = vunpack.c.h.b16 %v935
        %v2364 = vunpack.c.l.b16 %v936
        %v2365 = vunpack.c.h.b16 %v936
        %v2366 = vunpack.c.l.b16 %v937
        %v2367 = vunpack.c.h.b16 %v937
        %v2368 = vunpack.c.l.b16 %v938
        %v2369 = vunpack.c.h.b16 %v938
        %v2370 = vunpack.c.l.b16 %v939
        %v2371 = vunpack.c.h.b16 %v939
        %v2372 = vunpack.c.l.b16 %v940
        %v2373 = vunpack.c.h.b16 %v940
        %v2374 = vunpack.c.l.b16 %v941
        %v2375 = vunpack.c.h.b16 %v941
        %v2376 = vunpack.c.l.b16 %v942
        %v2377 = vunpack.c.h.b16 %v942
        %v2378 = vunpack.c.l.b16 %v943
        %v2379 = vunpack.c.h.b16 %v943
        %v2380 = vunpack.c.l.b16 %v944
        %v2381 = vunpack.c.h.b16 %v944
        %v2382 = vunpack.c.l.b16 %v945
        %v2383 = vunpack.c.h.b16 %v945
        %v2384 = vunpack.c.l.b16 %v946
        %v2385 = vunpack.c.h.b16 %v946
        %v2386 = vunpack.c.l.b16 %v947
        %v2387 = vunpack.c.h.b16 %v947
        %v2388 = vunpack.c.l.b16 %v948
        %v2389 = vunpack.c.h.b16 %v948
        %v2390 = vunpack.c.l.b16 %v949
        %v2391 = vunpack.c.h.b16 %v949
        %v2392 = vunpack.c.l.b16 %v950
        %v2393 = vunpack.c.h.b16 %v950
        %v2394 = vunpack.c.l.b16 %v951
        %v2395 = vunpack.c.h.b16 %v951
        %v2396 = vunpack.c.l.b16 %v952
        %v2397 = vunpack.c.h.b16 %v952
        %v2398 = vunpack.c.l.b16 %v953
        %v2399 = vunpack.c.h.b16 %v953
        %v2400 = vunpack.c.l.b16 %v954
        %v2401 = vunpack.c.h.b16 %v954
        %v2402 = vunpack.c.l.b16 %v955
        %v2403 = vunpack.c.h.b16 %v955
        %v2404 = vunpack.c.l.b16 %v956
        %v2405 = vunpack.c.h.b16 %v956
        %v2406 = vunpack.c.l.b16 %v957
        %v2407 = vunpack.c.h.b16 %v957
        %v2408 = vunpack.c.l.b16 %v958
        %v2409 = vunpack.c.h.b16 %v958
        %v2410 = vunpack.c.l.b16 %v959
        %v2411 = vunpack.c.h.b16 %v959
        %v2412 = vunpack.c.l.b16 %v960
        %v2413 = vunpack.c.h.b16 %v960
        %v2414 = vunpack.c.l.b16 %v961
        %v2415 = vunpack.c.h.b16 %v961
        %v2416 = vunpack.c.l.b16 %v962
        %v2417 = vunpack.c.h.b16 %v962
        %v2418 = vunpack.c.l.b16 %v963
        %v2419 = vunpack.c.h.b16 %v963
        %v2420 = vunpack.c.l.b16 %v964
        %v2421 = vunpack.c.h.b16 %v964
        %v2422 = vunpack.c.l.b16 %v965
        %v2423 = vunpack.c.h.b16 %v965
        %v2424 = vunpack.c.l.b16 %v966
        %v2425 = vunpack.c.h.b16 %v966
        %v2426 = vunpack.c.l.b16 %v967
        %v2427 = vunpack.c.h.b16 %v967
        %v2428 = vunpack.c.l.b16 %v968
        %v2429 = vunpack.c.h.b16 %v968
        %v2430 = vunpack.c.l.b16 %v969
        %v2431 = vunpack.c.h.b16 %v969
        %v2432 = vunpack.c.l.b16 %v970
        %v2433 = vunpack.c.h.b16 %v970
        %v2434 = vunpack.c.l.b16 %v971
        %v2435 = vunpack.c.h.b16 %v971
        %v2436 = vunpack.c.l.b16 %v972
        %v2437 = vunpack.c.h.b16 %v972
        %v2438 = vunpack.c.l.b16 %v973
        %v2439 = vunpack.c.h.b16 %v973
        %v2440 = vunpack.c.l.b16 %v974
        %v2441 = vunpack.c.h.b16 %v974
        %v2442 = vunpack.c.l.b16 %v975
        %v2443 = vunpack.c.h.b16 %v975
        %v2444 = vunpack.c.l.b16 %v976
        %v2445 = vunpack.c.h.b16 %v976
        %v2446 = vunpack.c.l.b16 %v977
        %v2447 = vunpack.c.h.b16 %v977
        %v2448 = vunpack.c.l.b16 %v978
        %v2449 = vunpack.c.h.b16 %v978
        %v2450 = vunpack.c.l.b16 %v979
        %v2451 = vunpack.c.h.b16 %v979
        %v2452 = vunpack.c.l.b16 %v980
        %v2453 = vunpack.c.h.b16 %v980
        %v2454 = vunpack.c.l.b16 %v981
        %v2455 = vunpack.c.h.b16 %v981
        %v2456 = vunpack.c.l.b16 %v982
        %v2457 = vunpack.c.h.b16 %v982
        %v2458 = vunpack.c.l.b16 %v983
        %v2459 = vunpack.c.h.b16 %v983
        %v2460 = vunpack.c.l.b16 %v984
        %v2461 = vunpack.c.h.b16 %v984
        %v2462 = vunpack.c.l.b16 %v985
        %v2463 = vunpack.c.h.b16 %v985
        %v2464 = vunpack.c.l.b16 %v986
        %v2465 = vunpack.c.h.b16 %v986
        %v2466 = vunpack.c.l.b16 %v987
        %v2467 = vunpack.c.h.b16 %v987
        %v2468 = vunpack.c.l.b16 %v988
        %v2469 = vunpack.c.h.b16 %v988
        %v2470 = vunpack.c.l.b16 %v989
        %v2471 = vunpack.c.h.b16 %v989
        %v2472 = vunpack.c.l.b16 %v990
        %v2473 = vunpack.c.h.b16 %v990
        %v2474 = vunpack.c.l.b16 %v991
        %v2475 = vunpack.c.h.b16 %v991
        %v2476 = vunpack.c.l.b16 %v992
        %v2477 = vunpack.c.h.b16 %v992
        %v2478 = vunpack.c.l.b16 %v993
        %v2479 = vunpack.c.h.b16 %v993
        %v2480 = vunpack.c.l.b16 %v994
        %v2481 = vunpack.c.h.b16 %v994
        %v2482 = vunpack.c.l.b16 %v995
        %v2483 = vunpack.c.h.b16 %v995
        %v2484 = vunpack.c.l.b16 %v996
        %v2485 = vunpack.c.h.b16 %v996
        %v2486 = vunpack.c.l.b16 %v997
        %v2487 = vunpack.c.h.b16 %v997
        %v2488 = vunpack.c.l.b16 %v998
        %v2489 = vunpack.c.h.b16 %v998
        %v2490 = vunpack.c.l.b16 %v999
        %v2491 = vunpack.c.h.b16 %v999
        %v2492 = vunpack.c.l.b16 %v1000
        %v2493 = vunpack.c.h.b16 %v1000
        %v2494 = vunpack.c.l.b16 %v1001
        %v2495 = vunpack.c.h.b16 %v1001
        %v2496 = vunpack.c.l.b16 %v1002
        %v2497 = vunpack.c.h.b16 %v1002
        %v2498 = vunpack.c.l.b16 %v1003
        %v2499 = vunpack.c.h.b16 %v1003
        %v2500 = vunpack.c.l.b16 %v1004
        %v2501 = vunpack.c.h.b16 %v1004
        %v2502 = vunpack.c.l.b16 %v1005
        %v2503 = vunpack.c.h.b16 %v1005
        %v2504 = vunpack.c.l.b16 %v1006
        %v2505 = vunpack.c.h.b16 %v1006
        %v2506 = vunpack.c.l.b16 %v1007
        %v2507 = vunpack.c.h.b16 %v1007
        %v2508 = vunpack.c.l.b16 %v1008
        %v2509 = vunpack.c.h.b16 %v1008
        %v2510 = vunpack.c.l.b16 %v1009
        %v2511 = vunpack.c.h.b16 %v1009
        %v2512 = vunpack.c.l.b16 %v1010
        %v2513 = vunpack.c.h.b16 %v1010
        %v2514 = vunpack.c.l.b16 %v1011
        %v2515 = vunpack.c.h.b16 %v1011
        %v2516 = vunpack.c.l.b16 %v1012
        %v2517 = vunpack.c.h.b16 %v1012
        %v2518 = vunpack.c.l.b16 %v1013
        %v2519 = vunpack.c.h.b16 %v1013
        %v2520 = vunpack.c.l.b16 %v1014
        %v2521 = vunpack.c.h.b16 %v1014
        %v2522 = vunpack.c.l.b16 %v1015
        %v2523 = vunpack.c.h.b16 %v1015
        %v2524 = vunpack.c.l.b16 %v1016
        %v2525 = vunpack.c.h.b16 %v1016
        %v2526 = vunpack.c.l.b16 %v1017
        %v2527 = vunpack.c.h.b16 %v1017
        %v2528 = vunpack.c.l.b16 %v1018
        %v2529 = vunpack.c.h.b16 %v1018
        %v2530 = vunpack.c.l.b16 %v1019
        %v2531 = vunpack.c.h.b16 %v1019
        %v2532 = vunpack.c.l.b16 %v1020
        %v2533 = vunpack.c.h.b16 %v1020
        %v2534 = vunpack.c.l.b16 %v1021
        %v2535 = vunpack.c.h.b16 %v1021
        %v2536 = vunpack.c.l.b16 %v1022
        %v2537 = vunpack.c.h.b16 %v1022
        %v2538 = vunpack.c.l.b16 %v1023
        %v2539 = vunpack.c.h.b16 %v1023
        %v2540 = vunpack.c.l.b16 %v1024
        %v2541 = vunpack.c.h.b16 %v1024
        %v2542 = vunpack.c.l.b16 %v1025
        %v2543 = vunpack.c.h.b16 %v1025
        %v2544 = vunpack.c.l.b16 %v1026
        %v2545 = vunpack.c.h.b16 %v1026
        %v2546 = vunpack.c.l.b16 %v1027
        %v2547 = vunpack.c.h.b16 %v1027
        %v2548 = vunpack.c.l.b16 %v1028
        %v2549 = vunpack.c.h.b16 %v1028
        %v2550 = vunpack.c.l.b16 %v1029
        %v2551 = vunpack.c.h.b16 %v1029
        %v2552 = vunpack.c.l.b16 %v1030
        %v2553 = vunpack.c.h.b16 %v1030
        %v2554 = vunpack.c.l.b16 %v1031
        %v2555 = vunpack.c.h.b16 %v1031
        %v2556 = vunpack.c.l.b16 %v1032
        %v2557 = vunpack.c.h.b16 %v1032
        %v2558 = vunpack.c.l.b16 %v1033
        %v2559 = vunpack.c.h.b16 %v1033
        %v2560 = vunpack.c.l.b16 %v1034
        %v2561 = vunpack.c.h.b16 %v1034
        %v2562 = vunpack.c.l.b16 %v1035
        %v2563 = vunpack.c.h.b16 %v1035
        %v2564 = vunpack.c.l.b16 %v1036
        %v2565 = vunpack.c.h.b16 %v1036
        %v2566 = vunpack.c.l.b16 %v1037
        %v2567 = vunpack.c.h.b16 %v1037
        %v2568 = vunpack.c.l.b16 %v1038
        %v2569 = vunpack.c.h.b16 %v1038
        %v2570 = vunpack.c.l.b16 %v1039
        %v2571 = vunpack.c.h.b16 %v1039
        %v2572 = vunpack.c.l.b16 %v1040
        %v2573 = vunpack.c.h.b16 %v1040
        %v2574 = vunpack.c.l.b16 %v1041
        %v2575 = vunpack.c.h.b16 %v1041
        %v2576 = vunpack.c.l.b16 %v1042
        %v2577 = vunpack.c.h.b16 %v1042
        %v2578 = vunpack.c.l.b16 %v1043
        %v2579 = vunpack.c.h.b16 %v1043
        %v2580 = vunpack.c.l.b16 %v1044
        %v2581 = vunpack.c.h.b16 %v1044
        %v2582 = vunpack.c.l.b16 %v1045
        %v2583 = vunpack.c.h.b16 %v1045
        %v2584 = vunpack.c.l.b16 %v1046
        %v2585 = vunpack.c.h.b16 %v1046
        %v2586 = vunpack.c.l.b16 %v1047
        %v2587 = vunpack.c.h.b16 %v1047
        %v2588 = vunpack.c.l.b16 %v1048
        %v2589 = vunpack.c.h.b16 %v1048
        %v2590 = vunpack.c.l.b16 %v1049
        %v2591 = vunpack.c.h.b16 %v1049
        %v2592 = vunpack.c.l.b16 %v1050
        %v2593 = vunpack.c.h.b16 %v1050
        %v2594 = vunpack.c.l.b16 %v1051
        %v2595 = vunpack.c.h.b16 %v1051
        %v2596 = vunpack.c.l.b16 %v1052
        %v2597 = vunpack.c.h.b16 %v1052
        %v2598 = vunpack.c.l.b16 %v1053
        %v2599 = vunpack.c.h.b16 %v1053
        %v2600 = vunpack.c.l.b16 %v1054
        %v2601 = vunpack.c.h.b16 %v1054
        %v2602 = vunpack.c.l.b16 %v1055
        %v2603 = vunpack.c.h.b16 %v1055
        %v2604 = vunpack.c.l.b16 %v1056
        %v2605 = vunpack.c.h.b16 %v1056
        %v2606 = vunpack.c.l.b16 %v1057
        %v2607 = vunpack.c.h.b16 %v1057
        %v2608 = vunpack.c.l.b16 %v1058
        %v2609 = vunpack.c.h.b16 %v1058
        %v2610 = vunpack.c.l.b16 %v1059
        %v2611 = vunpack.c.h.b16 %v1059
        %v2612 = vunpack.c.l.b16 %v1060
        %v2613 = vunpack.c.h.b16 %v1060
        %v2614 = vunpack.c.l.b16 %v1061
        %v2615 = vunpack.c.h.b16 %v1061
        %v2616 = vunpack.c.l.b16 %v1062
        %v2617 = vunpack.c.h.b16 %v1062
        %v2618 = vunpack.c.l.b16 %v1063
        %v2619 = vunpack.c.h.b16 %v1063
        %v2620 = vunpack.c.l.b16 %v1064
        %v2621 = vunpack.c.h.b16 %v1064
        %v2622 = vunpack.c.l.b16 %v1065
        %v2623 = vunpack.c.h.b16 %v1065
        %v2624 = vunpack.c.l.b16 %v1066
        %v2625 = vunpack.c.h.b16 %v1066
        %v2626 = vunpack.c.l.b16 %v1067
        %v2627 = vunpack.c.h.b16 %v1067
        %v2628 = vunpack.c.l.b16 %v1068
        %v2629 = vunpack.c.h.b16 %v1068
        %v2630 = vunpack.c.l.b16 %v1069
        %v2631 = vunpack.c.h.b16 %v1069
        %v2632 = vunpack.c.l.b16 %v1070
        %v2633 = vunpack.c.h.b16 %v1070
        %v2634 = vunpack.c.l.b16 %v1071
        %v2635 = vunpack.c.h.b16 %v1071
        %v2636 = vunpack.c.l.b16 %v1072
        %v2637 = vunpack.c.h.b16 %v1072
        %v2638 = vunpack.c.l.b16 %v1073
        %v2639 = vunpack.c.h.b16 %v1073
        %v2640 = vunpack.c.l.b16 %v1074
        %v2641 = vunpack.c.h.b16 %v1074
        %v2642 = vunpack.c.l.b16 %v1075
        %v2643 = vunpack.c.h.b16 %v1075
        %v2644 = vunpack.c.l.b16 %v1076
        %v2645 = vunpack.c.h.b16 %v1076
        %v2646 = vunpack.c.l.b16 %v1077
        %v2647 = vunpack.c.h.b16 %v1077
        %v2648 = vunpack.c.l.b16 %v1078
        %v2649 = vunpack.c.h.b16 %v1078
        %v2650 = vunpack.c.l.b16 %v1079
        %v2651 = vunpack.c.h.b16 %v1079
        %v2652 = vunpack.c.l.b16 %v1080
        %v2653 = vunpack.c.h.b16 %v1080
        %v2654 = vunpack.c.l.b16 %v1081
        %v2655 = vunpack.c.h.b16 %v1081
        %v2656 = vunpack.c.l.b16 %v1082
        %v2657 = vunpack.c.h.b16 %v1082
        %v2658 = vunpack.c.l.b16 %v1083
        %v2659 = vunpack.c.h.b16 %v1083
        %v2660 = vunpack.c.l.b16 %v1084
        %v2661 = vunpack.c.h.b16 %v1084
        %v2662 = vunpack.c.l.b16 %v1085
        %v2663 = vunpack.c.h.b16 %v1085
        %v2664 = vpack.c.b16 %v1648, %v1640
        %v2665 = vpack.c.b16 %v1649, %v1641
        %v2666 = vpack.c.b16 %v1650, %v1642
        %v2667 = vpack.c.b16 %v1651, %v1643
        %v2668 = vpack.c.b16 %v1652, %v1644
        %v2669 = vpack.c.b16 %v1653, %v1645
        %v2670 = vpack.c.b16 %v1654, %v1646
        %v2671 = vpack.c.b16 %v1655, %v1647
        %v2672 = vpack.c.b16 %v1664, %v1656
        %v2673 = vpack.c.b16 %v1665, %v1657
        %v2674 = vpack.c.b16 %v1666, %v1658
        %v2675 = vpack.c.b16 %v1667, %v1659
        %v2676 = vpack.c.b16 %v1668, %v1660
        %v2677 = vpack.c.b16 %v1669, %v1661
        %v2678 = vpack.c.b16 %v1670, %v1662
        %v2679 = vpack.c.b16 %v1671, %v1663
        %v2680 = vpack.c.b16 %v1680, %v1672
        %v2681 = vpack.c.b16 %v1681, %v1673
        %v2682 = vpack.c.b16 %v1682, %v1674
        %v2683 = vpack.c.b16 %v1683, %v1675
        %v2684 = vpack.c.b16 %v1684, %v1676
        %v2685 = vpack.c.b16 %v1685, %v1677
        %v2686 = vpack.c.b16 %v1686, %v1678
        %v2687 = vpack.c.b16 %v1687, %v1679
        %v2688 = vpack.c.b16 %v1696, %v1688
        %v2689 = vpack.c.b16 %v1697, %v1689
        %v2690 = vpack.c.b16 %v1698, %v1690
        %v2691 = vpack.c.b16 %v1699, %v1691
        %v2692 = vpack.c.b16 %v1700, %v1692
        %v2693 = vpack.c.b16 %v1701, %v1693
        %v2694 = vpack.c.b16 %v1702, %v1694
        %v2695 = vpack.c.b16 %v1703, %v1695
        %v2696 = vpack.c.b16 %v1712, %v1704
        %v2697 = vpack.c.b16 %v1713, %v1705
        %v2698 = vpack.c.b16 %v1714, %v1706
        %v2699 = vpack.c.b16 %v1715, %v1707
        %v2700 = vpack.c.b16 %v1716, %v1708
        %v2701 = vpack.c.b16 %v1717, %v1709
        %v2702 = vpack.c.b16 %v1718, %v1710
        %v2703 = vpack.c.b16 %v1719, %v1711
        %v2704 = vpack.c.b16 %v1728, %v1720
        %v2705 = vpack.c.b16 %v1729, %v1721
        %v2706 = vpack.c.b16 %v1730, %v1722
        %v2707 = vpack.c.b16 %v1731, %v1723
        %v2708 = vpack.c.b16 %v1732, %v1724
        %v2709 = vpack.c.b16 %v1733, %v1725
        %v2710 = vpack.c.b16 %v1734, %v1726
        %v2711 = vpack.c.b16 %v1735, %v1727
        %v2712 = vpack.c.b16 %v1744, %v1736
        %v2713 = vpack.c.b16 %v1745, %v1737
        %v2714 = vpack.c.b16 %v1746, %v1738
        %v2715 = vpack.c.b16 %v1747, %v1739
        %v2716 = vpack.c.b16 %v1748, %v1740
        %v2717 = vpack.c.b16 %v1749, %v1741
        %v2718 = vpack.c.b16 %v1750, %v1742
        %v2719 = vpack.c.b16 %v1751, %v1743
        %v2720 = vpack.c.b16 %v1760, %v1752
        %v2721 = vpack.c.b16 %v1761, %v1753
        %v2722 = vpack.c.b16 %v1762, %v1754
        %v2723 = vpack.c.b16 %v1763, %v1755
        %v2724 = vpack.c.b16 %v1764, %v1756
        %v2725 = vpack.c.b16 %v1765, %v1757
        %v2726 = vpack.c.b16 %v1766, %v1758
        %v2727 = vpack.c.b16 %v1767, %v1759
        %v2728 = vpack.c.b16 %v1776, %v1768
        %v2729 = vpack.c.b16 %v1777, %v1769
        %v2730 = vpack.c.b16 %v1778, %v1770
        %v2731 = vpack.c.b16 %v1779, %v1771
        %v2732 = vpack.c.b16 %v1780, %v1772
        %v2733 = vpack.c.b16 %v1781, %v1773
        %v2734 = vpack.c.b16 %v1782, %v1774
        %v2735 = vpack.c.b16 %v1783, %v1775
        %v2736 = vpack.c.b16 %v1792, %v1784
        %v2737 = vpack.c.b16 %v1793, %v1785
        %v2738 = vpack.c.b16 %v1794, %v1786
        %v2739 = vpack.c.b16 %v1795, %v1787
        %v2740 = vpack.c.b16 %v1796, %v1788
        %v2741 = vpack.c.b16 %v1797, %v1789
        %v2742 = vpack.c.b16 %v1798, %v1790
        %v2743 = vpack.c.b16 %v1799, %v1791
        %v2744 = vpack.c.b16 %v1808, %v1800
        %v2745 = vpack.c.b16 %v1809, %v1801
        %v2746 = vpack.c.b16 %v1810, %v1802
        %v2747 = vpack.c.b16 %v1811, %v1803
        %v2748 = vpack.c.b16 %v1812, %v1804
        %v2749 = vpack.c.b16 %v1813, %v1805
        %v2750 = vpack.c.b16 %v1814, %v1806
        %v2751 = vpack.c.b16 %v1815, %v1807
        %v2752 = vpack.c.b16 %v1824, %v1816
        %v2753 = vpack.c.b16 %v1825, %v1817
        %v2754 = vpack.c.b16 %v1826, %v1818
        %v2755 = vpack.c.b16 %v1827, %v1819
        %v2756 = vpack.c.b16 %v1828, %v1820
        %v2757 = vpack.c.b16 %v1829, %v1821
        %v2758 = vpack.c.b16 %v1830, %v1822
        %v2759 = vpack.c.b16 %v1831, %v1823
        %v2760 = vpack.c.b16 %v1840, %v1832
        %v2761 = vpack.c.b16 %v1841, %v1833
        %v2762 = vpack.c.b16 %v1842, %v1834
        %v2763 = vpack.c.b16 %v1843, %v1835
        %v2764 = vpack.c.b16 %v1844, %v1836
        %v2765 = vpack.c.b16 %v1845, %v1837
        %v2766 = vpack.c.b16 %v1846, %v1838
        %v2767 = vpack.c.b16 %v1847, %v1839
        %v2768 = vpack.c.b16 %v1856, %v1848
        %v2769 = vpack.c.b16 %v1857, %v1849
        %v2770 = vpack.c.b16 %v1858, %v1850
        %v2771 = vpack.c.b16 %v1859, %v1851
        %v2772 = vpack.c.b16 %v1860, %v1852
        %v2773 = vpack.c.b16 %v1861, %v1853
        %v2774 = vpack.c.b16 %v1862, %v1854
        %v2775 = vpack.c.b16 %v1863, %v1855
        %v2776 = vpack.c.b16 %v1872, %v1864
        %v2777 = vpack.c.b16 %v1873, %v1865
        %v2778 = vpack.c.b16 %v1874, %v1866
        %v2779 = vpack.c.b16 %v1875, %v1867
        %v2780 = vpack.c.b16 %v1876, %v1868
        %v2781 = vpack.c.b16 %v1877, %v1869
        %v2782 = vpack.c.b16 %v1878, %v1870
        %v2783 = vpack.c.b16 %v1879, %v1871
        %v2784 = vpack.c.b16 %v1888, %v1880
        %v2785 = vpack.c.b16 %v1889, %v1881
        %v2786 = vpack.c.b16 %v1890, %v1882
        %v2787 = vpack.c.b16 %v1891, %v1883
        %v2788 = vpack.c.b16 %v1892, %v1884
        %v2789 = vpack.c.b16 %v1893, %v1885
        %v2790 = vpack.c.b16 %v1894, %v1886
        %v2791 = vpack.c.b16 %v1895, %v1887
        %v2792 = vpack.c.b16 %v1904, %v1896
        %v2793 = vpack.c.b16 %v1905, %v1897
        %v2794 = vpack.c.b16 %v1906, %v1898
        %v2795 = vpack.c.b16 %v1907, %v1899
        %v2796 = vpack.c.b16 %v1908, %v1900
        %v2797 = vpack.c.b16 %v1909, %v1901
        %v2798 = vpack.c.b16 %v1910, %v1902
        %v2799 = vpack.c.b16 %v1911, %v1903
        %v2800 = vpack.c.b16 %v1920, %v1912
        %v2801 = vpack.c.b16 %v1921, %v1913
        %v2802 = vpack.c.b16 %v1922, %v1914
        %v2803 = vpack.c.b16 %v1923, %v1915
        %v2804 = vpack.c.b16 %v1924, %v1916
        %v2805 = vpack.c.b16 %v1925, %v1917
        %v2806 = vpack.c.b16 %v1926, %v1918
        %v2807 = vpack.c.b16 %v1927, %v1919
        %v2808 = vpack.c.b16 %v1936, %v1928
        %v2809 = vpack.c.b16 %v1937, %v1929
        %v2810 = vpack.c.b16 %v1938, %v1930
        %v2811 = vpack.c.b16 %v1939, %v1931
        %v2812 = vpack.c.b16 %v1940, %v1932
        %v2813 = vpack.c.b16 %v1941, %v1933
        %v2814 = vpack.c.b16 %v1942, %v1934
        %v2815 = vpack.c.b16 %v1943, %v1935
        %v2816 = vpack.c.b16 %v1952, %v1944
        %v2817 = vpack.c.b16 %v1953, %v1945
        %v2818 = vpack.c.b16 %v1954, %v1946
        %v2819 = vpack.c.b16 %v1955, %v1947
        %v2820 = vpack.c.b16 %v1956, %v1948
        %v2821 = vpack.c.b16 %v1957, %v1949
        %v2822 = vpack.c.b16 %v1958, %v1950
        %v2823 = vpack.c.b16 %v1959, %v1951
        %v2824 = vpack.c.b16 %v1968, %v1960
        %v2825 = vpack.c.b16 %v1969, %v1961
        %v2826 = vpack.c.b16 %v1970, %v1962
        %v2827 = vpack.c.b16 %v1971, %v1963
        %v2828 = vpack.c.b16 %v1972, %v1964
        %v2829 = vpack.c.b16 %v1973, %v1965
        %v2830 = vpack.c.b16 %v1974, %v1966
        %v2831 = vpack.c.b16 %v1975, %v1967
        %v2832 = vpack.c.b16 %v1984, %v1976
        %v2833 = vpack.c.b16 %v1985, %v1977
        %v2834 = vpack.c.b16 %v1986, %v1978
        %v2835 = vpack.c.b16 %v1987, %v1979
        %v2836 = vpack.c.b16 %v1988, %v1980
        %v2837 = vpack.c.b16 %v1989, %v1981
        %v2838 = vpack.c.b16 %v1990, %v1982
        %v2839 = vpack.c.b16 %v1991, %v1983
        %v2840 = vpack.c.b16 %v2000, %v1992
        %v2841 = vpack.c.b16 %v2001, %v1993
        %v2842 = vpack.c.b16 %v2002, %v1994
        %v2843 = vpack.c.b16 %v2003, %v1995
        %v2844 = vpack.c.b16 %v2004, %v1996
        %v2845 = vpack.c.b16 %v2005, %v1997
        %v2846 = vpack.c.b16 %v2006, %v1998
        %v2847 = vpack.c.b16 %v2007, %v1999
        %v2848 = vpack.c.b16 %v2016, %v2008
        %v2849 = vpack.c.b16 %v2017, %v2009
        %v2850 = vpack.c.b16 %v2018, %v2010
        %v2851 = vpack.c.b16 %v2019, %v2011
        %v2852 = vpack.c.b16 %v2020, %v2012
        %v2853 = vpack.c.b16 %v2021, %v2013
        %v2854 = vpack.c.b16 %v2022, %v2014
        %v2855 = vpack.c.b16 %v2023, %v2015
        %v2856 = vpack.c.b16 %v2032, %v2024
        %v2857 = vpack.c.b16 %v2033, %v2025
        %v2858 = vpack.c.b16 %v2034, %v2026
        %v2859 = vpack.c.b16 %v2035, %v2027
        %v2860 = vpack.c.b16 %v2036, %v2028
        %v2861 = vpack.c.b16 %v2037, %v2029
        %v2862 = vpack.c.b16 %v2038, %v2030
        %v2863 = vpack.c.b16 %v2039, %v2031
        %v2864 = vpack.c.b16 %v2048, %v2040
        %v2865 = vpack.c.b16 %v2049, %v2041
        %v2866 = vpack.c.b16 %v2050, %v2042
        %v2867 = vpack.c.b16 %v2051, %v2043
        %v2868 = vpack.c.b16 %v2052, %v2044
        %v2869 = vpack.c.b16 %v2053, %v2045
        %v2870 = vpack.c.b16 %v2054, %v2046
        %v2871 = vpack.c.b16 %v2055, %v2047
        %v2872 = vpack.c.b16 %v2064, %v2056
        %v2873 = vpack.c.b16 %v2065, %v2057
        %v2874 = vpack.c.b16 %v2066, %v2058
        %v2875 = vpack.c.b16 %v2067, %v2059
        %v2876 = vpack.c.b16 %v2068, %v2060
        %v2877 = vpack.c.b16 %v2069, %v2061
        %v2878 = vpack.c.b16 %v2070, %v2062
        %v2879 = vpack.c.b16 %v2071, %v2063
        %v2880 = vpack.c.b16 %v2080, %v2072
        %v2881 = vpack.c.b16 %v2081, %v2073
        %v2882 = vpack.c.b16 %v2082, %v2074
        %v2883 = vpack.c.b16 %v2083, %v2075
        %v2884 = vpack.c.b16 %v2084, %v2076
        %v2885 = vpack.c.b16 %v2085, %v2077
        %v2886 = vpack.c.b16 %v2086, %v2078
        %v2887 = vpack.c.b16 %v2087, %v2079
        %v2888 = vpack.c.b16 %v2096, %v2088
        %v2889 = vpack.c.b16 %v2097, %v2089
        %v2890 = vpack.c.b16 %v2098, %v2090
        %v2891 = vpack.c.b16 %v2099, %v2091
        %v2892 = vpack.c.b16 %v2100, %v2092
        %v2893 = vpack.c.b16 %v2101, %v2093
        %v2894 = vpack.c.b16 %v2102, %v2094
        %v2895 = vpack.c.b16 %v2103, %v2095
        %v2896 = vpack.c.b16 %v2112, %v2104
        %v2897 = vpack.c.b16 %v2113, %v2105
        %v2898 = vpack.c.b16 %v2114, %v2106
        %v2899 = vpack.c.b16 %v2115, %v2107
        %v2900 = vpack.c.b16 %v2116, %v2108
        %v2901 = vpack.c.b16 %v2117, %v2109
        %v2902 = vpack.c.b16 %v2118, %v2110
        %v2903 = vpack.c.b16 %v2119, %v2111
        %v2904 = vpack.c.b16 %v2128, %v2120
        %v2905 = vpack.c.b16 %v2129, %v2121
        %v2906 = vpack.c.b16 %v2130, %v2122
        %v2907 = vpack.c.b16 %v2131, %v2123
        %v2908 = vpack.c.b16 %v2132, %v2124
        %v2909 = vpack.c.b16 %v2133, %v2125
        %v2910 = vpack.c.b16 %v2134, %v2126
        %v2911 = vpack.c.b16 %v2135, %v2127
        %v2912 = vpack.c.b16 %v2144, %v2136
        %v2913 = vpack.c.b16 %v2145, %v2137
        %v2914 = vpack.c.b16 %v2146, %v2138
        %v2915 = vpack.c.b16 %v2147, %v2139
        %v2916 = vpack.c.b16 %v2148, %v2140
        %v2917 = vpack.c.b16 %v2149, %v2141
        %v2918 = vpack.c.b16 %v2150, %v2142
        %v2919 = vpack.c.b16 %v2151, %v2143
        %v2920 = vpack.c.b16 %v2160, %v2152
        %v2921 = vpack.c.b16 %v2161, %v2153
        %v2922 = vpack.c.b16 %v2162, %v2154
        %v2923 = vpack.c.b16 %v2163, %v2155
        %v2924 = vpack.c.b16 %v2164, %v2156
        %v2925 = vpack.c.b16 %v2165, %v2157
        %v2926 = vpack.c.b16 %v2166, %v2158
        %v2927 = vpack.c.b16 %v2167, %v2159
        %v2928 = vpack.c.b16 %v2176, %v2168
        %v2929 = vpack.c.b16 %v2177, %v2169
        %v2930 = vpack.c.b16 %v2178, %v2170
        %v2931 = vpack.c.b16 %v2179, %v2171
        %v2932 = vpack.c.b16 %v2180, %v2172
        %v2933 = vpack.c.b16 %v2181, %v2173
        %v2934 = vpack.c.b16 %v2182, %v2174
        %v2935 = vpack.c.b16 %v2183, %v2175
        %v2936 = vpack.c.b16 %v2192, %v2184
        %v2937 = vpack.c.b16 %v2193, %v2185
        %v2938 = vpack.c.b16 %v2194, %v2186
        %v2939 = vpack.c.b16 %v2195, %v2187
        %v2940 = vpack.c.b16 %v2196, %v2188
        %v2941 = vpack.c.b16 %v2197, %v2189
        %v2942 = vpack.c.b16 %v2198, %v2190
        %v2943 = vpack.c.b16 %v2199, %v2191
        %v2944 = vpack.c.b16 %v2208, %v2200
        %v2945 = vpack.c.b16 %v2209, %v2201
        %v2946 = vpack.c.b16 %v2210, %v2202
        %v2947 = vpack.c.b16 %v2211, %v2203
        %v2948 = vpack.c.b16 %v2212, %v2204
        %v2949 = vpack.c.b16 %v2213, %v2205
        %v2950 = vpack.c.b16 %v2214, %v2206
        %v2951 = vpack.c.b16 %v2215, %v2207
        %v2952 = vpack.c.b16 %v2224, %v2216
        %v2953 = vpack.c.b16 %v2225, %v2217
        %v2954 = vpack.c.b16 %v2226, %v2218
        %v2955 = vpack.c.b16 %v2227, %v2219
        %v2956 = vpack.c.b16 %v2228, %v2220
        %v2957 = vpack.c.b16 %v2229, %v2221
        %v2958 = vpack.c.b16 %v2230, %v2222
        %v2959 = vpack.c.b16 %v2231, %v2223
        %v2960 = vpack.c.b16 %v2240, %v2232
        %v2961 = vpack.c.b16 %v2241, %v2233
        %v2962 = vpack.c.b16 %v2242, %v2234
        %v2963 = vpack.c.b16 %v2243, %v2235
        %v2964 = vpack.c.b16 %v2244, %v2236
        %v2965 = vpack.c.b16 %v2245, %v2237
        %v2966 = vpack.c.b16 %v2246, %v2238
        %v2967 = vpack.c.b16 %v2247, %v2239
        %v2968 = vpack.c.b16 %v2256, %v2248
        %v2969 = vpack.c.b16 %v2257, %v2249
        %v2970 = vpack.c.b16 %v2258, %v2250
        %v2971 = vpack.c.b16 %v2259, %v2251
        %v2972 = vpack.c.b16 %v2260, %v2252
        %v2973 = vpack.c.b16 %v2261, %v2253
        %v2974 = vpack.c.b16 %v2262, %v2254
        %v2975 = vpack.c.b16 %v2263, %v2255
        %v2976 = vpack.c.b16 %v2272, %v2264
        %v2977 = vpack.c.b16 %v2273, %v2265
        %v2978 = vpack.c.b16 %v2274, %v2266
        %v2979 = vpack.c.b16 %v2275, %v2267
        %v2980 = vpack.c.b16 %v2276, %v2268
        %v2981 = vpack.c.b16 %v2277, %v2269
        %v2982 = vpack.c.b16 %v2278, %v2270
        %v2983 = vpack.c.b16 %v2279, %v2271
        %v2984 = vpack.c.b16 %v2288, %v2280
        %v2985 = vpack.c.b16 %v2289, %v2281
        %v2986 = vpack.c.b16 %v2290, %v2282
        %v2987 = vpack.c.b16 %v2291, %v2283
        %v2988 = vpack.c.b16 %v2292, %v2284
        %v2989 = vpack.c.b16 %v2293, %v2285
        %v2990 = vpack.c.b16 %v2294, %v2286
        %v2991 = vpack.c.b16 %v2295, %v2287
        %v2992 = vpack.c.b16 %v2304, %v2296
        %v2993 = vpack.c.b16 %v2305, %v2297
        %v2994 = vpack.c.b16 %v2306, %v2298
        %v2995 = vpack.c.b16 %v2307, %v2299
        %v2996 = vpack.c.b16 %v2308, %v2300
        %v2997 = vpack.c.b16 %v2309, %v2301
        %v2998 = vpack.c.b16 %v2310, %v2302
        %v2999 = vpack.c.b16 %v2311, %v2303
        %v3000 = vpack.c.b16 %v2320, %v2312
        %v3001 = vpack.c.b16 %v2321, %v2313
        %v3002 = vpack.c.b16 %v2322, %v2314
        %v3003 = vpack.c.b16 %v2323, %v2315
        %v3004 = vpack.c.b16 %v2324, %v2316
        %v3005 = vpack.c.b16 %v2325, %v2317
        %v3006 = vpack.c.b16 %v2326, %v2318
        %v3007 = vpack.c.b16 %v2327, %v2319
        %v3008 = vpack.c.b16 %v2336, %v2328
        %v3009 = vpack.c.b16 %v2337, %v2329
        %v3010 = vpack.c.b16 %v2338, %v2330
        %v3011 = vpack.c.b16 %v2339, %v2331
        %v3012 = vpack.c.b16 %v2340, %v2332
        %v3013 = vpack.c.b16 %v2341, %v2333
        %v3014 = vpack.c.b16 %v2342, %v2334
        %v3015 = vpack.c.b16 %v2343, %v2335
        %v3016 = vpack.c.b16 %v2352, %v2344
        %v3017 = vpack.c.b16 %v2353, %v2345
        %v3018 = vpack.c.b16 %v2354, %v2346
        %v3019 = vpack.c.b16 %v2355, %v2347
        %v3020 = vpack.c.b16 %v2356, %v2348
        %v3021 = vpack.c.b16 %v2357, %v2349
        %v3022 = vpack.c.b16 %v2358, %v2350
        %v3023 = vpack.c.b16 %v2359, %v2351
        %v3024 = vpack.c.b16 %v2368, %v2360
        %v3025 = vpack.c.b16 %v2369, %v2361
        %v3026 = vpack.c.b16 %v2370, %v2362
        %v3027 = vpack.c.b16 %v2371, %v2363
        %v3028 = vpack.c.b16 %v2372, %v2364
        %v3029 = vpack.c.b16 %v2373, %v2365
        %v3030 = vpack.c.b16 %v2374, %v2366
        %v3031 = vpack.c.b16 %v2375, %v2367
        %v3032 = vpack.c.b16 %v2384, %v2376
        %v3033 = vpack.c.b16 %v2385, %v2377
        %v3034 = vpack.c.b16 %v2386, %v2378
        %v3035 = vpack.c.b16 %v2387, %v2379
        %v3036 = vpack.c.b16 %v2388, %v2380
        %v3037 = vpack.c.b16 %v2389, %v2381
        %v3038 = vpack.c.b16 %v2390, %v2382
        %v3039 = vpack.c.b16 %v2391, %v2383
        %v3040 = vpack.c.b16 %v2400, %v2392
        %v3041 = vpack.c.b16 %v2401, %v2393
        %v3042 = vpack.c.b16 %v2402, %v2394
        %v3043 = vpack.c.b16 %v2403, %v2395
        %v3044 = vpack.c.b16 %v2404, %v2396
        %v3045 = vpack.c.b16 %v2405, %v2397
        %v3046 = vpack.c.b16 %v2406, %v2398
        %v3047 = vpack.c.b16 %v2407, %v2399
        %v3048 = vpack.c.b16 %v2416, %v2408
        %v3049 = vpack.c.b16 %v2417, %v2409
        %v3050 = vpack.c.b16 %v2418, %v2410
        %v3051 = vpack.c.b16 %v2419, %v2411
        %v3052 = vpack.c.b16 %v2420, %v2412
        %v3053 = vpack.c.b16 %v2421, %v2413
        %v3054 = vpack.c.b16 %v2422, %v2414
        %v3055 = vpack.c.b16 %v2423, %v2415
        %v3056 = vpack.c.b16 %v2432, %v2424
        %v3057 = vpack.c.b16 %v2433, %v2425
        %v3058 = vpack.c.b16 %v2434, %v2426
        %v3059 = vpack.c.b16 %v2435, %v2427
        %v3060 = vpack.c.b16 %v2436, %v2428
        %v3061 = vpack.c.b16 %v2437, %v2429
        %v3062 = vpack.c.b16 %v2438, %v2430
        %v3063 = vpack.c.b16 %v2439, %v2431
        %v3064 = vpack.c.b16 %v2448, %v2440
        %v3065 = vpack.c.b16 %v2449, %v2441
        %v3066 = vpack.c.b16 %v2450, %v2442
        %v3067 = vpack.c.b16 %v2451, %v2443
        %v3068 = vpack.c.b16 %v2452, %v2444
        %v3069 = vpack.c.b16 %v2453, %v2445
        %v3070 = vpack.c.b16 %v2454, %v2446
        %v3071 = vpack.c.b16 %v2455, %v2447
        %v3072 = vpack.c.b16 %v2464, %v2456
        %v3073 = vpack.c.b16 %v2465, %v2457
        %v3074 = vpack.c.b16 %v2466, %v2458
        %v3075 = vpack.c.b16 %v2467, %v2459
        %v3076 = vpack.c.b16 %v2468, %v2460
        %v3077 = vpack.c.b16 %v2469, %v2461
        %v3078 = vpack.c.b16 %v2470, %v2462
        %v3079 = vpack.c.b16 %v2471, %v2463
        %v3080 = vpack.c.b16 %v2480, %v2472
        %v3081 = vpack.c.b16 %v2481, %v2473
        %v3082 = vpack.c.b16 %v2482, %v2474
        %v3083 = vpack.c.b16 %v2483, %v2475
        %v3084 = vpack.c.b16 %v2484, %v2476
        %v3085 = vpack.c.b16 %v2485, %v2477
        %v3086 = vpack.c.b16 %v2486, %v2478
        %v3087 = vpack.c.b16 %v2487, %v2479
        %v3088 = vpack.c.b16 %v2496, %v2488
        %v3089 = vpack.c.b16 %v2497, %v2489
        %v3090 = vpack.c.b16 %v2498, %v2490
        %v3091 = vpack.c.b16 %v2499, %v2491
        %v3092 = vpack.c.b16 %v2500, %v2492
        %v3093 = vpack.c.b16 %v2501, %v2493
        %v3094 = vpack.c.b16 %v2502, %v2494
        %v3095 = vpack.c.b16 %v2503, %v2495
        %v3096 = vpack.c.b16 %v2512, %v2504
        %v3097 = vpack.c.b16 %v2513, %v2505
        %v3098 = vpack.c.b16 %v2514, %v2506
        %v3099 = vpack.c.b16 %v2515, %v2507
        %v3100 = vpack.c.b16 %v2516, %v2508
        %v3101 = vpack.c.b16 %v2517, %v2509
        %v3102 = vpack.c.b16 %v2518, %v2510
        %v3103 = vpack.c.b16 %v2519, %v2511
        %v3104 = vpack.c.b16 %v2528, %v2520
        %v3105 = vpack.c.b16 %v2529, %v2521
        %v3106 = vpack.c.b16 %v2530, %v2522
        %v3107 = vpack.c.b16 %v2531, %v2523
        %v3108 = vpack.c.b16 %v2532, %v2524
        %v3109 = vpack.c.b16 %v2533, %v2525
        %v3110 = vpack.c.b16 %v2534, %v2526
        %v3111 = vpack.c.b16 %v2535, %v2527
        %v3112 = vpack.c.b16 %v2544, %v2536
        %v3113 = vpack.c.b16 %v2545, %v2537
        %v3114 = vpack.c.b16 %v2546, %v2538
        %v3115 = vpack.c.b16 %v2547, %v2539
        %v3116 = vpack.c.b16 %v2548, %v2540
        %v3117 = vpack.c.b16 %v2549, %v2541
        %v3118 = vpack.c.b16 %v2550, %v2542
        %v3119 = vpack.c.b16 %v2551, %v2543
        %v3120 = vpack.c.b16 %v2560, %v2552
        %v3121 = vpack.c.b16 %v2561, %v2553
        %v3122 = vpack.c.b16 %v2562, %v2554
        %v3123 = vpack.c.b16 %v2563, %v2555
        %v3124 = vpack.c.b16 %v2564, %v2556
        %v3125 = vpack.c.b16 %v2565, %v2557
        %v3126 = vpack.c.b16 %v2566, %v2558
        %v3127 = vpack.c.b16 %v2567, %v2559
        %v3128 = vpack.c.b16 %v2576, %v2568
        %v3129 = vpack.c.b16 %v2577, %v2569
        %v3130 = vpack.c.b16 %v2578, %v2570
        %v3131 = vpack.c.b16 %v2579, %v2571
        %v3132 = vpack.c.b16 %v2580, %v2572
        %v3133 = vpack.c.b16 %v2581, %v2573
        %v3134 = vpack.c.b16 %v2582, %v2574
        %v3135 = vpack.c.b16 %v2583, %v2575
        %v3136 = vpack.c.b16 %v2592, %v2584
        %v3137 = vpack.c.b16 %v2593, %v2585
        %v3138 = vpack.c.b16 %v2594, %v2586
        %v3139 = vpack.c.b16 %v2595, %v2587
        %v3140 = vpack.c.b16 %v2596, %v2588
        %v3141 = vpack.c.b16 %v2597, %v2589
        %v3142 = vpack.c.b16 %v2598, %v2590
        %v3143 = vpack.c.b16 %v2599, %v2591
        %v3144 = vpack.c.b16 %v2608, %v2600
        %v3145 = vpack.c.b16 %v2609, %v2601
        %v3146 = vpack.c.b16 %v2610, %v2602
        %v3147 = vpack.c.b16 %v2611, %v2603
        %v3148 = vpack.c.b16 %v2612, %v2604
        %v3149 = vpack.c.b16 %v2613, %v2605
        %v3150 = vpack.c.b16 %v2614, %v2606
        %v3151 = vpack.c.b16 %v2615, %v2607
        %v3152 = vpack.c.b16 %v2624, %v2616
        %v3153 = vpack.c.b16 %v2625, %v2617
        %v3154 = vpack.c.b16 %v2626, %v2618
        %v3155 = vpack.c.b16 %v2627, %v2619
        %v3156 = vpack.c.b16 %v2628, %v2620
        %v3157 = vpack.c.b16 %v2629, %v2621
        %v3158 = vpack.c.b16 %v2630, %v2622
        %v3159 = vpack.c.b16 %v2631, %v2623
        %v3160 = vpack.c.b16 %v2640, %v2632
        %v3161 = vpack.c.b16 %v2641, %v2633
        %v3162 = vpack.c.b16 %v2642, %v2634
        %v3163 = vpack.c.b16 %v2643, %v2635
        %v3164 = vpack.c.b16 %v2644, %v2636
        %v3165 = vpack.c.b16 %v2645, %v2637
        %v3166 = vpack.c.b16 %v2646, %v2638
        %v3167 = vpack.c.b16 %v2647, %v2639
        %v3168 = vpack.c.b16 %v2656, %v2648
        %v3169 = vpack.c.b16 %v2657, %v2649
        %v3170 = vpack.c.b16 %v2658, %v2650
        %v3171 = vpack.c.b16 %v2659, %v2651
        %v3172 = vpack.c.b16 %v2660, %v2652
        %v3173 = vpack.c.b16 %v2661, %v2653
        %v3174 = vpack.c.b16 %v2662, %v2654
        %v3175 = vpack.c.b16 %v2663, %v2655
        %3688 = vmatprep.subr.bf16.mxu0 %v2721
        %3689 = vmatpush1.bf16.msra.mxu0 %v2720
        %3690 = vmatprep.subr.bf16.mxu0 %v2713
        %3691 = vmatpush1.bf16.msra.mxu0 %v2712
        %3692 = vmatprep.subr.bf16.mxu0 %v2705
        %3693 = vmatpush1.bf16.msra.mxu0 %v2704
        %3694 = vmatprep.subr.bf16.mxu0 %v2697
        %3695 = vmatpush1.bf16.msra.mxu0 %v2696
        %3696 = vmatprep.subr.bf16.mxu0 %v2689
        %3697 = vmatpush1.bf16.msra.mxu0 %v2688
        %3698 = vmatprep.subr.bf16.mxu0 %v2681
        %3699 = vmatpush1.bf16.msra.mxu0 %v2680
        %3700 = vmatprep.subr.bf16.mxu0 %v2673
        %3701 = vmatpush1.bf16.msra.mxu0 %v2672
        %3702 = vmatprep.subr.bf16.mxu0 %v2665
        %3703 = vmatpush1.bf16.msra.mxu0 %v2664
        %3704 = vmatprep.subr.bf16.mxu0 %v2785
        %3705 = vmatpush2.bf16.msra.mxu0 %v2784
        %3706 = vmatprep.subr.bf16.mxu0 %v2777
        %3707 = vmatpush2.bf16.msra.mxu0 %v2776
        %3708 = vmatprep.subr.bf16.mxu0 %v2769
        %3709 = vmatpush2.bf16.msra.mxu0 %v2768
        %3710 = vmatprep.subr.bf16.mxu0 %v2761
        %3711 = vmatpush2.bf16.msra.mxu0 %v2760
        %3712 = vmatprep.subr.bf16.mxu0 %v2753
        %3713 = vmatpush2.bf16.msra.mxu0 %v2752
        %3714 = vmatprep.subr.bf16.mxu0 %v2745
        %3715 = vmatpush2.bf16.msra.mxu0 %v2744
        %3716 = vmatprep.subr.bf16.mxu0 %v2737
        %3717 = vmatpush2.bf16.msra.mxu0 %v2736
        %3718 = vmatprep.subr.bf16.mxu0 %v2729
        %3719 = vmatpush2.bf16.msra.mxu0 %v2728
        %3720 = vmatprep.mubr.bf16.mxu0 %v511
        %3721 = vmatmul.mubr.bf16.gmra.mxu0 %v510
        %v3722 = vpop.f32.mrf.mxu0
        %v3723 = vadd.f32 %v1091, %v3722
        %v3724 = vpop.f32.mrf.mxu0
        %v3725 = vadd.f32 %v1095, %v3724
        %v3726 = vpop.f32.mrf.mxu0
        %v3727 = vadd.f32 %v1091, %v3726
        %v3728 = vpop.f32.mrf.mxu0
        %v3729 = vadd.f32 %v1095, %v3728
        %3730 = vmatprep.mubr.bf16.mxu0 %v519
        %3731 = vmatmul.mubr.bf16.gmra.mxu0 %v518
        %v3732 = vpop.f32.mrf.mxu0
        %v3733 = vadd.f32 %v1091, %v3732
        %v3734 = vpop.f32.mrf.mxu0
        %v3735 = vadd.f32 %v1095, %v3734
        %v3736 = vpop.f32.mrf.mxu0
        %v3737 = vadd.f32 %v1091, %v3736
        %v3738 = vpop.f32.mrf.mxu0
        %v3739 = vadd.f32 %v1095, %v3738
        %3740 = vmatprep.mubr.bf16.mxu0 %v527
        %3741 = vmatmul.mubr.bf16.gmra.mxu0 %v526
        %v3742 = vpop.f32.mrf.mxu0
        %v3743 = vadd.f32 %v1091, %v3742
        %v3744 = vpop.f32.mrf.mxu0
        %v3745 = vadd.f32 %v1095, %v3744
        %v3746 = vpop.f32.mrf.mxu0
        %v3747 = vadd.f32 %v1091, %v3746
        %v3748 = vpop.f32.mrf.mxu0
        %v3749 = vadd.f32 %v1095, %v3748
        %3750 = vmatprep.mubr.bf16.mxu0 %v535
        %3751 = vmatmul.mubr.bf16.gmra.mxu0 %v534
        %v3752 = vpop.f32.mrf.mxu0
        %v3753 = vadd.f32 %v1091, %v3752
        %v3754 = vpop.f32.mrf.mxu0
        %v3755 = vadd.f32 %v1095, %v3754
        %v3756 = vpop.f32.mrf.mxu0
        %v3757 = vadd.f32 %v1091, %v3756
        %v3758 = vpop.f32.mrf.mxu0
        %v3759 = vadd.f32 %v1095, %v3758
        %3760 = vmatprep.mubr.bf16.mxu0 %v543
        %3761 = vmatmul.mubr.bf16.gmra.mxu0 %v542
        %v3762 = vpop.f32.mrf.mxu0
        %v3763 = vadd.f32 %v1091, %v3762
        %v3764 = vpop.f32.mrf.mxu0
        %v3765 = vadd.f32 %v1095, %v3764
        %v3766 = vpop.f32.mrf.mxu0
        %v3767 = vadd.f32 %v1091, %v3766
        %v3768 = vpop.f32.mrf.mxu0
        %v3769 = vadd.f32 %v1095, %v3768
        %3770 = vmatprep.mubr.bf16.mxu0 %v551
        %3771 = vmatmul.mubr.bf16.gmra.mxu0 %v550
        %v3772 = vpop.f32.mrf.mxu0
        %v3773 = vadd.f32 %v1091, %v3772
        %v3774 = vpop.f32.mrf.mxu0
        %v3775 = vadd.f32 %v1095, %v3774
        %v3776 = vpop.f32.mrf.mxu0
        %v3777 = vadd.f32 %v1091, %v3776
        %v3778 = vpop.f32.mrf.mxu0
        %v3779 = vadd.f32 %v1095, %v3778
        %3780 = vmatprep.mubr.bf16.mxu0 %v559
        %3781 = vmatmul.mubr.bf16.gmra.mxu0 %v558
        %v3782 = vpop.f32.mrf.mxu0
        %v3783 = vadd.f32 %v1091, %v3782
        %v3784 = vpop.f32.mrf.mxu0
        %v3785 = vadd.f32 %v1095, %v3784
        %v3786 = vpop.f32.mrf.mxu0
        %v3787 = vadd.f32 %v1091, %v3786
        %v3788 = vpop.f32.mrf.mxu0
        %v3789 = vadd.f32 %v1095, %v3788
        %3790 = vmatprep.mubr.bf16.mxu0 %v567
        %3791 = vmatmul.mubr.bf16.gmra.mxu0 %v566
        %v3792 = vpop.f32.mrf.mxu0
        %v3793 = vadd.f32 %v1091, %v3792
        %v3794 = vpop.f32.mrf.mxu0
        %v3795 = vadd.f32 %v1095, %v3794
        %v3796 = vpop.f32.mrf.mxu0
        %v3797 = vadd.f32 %v1091, %v3796
        %v3798 = vpop.f32.mrf.mxu0
        %v3799 = vadd.f32 %v1095, %v3798
        %3800 = vdwg.mxu0
        %3801 = vmatprep.subr.bf16.mxu0 %v2849
        %3802 = vmatpush1.bf16.msra.mxu0 %v2848
        %3803 = vmatprep.subr.bf16.mxu0 %v2841
        %3804 = vmatpush1.bf16.msra.mxu0 %v2840
        %3805 = vmatprep.subr.bf16.mxu0 %v2833
        %3806 = vmatpush1.bf16.msra.mxu0 %v2832
        %3807 = vmatprep.subr.bf16.mxu0 %v2825
        %3808 = vmatpush1.bf16.msra.mxu0 %v2824
        %3809 = vmatprep.subr.bf16.mxu0 %v2817
        %3810 = vmatpush1.bf16.msra.mxu0 %v2816
        %3811 = vmatprep.subr.bf16.mxu0 %v2809
        %3812 = vmatpush1.bf16.msra.mxu0 %v2808
        %3813 = vmatprep.subr.bf16.mxu0 %v2801
        %3814 = vmatpush1.bf16.msra.mxu0 %v2800
        %3815 = vmatprep.subr.bf16.mxu0 %v2793
        %3816 = vmatpush1.bf16.msra.mxu0 %v2792
        %3817 = vmatprep.subr.bf16.mxu0 %v2913
        %3818 = vmatpush2.bf16.msra.mxu0 %v2912
        %3819 = vmatprep.subr.bf16.mxu0 %v2905
        %3820 = vmatpush2.bf16.msra.mxu0 %v2904
        %3821 = vmatprep.subr.bf16.mxu0 %v2897
        %3822 = vmatpush2.bf16.msra.mxu0 %v2896
        %3823 = vmatprep.subr.bf16.mxu0 %v2889
        %3824 = vmatpush2.bf16.msra.mxu0 %v2888
        %3825 = vmatprep.subr.bf16.mxu0 %v2881
        %3826 = vmatpush2.bf16.msra.mxu0 %v2880
        %3827 = vmatprep.subr.bf16.mxu0 %v2873
        %3828 = vmatpush2.bf16.msra.mxu0 %v2872
        %3829 = vmatprep.subr.bf16.mxu0 %v2865
        %3830 = vmatpush2.bf16.msra.mxu0 %v2864
        %3831 = vmatprep.subr.bf16.mxu0 %v2857
        %3832 = vmatpush2.bf16.msra.mxu0 %v2856
        %3833 = vmatprep.mubr.bf16.mxu0 %v513
        %3834 = vmatmul.mubr.bf16.gmra.mxu0 %v512
        %v3835 = vpop.f32.mrf.mxu0
        %v3836 = vadd.f32 %v3723, %v3835
        %v3837 = vpop.f32.mrf.mxu0
        %v3838 = vadd.f32 %v3725, %v3837
        %v3839 = vpop.f32.mrf.mxu0
        %v3840 = vadd.f32 %v3727, %v3839
        %v3841 = vpop.f32.mrf.mxu0
        %v3842 = vadd.f32 %v3729, %v3841
        %3843 = vmatprep.mubr.bf16.mxu0 %v521
        %3844 = vmatmul.mubr.bf16.gmra.mxu0 %v520
        %v3845 = vpop.f32.mrf.mxu0
        %v3846 = vadd.f32 %v3733, %v3845
        %v3847 = vpop.f32.mrf.mxu0
        %v3848 = vadd.f32 %v3735, %v3847
        %v3849 = vpop.f32.mrf.mxu0
        %v3850 = vadd.f32 %v3737, %v3849
        %v3851 = vpop.f32.mrf.mxu0
        %v3852 = vadd.f32 %v3739, %v3851
        %3853 = vmatprep.mubr.bf16.mxu0 %v529
        %3854 = vmatmul.mubr.bf16.gmra.mxu0 %v528
        %v3855 = vpop.f32.mrf.mxu0
        %v3856 = vadd.f32 %v3743, %v3855
        %v3857 = vpop.f32.mrf.mxu0
        %v3858 = vadd.f32 %v3745, %v3857
        %v3859 = vpop.f32.mrf.mxu0
        %v3860 = vadd.f32 %v3747, %v3859
        %v3861 = vpop.f32.mrf.mxu0
        %v3862 = vadd.f32 %v3749, %v3861
        %3863 = vmatprep.mubr.bf16.mxu0 %v537
        %3864 = vmatmul.mubr.bf16.gmra.mxu0 %v536
        %v3865 = vpop.f32.mrf.mxu0
        %v3866 = vadd.f32 %v3753, %v3865
        %v3867 = vpop.f32.mrf.mxu0
        %v3868 = vadd.f32 %v3755, %v3867
        %v3869 = vpop.f32.mrf.mxu0
        %v3870 = vadd.f32 %v3757, %v3869
        %v3871 = vpop.f32.mrf.mxu0
        %v3872 = vadd.f32 %v3759, %v3871
        %3873 = vmatprep.mubr.bf16.mxu0 %v545
        %3874 = vmatmul.mubr.bf16.gmra.mxu0 %v544
        %v3875 = vpop.f32.mrf.mxu0
        %v3876 = vadd.f32 %v3763, %v3875
        %v3877 = vpop.f32.mrf.mxu0
        %v3878 = vadd.f32 %v3765, %v3877
        %v3879 = vpop.f32.mrf.mxu0
        %v3880 = vadd.f32 %v3767, %v3879
        %v3881 = vpop.f32.mrf.mxu0
        %v3882 = vadd.f32 %v3769, %v3881
        %3883 = vmatprep.mubr.bf16.mxu0 %v553
        %3884 = vmatmul.mubr.bf16.gmra.mxu0 %v552
        %v3885 = vpop.f32.mrf.mxu0
        %v3886 = vadd.f32 %v3773, %v3885
        %v3887 = vpop.f32.mrf.mxu0
        %v3888 = vadd.f32 %v3775, %v3887
        %v3889 = vpop.f32.mrf.mxu0
        %v3890 = vadd.f32 %v3777, %v3889
        %v3891 = vpop.f32.mrf.mxu0
        %v3892 = vadd.f32 %v3779, %v3891
        %3893 = vmatprep.mubr.bf16.mxu0 %v561
        %3894 = vmatmul.mubr.bf16.gmra.mxu0 %v560
        %v3895 = vpop.f32.mrf.mxu0
        %v3896 = vadd.f32 %v3783, %v3895
        %v3897 = vpop.f32.mrf.mxu0
        %v3898 = vadd.f32 %v3785, %v3897
        %v3899 = vpop.f32.mrf.mxu0
        %v3900 = vadd.f32 %v3787, %v3899
        %v3901 = vpop.f32.mrf.mxu0
        %v3902 = vadd.f32 %v3789, %v3901
        %3903 = vmatprep.mubr.bf16.mxu0 %v569
        %3904 = vmatmul.mubr.bf16.gmra.mxu0 %v568
        %v3905 = vpop.f32.mrf.mxu0
        %v3906 = vadd.f32 %v3793, %v3905
        %v3907 = vpop.f32.mrf.mxu0
        %v3908 = vadd.f32 %v3795, %v3907
        %v3909 = vpop.f32.mrf.mxu0
        %v3910 = vadd.f32 %v3797, %v3909
        %v3911 = vpop.f32.mrf.mxu0
        %v3912 = vadd.f32 %v3799, %v3911
        %3913 = vdwg.mxu0
        %3914 = vmatprep.subr.bf16.mxu0 %v2977
        %3915 = vmatpush1.bf16.msra.mxu0 %v2976
        %3916 = vmatprep.subr.bf16.mxu0 %v2969
        %3917 = vmatpush1.bf16.msra.mxu0 %v2968
        %3918 = vmatprep.subr.bf16.mxu0 %v2961
        %3919 = vmatpush1.bf16.msra.mxu0 %v2960
        %3920 = vmatprep.subr.bf16.mxu0 %v2953
        %3921 = vmatpush1.bf16.msra.mxu0 %v2952
        %3922 = vmatprep.subr.bf16.mxu0 %v2945
        %3923 = vmatpush1.bf16.msra.mxu0 %v2944
        %3924 = vmatprep.subr.bf16.mxu0 %v2937
        %3925 = vmatpush1.bf16.msra.mxu0 %v2936
        %3926 = vmatprep.subr.bf16.mxu0 %v2929
        %3927 = vmatpush1.bf16.msra.mxu0 %v2928
        %3928 = vmatprep.subr.bf16.mxu0 %v2921
        %3929 = vmatpush1.bf16.msra.mxu0 %v2920
        %3930 = vmatprep.subr.bf16.mxu0 %v3041
        %3931 = vmatpush2.bf16.msra.mxu0 %v3040
        %3932 = vmatprep.subr.bf16.mxu0 %v3033
        %3933 = vmatpush2.bf16.msra.mxu0 %v3032
        %3934 = vmatprep.subr.bf16.mxu0 %v3025
        %3935 = vmatpush2.bf16.msra.mxu0 %v3024
        %3936 = vmatprep.subr.bf16.mxu0 %v3017
        %3937 = vmatpush2.bf16.msra.mxu0 %v3016
        %3938 = vmatprep.subr.bf16.mxu0 %v3009
        %3939 = vmatpush2.bf16.msra.mxu0 %v3008
        %3940 = vmatprep.subr.bf16.mxu0 %v3001
        %3941 = vmatpush2.bf16.msra.mxu0 %v3000
        %3942 = vmatprep.subr.bf16.mxu0 %v2993
        %3943 = vmatpush2.bf16.msra.mxu0 %v2992
        %3944 = vmatprep.subr.bf16.mxu0 %v2985
        %3945 = vmatpush2.bf16.msra.mxu0 %v2984
        %3946 = vmatprep.mubr.bf16.mxu0 %v515
        %3947 = vmatmul.mubr.bf16.gmra.mxu0 %v514
        %v3948 = vpop.f32.mrf.mxu0
        %v3949 = vadd.f32 %v3836, %v3948
        %v3950 = vpop.f32.mrf.mxu0
        %v3951 = vadd.f32 %v3838, %v3950
        %v3952 = vpop.f32.mrf.mxu0
        %v3953 = vadd.f32 %v3840, %v3952
        %v3954 = vpop.f32.mrf.mxu0
        %v3955 = vadd.f32 %v3842, %v3954
        %3956 = vmatprep.mubr.bf16.mxu0 %v523
        %3957 = vmatmul.mubr.bf16.gmra.mxu0 %v522
        %v3958 = vpop.f32.mrf.mxu0
        %v3959 = vadd.f32 %v3846, %v3958
        %v3960 = vpop.f32.mrf.mxu0
        %v3961 = vadd.f32 %v3848, %v3960
        %v3962 = vpop.f32.mrf.mxu0
        %v3963 = vadd.f32 %v3850, %v3962
        %v3964 = vpop.f32.mrf.mxu0
        %v3965 = vadd.f32 %v3852, %v3964
        %3966 = vmatprep.mubr.bf16.mxu0 %v531
        %3967 = vmatmul.mubr.bf16.gmra.mxu0 %v530
        %v3968 = vpop.f32.mrf.mxu0
        %v3969 = vadd.f32 %v3856, %v3968
        %v3970 = vpop.f32.mrf.mxu0
        %v3971 = vadd.f32 %v3858, %v3970
        %v3972 = vpop.f32.mrf.mxu0
        %v3973 = vadd.f32 %v3860, %v3972
        %v3974 = vpop.f32.mrf.mxu0
        %v3975 = vadd.f32 %v3862, %v3974
        %3976 = vmatprep.mubr.bf16.mxu0 %v539
        %3977 = vmatmul.mubr.bf16.gmra.mxu0 %v538
        %v3978 = vpop.f32.mrf.mxu0
        %v3979 = vadd.f32 %v3866, %v3978
        %v3980 = vpop.f32.mrf.mxu0
        %v3981 = vadd.f32 %v3868, %v3980
        %v3982 = vpop.f32.mrf.mxu0
        %v3983 = vadd.f32 %v3870, %v3982
        %v3984 = vpop.f32.mrf.mxu0
        %v3985 = vadd.f32 %v3872, %v3984
        %3986 = vmatprep.mubr.bf16.mxu0 %v547
        %3987 = vmatmul.mubr.bf16.gmra.mxu0 %v546
        %v3988 = vpop.f32.mrf.mxu0
        %v3989 = vadd.f32 %v3876, %v3988
        %v3990 = vpop.f32.mrf.mxu0
        %v3991 = vadd.f32 %v3878, %v3990
        %v3992 = vpop.f32.mrf.mxu0
        %v3993 = vadd.f32 %v3880, %v3992
        %v3994 = vpop.f32.mrf.mxu0
        %v3995 = vadd.f32 %v3882, %v3994
        %3996 = vmatprep.mubr.bf16.mxu0 %v555
        %3997 = vmatmul.mubr.bf16.gmra.mxu0 %v554
        %v3998 = vpop.f32.mrf.mxu0
        %v3999 = vadd.f32 %v3886, %v3998
        %v4000 = vpop.f32.mrf.mxu0
        %v4001 = vadd.f32 %v3888, %v4000
        %v4002 = vpop.f32.mrf.mxu0
        %v4003 = vadd.f32 %v3890, %v4002
        %v4004 = vpop.f32.mrf.mxu0
        %v4005 = vadd.f32 %v3892, %v4004
        %4006 = vmatprep.mubr.bf16.mxu0 %v563
        %4007 = vmatmul.mubr.bf16.gmra.mxu0 %v562
        %v4008 = vpop.f32.mrf.mxu0
        %v4009 = vadd.f32 %v3896, %v4008
        %v4010 = vpop.f32.mrf.mxu0
        %v4011 = vadd.f32 %v3898, %v4010
        %v4012 = vpop.f32.mrf.mxu0
        %v4013 = vadd.f32 %v3900, %v4012
        %v4014 = vpop.f32.mrf.mxu0
        %v4015 = vadd.f32 %v3902, %v4014
        %4016 = vmatprep.mubr.bf16.mxu0 %v571
        %4017 = vmatmul.mubr.bf16.gmra.mxu0 %v570
        %v4018 = vpop.f32.mrf.mxu0
        %v4019 = vadd.f32 %v3906, %v4018
        %v4020 = vpop.f32.mrf.mxu0
        %v4021 = vadd.f32 %v3908, %v4020
        %v4022 = vpop.f32.mrf.mxu0
        %v4023 = vadd.f32 %v3910, %v4022
        %v4024 = vpop.f32.mrf.mxu0
        %v4025 = vadd.f32 %v3912, %v4024
        %4026 = vdwg.mxu0
        %4027 = vmatprep.subr.bf16.mxu0 %v3105
        %4028 = vmatpush1.bf16.msra.mxu0 %v3104
        %4029 = vmatprep.subr.bf16.mxu0 %v3097
        %4030 = vmatpush1.bf16.msra.mxu0 %v3096
        %4031 = vmatprep.subr.bf16.mxu0 %v3089
        %4032 = vmatpush1.bf16.msra.mxu0 %v3088
        %4033 = vmatprep.subr.bf16.mxu0 %v3081
        %4034 = vmatpush1.bf16.msra.mxu0 %v3080
        %4035 = vmatprep.subr.bf16.mxu0 %v3073
        %4036 = vmatpush1.bf16.msra.mxu0 %v3072
        %4037 = vmatprep.subr.bf16.mxu0 %v3065
        %4038 = vmatpush1.bf16.msra.mxu0 %v3064
        %4039 = vmatprep.subr.bf16.mxu0 %v3057
        %4040 = vmatpush1.bf16.msra.mxu0 %v3056
        %4041 = vmatprep.subr.bf16.mxu0 %v3049
        %4042 = vmatpush1.bf16.msra.mxu0 %v3048
        %4043 = vmatprep.subr.bf16.mxu0 %v3169
        %4044 = vmatpush2.bf16.msra.mxu0 %v3168
        %4045 = vmatprep.subr.bf16.mxu0 %v3161
        %4046 = vmatpush2.bf16.msra.mxu0 %v3160
        %4047 = vmatprep.subr.bf16.mxu0 %v3153
        %4048 = vmatpush2.bf16.msra.mxu0 %v3152
        %4049 = vmatprep.subr.bf16.mxu0 %v3145
        %4050 = vmatpush2.bf16.msra.mxu0 %v3144
        %4051 = vmatprep.subr.bf16.mxu0 %v3137
        %4052 = vmatpush2.bf16.msra.mxu0 %v3136
        %4053 = vmatprep.subr.bf16.mxu0 %v3129
        %4054 = vmatpush2.bf16.msra.mxu0 %v3128
        %4055 = vmatprep.subr.bf16.mxu0 %v3121
        %4056 = vmatpush2.bf16.msra.mxu0 %v3120
        %4057 = vmatprep.subr.bf16.mxu0 %v3113
        %4058 = vmatpush2.bf16.msra.mxu0 %v3112
        %4059 = vmatprep.mubr.bf16.mxu0 %v517
        %4060 = vmatmul.mubr.bf16.gmra.mxu0 %v516
        %v4061 = vpop.f32.mrf.mxu0
        %v4062 = vadd.f32 %v3949, %v4061
        %v4063 = vpop.f32.mrf.mxu0
        %v4064 = vadd.f32 %v3951, %v4063
        %v4065 = vpop.f32.mrf.mxu0
        %v4066 = vadd.f32 %v3953, %v4065
        %v4067 = vpop.f32.mrf.mxu0
        %v4068 = vadd.f32 %v3955, %v4067
        %4069 = vmatprep.mubr.bf16.mxu0 %v525
        %4070 = vmatmul.mubr.bf16.gmra.mxu0 %v524
        %v4071 = vpop.f32.mrf.mxu0
        %v4072 = vadd.f32 %v3959, %v4071
        %v4073 = vpop.f32.mrf.mxu0
        %v4074 = vadd.f32 %v3961, %v4073
        %v4075 = vpop.f32.mrf.mxu0
        %v4076 = vadd.f32 %v3963, %v4075
        %v4077 = vpop.f32.mrf.mxu0
        %v4078 = vadd.f32 %v3965, %v4077
        %4079 = vmatprep.mubr.bf16.mxu0 %v533
        %4080 = vmatmul.mubr.bf16.gmra.mxu0 %v532
        %v4081 = vpop.f32.mrf.mxu0
        %v4082 = vadd.f32 %v3969, %v4081
        %v4083 = vpop.f32.mrf.mxu0
        %v4084 = vadd.f32 %v3971, %v4083
        %v4085 = vpop.f32.mrf.mxu0
        %v4086 = vadd.f32 %v3973, %v4085
        %v4087 = vpop.f32.mrf.mxu0
        %v4088 = vadd.f32 %v3975, %v4087
        %4089 = vmatprep.mubr.bf16.mxu0 %v541
        %4090 = vmatmul.mubr.bf16.gmra.mxu0 %v540
        %v4091 = vpop.f32.mrf.mxu0
        %v4092 = vadd.f32 %v3979, %v4091
        %v4093 = vpop.f32.mrf.mxu0
        %v4094 = vadd.f32 %v3981, %v4093
        %v4095 = vpop.f32.mrf.mxu0
        %v4096 = vadd.f32 %v3983, %v4095
        %v4097 = vpop.f32.mrf.mxu0
        %v4098 = vadd.f32 %v3985, %v4097
        %4099 = vmatprep.mubr.bf16.mxu0 %v549
        %4100 = vmatmul.mubr.bf16.gmra.mxu0 %v548
        %v4101 = vpop.f32.mrf.mxu0
        %v4102 = vadd.f32 %v3989, %v4101
        %v4103 = vpop.f32.mrf.mxu0
        %v4104 = vadd.f32 %v3991, %v4103
        %v4105 = vpop.f32.mrf.mxu0
        %v4106 = vadd.f32 %v3993, %v4105
        %v4107 = vpop.f32.mrf.mxu0
        %v4108 = vadd.f32 %v3995, %v4107
        %4109 = vmatprep.mubr.bf16.mxu0 %v557
        %4110 = vmatmul.mubr.bf16.gmra.mxu0 %v556
        %v4111 = vpop.f32.mrf.mxu0
        %v4112 = vadd.f32 %v3999, %v4111
        %v4113 = vpop.f32.mrf.mxu0
        %v4114 = vadd.f32 %v4001, %v4113
        %v4115 = vpop.f32.mrf.mxu0
        %v4116 = vadd.f32 %v4003, %v4115
        %v4117 = vpop.f32.mrf.mxu0
        %v4118 = vadd.f32 %v4005, %v4117
        %4119 = vmatprep.mubr.bf16.mxu0 %v565
        %4120 = vmatmul.mubr.bf16.gmra.mxu0 %v564
        %v4121 = vpop.f32.mrf.mxu0
        %v4122 = vadd.f32 %v4009, %v4121
        %v4123 = vpop.f32.mrf.mxu0
        %v4124 = vadd.f32 %v4011, %v4123
        %v4125 = vpop.f32.mrf.mxu0
        %v4126 = vadd.f32 %v4013, %v4125
        %v4127 = vpop.f32.mrf.mxu0
        %v4128 = vadd.f32 %v4015, %v4127
        %4129 = vmatprep.mubr.bf16.mxu0 %v573
        %4130 = vmatmul.mubr.bf16.gmra.mxu0 %v572
        %v4131 = vpop.f32.mrf.mxu0
        %v4132 = vadd.f32 %v4019, %v4131
        %v4133 = vpop.f32.mrf.mxu0
        %v4134 = vadd.f32 %v4021, %v4133
        %v4135 = vpop.f32.mrf.mxu0
        %v4136 = vadd.f32 %v4023, %v4135
        %v4137 = vpop.f32.mrf.mxu0
        %v4138 = vadd.f32 %v4025, %v4137
        %4139 = vdwg.mxu0
        %4140 = vmatprep.subr.bf16.mxu0 %v2723
        %4141 = vmatpush1.bf16.msra.mxu0 %v2722
        %4142 = vmatprep.subr.bf16.mxu0 %v2715
        %4143 = vmatpush1.bf16.msra.mxu0 %v2714
        %4144 = vmatprep.subr.bf16.mxu0 %v2707
        %4145 = vmatpush1.bf16.msra.mxu0 %v2706
        %4146 = vmatprep.subr.bf16.mxu0 %v2699
        %4147 = vmatpush1.bf16.msra.mxu0 %v2698
        %4148 = vmatprep.subr.bf16.mxu0 %v2691
        %4149 = vmatpush1.bf16.msra.mxu0 %v2690
        %4150 = vmatprep.subr.bf16.mxu0 %v2683
        %4151 = vmatpush1.bf16.msra.mxu0 %v2682
        %4152 = vmatprep.subr.bf16.mxu0 %v2675
        %4153 = vmatpush1.bf16.msra.mxu0 %v2674
        %4154 = vmatprep.subr.bf16.mxu0 %v2667
        %4155 = vmatpush1.bf16.msra.mxu0 %v2666
        %4156 = vmatprep.subr.bf16.mxu0 %v2787
        %4157 = vmatpush2.bf16.msra.mxu0 %v2786
        %4158 = vmatprep.subr.bf16.mxu0 %v2779
        %4159 = vmatpush2.bf16.msra.mxu0 %v2778
        %4160 = vmatprep.subr.bf16.mxu0 %v2771
        %4161 = vmatpush2.bf16.msra.mxu0 %v2770
        %4162 = vmatprep.subr.bf16.mxu0 %v2763
        %4163 = vmatpush2.bf16.msra.mxu0 %v2762
        %4164 = vmatprep.subr.bf16.mxu0 %v2755
        %4165 = vmatpush2.bf16.msra.mxu0 %v2754
        %4166 = vmatprep.subr.bf16.mxu0 %v2747
        %4167 = vmatpush2.bf16.msra.mxu0 %v2746
        %4168 = vmatprep.subr.bf16.mxu0 %v2739
        %4169 = vmatpush2.bf16.msra.mxu0 %v2738
        %4170 = vmatprep.subr.bf16.mxu0 %v2731
        %4171 = vmatpush2.bf16.msra.mxu0 %v2730
        %4172 = vmatprep.mubr.bf16.mxu0 %v511
        %4173 = vmatmul.mubr.bf16.gmra.mxu0 %v510
        %v4174 = vpop.f32.mrf.mxu0
        %v4175 = vadd.f32 %v1099, %v4174
        %v4176 = vpop.f32.mrf.mxu0
        %v4177 = vadd.f32 %v1103, %v4176
        %v4178 = vpop.f32.mrf.mxu0
        %v4179 = vadd.f32 %v1099, %v4178
        %v4180 = vpop.f32.mrf.mxu0
        %v4181 = vadd.f32 %v1103, %v4180
        %4182 = vmatprep.mubr.bf16.mxu0 %v519
        %4183 = vmatmul.mubr.bf16.gmra.mxu0 %v518
        %v4184 = vpop.f32.mrf.mxu0
        %v4185 = vadd.f32 %v1099, %v4184
        %v4186 = vpop.f32.mrf.mxu0
        %v4187 = vadd.f32 %v1103, %v4186
        %v4188 = vpop.f32.mrf.mxu0
        %v4189 = vadd.f32 %v1099, %v4188
        %v4190 = vpop.f32.mrf.mxu0
        %v4191 = vadd.f32 %v1103, %v4190
        %4192 = vmatprep.mubr.bf16.mxu0 %v527
        %4193 = vmatmul.mubr.bf16.gmra.mxu0 %v526
        %v4194 = vpop.f32.mrf.mxu0
        %v4195 = vadd.f32 %v1099, %v4194
        %v4196 = vpop.f32.mrf.mxu0
        %v4197 = vadd.f32 %v1103, %v4196
        %v4198 = vpop.f32.mrf.mxu0
        %v4199 = vadd.f32 %v1099, %v4198
        %v4200 = vpop.f32.mrf.mxu0
        %v4201 = vadd.f32 %v1103, %v4200
        %4202 = vmatprep.mubr.bf16.mxu0 %v535
        %4203 = vmatmul.mubr.bf16.gmra.mxu0 %v534
        %v4204 = vpop.f32.mrf.mxu0
        %v4205 = vadd.f32 %v1099, %v4204
        %v4206 = vpop.f32.mrf.mxu0
        %v4207 = vadd.f32 %v1103, %v4206
        %v4208 = vpop.f32.mrf.mxu0
        %v4209 = vadd.f32 %v1099, %v4208
        %v4210 = vpop.f32.mrf.mxu0
        %v4211 = vadd.f32 %v1103, %v4210
        %4212 = vmatprep.mubr.bf16.mxu0 %v543
        %4213 = vmatmul.mubr.bf16.gmra.mxu0 %v542
        %v4214 = vpop.f32.mrf.mxu0
        %v4215 = vadd.f32 %v1099, %v4214
        %v4216 = vpop.f32.mrf.mxu0
        %v4217 = vadd.f32 %v1103, %v4216
        %v4218 = vpop.f32.mrf.mxu0
        %v4219 = vadd.f32 %v1099, %v4218
        %v4220 = vpop.f32.mrf.mxu0
        %v4221 = vadd.f32 %v1103, %v4220
        %4222 = vmatprep.mubr.bf16.mxu0 %v551
        %4223 = vmatmul.mubr.bf16.gmra.mxu0 %v550
        %v4224 = vpop.f32.mrf.mxu0
        %v4225 = vadd.f32 %v1099, %v4224
        %v4226 = vpop.f32.mrf.mxu0
        %v4227 = vadd.f32 %v1103, %v4226
        %v4228 = vpop.f32.mrf.mxu0
        %v4229 = vadd.f32 %v1099, %v4228
        %v4230 = vpop.f32.mrf.mxu0
        %v4231 = vadd.f32 %v1103, %v4230
        %4232 = vmatprep.mubr.bf16.mxu0 %v559
        %4233 = vmatmul.mubr.bf16.gmra.mxu0 %v558
        %v4234 = vpop.f32.mrf.mxu0
        %v4235 = vadd.f32 %v1099, %v4234
        %v4236 = vpop.f32.mrf.mxu0
        %v4237 = vadd.f32 %v1103, %v4236
        %v4238 = vpop.f32.mrf.mxu0
        %v4239 = vadd.f32 %v1099, %v4238
        %v4240 = vpop.f32.mrf.mxu0
        %v4241 = vadd.f32 %v1103, %v4240
        %4242 = vmatprep.mubr.bf16.mxu0 %v567
        %4243 = vmatmul.mubr.bf16.gmra.mxu0 %v566
        %v4244 = vpop.f32.mrf.mxu0
        %v4245 = vadd.f32 %v1099, %v4244
        %v4246 = vpop.f32.mrf.mxu0
        %v4247 = vadd.f32 %v1103, %v4246
        %v4248 = vpop.f32.mrf.mxu0
        %v4249 = vadd.f32 %v1099, %v4248
        %v4250 = vpop.f32.mrf.mxu0
        %v4251 = vadd.f32 %v1103, %v4250
        %4252 = vdwg.mxu0
        %4253 = vmatprep.subr.bf16.mxu0 %v2851
        %4254 = vmatpush1.bf16.msra.mxu0 %v2850
        %4255 = vmatprep.subr.bf16.mxu0 %v2843
        %4256 = vmatpush1.bf16.msra.mxu0 %v2842
        %4257 = vmatprep.subr.bf16.mxu0 %v2835
        %4258 = vmatpush1.bf16.msra.mxu0 %v2834
        %4259 = vmatprep.subr.bf16.mxu0 %v2827
        %4260 = vmatpush1.bf16.msra.mxu0 %v2826
        %4261 = vmatprep.subr.bf16.mxu0 %v2819
        %4262 = vmatpush1.bf16.msra.mxu0 %v2818
        %4263 = vmatprep.subr.bf16.mxu0 %v2811
        %4264 = vmatpush1.bf16.msra.mxu0 %v2810
        %4265 = vmatprep.subr.bf16.mxu0 %v2803
        %4266 = vmatpush1.bf16.msra.mxu0 %v2802
        %4267 = vmatprep.subr.bf16.mxu0 %v2795
        %4268 = vmatpush1.bf16.msra.mxu0 %v2794
        %4269 = vmatprep.subr.bf16.mxu0 %v2915
        %4270 = vmatpush2.bf16.msra.mxu0 %v2914
        %4271 = vmatprep.subr.bf16.mxu0 %v2907
        %4272 = vmatpush2.bf16.msra.mxu0 %v2906
        %4273 = vmatprep.subr.bf16.mxu0 %v2899
        %4274 = vmatpush2.bf16.msra.mxu0 %v2898
        %4275 = vmatprep.subr.bf16.mxu0 %v2891
        %4276 = vmatpush2.bf16.msra.mxu0 %v2890
        %4277 = vmatprep.subr.bf16.mxu0 %v2883
        %4278 = vmatpush2.bf16.msra.mxu0 %v2882
        %4279 = vmatprep.subr.bf16.mxu0 %v2875
        %4280 = vmatpush2.bf16.msra.mxu0 %v2874
        %4281 = vmatprep.subr.bf16.mxu0 %v2867
        %4282 = vmatpush2.bf16.msra.mxu0 %v2866
        %4283 = vmatprep.subr.bf16.mxu0 %v2859
        %4284 = vmatpush2.bf16.msra.mxu0 %v2858
        %4285 = vmatprep.mubr.bf16.mxu0 %v513
        %4286 = vmatmul.mubr.bf16.gmra.mxu0 %v512
        %v4287 = vpop.f32.mrf.mxu0
        %v4288 = vadd.f32 %v4175, %v4287
        %v4289 = vpop.f32.mrf.mxu0
        %v4290 = vadd.f32 %v4177, %v4289
        %v4291 = vpop.f32.mrf.mxu0
        %v4292 = vadd.f32 %v4179, %v4291
        %v4293 = vpop.f32.mrf.mxu0
        %v4294 = vadd.f32 %v4181, %v4293
        %4295 = vmatprep.mubr.bf16.mxu0 %v521
        %4296 = vmatmul.mubr.bf16.gmra.mxu0 %v520
        %v4297 = vpop.f32.mrf.mxu0
        %v4298 = vadd.f32 %v4185, %v4297
        %v4299 = vpop.f32.mrf.mxu0
        %v4300 = vadd.f32 %v4187, %v4299
        %v4301 = vpop.f32.mrf.mxu0
        %v4302 = vadd.f32 %v4189, %v4301
        %v4303 = vpop.f32.mrf.mxu0
        %v4304 = vadd.f32 %v4191, %v4303
        %4305 = vmatprep.mubr.bf16.mxu0 %v529
        %4306 = vmatmul.mubr.bf16.gmra.mxu0 %v528
        %v4307 = vpop.f32.mrf.mxu0
        %v4308 = vadd.f32 %v4195, %v4307
        %v4309 = vpop.f32.mrf.mxu0
        %v4310 = vadd.f32 %v4197, %v4309
        %v4311 = vpop.f32.mrf.mxu0
        %v4312 = vadd.f32 %v4199, %v4311
        %v4313 = vpop.f32.mrf.mxu0
        %v4314 = vadd.f32 %v4201, %v4313
        %4315 = vmatprep.mubr.bf16.mxu0 %v537
        %4316 = vmatmul.mubr.bf16.gmra.mxu0 %v536
        %v4317 = vpop.f32.mrf.mxu0
        %v4318 = vadd.f32 %v4205, %v4317
        %v4319 = vpop.f32.mrf.mxu0
        %v4320 = vadd.f32 %v4207, %v4319
        %v4321 = vpop.f32.mrf.mxu0
        %v4322 = vadd.f32 %v4209, %v4321
        %v4323 = vpop.f32.mrf.mxu0
        %v4324 = vadd.f32 %v4211, %v4323
        %4325 = vmatprep.mubr.bf16.mxu0 %v545
        %4326 = vmatmul.mubr.bf16.gmra.mxu0 %v544
        %v4327 = vpop.f32.mrf.mxu0
        %v4328 = vadd.f32 %v4215, %v4327
        %v4329 = vpop.f32.mrf.mxu0
        %v4330 = vadd.f32 %v4217, %v4329
        %v4331 = vpop.f32.mrf.mxu0
        %v4332 = vadd.f32 %v4219, %v4331
        %v4333 = vpop.f32.mrf.mxu0
        %v4334 = vadd.f32 %v4221, %v4333
        %4335 = vmatprep.mubr.bf16.mxu0 %v553
        %4336 = vmatmul.mubr.bf16.gmra.mxu0 %v552
        %v4337 = vpop.f32.mrf.mxu0
        %v4338 = vadd.f32 %v4225, %v4337
        %v4339 = vpop.f32.mrf.mxu0
        %v4340 = vadd.f32 %v4227, %v4339
        %v4341 = vpop.f32.mrf.mxu0
        %v4342 = vadd.f32 %v4229, %v4341
        %v4343 = vpop.f32.mrf.mxu0
        %v4344 = vadd.f32 %v4231, %v4343
        %4345 = vmatprep.mubr.bf16.mxu0 %v561
        %4346 = vmatmul.mubr.bf16.gmra.mxu0 %v560
        %v4347 = vpop.f32.mrf.mxu0
        %v4348 = vadd.f32 %v4235, %v4347
        %v4349 = vpop.f32.mrf.mxu0
        %v4350 = vadd.f32 %v4237, %v4349
        %v4351 = vpop.f32.mrf.mxu0
        %v4352 = vadd.f32 %v4239, %v4351
        %v4353 = vpop.f32.mrf.mxu0
        %v4354 = vadd.f32 %v4241, %v4353
        %4355 = vmatprep.mubr.bf16.mxu0 %v569
        %4356 = vmatmul.mubr.bf16.gmra.mxu0 %v568
        %v4357 = vpop.f32.mrf.mxu0
        %v4358 = vadd.f32 %v4245, %v4357
        %v4359 = vpop.f32.mrf.mxu0
        %v4360 = vadd.f32 %v4247, %v4359
        %v4361 = vpop.f32.mrf.mxu0
        %v4362 = vadd.f32 %v4249, %v4361
        %v4363 = vpop.f32.mrf.mxu0
        %v4364 = vadd.f32 %v4251, %v4363
        %4365 = vdwg.mxu0
        %4366 = vmatprep.subr.bf16.mxu0 %v2979
        %4367 = vmatpush1.bf16.msra.mxu0 %v2978
        %4368 = vmatprep.subr.bf16.mxu0 %v2971
        %4369 = vmatpush1.bf16.msra.mxu0 %v2970
        %4370 = vmatprep.subr.bf16.mxu0 %v2963
        %4371 = vmatpush1.bf16.msra.mxu0 %v2962
        %4372 = vmatprep.subr.bf16.mxu0 %v2955
        %4373 = vmatpush1.bf16.msra.mxu0 %v2954
        %4374 = vmatprep.subr.bf16.mxu0 %v2947
        %4375 = vmatpush1.bf16.msra.mxu0 %v2946
        %4376 = vmatprep.subr.bf16.mxu0 %v2939
        %4377 = vmatpush1.bf16.msra.mxu0 %v2938
        %4378 = vmatprep.subr.bf16.mxu0 %v2931
        %4379 = vmatpush1.bf16.msra.mxu0 %v2930
        %4380 = vmatprep.subr.bf16.mxu0 %v2923
        %4381 = vmatpush1.bf16.msra.mxu0 %v2922
        %4382 = vmatprep.subr.bf16.mxu0 %v3043
        %4383 = vmatpush2.bf16.msra.mxu0 %v3042
        %4384 = vmatprep.subr.bf16.mxu0 %v3035
        %4385 = vmatpush2.bf16.msra.mxu0 %v3034
        %4386 = vmatprep.subr.bf16.mxu0 %v3027
        %4387 = vmatpush2.bf16.msra.mxu0 %v3026
        %4388 = vmatprep.subr.bf16.mxu0 %v3019
        %4389 = vmatpush2.bf16.msra.mxu0 %v3018
        %4390 = vmatprep.subr.bf16.mxu0 %v3011
        %4391 = vmatpush2.bf16.msra.mxu0 %v3010
        %4392 = vmatprep.subr.bf16.mxu0 %v3003
        %4393 = vmatpush2.bf16.msra.mxu0 %v3002
        %4394 = vmatprep.subr.bf16.mxu0 %v2995
        %4395 = vmatpush2.bf16.msra.mxu0 %v2994
        %4396 = vmatprep.subr.bf16.mxu0 %v2987
        %4397 = vmatpush2.bf16.msra.mxu0 %v2986
        %4398 = vmatprep.mubr.bf16.mxu0 %v515
        %4399 = vmatmul.mubr.bf16.gmra.mxu0 %v514
        %v4400 = vpop.f32.mrf.mxu0
        %v4401 = vadd.f32 %v4288, %v4400
        %v4402 = vpop.f32.mrf.mxu0
        %v4403 = vadd.f32 %v4290, %v4402
        %v4404 = vpop.f32.mrf.mxu0
        %v4405 = vadd.f32 %v4292, %v4404
        %v4406 = vpop.f32.mrf.mxu0
        %v4407 = vadd.f32 %v4294, %v4406
        %4408 = vmatprep.mubr.bf16.mxu0 %v523
        %4409 = vmatmul.mubr.bf16.gmra.mxu0 %v522
        %v4410 = vpop.f32.mrf.mxu0
        %v4411 = vadd.f32 %v4298, %v4410
        %v4412 = vpop.f32.mrf.mxu0
        %v4413 = vadd.f32 %v4300, %v4412
        %v4414 = vpop.f32.mrf.mxu0
        %v4415 = vadd.f32 %v4302, %v4414
        %v4416 = vpop.f32.mrf.mxu0
        %v4417 = vadd.f32 %v4304, %v4416
        %4418 = vmatprep.mubr.bf16.mxu0 %v531
        %4419 = vmatmul.mubr.bf16.gmra.mxu0 %v530
        %v4420 = vpop.f32.mrf.mxu0
        %v4421 = vadd.f32 %v4308, %v4420
        %v4422 = vpop.f32.mrf.mxu0
        %v4423 = vadd.f32 %v4310, %v4422
        %v4424 = vpop.f32.mrf.mxu0
        %v4425 = vadd.f32 %v4312, %v4424
        %v4426 = vpop.f32.mrf.mxu0
        %v4427 = vadd.f32 %v4314, %v4426
        %4428 = vmatprep.mubr.bf16.mxu0 %v539
        %4429 = vmatmul.mubr.bf16.gmra.mxu0 %v538
        %v4430 = vpop.f32.mrf.mxu0
        %v4431 = vadd.f32 %v4318, %v4430
        %v4432 = vpop.f32.mrf.mxu0
        %v4433 = vadd.f32 %v4320, %v4432
        %v4434 = vpop.f32.mrf.mxu0
        %v4435 = vadd.f32 %v4322, %v4434
        %v4436 = vpop.f32.mrf.mxu0
        %v4437 = vadd.f32 %v4324, %v4436
        %4438 = vmatprep.mubr.bf16.mxu0 %v547
        %4439 = vmatmul.mubr.bf16.gmra.mxu0 %v546
        %v4440 = vpop.f32.mrf.mxu0
        %v4441 = vadd.f32 %v4328, %v4440
        %v4442 = vpop.f32.mrf.mxu0
        %v4443 = vadd.f32 %v4330, %v4442
        %v4444 = vpop.f32.mrf.mxu0
        %v4445 = vadd.f32 %v4332, %v4444
        %v4446 = vpop.f32.mrf.mxu0
        %v4447 = vadd.f32 %v4334, %v4446
        %4448 = vmatprep.mubr.bf16.mxu0 %v555
        %4449 = vmatmul.mubr.bf16.gmra.mxu0 %v554
        %v4450 = vpop.f32.mrf.mxu0
        %v4451 = vadd.f32 %v4338, %v4450
        %v4452 = vpop.f32.mrf.mxu0
        %v4453 = vadd.f32 %v4340, %v4452
        %v4454 = vpop.f32.mrf.mxu0
        %v4455 = vadd.f32 %v4342, %v4454
        %v4456 = vpop.f32.mrf.mxu0
        %v4457 = vadd.f32 %v4344, %v4456
        %4458 = vmatprep.mubr.bf16.mxu0 %v563
        %4459 = vmatmul.mubr.bf16.gmra.mxu0 %v562
        %v4460 = vpop.f32.mrf.mxu0
        %v4461 = vadd.f32 %v4348, %v4460
        %v4462 = vpop.f32.mrf.mxu0
        %v4463 = vadd.f32 %v4350, %v4462
        %v4464 = vpop.f32.mrf.mxu0
        %v4465 = vadd.f32 %v4352, %v4464
        %v4466 = vpop.f32.mrf.mxu0
        %v4467 = vadd.f32 %v4354, %v4466
        %4468 = vmatprep.mubr.bf16.mxu0 %v571
        %4469 = vmatmul.mubr.bf16.gmra.mxu0 %v570
        %v4470 = vpop.f32.mrf.mxu0
        %v4471 = vadd.f32 %v4358, %v4470
        %v4472 = vpop.f32.mrf.mxu0
        %v4473 = vadd.f32 %v4360, %v4472
        %v4474 = vpop.f32.mrf.mxu0
        %v4475 = vadd.f32 %v4362, %v4474
        %v4476 = vpop.f32.mrf.mxu0
        %v4477 = vadd.f32 %v4364, %v4476
        %4478 = vdwg.mxu0
        %4479 = vmatprep.subr.bf16.mxu0 %v3107
        %4480 = vmatpush1.bf16.msra.mxu0 %v3106
        %4481 = vmatprep.subr.bf16.mxu0 %v3099
        %4482 = vmatpush1.bf16.msra.mxu0 %v3098
        %4483 = vmatprep.subr.bf16.mxu0 %v3091
        %4484 = vmatpush1.bf16.msra.mxu0 %v3090
        %4485 = vmatprep.subr.bf16.mxu0 %v3083
        %4486 = vmatpush1.bf16.msra.mxu0 %v3082
        %4487 = vmatprep.subr.bf16.mxu0 %v3075
        %4488 = vmatpush1.bf16.msra.mxu0 %v3074
        %4489 = vmatprep.subr.bf16.mxu0 %v3067
        %4490 = vmatpush1.bf16.msra.mxu0 %v3066
        %4491 = vmatprep.subr.bf16.mxu0 %v3059
        %4492 = vmatpush1.bf16.msra.mxu0 %v3058
        %4493 = vmatprep.subr.bf16.mxu0 %v3051
        %4494 = vmatpush1.bf16.msra.mxu0 %v3050
        %4495 = vmatprep.subr.bf16.mxu0 %v3171
        %4496 = vmatpush2.bf16.msra.mxu0 %v3170
        %4497 = vmatprep.subr.bf16.mxu0 %v3163
        %4498 = vmatpush2.bf16.msra.mxu0 %v3162
        %4499 = vmatprep.subr.bf16.mxu0 %v3155
        %4500 = vmatpush2.bf16.msra.mxu0 %v3154
        %4501 = vmatprep.subr.bf16.mxu0 %v3147
        %4502 = vmatpush2.bf16.msra.mxu0 %v3146
        %4503 = vmatprep.subr.bf16.mxu0 %v3139
        %4504 = vmatpush2.bf16.msra.mxu0 %v3138
        %4505 = vmatprep.subr.bf16.mxu0 %v3131
        %4506 = vmatpush2.bf16.msra.mxu0 %v3130
        %4507 = vmatprep.subr.bf16.mxu0 %v3123
        %4508 = vmatpush2.bf16.msra.mxu0 %v3122
        %4509 = vmatprep.subr.bf16.mxu0 %v3115
        %4510 = vmatpush2.bf16.msra.mxu0 %v3114
        %4511 = vmatprep.mubr.bf16.mxu0 %v517
        %4512 = vmatmul.mubr.bf16.gmra.mxu0 %v516
        %v4513 = vpop.f32.mrf.mxu0
        %v4514 = vadd.f32 %v4401, %v4513
        %v4515 = vpop.f32.mrf.mxu0
        %v4516 = vadd.f32 %v4403, %v4515
        %v4517 = vpop.f32.mrf.mxu0
        %v4518 = vadd.f32 %v4405, %v4517
        %v4519 = vpop.f32.mrf.mxu0
        %v4520 = vadd.f32 %v4407, %v4519
        %4521 = vmatprep.mubr.bf16.mxu0 %v525
        %4522 = vmatmul.mubr.bf16.gmra.mxu0 %v524
        %v4523 = vpop.f32.mrf.mxu0
        %v4524 = vadd.f32 %v4411, %v4523
        %v4525 = vpop.f32.mrf.mxu0
        %v4526 = vadd.f32 %v4413, %v4525
        %v4527 = vpop.f32.mrf.mxu0
        %v4528 = vadd.f32 %v4415, %v4527
        %v4529 = vpop.f32.mrf.mxu0
        %v4530 = vadd.f32 %v4417, %v4529
        %4531 = vmatprep.mubr.bf16.mxu0 %v533
        %4532 = vmatmul.mubr.bf16.gmra.mxu0 %v532
        %v4533 = vpop.f32.mrf.mxu0
        %v4534 = vadd.f32 %v4421, %v4533
        %v4535 = vpop.f32.mrf.mxu0
        %v4536 = vadd.f32 %v4423, %v4535
        %v4537 = vpop.f32.mrf.mxu0
        %v4538 = vadd.f32 %v4425, %v4537
        %v4539 = vpop.f32.mrf.mxu0
        %v4540 = vadd.f32 %v4427, %v4539
        %4541 = vmatprep.mubr.bf16.mxu0 %v541
        %4542 = vmatmul.mubr.bf16.gmra.mxu0 %v540
        %v4543 = vpop.f32.mrf.mxu0
        %v4544 = vadd.f32 %v4431, %v4543
        %v4545 = vpop.f32.mrf.mxu0
        %v4546 = vadd.f32 %v4433, %v4545
        %v4547 = vpop.f32.mrf.mxu0
        %v4548 = vadd.f32 %v4435, %v4547
        %v4549 = vpop.f32.mrf.mxu0
        %v4550 = vadd.f32 %v4437, %v4549
        %4551 = vmatprep.mubr.bf16.mxu0 %v549
        %4552 = vmatmul.mubr.bf16.gmra.mxu0 %v548
        %v4553 = vpop.f32.mrf.mxu0
        %v4554 = vadd.f32 %v4441, %v4553
        %v4555 = vpop.f32.mrf.mxu0
        %v4556 = vadd.f32 %v4443, %v4555
        %v4557 = vpop.f32.mrf.mxu0
        %v4558 = vadd.f32 %v4445, %v4557
        %v4559 = vpop.f32.mrf.mxu0
        %v4560 = vadd.f32 %v4447, %v4559
        %4561 = vmatprep.mubr.bf16.mxu0 %v557
        %4562 = vmatmul.mubr.bf16.gmra.mxu0 %v556
        %v4563 = vpop.f32.mrf.mxu0
        %v4564 = vadd.f32 %v4451, %v4563
        %v4565 = vpop.f32.mrf.mxu0
        %v4566 = vadd.f32 %v4453, %v4565
        %v4567 = vpop.f32.mrf.mxu0
        %v4568 = vadd.f32 %v4455, %v4567
        %v4569 = vpop.f32.mrf.mxu0
        %v4570 = vadd.f32 %v4457, %v4569
        %4571 = vmatprep.mubr.bf16.mxu0 %v565
        %4572 = vmatmul.mubr.bf16.gmra.mxu0 %v564
        %v4573 = vpop.f32.mrf.mxu0
        %v4574 = vadd.f32 %v4461, %v4573
        %v4575 = vpop.f32.mrf.mxu0
        %v4576 = vadd.f32 %v4463, %v4575
        %v4577 = vpop.f32.mrf.mxu0
        %v4578 = vadd.f32 %v4465, %v4577
        %v4579 = vpop.f32.mrf.mxu0
        %v4580 = vadd.f32 %v4467, %v4579
        %4581 = vmatprep.mubr.bf16.mxu0 %v573
        %4582 = vmatmul.mubr.bf16.gmra.mxu0 %v572
        %v4583 = vpop.f32.mrf.mxu0
        %v4584 = vadd.f32 %v4471, %v4583
        %v4585 = vpop.f32.mrf.mxu0
        %v4586 = vadd.f32 %v4473, %v4585
        %v4587 = vpop.f32.mrf.mxu0
        %v4588 = vadd.f32 %v4475, %v4587
        %v4589 = vpop.f32.mrf.mxu0
        %v4590 = vadd.f32 %v4477, %v4589
        %4591 = vdwg.mxu0
        %4592 = vmatprep.subr.bf16.mxu0 %v2725
        %4593 = vmatpush1.bf16.msra.mxu0 %v2724
        %4594 = vmatprep.subr.bf16.mxu0 %v2717
        %4595 = vmatpush1.bf16.msra.mxu0 %v2716
        %4596 = vmatprep.subr.bf16.mxu0 %v2709
        %4597 = vmatpush1.bf16.msra.mxu0 %v2708
        %4598 = vmatprep.subr.bf16.mxu0 %v2701
        %4599 = vmatpush1.bf16.msra.mxu0 %v2700
        %4600 = vmatprep.subr.bf16.mxu0 %v2693
        %4601 = vmatpush1.bf16.msra.mxu0 %v2692
        %4602 = vmatprep.subr.bf16.mxu0 %v2685
        %4603 = vmatpush1.bf16.msra.mxu0 %v2684
        %4604 = vmatprep.subr.bf16.mxu0 %v2677
        %4605 = vmatpush1.bf16.msra.mxu0 %v2676
        %4606 = vmatprep.subr.bf16.mxu0 %v2669
        %4607 = vmatpush1.bf16.msra.mxu0 %v2668
        %4608 = vmatprep.subr.bf16.mxu0 %v2789
        %4609 = vmatpush2.bf16.msra.mxu0 %v2788
        %4610 = vmatprep.subr.bf16.mxu0 %v2781
        %4611 = vmatpush2.bf16.msra.mxu0 %v2780
        %4612 = vmatprep.subr.bf16.mxu0 %v2773
        %4613 = vmatpush2.bf16.msra.mxu0 %v2772
        %4614 = vmatprep.subr.bf16.mxu0 %v2765
        %4615 = vmatpush2.bf16.msra.mxu0 %v2764
        %4616 = vmatprep.subr.bf16.mxu0 %v2757
        %4617 = vmatpush2.bf16.msra.mxu0 %v2756
        %4618 = vmatprep.subr.bf16.mxu0 %v2749
        %4619 = vmatpush2.bf16.msra.mxu0 %v2748
        %4620 = vmatprep.subr.bf16.mxu0 %v2741
        %4621 = vmatpush2.bf16.msra.mxu0 %v2740
        %4622 = vmatprep.subr.bf16.mxu0 %v2733
        %4623 = vmatpush2.bf16.msra.mxu0 %v2732
        %4624 = vmatprep.mubr.bf16.mxu0 %v511
        %4625 = vmatmul.mubr.bf16.gmra.mxu0 %v510
        %v4626 = vpop.f32.mrf.mxu0
        %v4627 = vadd.f32 %v1107, %v4626
        %v4628 = vpop.f32.mrf.mxu0
        %v4629 = vadd.f32 %v1111, %v4628
        %v4630 = vpop.f32.mrf.mxu0
        %v4631 = vadd.f32 %v1107, %v4630
        %v4632 = vpop.f32.mrf.mxu0
        %v4633 = vadd.f32 %v1111, %v4632
        %4634 = vmatprep.mubr.bf16.mxu0 %v519
        %4635 = vmatmul.mubr.bf16.gmra.mxu0 %v518
        %v4636 = vpop.f32.mrf.mxu0
        %v4637 = vadd.f32 %v1107, %v4636
        %v4638 = vpop.f32.mrf.mxu0
        %v4639 = vadd.f32 %v1111, %v4638
        %v4640 = vpop.f32.mrf.mxu0
        %v4641 = vadd.f32 %v1107, %v4640
        %v4642 = vpop.f32.mrf.mxu0
        %v4643 = vadd.f32 %v1111, %v4642
        %4644 = vmatprep.mubr.bf16.mxu0 %v527
        %4645 = vmatmul.mubr.bf16.gmra.mxu0 %v526
        %v4646 = vpop.f32.mrf.mxu0
        %v4647 = vadd.f32 %v1107, %v4646
        %v4648 = vpop.f32.mrf.mxu0
        %v4649 = vadd.f32 %v1111, %v4648
        %v4650 = vpop.f32.mrf.mxu0
        %v4651 = vadd.f32 %v1107, %v4650
        %v4652 = vpop.f32.mrf.mxu0
        %v4653 = vadd.f32 %v1111, %v4652
        %4654 = vmatprep.mubr.bf16.mxu0 %v535
        %4655 = vmatmul.mubr.bf16.gmra.mxu0 %v534
        %v4656 = vpop.f32.mrf.mxu0
        %v4657 = vadd.f32 %v1107, %v4656
        %v4658 = vpop.f32.mrf.mxu0
        %v4659 = vadd.f32 %v1111, %v4658
        %v4660 = vpop.f32.mrf.mxu0
        %v4661 = vadd.f32 %v1107, %v4660
        %v4662 = vpop.f32.mrf.mxu0
        %v4663 = vadd.f32 %v1111, %v4662
        %4664 = vmatprep.mubr.bf16.mxu0 %v543
        %4665 = vmatmul.mubr.bf16.gmra.mxu0 %v542
        %v4666 = vpop.f32.mrf.mxu0
        %v4667 = vadd.f32 %v1107, %v4666
        %v4668 = vpop.f32.mrf.mxu0
        %v4669 = vadd.f32 %v1111, %v4668
        %v4670 = vpop.f32.mrf.mxu0
        %v4671 = vadd.f32 %v1107, %v4670
        %v4672 = vpop.f32.mrf.mxu0
        %v4673 = vadd.f32 %v1111, %v4672
        %4674 = vmatprep.mubr.bf16.mxu0 %v551
        %4675 = vmatmul.mubr.bf16.gmra.mxu0 %v550
        %v4676 = vpop.f32.mrf.mxu0
        %v4677 = vadd.f32 %v1107, %v4676
        %v4678 = vpop.f32.mrf.mxu0
        %v4679 = vadd.f32 %v1111, %v4678
        %v4680 = vpop.f32.mrf.mxu0
        %v4681 = vadd.f32 %v1107, %v4680
        %v4682 = vpop.f32.mrf.mxu0
        %v4683 = vadd.f32 %v1111, %v4682
        %4684 = vmatprep.mubr.bf16.mxu0 %v559
        %4685 = vmatmul.mubr.bf16.gmra.mxu0 %v558
        %v4686 = vpop.f32.mrf.mxu0
        %v4687 = vadd.f32 %v1107, %v4686
        %v4688 = vpop.f32.mrf.mxu0
        %v4689 = vadd.f32 %v1111, %v4688
        %v4690 = vpop.f32.mrf.mxu0
        %v4691 = vadd.f32 %v1107, %v4690
        %v4692 = vpop.f32.mrf.mxu0
        %v4693 = vadd.f32 %v1111, %v4692
        %4694 = vmatprep.mubr.bf16.mxu0 %v567
        %4695 = vmatmul.mubr.bf16.gmra.mxu0 %v566
        %v4696 = vpop.f32.mrf.mxu0
        %v4697 = vadd.f32 %v1107, %v4696
        %v4698 = vpop.f32.mrf.mxu0
        %v4699 = vadd.f32 %v1111, %v4698
        %v4700 = vpop.f32.mrf.mxu0
        %v4701 = vadd.f32 %v1107, %v4700
        %v4702 = vpop.f32.mrf.mxu0
        %v4703 = vadd.f32 %v1111, %v4702
        %4704 = vdwg.mxu0
        %4705 = vmatprep.subr.bf16.mxu0 %v2853
        %4706 = vmatpush1.bf16.msra.mxu0 %v2852
        %4707 = vmatprep.subr.bf16.mxu0 %v2845
        %4708 = vmatpush1.bf16.msra.mxu0 %v2844
        %4709 = vmatprep.subr.bf16.mxu0 %v2837
        %4710 = vmatpush1.bf16.msra.mxu0 %v2836
        %4711 = vmatprep.subr.bf16.mxu0 %v2829
        %4712 = vmatpush1.bf16.msra.mxu0 %v2828
        %4713 = vmatprep.subr.bf16.mxu0 %v2821
        %4714 = vmatpush1.bf16.msra.mxu0 %v2820
        %4715 = vmatprep.subr.bf16.mxu0 %v2813
        %4716 = vmatpush1.bf16.msra.mxu0 %v2812
        %4717 = vmatprep.subr.bf16.mxu0 %v2805
        %4718 = vmatpush1.bf16.msra.mxu0 %v2804
        %4719 = vmatprep.subr.bf16.mxu0 %v2797
        %4720 = vmatpush1.bf16.msra.mxu0 %v2796
        %4721 = vmatprep.subr.bf16.mxu0 %v2917
        %4722 = vmatpush2.bf16.msra.mxu0 %v2916
        %4723 = vmatprep.subr.bf16.mxu0 %v2909
        %4724 = vmatpush2.bf16.msra.mxu0 %v2908
        %4725 = vmatprep.subr.bf16.mxu0 %v2901
        %4726 = vmatpush2.bf16.msra.mxu0 %v2900
        %4727 = vmatprep.subr.bf16.mxu0 %v2893
        %4728 = vmatpush2.bf16.msra.mxu0 %v2892
        %4729 = vmatprep.subr.bf16.mxu0 %v2885
        %4730 = vmatpush2.bf16.msra.mxu0 %v2884
        %4731 = vmatprep.subr.bf16.mxu0 %v2877
        %4732 = vmatpush2.bf16.msra.mxu0 %v2876
        %4733 = vmatprep.subr.bf16.mxu0 %v2869
        %4734 = vmatpush2.bf16.msra.mxu0 %v2868
        %4735 = vmatprep.subr.bf16.mxu0 %v2861
        %4736 = vmatpush2.bf16.msra.mxu0 %v2860
        %4737 = vmatprep.mubr.bf16.mxu0 %v513
        %4738 = vmatmul.mubr.bf16.gmra.mxu0 %v512
        %v4739 = vpop.f32.mrf.mxu0
        %v4740 = vadd.f32 %v4627, %v4739
        %v4741 = vpop.f32.mrf.mxu0
        %v4742 = vadd.f32 %v4629, %v4741
        %v4743 = vpop.f32.mrf.mxu0
        %v4744 = vadd.f32 %v4631, %v4743
        %v4745 = vpop.f32.mrf.mxu0
        %v4746 = vadd.f32 %v4633, %v4745
        %4747 = vmatprep.mubr.bf16.mxu0 %v521
        %4748 = vmatmul.mubr.bf16.gmra.mxu0 %v520
        %v4749 = vpop.f32.mrf.mxu0
        %v4750 = vadd.f32 %v4637, %v4749
        %v4751 = vpop.f32.mrf.mxu0
        %v4752 = vadd.f32 %v4639, %v4751
        %v4753 = vpop.f32.mrf.mxu0
        %v4754 = vadd.f32 %v4641, %v4753
        %v4755 = vpop.f32.mrf.mxu0
        %v4756 = vadd.f32 %v4643, %v4755
        %4757 = vmatprep.mubr.bf16.mxu0 %v529
        %4758 = vmatmul.mubr.bf16.gmra.mxu0 %v528
        %v4759 = vpop.f32.mrf.mxu0
        %v4760 = vadd.f32 %v4647, %v4759
        %v4761 = vpop.f32.mrf.mxu0
        %v4762 = vadd.f32 %v4649, %v4761
        %v4763 = vpop.f32.mrf.mxu0
        %v4764 = vadd.f32 %v4651, %v4763
        %v4765 = vpop.f32.mrf.mxu0
        %v4766 = vadd.f32 %v4653, %v4765
        %4767 = vmatprep.mubr.bf16.mxu0 %v537
        %4768 = vmatmul.mubr.bf16.gmra.mxu0 %v536
        %v4769 = vpop.f32.mrf.mxu0
        %v4770 = vadd.f32 %v4657, %v4769
        %v4771 = vpop.f32.mrf.mxu0
        %v4772 = vadd.f32 %v4659, %v4771
        %v4773 = vpop.f32.mrf.mxu0
        %v4774 = vadd.f32 %v4661, %v4773
        %v4775 = vpop.f32.mrf.mxu0
        %v4776 = vadd.f32 %v4663, %v4775
        %4777 = vmatprep.mubr.bf16.mxu0 %v545
        %4778 = vmatmul.mubr.bf16.gmra.mxu0 %v544
        %v4779 = vpop.f32.mrf.mxu0
        %v4780 = vadd.f32 %v4667, %v4779
        %v4781 = vpop.f32.mrf.mxu0
        %v4782 = vadd.f32 %v4669, %v4781
        %v4783 = vpop.f32.mrf.mxu0
        %v4784 = vadd.f32 %v4671, %v4783
        %v4785 = vpop.f32.mrf.mxu0
        %v4786 = vadd.f32 %v4673, %v4785
        %4787 = vmatprep.mubr.bf16.mxu0 %v553
        %4788 = vmatmul.mubr.bf16.gmra.mxu0 %v552
        %v4789 = vpop.f32.mrf.mxu0
        %v4790 = vadd.f32 %v4677, %v4789
        %v4791 = vpop.f32.mrf.mxu0
        %v4792 = vadd.f32 %v4679, %v4791
        %v4793 = vpop.f32.mrf.mxu0
        %v4794 = vadd.f32 %v4681, %v4793
        %v4795 = vpop.f32.mrf.mxu0
        %v4796 = vadd.f32 %v4683, %v4795
        %4797 = vmatprep.mubr.bf16.mxu0 %v561
        %4798 = vmatmul.mubr.bf16.gmra.mxu0 %v560
        %v4799 = vpop.f32.mrf.mxu0
        %v4800 = vadd.f32 %v4687, %v4799
        %v4801 = vpop.f32.mrf.mxu0
        %v4802 = vadd.f32 %v4689, %v4801
        %v4803 = vpop.f32.mrf.mxu0
        %v4804 = vadd.f32 %v4691, %v4803
        %v4805 = vpop.f32.mrf.mxu0
        %v4806 = vadd.f32 %v4693, %v4805
        %4807 = vmatprep.mubr.bf16.mxu0 %v569
        %4808 = vmatmul.mubr.bf16.gmra.mxu0 %v568
        %v4809 = vpop.f32.mrf.mxu0
        %v4810 = vadd.f32 %v4697, %v4809
        %v4811 = vpop.f32.mrf.mxu0
        %v4812 = vadd.f32 %v4699, %v4811
        %v4813 = vpop.f32.mrf.mxu0
        %v4814 = vadd.f32 %v4701, %v4813
        %v4815 = vpop.f32.mrf.mxu0
        %v4816 = vadd.f32 %v4703, %v4815
        %4817 = vdwg.mxu0
        %4818 = vmatprep.subr.bf16.mxu0 %v2981
        %4819 = vmatpush1.bf16.msra.mxu0 %v2980
        %4820 = vmatprep.subr.bf16.mxu0 %v2973
        %4821 = vmatpush1.bf16.msra.mxu0 %v2972
        %4822 = vmatprep.subr.bf16.mxu0 %v2965
        %4823 = vmatpush1.bf16.msra.mxu0 %v2964
        %4824 = vmatprep.subr.bf16.mxu0 %v2957
        %4825 = vmatpush1.bf16.msra.mxu0 %v2956
        %4826 = vmatprep.subr.bf16.mxu0 %v2949
        %4827 = vmatpush1.bf16.msra.mxu0 %v2948
        %4828 = vmatprep.subr.bf16.mxu0 %v2941
        %4829 = vmatpush1.bf16.msra.mxu0 %v2940
        %4830 = vmatprep.subr.bf16.mxu0 %v2933
        %4831 = vmatpush1.bf16.msra.mxu0 %v2932
        %4832 = vmatprep.subr.bf16.mxu0 %v2925
        %4833 = vmatpush1.bf16.msra.mxu0 %v2924
        %4834 = vmatprep.subr.bf16.mxu0 %v3045
        %4835 = vmatpush2.bf16.msra.mxu0 %v3044
        %4836 = vmatprep.subr.bf16.mxu0 %v3037
        %4837 = vmatpush2.bf16.msra.mxu0 %v3036
        %4838 = vmatprep.subr.bf16.mxu0 %v3029
        %4839 = vmatpush2.bf16.msra.mxu0 %v3028
        %4840 = vmatprep.subr.bf16.mxu0 %v3021
        %4841 = vmatpush2.bf16.msra.mxu0 %v3020
        %4842 = vmatprep.subr.bf16.mxu0 %v3013
        %4843 = vmatpush2.bf16.msra.mxu0 %v3012
        %4844 = vmatprep.subr.bf16.mxu0 %v3005
        %4845 = vmatpush2.bf16.msra.mxu0 %v3004
        %4846 = vmatprep.subr.bf16.mxu0 %v2997
        %4847 = vmatpush2.bf16.msra.mxu0 %v2996
        %4848 = vmatprep.subr.bf16.mxu0 %v2989
        %4849 = vmatpush2.bf16.msra.mxu0 %v2988
        %4850 = vmatprep.mubr.bf16.mxu0 %v515
        %4851 = vmatmul.mubr.bf16.gmra.mxu0 %v514
        %v4852 = vpop.f32.mrf.mxu0
        %v4853 = vadd.f32 %v4740, %v4852
        %v4854 = vpop.f32.mrf.mxu0
        %v4855 = vadd.f32 %v4742, %v4854
        %v4856 = vpop.f32.mrf.mxu0
        %v4857 = vadd.f32 %v4744, %v4856
        %v4858 = vpop.f32.mrf.mxu0
        %v4859 = vadd.f32 %v4746, %v4858
        %4860 = vmatprep.mubr.bf16.mxu0 %v523
        %4861 = vmatmul.mubr.bf16.gmra.mxu0 %v522
        %v4862 = vpop.f32.mrf.mxu0
        %v4863 = vadd.f32 %v4750, %v4862
        %v4864 = vpop.f32.mrf.mxu0
        %v4865 = vadd.f32 %v4752, %v4864
        %v4866 = vpop.f32.mrf.mxu0
        %v4867 = vadd.f32 %v4754, %v4866
        %v4868 = vpop.f32.mrf.mxu0
        %v4869 = vadd.f32 %v4756, %v4868
        %4870 = vmatprep.mubr.bf16.mxu0 %v531
        %4871 = vmatmul.mubr.bf16.gmra.mxu0 %v530
        %v4872 = vpop.f32.mrf.mxu0
        %v4873 = vadd.f32 %v4760, %v4872
        %v4874 = vpop.f32.mrf.mxu0
        %v4875 = vadd.f32 %v4762, %v4874
        %v4876 = vpop.f32.mrf.mxu0
        %v4877 = vadd.f32 %v4764, %v4876
        %v4878 = vpop.f32.mrf.mxu0
        %v4879 = vadd.f32 %v4766, %v4878
        %4880 = vmatprep.mubr.bf16.mxu0 %v539
        %4881 = vmatmul.mubr.bf16.gmra.mxu0 %v538
        %v4882 = vpop.f32.mrf.mxu0
        %v4883 = vadd.f32 %v4770, %v4882
        %v4884 = vpop.f32.mrf.mxu0
        %v4885 = vadd.f32 %v4772, %v4884
        %v4886 = vpop.f32.mrf.mxu0
        %v4887 = vadd.f32 %v4774, %v4886
        %v4888 = vpop.f32.mrf.mxu0
        %v4889 = vadd.f32 %v4776, %v4888
        %4890 = vmatprep.mubr.bf16.mxu0 %v547
        %4891 = vmatmul.mubr.bf16.gmra.mxu0 %v546
        %v4892 = vpop.f32.mrf.mxu0
        %v4893 = vadd.f32 %v4780, %v4892
        %v4894 = vpop.f32.mrf.mxu0
        %v4895 = vadd.f32 %v4782, %v4894
        %v4896 = vpop.f32.mrf.mxu0
        %v4897 = vadd.f32 %v4784, %v4896
        %v4898 = vpop.f32.mrf.mxu0
        %v4899 = vadd.f32 %v4786, %v4898
        %4900 = vmatprep.mubr.bf16.mxu0 %v555
        %4901 = vmatmul.mubr.bf16.gmra.mxu0 %v554
        %v4902 = vpop.f32.mrf.mxu0
        %v4903 = vadd.f32 %v4790, %v4902
        %v4904 = vpop.f32.mrf.mxu0
        %v4905 = vadd.f32 %v4792, %v4904
        %v4906 = vpop.f32.mrf.mxu0
        %v4907 = vadd.f32 %v4794, %v4906
        %v4908 = vpop.f32.mrf.mxu0
        %v4909 = vadd.f32 %v4796, %v4908
        %4910 = vmatprep.mubr.bf16.mxu0 %v563
        %4911 = vmatmul.mubr.bf16.gmra.mxu0 %v562
        %v4912 = vpop.f32.mrf.mxu0
        %v4913 = vadd.f32 %v4800, %v4912
        %v4914 = vpop.f32.mrf.mxu0
        %v4915 = vadd.f32 %v4802, %v4914
        %v4916 = vpop.f32.mrf.mxu0
        %v4917 = vadd.f32 %v4804, %v4916
        %v4918 = vpop.f32.mrf.mxu0
        %v4919 = vadd.f32 %v4806, %v4918
        %4920 = vmatprep.mubr.bf16.mxu0 %v571
        %4921 = vmatmul.mubr.bf16.gmra.mxu0 %v570
        %v4922 = vpop.f32.mrf.mxu0
        %v4923 = vadd.f32 %v4810, %v4922
        %v4924 = vpop.f32.mrf.mxu0
        %v4925 = vadd.f32 %v4812, %v4924
        %v4926 = vpop.f32.mrf.mxu0
        %v4927 = vadd.f32 %v4814, %v4926
        %v4928 = vpop.f32.mrf.mxu0
        %v4929 = vadd.f32 %v4816, %v4928
        %4930 = vdwg.mxu0
        %4931 = vmatprep.subr.bf16.mxu0 %v3109
        %4932 = vmatpush1.bf16.msra.mxu0 %v3108
        %4933 = vmatprep.subr.bf16.mxu0 %v3101
        %4934 = vmatpush1.bf16.msra.mxu0 %v3100
        %4935 = vmatprep.subr.bf16.mxu0 %v3093
        %4936 = vmatpush1.bf16.msra.mxu0 %v3092
        %4937 = vmatprep.subr.bf16.mxu0 %v3085
        %4938 = vmatpush1.bf16.msra.mxu0 %v3084
        %4939 = vmatprep.subr.bf16.mxu0 %v3077
        %4940 = vmatpush1.bf16.msra.mxu0 %v3076
        %4941 = vmatprep.subr.bf16.mxu0 %v3069
        %4942 = vmatpush1.bf16.msra.mxu0 %v3068
        %4943 = vmatprep.subr.bf16.mxu0 %v3061
        %4944 = vmatpush1.bf16.msra.mxu0 %v3060
        %4945 = vmatprep.subr.bf16.mxu0 %v3053
        %4946 = vmatpush1.bf16.msra.mxu0 %v3052
        %4947 = vmatprep.subr.bf16.mxu0 %v3173
        %4948 = vmatpush2.bf16.msra.mxu0 %v3172
        %4949 = vmatprep.subr.bf16.mxu0 %v3165
        %4950 = vmatpush2.bf16.msra.mxu0 %v3164
        %4951 = vmatprep.subr.bf16.mxu0 %v3157
        %4952 = vmatpush2.bf16.msra.mxu0 %v3156
        %4953 = vmatprep.subr.bf16.mxu0 %v3149
        %4954 = vmatpush2.bf16.msra.mxu0 %v3148
        %4955 = vmatprep.subr.bf16.mxu0 %v3141
        %4956 = vmatpush2.bf16.msra.mxu0 %v3140
        %4957 = vmatprep.subr.bf16.mxu0 %v3133
        %4958 = vmatpush2.bf16.msra.mxu0 %v3132
        %4959 = vmatprep.subr.bf16.mxu0 %v3125
        %4960 = vmatpush2.bf16.msra.mxu0 %v3124
        %4961 = vmatprep.subr.bf16.mxu0 %v3117
        %4962 = vmatpush2.bf16.msra.mxu0 %v3116
        %4963 = vmatprep.mubr.bf16.mxu0 %v517
        %4964 = vmatmul.mubr.bf16.gmra.mxu0 %v516
        %v4965 = vpop.f32.mrf.mxu0
        %v4966 = vadd.f32 %v4853, %v4965
        %v4967 = vpop.f32.mrf.mxu0
        %v4968 = vadd.f32 %v4855, %v4967
        %v4969 = vpop.f32.mrf.mxu0
        %v4970 = vadd.f32 %v4857, %v4969
        %v4971 = vpop.f32.mrf.mxu0
        %v4972 = vadd.f32 %v4859, %v4971
        %4973 = vmatprep.mubr.bf16.mxu0 %v525
        %4974 = vmatmul.mubr.bf16.gmra.mxu0 %v524
        %v4975 = vpop.f32.mrf.mxu0
        %v4976 = vadd.f32 %v4863, %v4975
        %v4977 = vpop.f32.mrf.mxu0
        %v4978 = vadd.f32 %v4865, %v4977
        %v4979 = vpop.f32.mrf.mxu0
        %v4980 = vadd.f32 %v4867, %v4979
        %v4981 = vpop.f32.mrf.mxu0
        %v4982 = vadd.f32 %v4869, %v4981
        %4983 = vmatprep.mubr.bf16.mxu0 %v533
        %4984 = vmatmul.mubr.bf16.gmra.mxu0 %v532
        %v4985 = vpop.f32.mrf.mxu0
        %v4986 = vadd.f32 %v4873, %v4985
        %v4987 = vpop.f32.mrf.mxu0
        %v4988 = vadd.f32 %v4875, %v4987
        %v4989 = vpop.f32.mrf.mxu0
        %v4990 = vadd.f32 %v4877, %v4989
        %v4991 = vpop.f32.mrf.mxu0
        %v4992 = vadd.f32 %v4879, %v4991
        %4993 = vmatprep.mubr.bf16.mxu0 %v541
        %4994 = vmatmul.mubr.bf16.gmra.mxu0 %v540
        %v4995 = vpop.f32.mrf.mxu0
        %v4996 = vadd.f32 %v4883, %v4995
        %v4997 = vpop.f32.mrf.mxu0
        %v4998 = vadd.f32 %v4885, %v4997
        %v4999 = vpop.f32.mrf.mxu0
        %v5000 = vadd.f32 %v4887, %v4999
        %v5001 = vpop.f32.mrf.mxu0
        %v5002 = vadd.f32 %v4889, %v5001
        %5003 = vmatprep.mubr.bf16.mxu0 %v549
        %5004 = vmatmul.mubr.bf16.gmra.mxu0 %v548
        %v5005 = vpop.f32.mrf.mxu0
        %v5006 = vadd.f32 %v4893, %v5005
        %v5007 = vpop.f32.mrf.mxu0
        %v5008 = vadd.f32 %v4895, %v5007
        %v5009 = vpop.f32.mrf.mxu0
        %v5010 = vadd.f32 %v4897, %v5009
        %v5011 = vpop.f32.mrf.mxu0
        %v5012 = vadd.f32 %v4899, %v5011
        %5013 = vmatprep.mubr.bf16.mxu0 %v557
        %5014 = vmatmul.mubr.bf16.gmra.mxu0 %v556
        %v5015 = vpop.f32.mrf.mxu0
        %v5016 = vadd.f32 %v4903, %v5015
        %v5017 = vpop.f32.mrf.mxu0
        %v5018 = vadd.f32 %v4905, %v5017
        %v5019 = vpop.f32.mrf.mxu0
        %v5020 = vadd.f32 %v4907, %v5019
        %v5021 = vpop.f32.mrf.mxu0
        %v5022 = vadd.f32 %v4909, %v5021
        %5023 = vmatprep.mubr.bf16.mxu0 %v565
        %5024 = vmatmul.mubr.bf16.gmra.mxu0 %v564
        %v5025 = vpop.f32.mrf.mxu0
        %v5026 = vadd.f32 %v4913, %v5025
        %v5027 = vpop.f32.mrf.mxu0
        %v5028 = vadd.f32 %v4915, %v5027
        %v5029 = vpop.f32.mrf.mxu0
        %v5030 = vadd.f32 %v4917, %v5029
        %v5031 = vpop.f32.mrf.mxu0
        %v5032 = vadd.f32 %v4919, %v5031
        %5033 = vmatprep.mubr.bf16.mxu0 %v573
        %5034 = vmatmul.mubr.bf16.gmra.mxu0 %v572
        %v5035 = vpop.f32.mrf.mxu0
        %v5036 = vadd.f32 %v4923, %v5035
        %v5037 = vpop.f32.mrf.mxu0
        %v5038 = vadd.f32 %v4925, %v5037
        %v5039 = vpop.f32.mrf.mxu0
        %v5040 = vadd.f32 %v4927, %v5039
        %v5041 = vpop.f32.mrf.mxu0
        %v5042 = vadd.f32 %v4929, %v5041
        %5043 = vdwg.mxu0
        %5044 = vmatprep.subr.bf16.mxu0 %v2727
        %5045 = vmatpush1.bf16.msra.mxu0 %v2726
        %5046 = vmatprep.subr.bf16.mxu0 %v2719
        %5047 = vmatpush1.bf16.msra.mxu0 %v2718
        %5048 = vmatprep.subr.bf16.mxu0 %v2711
        %5049 = vmatpush1.bf16.msra.mxu0 %v2710
        %5050 = vmatprep.subr.bf16.mxu0 %v2703
        %5051 = vmatpush1.bf16.msra.mxu0 %v2702
        %5052 = vmatprep.subr.bf16.mxu0 %v2695
        %5053 = vmatpush1.bf16.msra.mxu0 %v2694
        %5054 = vmatprep.subr.bf16.mxu0 %v2687
        %5055 = vmatpush1.bf16.msra.mxu0 %v2686
        %5056 = vmatprep.subr.bf16.mxu0 %v2679
        %5057 = vmatpush1.bf16.msra.mxu0 %v2678
        %5058 = vmatprep.subr.bf16.mxu0 %v2671
        %5059 = vmatpush1.bf16.msra.mxu0 %v2670
        %5060 = vmatprep.subr.bf16.mxu0 %v2791
        %5061 = vmatpush2.bf16.msra.mxu0 %v2790
        %5062 = vmatprep.subr.bf16.mxu0 %v2783
        %5063 = vmatpush2.bf16.msra.mxu0 %v2782
        %5064 = vmatprep.subr.bf16.mxu0 %v2775
        %5065 = vmatpush2.bf16.msra.mxu0 %v2774
        %5066 = vmatprep.subr.bf16.mxu0 %v2767
        %5067 = vmatpush2.bf16.msra.mxu0 %v2766
        %5068 = vmatprep.subr.bf16.mxu0 %v2759
        %5069 = vmatpush2.bf16.msra.mxu0 %v2758
        %5070 = vmatprep.subr.bf16.mxu0 %v2751
        %5071 = vmatpush2.bf16.msra.mxu0 %v2750
        %5072 = vmatprep.subr.bf16.mxu0 %v2743
        %5073 = vmatpush2.bf16.msra.mxu0 %v2742
        %5074 = vmatprep.subr.bf16.mxu0 %v2735
        %5075 = vmatpush2.bf16.msra.mxu0 %v2734
        %5076 = vmatprep.mubr.bf16.mxu0 %v511
        %5077 = vmatmul.mubr.bf16.gmra.mxu0 %v510
        %v5078 = vpop.f32.mrf.mxu0
        %v5079 = vadd.f32 %v1115, %v5078
        %v5080 = vpop.f32.mrf.mxu0
        %v5081 = vadd.f32 %v1119, %v5080
        %v5082 = vpop.f32.mrf.mxu0
        %v5083 = vadd.f32 %v1115, %v5082
        %v5084 = vpop.f32.mrf.mxu0
        %v5085 = vadd.f32 %v1119, %v5084
        %5086 = vmatprep.mubr.bf16.mxu0 %v519
        %5087 = vmatmul.mubr.bf16.gmra.mxu0 %v518
        %v5088 = vpop.f32.mrf.mxu0
        %v5089 = vadd.f32 %v1115, %v5088
        %v5090 = vpop.f32.mrf.mxu0
        %v5091 = vadd.f32 %v1119, %v5090
        %v5092 = vpop.f32.mrf.mxu0
        %v5093 = vadd.f32 %v1115, %v5092
        %v5094 = vpop.f32.mrf.mxu0
        %v5095 = vadd.f32 %v1119, %v5094
        %5096 = vmatprep.mubr.bf16.mxu0 %v527
        %5097 = vmatmul.mubr.bf16.gmra.mxu0 %v526
        %v5098 = vpop.f32.mrf.mxu0
        %v5099 = vadd.f32 %v1115, %v5098
        %v5100 = vpop.f32.mrf.mxu0
        %v5101 = vadd.f32 %v1119, %v5100
        %v5102 = vpop.f32.mrf.mxu0
        %v5103 = vadd.f32 %v1115, %v5102
        %v5104 = vpop.f32.mrf.mxu0
        %v5105 = vadd.f32 %v1119, %v5104
        %5106 = vmatprep.mubr.bf16.mxu0 %v535
        %5107 = vmatmul.mubr.bf16.gmra.mxu0 %v534
        %v5108 = vpop.f32.mrf.mxu0
        %v5109 = vadd.f32 %v1115, %v5108
        %v5110 = vpop.f32.mrf.mxu0
        %v5111 = vadd.f32 %v1119, %v5110
        %v5112 = vpop.f32.mrf.mxu0
        %v5113 = vadd.f32 %v1115, %v5112
        %v5114 = vpop.f32.mrf.mxu0
        %v5115 = vadd.f32 %v1119, %v5114
        %5116 = vmatprep.mubr.bf16.mxu0 %v543
        %5117 = vmatmul.mubr.bf16.gmra.mxu0 %v542
        %v5118 = vpop.f32.mrf.mxu0
        %v5119 = vadd.f32 %v1115, %v5118
        %v5120 = vpop.f32.mrf.mxu0
        %v5121 = vadd.f32 %v1119, %v5120
        %v5122 = vpop.f32.mrf.mxu0
        %v5123 = vadd.f32 %v1115, %v5122
        %v5124 = vpop.f32.mrf.mxu0
        %v5125 = vadd.f32 %v1119, %v5124
        %5126 = vmatprep.mubr.bf16.mxu0 %v551
        %5127 = vmatmul.mubr.bf16.gmra.mxu0 %v550
        %v5128 = vpop.f32.mrf.mxu0
        %v5129 = vadd.f32 %v1115, %v5128
        %v5130 = vpop.f32.mrf.mxu0
        %v5131 = vadd.f32 %v1119, %v5130
        %v5132 = vpop.f32.mrf.mxu0
        %v5133 = vadd.f32 %v1115, %v5132
        %v5134 = vpop.f32.mrf.mxu0
        %v5135 = vadd.f32 %v1119, %v5134
        %5136 = vmatprep.mubr.bf16.mxu0 %v559
        %5137 = vmatmul.mubr.bf16.gmra.mxu0 %v558
        %v5138 = vpop.f32.mrf.mxu0
        %v5139 = vadd.f32 %v1115, %v5138
        %v5140 = vpop.f32.mrf.mxu0
        %v5141 = vadd.f32 %v1119, %v5140
        %v5142 = vpop.f32.mrf.mxu0
        %v5143 = vadd.f32 %v1115, %v5142
        %v5144 = vpop.f32.mrf.mxu0
        %v5145 = vadd.f32 %v1119, %v5144
        %5146 = vmatprep.mubr.bf16.mxu0 %v567
        %5147 = vmatmul.mubr.bf16.gmra.mxu0 %v566
        %v5148 = vpop.f32.mrf.mxu0
        %v5149 = vadd.f32 %v1115, %v5148
        %v5150 = vpop.f32.mrf.mxu0
        %v5151 = vadd.f32 %v1119, %v5150
        %v5152 = vpop.f32.mrf.mxu0
        %v5153 = vadd.f32 %v1115, %v5152
        %v5154 = vpop.f32.mrf.mxu0
        %v5155 = vadd.f32 %v1119, %v5154
        %5156 = vdwg.mxu0
        %5157 = vmatprep.subr.bf16.mxu0 %v2855
        %5158 = vmatpush1.bf16.msra.mxu0 %v2854
        %5159 = vmatprep.subr.bf16.mxu0 %v2847
        %5160 = vmatpush1.bf16.msra.mxu0 %v2846
        %5161 = vmatprep.subr.bf16.mxu0 %v2839
        %5162 = vmatpush1.bf16.msra.mxu0 %v2838
        %5163 = vmatprep.subr.bf16.mxu0 %v2831
        %5164 = vmatpush1.bf16.msra.mxu0 %v2830
        %5165 = vmatprep.subr.bf16.mxu0 %v2823
        %5166 = vmatpush1.bf16.msra.mxu0 %v2822
        %5167 = vmatprep.subr.bf16.mxu0 %v2815
        %5168 = vmatpush1.bf16.msra.mxu0 %v2814
        %5169 = vmatprep.subr.bf16.mxu0 %v2807
        %5170 = vmatpush1.bf16.msra.mxu0 %v2806
        %5171 = vmatprep.subr.bf16.mxu0 %v2799
        %5172 = vmatpush1.bf16.msra.mxu0 %v2798
        %5173 = vmatprep.subr.bf16.mxu0 %v2919
        %5174 = vmatpush2.bf16.msra.mxu0 %v2918
        %5175 = vmatprep.subr.bf16.mxu0 %v2911
        %5176 = vmatpush2.bf16.msra.mxu0 %v2910
        %5177 = vmatprep.subr.bf16.mxu0 %v2903
        %5178 = vmatpush2.bf16.msra.mxu0 %v2902
        %5179 = vmatprep.subr.bf16.mxu0 %v2895
        %5180 = vmatpush2.bf16.msra.mxu0 %v2894
        %5181 = vmatprep.subr.bf16.mxu0 %v2887
        %5182 = vmatpush2.bf16.msra.mxu0 %v2886
        %5183 = vmatprep.subr.bf16.mxu0 %v2879
        %5184 = vmatpush2.bf16.msra.mxu0 %v2878
        %5185 = vmatprep.subr.bf16.mxu0 %v2871
        %5186 = vmatpush2.bf16.msra.mxu0 %v2870
        %5187 = vmatprep.subr.bf16.mxu0 %v2863
        %5188 = vmatpush2.bf16.msra.mxu0 %v2862
        %5189 = vmatprep.mubr.bf16.mxu0 %v513
        %5190 = vmatmul.mubr.bf16.gmra.mxu0 %v512
        %v5191 = vpop.f32.mrf.mxu0
        %v5192 = vadd.f32 %v5079, %v5191
        %v5193 = vpop.f32.mrf.mxu0
        %v5194 = vadd.f32 %v5081, %v5193
        %v5195 = vpop.f32.mrf.mxu0
        %v5196 = vadd.f32 %v5083, %v5195
        %v5197 = vpop.f32.mrf.mxu0
        %v5198 = vadd.f32 %v5085, %v5197
        %5199 = vmatprep.mubr.bf16.mxu0 %v521
        %5200 = vmatmul.mubr.bf16.gmra.mxu0 %v520
        %v5201 = vpop.f32.mrf.mxu0
        %v5202 = vadd.f32 %v5089, %v5201
        %v5203 = vpop.f32.mrf.mxu0
        %v5204 = vadd.f32 %v5091, %v5203
        %v5205 = vpop.f32.mrf.mxu0
        %v5206 = vadd.f32 %v5093, %v5205
        %v5207 = vpop.f32.mrf.mxu0
        %v5208 = vadd.f32 %v5095, %v5207
        %5209 = vmatprep.mubr.bf16.mxu0 %v529
        %5210 = vmatmul.mubr.bf16.gmra.mxu0 %v528
        %v5211 = vpop.f32.mrf.mxu0
        %v5212 = vadd.f32 %v5099, %v5211
        %v5213 = vpop.f32.mrf.mxu0
        %v5214 = vadd.f32 %v5101, %v5213
        %v5215 = vpop.f32.mrf.mxu0
        %v5216 = vadd.f32 %v5103, %v5215
        %v5217 = vpop.f32.mrf.mxu0
        %v5218 = vadd.f32 %v5105, %v5217
        %5219 = vmatprep.mubr.bf16.mxu0 %v537
        %5220 = vmatmul.mubr.bf16.gmra.mxu0 %v536
        %v5221 = vpop.f32.mrf.mxu0
        %v5222 = vadd.f32 %v5109, %v5221
        %v5223 = vpop.f32.mrf.mxu0
        %v5224 = vadd.f32 %v5111, %v5223
        %v5225 = vpop.f32.mrf.mxu0
        %v5226 = vadd.f32 %v5113, %v5225
        %v5227 = vpop.f32.mrf.mxu0
        %v5228 = vadd.f32 %v5115, %v5227
        %5229 = vmatprep.mubr.bf16.mxu0 %v545
        %5230 = vmatmul.mubr.bf16.gmra.mxu0 %v544
        %v5231 = vpop.f32.mrf.mxu0
        %v5232 = vadd.f32 %v5119, %v5231
        %v5233 = vpop.f32.mrf.mxu0
        %v5234 = vadd.f32 %v5121, %v5233
        %v5235 = vpop.f32.mrf.mxu0
        %v5236 = vadd.f32 %v5123, %v5235
        %v5237 = vpop.f32.mrf.mxu0
        %v5238 = vadd.f32 %v5125, %v5237
        %5239 = vmatprep.mubr.bf16.mxu0 %v553
        %5240 = vmatmul.mubr.bf16.gmra.mxu0 %v552
        %v5241 = vpop.f32.mrf.mxu0
        %v5242 = vadd.f32 %v5129, %v5241
        %v5243 = vpop.f32.mrf.mxu0
        %v5244 = vadd.f32 %v5131, %v5243
        %v5245 = vpop.f32.mrf.mxu0
        %v5246 = vadd.f32 %v5133, %v5245
        %v5247 = vpop.f32.mrf.mxu0
        %v5248 = vadd.f32 %v5135, %v5247
        %5249 = vmatprep.mubr.bf16.mxu0 %v561
        %5250 = vmatmul.mubr.bf16.gmra.mxu0 %v560
        %v5251 = vpop.f32.mrf.mxu0
        %v5252 = vadd.f32 %v5139, %v5251
        %v5253 = vpop.f32.mrf.mxu0
        %v5254 = vadd.f32 %v5141, %v5253
        %v5255 = vpop.f32.mrf.mxu0
        %v5256 = vadd.f32 %v5143, %v5255
        %v5257 = vpop.f32.mrf.mxu0
        %v5258 = vadd.f32 %v5145, %v5257
        %5259 = vmatprep.mubr.bf16.mxu0 %v569
        %5260 = vmatmul.mubr.bf16.gmra.mxu0 %v568
        %v5261 = vpop.f32.mrf.mxu0
        %v5262 = vadd.f32 %v5149, %v5261
        %v5263 = vpop.f32.mrf.mxu0
        %v5264 = vadd.f32 %v5151, %v5263
        %v5265 = vpop.f32.mrf.mxu0
        %v5266 = vadd.f32 %v5153, %v5265
        %v5267 = vpop.f32.mrf.mxu0
        %v5268 = vadd.f32 %v5155, %v5267
        %5269 = vdwg.mxu0
        %5270 = vmatprep.subr.bf16.mxu0 %v2983
        %5271 = vmatpush1.bf16.msra.mxu0 %v2982
        %5272 = vmatprep.subr.bf16.mxu0 %v2975
        %5273 = vmatpush1.bf16.msra.mxu0 %v2974
        %5274 = vmatprep.subr.bf16.mxu0 %v2967
        %5275 = vmatpush1.bf16.msra.mxu0 %v2966
        %5276 = vmatprep.subr.bf16.mxu0 %v2959
        %5277 = vmatpush1.bf16.msra.mxu0 %v2958
        %5278 = vmatprep.subr.bf16.mxu0 %v2951
        %5279 = vmatpush1.bf16.msra.mxu0 %v2950
        %5280 = vmatprep.subr.bf16.mxu0 %v2943
        %5281 = vmatpush1.bf16.msra.mxu0 %v2942
        %5282 = vmatprep.subr.bf16.mxu0 %v2935
        %5283 = vmatpush1.bf16.msra.mxu0 %v2934
        %5284 = vmatprep.subr.bf16.mxu0 %v2927
        %5285 = vmatpush1.bf16.msra.mxu0 %v2926
        %5286 = vmatprep.subr.bf16.mxu0 %v3047
        %5287 = vmatpush2.bf16.msra.mxu0 %v3046
        %5288 = vmatprep.subr.bf16.mxu0 %v3039
        %5289 = vmatpush2.bf16.msra.mxu0 %v3038
        %5290 = vmatprep.subr.bf16.mxu0 %v3031
        %5291 = vmatpush2.bf16.msra.mxu0 %v3030
        %5292 = vmatprep.subr.bf16.mxu0 %v3023
        %5293 = vmatpush2.bf16.msra.mxu0 %v3022
        %5294 = vmatprep.subr.bf16.mxu0 %v3015
        %5295 = vmatpush2.bf16.msra.mxu0 %v3014
        %5296 = vmatprep.subr.bf16.mxu0 %v3007
        %5297 = vmatpush2.bf16.msra.mxu0 %v3006
        %5298 = vmatprep.subr.bf16.mxu0 %v2999
        %5299 = vmatpush2.bf16.msra.mxu0 %v2998
        %5300 = vmatprep.subr.bf16.mxu0 %v2991
        %5301 = vmatpush2.bf16.msra.mxu0 %v2990
        %5302 = vmatprep.mubr.bf16.mxu0 %v515
        %5303 = vmatmul.mubr.bf16.gmra.mxu0 %v514
        %v5304 = vpop.f32.mrf.mxu0
        %v5305 = vadd.f32 %v5192, %v5304
        %v5306 = vpop.f32.mrf.mxu0
        %v5307 = vadd.f32 %v5194, %v5306
        %v5308 = vpop.f32.mrf.mxu0
        %v5309 = vadd.f32 %v5196, %v5308
        %v5310 = vpop.f32.mrf.mxu0
        %v5311 = vadd.f32 %v5198, %v5310
        %5312 = vmatprep.mubr.bf16.mxu0 %v523
        %5313 = vmatmul.mubr.bf16.gmra.mxu0 %v522
        %v5314 = vpop.f32.mrf.mxu0
        %v5315 = vadd.f32 %v5202, %v5314
        %v5316 = vpop.f32.mrf.mxu0
        %v5317 = vadd.f32 %v5204, %v5316
        %v5318 = vpop.f32.mrf.mxu0
        %v5319 = vadd.f32 %v5206, %v5318
        %v5320 = vpop.f32.mrf.mxu0
        %v5321 = vadd.f32 %v5208, %v5320
        %5322 = vmatprep.mubr.bf16.mxu0 %v531
        %5323 = vmatmul.mubr.bf16.gmra.mxu0 %v530
        %v5324 = vpop.f32.mrf.mxu0
        %v5325 = vadd.f32 %v5212, %v5324
        %v5326 = vpop.f32.mrf.mxu0
        %v5327 = vadd.f32 %v5214, %v5326
        %v5328 = vpop.f32.mrf.mxu0
        %v5329 = vadd.f32 %v5216, %v5328
        %v5330 = vpop.f32.mrf.mxu0
        %v5331 = vadd.f32 %v5218, %v5330
        %5332 = vmatprep.mubr.bf16.mxu0 %v539
        %5333 = vmatmul.mubr.bf16.gmra.mxu0 %v538
        %v5334 = vpop.f32.mrf.mxu0
        %v5335 = vadd.f32 %v5222, %v5334
        %v5336 = vpop.f32.mrf.mxu0
        %v5337 = vadd.f32 %v5224, %v5336
        %v5338 = vpop.f32.mrf.mxu0
        %v5339 = vadd.f32 %v5226, %v5338
        %v5340 = vpop.f32.mrf.mxu0
        %v5341 = vadd.f32 %v5228, %v5340
        %5342 = vmatprep.mubr.bf16.mxu0 %v547
        %5343 = vmatmul.mubr.bf16.gmra.mxu0 %v546
        %v5344 = vpop.f32.mrf.mxu0
        %v5345 = vadd.f32 %v5232, %v5344
        %v5346 = vpop.f32.mrf.mxu0
        %v5347 = vadd.f32 %v5234, %v5346
        %v5348 = vpop.f32.mrf.mxu0
        %v5349 = vadd.f32 %v5236, %v5348
        %v5350 = vpop.f32.mrf.mxu0
        %v5351 = vadd.f32 %v5238, %v5350
        %5352 = vmatprep.mubr.bf16.mxu0 %v555
        %5353 = vmatmul.mubr.bf16.gmra.mxu0 %v554
        %v5354 = vpop.f32.mrf.mxu0
        %v5355 = vadd.f32 %v5242, %v5354
        %v5356 = vpop.f32.mrf.mxu0
        %v5357 = vadd.f32 %v5244, %v5356
        %v5358 = vpop.f32.mrf.mxu0
        %v5359 = vadd.f32 %v5246, %v5358
        %v5360 = vpop.f32.mrf.mxu0
        %v5361 = vadd.f32 %v5248, %v5360
        %5362 = vmatprep.mubr.bf16.mxu0 %v563
        %5363 = vmatmul.mubr.bf16.gmra.mxu0 %v562
        %v5364 = vpop.f32.mrf.mxu0
        %v5365 = vadd.f32 %v5252, %v5364
        %v5366 = vpop.f32.mrf.mxu0
        %v5367 = vadd.f32 %v5254, %v5366
        %v5368 = vpop.f32.mrf.mxu0
        %v5369 = vadd.f32 %v5256, %v5368
        %v5370 = vpop.f32.mrf.mxu0
        %v5371 = vadd.f32 %v5258, %v5370
        %5372 = vmatprep.mubr.bf16.mxu0 %v571
        %5373 = vmatmul.mubr.bf16.gmra.mxu0 %v570
        %v5374 = vpop.f32.mrf.mxu0
        %v5375 = vadd.f32 %v5262, %v5374
        %v5376 = vpop.f32.mrf.mxu0
        %v5377 = vadd.f32 %v5264, %v5376
        %v5378 = vpop.f32.mrf.mxu0
        %v5379 = vadd.f32 %v5266, %v5378
        %v5380 = vpop.f32.mrf.mxu0
        %v5381 = vadd.f32 %v5268, %v5380
        %5382 = vdwg.mxu0
        %5383 = vmatprep.subr.bf16.mxu0 %v3111
        %5384 = vmatpush1.bf16.msra.mxu0 %v3110
        %5385 = vmatprep.subr.bf16.mxu0 %v3103
        %5386 = vmatpush1.bf16.msra.mxu0 %v3102
        %5387 = vmatprep.subr.bf16.mxu0 %v3095
        %5388 = vmatpush1.bf16.msra.mxu0 %v3094
        %5389 = vmatprep.subr.bf16.mxu0 %v3087
        %5390 = vmatpush1.bf16.msra.mxu0 %v3086
        %5391 = vmatprep.subr.bf16.mxu0 %v3079
        %5392 = vmatpush1.bf16.msra.mxu0 %v3078
        %5393 = vmatprep.subr.bf16.mxu0 %v3071
        %5394 = vmatpush1.bf16.msra.mxu0 %v3070
        %5395 = vmatprep.subr.bf16.mxu0 %v3063
        %5396 = vmatpush1.bf16.msra.mxu0 %v3062
        %5397 = vmatprep.subr.bf16.mxu0 %v3055
        %5398 = vmatpush1.bf16.msra.mxu0 %v3054
        %5399 = vmatprep.subr.bf16.mxu0 %v3175
        %5400 = vmatpush2.bf16.msra.mxu0 %v3174
        %5401 = vmatprep.subr.bf16.mxu0 %v3167
        %5402 = vmatpush2.bf16.msra.mxu0 %v3166
        %5403 = vmatprep.subr.bf16.mxu0 %v3159
        %5404 = vmatpush2.bf16.msra.mxu0 %v3158
        %5405 = vmatprep.subr.bf16.mxu0 %v3151
        %5406 = vmatpush2.bf16.msra.mxu0 %v3150
        %5407 = vmatprep.subr.bf16.mxu0 %v3143
        %5408 = vmatpush2.bf16.msra.mxu0 %v3142
        %5409 = vmatprep.subr.bf16.mxu0 %v3135
        %5410 = vmatpush2.bf16.msra.mxu0 %v3134
        %5411 = vmatprep.subr.bf16.mxu0 %v3127
        %5412 = vmatpush2.bf16.msra.mxu0 %v3126
        %5413 = vmatprep.subr.bf16.mxu0 %v3119
        %5414 = vmatpush2.bf16.msra.mxu0 %v3118
        %5415 = vmatprep.mubr.bf16.mxu0 %v517
        %5416 = vmatmul.mubr.bf16.gmra.mxu0 %v516
        %v5417 = vpop.f32.mrf.mxu0
        %v5418 = vadd.f32 %v5305, %v5417
        %v5419 = vpop.f32.mrf.mxu0
        %v5420 = vadd.f32 %v5307, %v5419
        %v5421 = vpop.f32.mrf.mxu0
        %v5422 = vadd.f32 %v5309, %v5421
        %v5423 = vpop.f32.mrf.mxu0
        %v5424 = vadd.f32 %v5311, %v5423
        %5425 = vmatprep.mubr.bf16.mxu0 %v525
        %5426 = vmatmul.mubr.bf16.gmra.mxu0 %v524
        %v5427 = vpop.f32.mrf.mxu0
        %v5428 = vadd.f32 %v5315, %v5427
        %v5429 = vpop.f32.mrf.mxu0
        %v5430 = vadd.f32 %v5317, %v5429
        %v5431 = vpop.f32.mrf.mxu0
        %v5432 = vadd.f32 %v5319, %v5431
        %v5433 = vpop.f32.mrf.mxu0
        %v5434 = vadd.f32 %v5321, %v5433
        %5435 = vmatprep.mubr.bf16.mxu0 %v533
        %5436 = vmatmul.mubr.bf16.gmra.mxu0 %v532
        %v5437 = vpop.f32.mrf.mxu0
        %v5438 = vadd.f32 %v5325, %v5437
        %v5439 = vpop.f32.mrf.mxu0
        %v5440 = vadd.f32 %v5327, %v5439
        %v5441 = vpop.f32.mrf.mxu0
        %v5442 = vadd.f32 %v5329, %v5441
        %v5443 = vpop.f32.mrf.mxu0
        %v5444 = vadd.f32 %v5331, %v5443
        %5445 = vmatprep.mubr.bf16.mxu0 %v541
        %5446 = vmatmul.mubr.bf16.gmra.mxu0 %v540
        %v5447 = vpop.f32.mrf.mxu0
        %v5448 = vadd.f32 %v5335, %v5447
        %v5449 = vpop.f32.mrf.mxu0
        %v5450 = vadd.f32 %v5337, %v5449
        %v5451 = vpop.f32.mrf.mxu0
        %v5452 = vadd.f32 %v5339, %v5451
        %v5453 = vpop.f32.mrf.mxu0
        %v5454 = vadd.f32 %v5341, %v5453
        %5455 = vmatprep.mubr.bf16.mxu0 %v549
        %5456 = vmatmul.mubr.bf16.gmra.mxu0 %v548
        %v5457 = vpop.f32.mrf.mxu0
        %v5458 = vadd.f32 %v5345, %v5457
        %v5459 = vpop.f32.mrf.mxu0
        %v5460 = vadd.f32 %v5347, %v5459
        %v5461 = vpop.f32.mrf.mxu0
        %v5462 = vadd.f32 %v5349, %v5461
        %v5463 = vpop.f32.mrf.mxu0
        %v5464 = vadd.f32 %v5351, %v5463
        %5465 = vmatprep.mubr.bf16.mxu0 %v557
        %5466 = vmatmul.mubr.bf16.gmra.mxu0 %v556
        %v5467 = vpop.f32.mrf.mxu0
        %v5468 = vadd.f32 %v5355, %v5467
        %v5469 = vpop.f32.mrf.mxu0
        %v5470 = vadd.f32 %v5357, %v5469
        %v5471 = vpop.f32.mrf.mxu0
        %v5472 = vadd.f32 %v5359, %v5471
        %v5473 = vpop.f32.mrf.mxu0
        %v5474 = vadd.f32 %v5361, %v5473
        %5475 = vmatprep.mubr.bf16.mxu0 %v565
        %5476 = vmatmul.mubr.bf16.gmra.mxu0 %v564
        %v5477 = vpop.f32.mrf.mxu0
        %v5478 = vadd.f32 %v5365, %v5477
        %v5479 = vpop.f32.mrf.mxu0
        %v5480 = vadd.f32 %v5367, %v5479
        %v5481 = vpop.f32.mrf.mxu0
        %v5482 = vadd.f32 %v5369, %v5481
        %v5483 = vpop.f32.mrf.mxu0
        %v5484 = vadd.f32 %v5371, %v5483
        %5485 = vmatprep.mubr.bf16.mxu0 %v573
        %5486 = vmatmul.mubr.bf16.gmra.mxu0 %v572
        %v5487 = vpop.f32.mrf.mxu0
        %v5488 = vadd.f32 %v5375, %v5487
        %v5489 = vpop.f32.mrf.mxu0
        %v5490 = vadd.f32 %v5377, %v5489
        %v5491 = vpop.f32.mrf.mxu0
        %v5492 = vadd.f32 %v5379, %v5491
        %v5493 = vpop.f32.mrf.mxu0
        %v5494 = vadd.f32 %v5381, %v5493
        %5495 = vdwg.mxu0
        %vm5496 = vcmp.gt.f32.partialorder %v4062, 0.0
        %vm5497 = vcmp.gt.f32.partialorder %v4064, 0.0
        %vm5498 = vcmp.gt.f32.partialorder %v4514, 0.0
        %vm5499 = vcmp.gt.f32.partialorder %v4516, 0.0
        %vm5500 = vcmp.gt.f32.partialorder %v4966, 0.0
        %vm5501 = vcmp.gt.f32.partialorder %v4968, 0.0
        %vm5502 = vcmp.gt.f32.partialorder %v5418, 0.0
        %vm5503 = vcmp.gt.f32.partialorder %v5420, 0.0
        %vm5504 = vcmp.gt.f32.partialorder %v4066, 0.0
        %vm5505 = vcmp.gt.f32.partialorder %v4068, 0.0
        %vm5506 = vcmp.gt.f32.partialorder %v4518, 0.0
        %vm5507 = vcmp.gt.f32.partialorder %v4520, 0.0
        %vm5508 = vcmp.gt.f32.partialorder %v4970, 0.0
        %vm5509 = vcmp.gt.f32.partialorder %v4972, 0.0
        %vm5510 = vcmp.gt.f32.partialorder %v5422, 0.0
        %vm5511 = vcmp.gt.f32.partialorder %v5424, 0.0
        %vm5512 = vcmp.gt.f32.partialorder %v4072, 0.0
        %vm5513 = vcmp.gt.f32.partialorder %v4074, 0.0
        %vm5514 = vcmp.gt.f32.partialorder %v4524, 0.0
        %vm5515 = vcmp.gt.f32.partialorder %v4526, 0.0
        %vm5516 = vcmp.gt.f32.partialorder %v4976, 0.0
        %vm5517 = vcmp.gt.f32.partialorder %v4978, 0.0
        %vm5518 = vcmp.gt.f32.partialorder %v5428, 0.0
        %vm5519 = vcmp.gt.f32.partialorder %v5430, 0.0
        %vm5520 = vcmp.gt.f32.partialorder %v4076, 0.0
        %vm5521 = vcmp.gt.f32.partialorder %v4078, 0.0
        %vm5522 = vcmp.gt.f32.partialorder %v4528, 0.0
        %vm5523 = vcmp.gt.f32.partialorder %v4530, 0.0
        %vm5524 = vcmp.gt.f32.partialorder %v4980, 0.0
        %vm5525 = vcmp.gt.f32.partialorder %v4982, 0.0
        %vm5526 = vcmp.gt.f32.partialorder %v5432, 0.0
        %vm5527 = vcmp.gt.f32.partialorder %v5434, 0.0
        %vm5528 = vcmp.gt.f32.partialorder %v4082, 0.0
        %vm5529 = vcmp.gt.f32.partialorder %v4084, 0.0
        %vm5530 = vcmp.gt.f32.partialorder %v4534, 0.0
        %vm5531 = vcmp.gt.f32.partialorder %v4536, 0.0
        %vm5532 = vcmp.gt.f32.partialorder %v4986, 0.0
        %vm5533 = vcmp.gt.f32.partialorder %v4988, 0.0
        %vm5534 = vcmp.gt.f32.partialorder %v5438, 0.0
        %vm5535 = vcmp.gt.f32.partialorder %v5440, 0.0
        %vm5536 = vcmp.gt.f32.partialorder %v4086, 0.0
        %vm5537 = vcmp.gt.f32.partialorder %v4088, 0.0
        %vm5538 = vcmp.gt.f32.partialorder %v4538, 0.0
        %vm5539 = vcmp.gt.f32.partialorder %v4540, 0.0
        %vm5540 = vcmp.gt.f32.partialorder %v4990, 0.0
        %vm5541 = vcmp.gt.f32.partialorder %v4992, 0.0
        %vm5542 = vcmp.gt.f32.partialorder %v5442, 0.0
        %vm5543 = vcmp.gt.f32.partialorder %v5444, 0.0
        %vm5544 = vcmp.gt.f32.partialorder %v4092, 0.0
        %vm5545 = vcmp.gt.f32.partialorder %v4094, 0.0
        %vm5546 = vcmp.gt.f32.partialorder %v4544, 0.0
        %vm5547 = vcmp.gt.f32.partialorder %v4546, 0.0
        %vm5548 = vcmp.gt.f32.partialorder %v4996, 0.0
        %vm5549 = vcmp.gt.f32.partialorder %v4998, 0.0
        %vm5550 = vcmp.gt.f32.partialorder %v5448, 0.0
        %vm5551 = vcmp.gt.f32.partialorder %v5450, 0.0
        %vm5552 = vcmp.gt.f32.partialorder %v4096, 0.0
        %vm5553 = vcmp.gt.f32.partialorder %v4098, 0.0
        %vm5554 = vcmp.gt.f32.partialorder %v4548, 0.0
        %vm5555 = vcmp.gt.f32.partialorder %v4550, 0.0
        %vm5556 = vcmp.gt.f32.partialorder %v5000, 0.0
        %vm5557 = vcmp.gt.f32.partialorder %v5002, 0.0
        %vm5558 = vcmp.gt.f32.partialorder %v5452, 0.0
        %vm5559 = vcmp.gt.f32.partialorder %v5454, 0.0
        %vm5560 = vcmp.gt.f32.partialorder %v4102, 0.0
        %vm5561 = vcmp.gt.f32.partialorder %v4104, 0.0
        %vm5562 = vcmp.gt.f32.partialorder %v4554, 0.0
        %vm5563 = vcmp.gt.f32.partialorder %v4556, 0.0
        %vm5564 = vcmp.gt.f32.partialorder %v5006, 0.0
        %vm5565 = vcmp.gt.f32.partialorder %v5008, 0.0
        %vm5566 = vcmp.gt.f32.partialorder %v5458, 0.0
        %vm5567 = vcmp.gt.f32.partialorder %v5460, 0.0
        %vm5568 = vcmp.gt.f32.partialorder %v4106, 0.0
        %vm5569 = vcmp.gt.f32.partialorder %v4108, 0.0
        %vm5570 = vcmp.gt.f32.partialorder %v4558, 0.0
        %vm5571 = vcmp.gt.f32.partialorder %v4560, 0.0
        %vm5572 = vcmp.gt.f32.partialorder %v5010, 0.0
        %vm5573 = vcmp.gt.f32.partialorder %v5012, 0.0
        %vm5574 = vcmp.gt.f32.partialorder %v5462, 0.0
        %vm5575 = vcmp.gt.f32.partialorder %v5464, 0.0
        %vm5576 = vcmp.gt.f32.partialorder %v4112, 0.0
        %vm5577 = vcmp.gt.f32.partialorder %v4114, 0.0
        %vm5578 = vcmp.gt.f32.partialorder %v4564, 0.0
        %vm5579 = vcmp.gt.f32.partialorder %v4566, 0.0
        %vm5580 = vcmp.gt.f32.partialorder %v5016, 0.0
        %vm5581 = vcmp.gt.f32.partialorder %v5018, 0.0
        %vm5582 = vcmp.gt.f32.partialorder %v5468, 0.0
        %vm5583 = vcmp.gt.f32.partialorder %v5470, 0.0
        %vm5584 = vcmp.gt.f32.partialorder %v4116, 0.0
        %vm5585 = vcmp.gt.f32.partialorder %v4118, 0.0
        %vm5586 = vcmp.gt.f32.partialorder %v4568, 0.0
        %vm5587 = vcmp.gt.f32.partialorder %v4570, 0.0
        %vm5588 = vcmp.gt.f32.partialorder %v5020, 0.0
        %vm5589 = vcmp.gt.f32.partialorder %v5022, 0.0
        %vm5590 = vcmp.gt.f32.partialorder %v5472, 0.0
        %vm5591 = vcmp.gt.f32.partialorder %v5474, 0.0
        %vm5592 = vcmp.gt.f32.partialorder %v4122, 0.0
        %vm5593 = vcmp.gt.f32.partialorder %v4124, 0.0
        %vm5594 = vcmp.gt.f32.partialorder %v4574, 0.0
        %vm5595 = vcmp.gt.f32.partialorder %v4576, 0.0
        %vm5596 = vcmp.gt.f32.partialorder %v5026, 0.0
        %vm5597 = vcmp.gt.f32.partialorder %v5028, 0.0
        %vm5598 = vcmp.gt.f32.partialorder %v5478, 0.0
        %vm5599 = vcmp.gt.f32.partialorder %v5480, 0.0
        %vm5600 = vcmp.gt.f32.partialorder %v4126, 0.0
        %vm5601 = vcmp.gt.f32.partialorder %v4128, 0.0
        %vm5602 = vcmp.gt.f32.partialorder %v4578, 0.0
        %vm5603 = vcmp.gt.f32.partialorder %v4580, 0.0
        %vm5604 = vcmp.gt.f32.partialorder %v5030, 0.0
        %vm5605 = vcmp.gt.f32.partialorder %v5032, 0.0
        %vm5606 = vcmp.gt.f32.partialorder %v5482, 0.0
        %vm5607 = vcmp.gt.f32.partialorder %v5484, 0.0
        %vm5608 = vcmp.gt.f32.partialorder %v4132, 0.0
        %vm5609 = vcmp.gt.f32.partialorder %v4134, 0.0
        %vm5610 = vcmp.gt.f32.partialorder %v4584, 0.0
        %vm5611 = vcmp.gt.f32.partialorder %v4586, 0.0
        %vm5612 = vcmp.gt.f32.partialorder %v5036, 0.0
        %vm5613 = vcmp.gt.f32.partialorder %v5038, 0.0
        %vm5614 = vcmp.gt.f32.partialorder %v5488, 0.0
        %vm5615 = vcmp.gt.f32.partialorder %v5490, 0.0
        %vm5616 = vcmp.gt.f32.partialorder %v4136, 0.0
        %vm5617 = vcmp.gt.f32.partialorder %v4138, 0.0
        %vm5618 = vcmp.gt.f32.partialorder %v4588, 0.0
        %vm5619 = vcmp.gt.f32.partialorder %v4590, 0.0
        %vm5620 = vcmp.gt.f32.partialorder %v5040, 0.0
        %vm5621 = vcmp.gt.f32.partialorder %v5042, 0.0
        %vm5622 = vcmp.gt.f32.partialorder %v5492, 0.0
        %vm5623 = vcmp.gt.f32.partialorder %v5494, 0.0
        %v5624 = vmul.f32 %v4062, 0.1
        %v5625 = vmul.f32 %v4064, 0.1
        %v5626 = vmul.f32 %v4514, 0.1
        %v5627 = vmul.f32 %v4516, 0.1
        %v5628 = vmul.f32 %v4966, 0.1
        %v5629 = vmul.f32 %v4968, 0.1
        %v5630 = vmul.f32 %v5418, 0.1
        %v5631 = vmul.f32 %v5420, 0.1
        %v5632 = vmul.f32 %v4066, 0.1
        %v5633 = vmul.f32 %v4068, 0.1
        %v5634 = vmul.f32 %v4518, 0.1
        %v5635 = vmul.f32 %v4520, 0.1
        %v5636 = vmul.f32 %v4970, 0.1
        %v5637 = vmul.f32 %v4972, 0.1
        %v5638 = vmul.f32 %v5422, 0.1
        %v5639 = vmul.f32 %v5424, 0.1
        %v5640 = vmul.f32 %v4072, 0.1
        %v5641 = vmul.f32 %v4074, 0.1
        %v5642 = vmul.f32 %v4524, 0.1
        %v5643 = vmul.f32 %v4526, 0.1
        %v5644 = vmul.f32 %v4976, 0.1
        %v5645 = vmul.f32 %v4978, 0.1
        %v5646 = vmul.f32 %v5428, 0.1
        %v5647 = vmul.f32 %v5430, 0.1
        %v5648 = vmul.f32 %v4076, 0.1
        %v5649 = vmul.f32 %v4078, 0.1
        %v5650 = vmul.f32 %v4528, 0.1
        %v5651 = vmul.f32 %v4530, 0.1
        %v5652 = vmul.f32 %v4980, 0.1
        %v5653 = vmul.f32 %v4982, 0.1
        %v5654 = vmul.f32 %v5432, 0.1
        %v5655 = vmul.f32 %v5434, 0.1
        %v5656 = vmul.f32 %v4082, 0.1
        %v5657 = vmul.f32 %v4084, 0.1
        %v5658 = vmul.f32 %v4534, 0.1
        %v5659 = vmul.f32 %v4536, 0.1
        %v5660 = vmul.f32 %v4986, 0.1
        %v5661 = vmul.f32 %v4988, 0.1
        %v5662 = vmul.f32 %v5438, 0.1
        %v5663 = vmul.f32 %v5440, 0.1
        %v5664 = vmul.f32 %v4086, 0.1
        %v5665 = vmul.f32 %v4088, 0.1
        %v5666 = vmul.f32 %v4538, 0.1
        %v5667 = vmul.f32 %v4540, 0.1
        %v5668 = vmul.f32 %v4990, 0.1
        %v5669 = vmul.f32 %v4992, 0.1
        %v5670 = vmul.f32 %v5442, 0.1
        %v5671 = vmul.f32 %v5444, 0.1
        %v5672 = vmul.f32 %v4092, 0.1
        %v5673 = vmul.f32 %v4094, 0.1
        %v5674 = vmul.f32 %v4544, 0.1
        %v5675 = vmul.f32 %v4546, 0.1
        %v5676 = vmul.f32 %v4996, 0.1
        %v5677 = vmul.f32 %v4998, 0.1
        %v5678 = vmul.f32 %v5448, 0.1
        %v5679 = vmul.f32 %v5450, 0.1
        %v5680 = vmul.f32 %v4096, 0.1
        %v5681 = vmul.f32 %v4098, 0.1
        %v5682 = vmul.f32 %v4548, 0.1
        %v5683 = vmul.f32 %v4550, 0.1
        %v5684 = vmul.f32 %v5000, 0.1
        %v5685 = vmul.f32 %v5002, 0.1
        %v5686 = vmul.f32 %v5452, 0.1
        %v5687 = vmul.f32 %v5454, 0.1
        %v5688 = vmul.f32 %v4102, 0.1
        %v5689 = vmul.f32 %v4104, 0.1
        %v5690 = vmul.f32 %v4554, 0.1
        %v5691 = vmul.f32 %v4556, 0.1
        %v5692 = vmul.f32 %v5006, 0.1
        %v5693 = vmul.f32 %v5008, 0.1
        %v5694 = vmul.f32 %v5458, 0.1
        %v5695 = vmul.f32 %v5460, 0.1
        %v5696 = vmul.f32 %v4106, 0.1
        %v5697 = vmul.f32 %v4108, 0.1
        %v5698 = vmul.f32 %v4558, 0.1
        %v5699 = vmul.f32 %v4560, 0.1
        %v5700 = vmul.f32 %v5010, 0.1
        %v5701 = vmul.f32 %v5012, 0.1
        %v5702 = vmul.f32 %v5462, 0.1
        %v5703 = vmul.f32 %v5464, 0.1
        %v5704 = vmul.f32 %v4112, 0.1
        %v5705 = vmul.f32 %v4114, 0.1
        %v5706 = vmul.f32 %v4564, 0.1
        %v5707 = vmul.f32 %v4566, 0.1
        %v5708 = vmul.f32 %v5016, 0.1
        %v5709 = vmul.f32 %v5018, 0.1
        %v5710 = vmul.f32 %v5468, 0.1
        %v5711 = vmul.f32 %v5470, 0.1
        %v5712 = vmul.f32 %v4116, 0.1
        %v5713 = vmul.f32 %v4118, 0.1
        %v5714 = vmul.f32 %v4568, 0.1
        %v5715 = vmul.f32 %v4570, 0.1
        %v5716 = vmul.f32 %v5020, 0.1
        %v5717 = vmul.f32 %v5022, 0.1
        %v5718 = vmul.f32 %v5472, 0.1
        %v5719 = vmul.f32 %v5474, 0.1
        %v5720 = vmul.f32 %v4122, 0.1
        %v5721 = vmul.f32 %v4124, 0.1
        %v5722 = vmul.f32 %v4574, 0.1
        %v5723 = vmul.f32 %v4576, 0.1
        %v5724 = vmul.f32 %v5026, 0.1
        %v5725 = vmul.f32 %v5028, 0.1
        %v5726 = vmul.f32 %v5478, 0.1
        %v5727 = vmul.f32 %v5480, 0.1
        %v5728 = vmul.f32 %v4126, 0.1
        %v5729 = vmul.f32 %v4128, 0.1
        %v5730 = vmul.f32 %v4578, 0.1
        %v5731 = vmul.f32 %v4580, 0.1
        %v5732 = vmul.f32 %v5030, 0.1
        %v5733 = vmul.f32 %v5032, 0.1
        %v5734 = vmul.f32 %v5482, 0.1
        %v5735 = vmul.f32 %v5484, 0.1
        %v5736 = vmul.f32 %v4132, 0.1
        %v5737 = vmul.f32 %v4134, 0.1
        %v5738 = vmul.f32 %v4584, 0.1
        %v5739 = vmul.f32 %v4586, 0.1
        %v5740 = vmul.f32 %v5036, 0.1
        %v5741 = vmul.f32 %v5038, 0.1
        %v5742 = vmul.f32 %v5488, 0.1
        %v5743 = vmul.f32 %v5490, 0.1
        %v5744 = vmul.f32 %v4136, 0.1
        %v5745 = vmul.f32 %v4138, 0.1
        %v5746 = vmul.f32 %v4588, 0.1
        %v5747 = vmul.f32 %v4590, 0.1
        %v5748 = vmul.f32 %v5040, 0.1
        %v5749 = vmul.f32 %v5042, 0.1
        %v5750 = vmul.f32 %v5492, 0.1
        %v5751 = vmul.f32 %v5494, 0.1
        %v5752 = vsel %vm5496, %v4062, %v5624
        %v5753 = vsel %vm5497, %v4064, %v5625
        %v5754 = vsel %vm5498, %v4514, %v5626
        %v5755 = vsel %vm5499, %v4516, %v5627
        %v5756 = vsel %vm5500, %v4966, %v5628
        %v5757 = vsel %vm5501, %v4968, %v5629
        %v5758 = vsel %vm5502, %v5418, %v5630
        %v5759 = vsel %vm5503, %v5420, %v5631
        %v5760 = vsel %vm5504, %v4066, %v5632
        %v5761 = vsel %vm5505, %v4068, %v5633
        %v5762 = vsel %vm5506, %v4518, %v5634
        %v5763 = vsel %vm5507, %v4520, %v5635
        %v5764 = vsel %vm5508, %v4970, %v5636
        %v5765 = vsel %vm5509, %v4972, %v5637
        %v5766 = vsel %vm5510, %v5422, %v5638
        %v5767 = vsel %vm5511, %v5424, %v5639
        %v5768 = vsel %vm5512, %v4072, %v5640
        %v5769 = vsel %vm5513, %v4074, %v5641
        %v5770 = vsel %vm5514, %v4524, %v5642
        %v5771 = vsel %vm5515, %v4526, %v5643
        %v5772 = vsel %vm5516, %v4976, %v5644
        %v5773 = vsel %vm5517, %v4978, %v5645
        %v5774 = vsel %vm5518, %v5428, %v5646
        %v5775 = vsel %vm5519, %v5430, %v5647
        %v5776 = vsel %vm5520, %v4076, %v5648
        %v5777 = vsel %vm5521, %v4078, %v5649
        %v5778 = vsel %vm5522, %v4528, %v5650
        %v5779 = vsel %vm5523, %v4530, %v5651
        %v5780 = vsel %vm5524, %v4980, %v5652
        %v5781 = vsel %vm5525, %v4982, %v5653
        %v5782 = vsel %vm5526, %v5432, %v5654
        %v5783 = vsel %vm5527, %v5434, %v5655
        %v5784 = vsel %vm5528, %v4082, %v5656
        %v5785 = vsel %vm5529, %v4084, %v5657
        %v5786 = vsel %vm5530, %v4534, %v5658
        %v5787 = vsel %vm5531, %v4536, %v5659
        %v5788 = vsel %vm5532, %v4986, %v5660
        %v5789 = vsel %vm5533, %v4988, %v5661
        %v5790 = vsel %vm5534, %v5438, %v5662
        %v5791 = vsel %vm5535, %v5440, %v5663
        %v5792 = vsel %vm5536, %v4086, %v5664
        %v5793 = vsel %vm5537, %v4088, %v5665
        %v5794 = vsel %vm5538, %v4538, %v5666
        %v5795 = vsel %vm5539, %v4540, %v5667
        %v5796 = vsel %vm5540, %v4990, %v5668
        %v5797 = vsel %vm5541, %v4992, %v5669
        %v5798 = vsel %vm5542, %v5442, %v5670
        %v5799 = vsel %vm5543, %v5444, %v5671
        %v5800 = vsel %vm5544, %v4092, %v5672
        %v5801 = vsel %vm5545, %v4094, %v5673
        %v5802 = vsel %vm5546, %v4544, %v5674
        %v5803 = vsel %vm5547, %v4546, %v5675
        %v5804 = vsel %vm5548, %v4996, %v5676
        %v5805 = vsel %vm5549, %v4998, %v5677
        %v5806 = vsel %vm5550, %v5448, %v5678
        %v5807 = vsel %vm5551, %v5450, %v5679
        %v5808 = vsel %vm5552, %v4096, %v5680
        %v5809 = vsel %vm5553, %v4098, %v5681
        %v5810 = vsel %vm5554, %v4548, %v5682
        %v5811 = vsel %vm5555, %v4550, %v5683
        %v5812 = vsel %vm5556, %v5000, %v5684
        %v5813 = vsel %vm5557, %v5002, %v5685
        %v5814 = vsel %vm5558, %v5452, %v5686
        %v5815 = vsel %vm5559, %v5454, %v5687
        %v5816 = vsel %vm5560, %v4102, %v5688
        %v5817 = vsel %vm5561, %v4104, %v5689
        %v5818 = vsel %vm5562, %v4554, %v5690
        %v5819 = vsel %vm5563, %v4556, %v5691
        %v5820 = vsel %vm5564, %v5006, %v5692
        %v5821 = vsel %vm5565, %v5008, %v5693
        %v5822 = vsel %vm5566, %v5458, %v5694
        %v5823 = vsel %vm5567, %v5460, %v5695
        %v5824 = vsel %vm5568, %v4106, %v5696
        %v5825 = vsel %vm5569, %v4108, %v5697
        %v5826 = vsel %vm5570, %v4558, %v5698
        %v5827 = vsel %vm5571, %v4560, %v5699
        %v5828 = vsel %vm5572, %v5010, %v5700
        %v5829 = vsel %vm5573, %v5012, %v5701
        %v5830 = vsel %vm5574, %v5462, %v5702
        %v5831 = vsel %vm5575, %v5464, %v5703
        %v5832 = vsel %vm5576, %v4112, %v5704
        %v5833 = vsel %vm5577, %v4114, %v5705
        %v5834 = vsel %vm5578, %v4564, %v5706
        %v5835 = vsel %vm5579, %v4566, %v5707
        %v5836 = vsel %vm5580, %v5016, %v5708
        %v5837 = vsel %vm5581, %v5018, %v5709
        %v5838 = vsel %vm5582, %v5468, %v5710
        %v5839 = vsel %vm5583, %v5470, %v5711
        %v5840 = vsel %vm5584, %v4116, %v5712
        %v5841 = vsel %vm5585, %v4118, %v5713
        %v5842 = vsel %vm5586, %v4568, %v5714
        %v5843 = vsel %vm5587, %v4570, %v5715
        %v5844 = vsel %vm5588, %v5020, %v5716
        %v5845 = vsel %vm5589, %v5022, %v5717
        %v5846 = vsel %vm5590, %v5472, %v5718
        %v5847 = vsel %vm5591, %v5474, %v5719
        %v5848 = vsel %vm5592, %v4122, %v5720
        %v5849 = vsel %vm5593, %v4124, %v5721
        %v5850 = vsel %vm5594, %v4574, %v5722
        %v5851 = vsel %vm5595, %v4576, %v5723
        %v5852 = vsel %vm5596, %v5026, %v5724
        %v5853 = vsel %vm5597, %v5028, %v5725
        %v5854 = vsel %vm5598, %v5478, %v5726
        %v5855 = vsel %vm5599, %v5480, %v5727
        %v5856 = vsel %vm5600, %v4126, %v5728
        %v5857 = vsel %vm5601, %v4128, %v5729
        %v5858 = vsel %vm5602, %v4578, %v5730
        %v5859 = vsel %vm5603, %v4580, %v5731
        %v5860 = vsel %vm5604, %v5030, %v5732
        %v5861 = vsel %vm5605, %v5032, %v5733
        %v5862 = vsel %vm5606, %v5482, %v5734
        %v5863 = vsel %vm5607, %v5484, %v5735
        %v5864 = vsel %vm5608, %v4132, %v5736
        %v5865 = vsel %vm5609, %v4134, %v5737
        %v5866 = vsel %vm5610, %v4584, %v5738
        %v5867 = vsel %vm5611, %v4586, %v5739
        %v5868 = vsel %vm5612, %v5036, %v5740
        %v5869 = vsel %vm5613, %v5038, %v5741
        %v5870 = vsel %vm5614, %v5488, %v5742
        %v5871 = vsel %vm5615, %v5490, %v5743
        %v5872 = vsel %vm5616, %v4136, %v5744
        %v5873 = vsel %vm5617, %v4138, %v5745
        %v5874 = vsel %vm5618, %v4588, %v5746
        %v5875 = vsel %vm5619, %v4590, %v5747
        %v5876 = vsel %vm5620, %v5040, %v5748
        %v5877 = vsel %vm5621, %v5042, %v5749
        %v5878 = vsel %vm5622, %v5492, %v5750
        %v5879 = vsel %vm5623, %v5494, %v5751
        %v5880 = vpack.c.bf16 %v5760, %v5752
        %v5881 = vpack.c.bf16 %v5761, %v5753
        %v5882 = vpack.c.bf16 %v5762, %v5754
        %v5883 = vpack.c.bf16 %v5763, %v5755
        %v5884 = vpack.c.bf16 %v5764, %v5756
        %v5885 = vpack.c.bf16 %v5765, %v5757
        %v5886 = vpack.c.bf16 %v5766, %v5758
        %v5887 = vpack.c.bf16 %v5767, %v5759
        %v5888 = vpack.c.bf16 %v5776, %v5768
        %v5889 = vpack.c.bf16 %v5777, %v5769
        %v5890 = vpack.c.bf16 %v5778, %v5770
        %v5891 = vpack.c.bf16 %v5779, %v5771
        %v5892 = vpack.c.bf16 %v5780, %v5772
        %v5893 = vpack.c.bf16 %v5781, %v5773
        %v5894 = vpack.c.bf16 %v5782, %v5774
        %v5895 = vpack.c.bf16 %v5783, %v5775
        %v5896 = vpack.c.bf16 %v5792, %v5784
        %v5897 = vpack.c.bf16 %v5793, %v5785
        %v5898 = vpack.c.bf16 %v5794, %v5786
        %v5899 = vpack.c.bf16 %v5795, %v5787
        %v5900 = vpack.c.bf16 %v5796, %v5788
        %v5901 = vpack.c.bf16 %v5797, %v5789
        %v5902 = vpack.c.bf16 %v5798, %v5790
        %v5903 = vpack.c.bf16 %v5799, %v5791
        %v5904 = vpack.c.bf16 %v5808, %v5800
        %v5905 = vpack.c.bf16 %v5809, %v5801
        %v5906 = vpack.c.bf16 %v5810, %v5802
        %v5907 = vpack.c.bf16 %v5811, %v5803
        %v5908 = vpack.c.bf16 %v5812, %v5804
        %v5909 = vpack.c.bf16 %v5813, %v5805
        %v5910 = vpack.c.bf16 %v5814, %v5806
        %v5911 = vpack.c.bf16 %v5815, %v5807
        %v5912 = vpack.c.bf16 %v5824, %v5816
        %v5913 = vpack.c.bf16 %v5825, %v5817
        %v5914 = vpack.c.bf16 %v5826, %v5818
        %v5915 = vpack.c.bf16 %v5827, %v5819
        %v5916 = vpack.c.bf16 %v5828, %v5820
        %v5917 = vpack.c.bf16 %v5829, %v5821
        %v5918 = vpack.c.bf16 %v5830, %v5822
        %v5919 = vpack.c.bf16 %v5831, %v5823
        %v5920 = vpack.c.bf16 %v5840, %v5832
        %v5921 = vpack.c.bf16 %v5841, %v5833
        %v5922 = vpack.c.bf16 %v5842, %v5834
        %v5923 = vpack.c.bf16 %v5843, %v5835
        %v5924 = vpack.c.bf16 %v5844, %v5836
        %v5925 = vpack.c.bf16 %v5845, %v5837
        %v5926 = vpack.c.bf16 %v5846, %v5838
        %v5927 = vpack.c.bf16 %v5847, %v5839
        %v5928 = vpack.c.bf16 %v5856, %v5848
        %v5929 = vpack.c.bf16 %v5857, %v5849
        %v5930 = vpack.c.bf16 %v5858, %v5850
        %v5931 = vpack.c.bf16 %v5859, %v5851
        %v5932 = vpack.c.bf16 %v5860, %v5852
        %v5933 = vpack.c.bf16 %v5861, %v5853
        %v5934 = vpack.c.bf16 %v5862, %v5854
        %v5935 = vpack.c.bf16 %v5863, %v5855
        %v5936 = vpack.c.bf16 %v5872, %v5864
        %v5937 = vpack.c.bf16 %v5873, %v5865
        %v5938 = vpack.c.bf16 %v5874, %v5866
        %v5939 = vpack.c.bf16 %v5875, %v5867
        %v5940 = vpack.c.bf16 %v5876, %v5868
        %v5941 = vpack.c.bf16 %v5877, %v5869
        %v5942 = vpack.c.bf16 %v5878, %v5870
        %v5943 = vpack.c.bf16 %v5879, %v5871
        %v5944 = vld [vmem:[#allocation8] sm:$0xff]
        %v5945 = vld [vmem:[#allocation8 + $0x8] sm:$0xff]
        %v5946 = vld [vmem:[#allocation8 + $0x10] sm:$0xff]
        %v5947 = vld [vmem:[#allocation8 + $0x18] sm:$0xff]
        %v5948 = vld [vmem:[#allocation8 + $0x20] sm:$0xff]
        %v5949 = vld [vmem:[#allocation8 + $0x28] sm:$0xff]
        %v5950 = vld [vmem:[#allocation8 + $0x30] sm:$0xff]
        %v5951 = vld [vmem:[#allocation8 + $0x38] sm:$0xff]
        %v5952 = vld [vmem:[#allocation8 + $0x40] sm:$0xff]
        %v5953 = vld [vmem:[#allocation8 + $0x48] sm:$0xff]
        %v5954 = vld [vmem:[#allocation8 + $0x50] sm:$0xff]
        %v5955 = vld [vmem:[#allocation8 + $0x58] sm:$0xff]
        %v5956 = vld [vmem:[#allocation8 + $0x60] sm:$0xff]
        %v5957 = vld [vmem:[#allocation8 + $0x68] sm:$0xff]
        %v5958 = vld [vmem:[#allocation8 + $0x70] sm:$0xff]
        %v5959 = vld [vmem:[#allocation8 + $0x78] sm:$0xff]
        %v5960 = vld [vmem:[#allocation8 + $0x80] sm:$0xff]
        %v5961 = vld [vmem:[#allocation8 + $0x88] sm:$0xff]
        %v5962 = vld [vmem:[#allocation8 + $0x90] sm:$0xff]
        %v5963 = vld [vmem:[#allocation8 + $0x98] sm:$0xff]
        %v5964 = vld [vmem:[#allocation8 + $0xa0] sm:$0xff]
        %v5965 = vld [vmem:[#allocation8 + $0xa8] sm:$0xff]
        %v5966 = vld [vmem:[#allocation8 + $0xb0] sm:$0xff]
        %v5967 = vld [vmem:[#allocation8 + $0xb8] sm:$0xff]
        %v5968 = vld [vmem:[#allocation8 + $0xc0] sm:$0xff]
        %v5969 = vld [vmem:[#allocation8 + $0xc8] sm:$0xff]
        %v5970 = vld [vmem:[#allocation8 + $0xd0] sm:$0xff]
        %v5971 = vld [vmem:[#allocation8 + $0xd8] sm:$0xff]
        %v5972 = vld [vmem:[#allocation8 + $0xe0] sm:$0xff]
        %v5973 = vld [vmem:[#allocation8 + $0xe8] sm:$0xff]
        %v5974 = vld [vmem:[#allocation8 + $0xf0] sm:$0xff]
        %v5975 = vld [vmem:[#allocation8 + $0xf8] sm:$0xff]
        %v5976 = vld [vmem:[#allocation8 + $0x100] sm:$0xff]
        %v5977 = vld [vmem:[#allocation8 + $0x108] sm:$0xff]
        %v5978 = vld [vmem:[#allocation8 + $0x110] sm:$0xff]
        %v5979 = vld [vmem:[#allocation8 + $0x118] sm:$0xff]
        %v5980 = vld [vmem:[#allocation8 + $0x120] sm:$0xff]
        %v5981 = vld [vmem:[#allocation8 + $0x128] sm:$0xff]
        %v5982 = vld [vmem:[#allocation8 + $0x130] sm:$0xff]
        %v5983 = vld [vmem:[#allocation8 + $0x138] sm:$0xff]
        %v5984 = vld [vmem:[#allocation8 + $0x140] sm:$0xff]
        %v5985 = vld [vmem:[#allocation8 + $0x148] sm:$0xff]
        %v5986 = vld [vmem:[#allocation8 + $0x150] sm:$0xff]
        %v5987 = vld [vmem:[#allocation8 + $0x158] sm:$0xff]
        %v5988 = vld [vmem:[#allocation8 + $0x160] sm:$0xff]
        %v5989 = vld [vmem:[#allocation8 + $0x168] sm:$0xff]
        %v5990 = vld [vmem:[#allocation8 + $0x170] sm:$0xff]
        %v5991 = vld [vmem:[#allocation8 + $0x178] sm:$0xff]
        %v5992 = vld [vmem:[#allocation8 + $0x180] sm:$0xff]
        %v5993 = vld [vmem:[#allocation8 + $0x188] sm:$0xff]
        %v5994 = vld [vmem:[#allocation8 + $0x190] sm:$0xff]
        %v5995 = vld [vmem:[#allocation8 + $0x198] sm:$0xff]
        %v5996 = vld [vmem:[#allocation8 + $0x1a0] sm:$0xff]
        %v5997 = vld [vmem:[#allocation8 + $0x1a8] sm:$0xff]
        %v5998 = vld [vmem:[#allocation8 + $0x1b0] sm:$0xff]
        %v5999 = vld [vmem:[#allocation8 + $0x1b8] sm:$0xff]
        %v6000 = vld [vmem:[#allocation8 + $0x1c0] sm:$0xff]
        %v6001 = vld [vmem:[#allocation8 + $0x1c8] sm:$0xff]
        %v6002 = vld [vmem:[#allocation8 + $0x1d0] sm:$0xff]
        %v6003 = vld [vmem:[#allocation8 + $0x1d8] sm:$0xff]
        %v6004 = vld [vmem:[#allocation8 + $0x1e0] sm:$0xff]
        %v6005 = vld [vmem:[#allocation8 + $0x1e8] sm:$0xff]
        %v6006 = vld [vmem:[#allocation8 + $0x1f0] sm:$0xff]
        %v6007 = vld [vmem:[#allocation8 + $0x1f8] sm:$0xff]
        %v6008 = vld [vmem:[#allocation8 + $0x200] sm:$0xff]
        %v6009 = vld [vmem:[#allocation8 + $0x208] sm:$0xff]
        %v6010 = vld [vmem:[#allocation8 + $0x210] sm:$0xff]
        %v6011 = vld [vmem:[#allocation8 + $0x218] sm:$0xff]
        %v6012 = vld [vmem:[#allocation8 + $0x220] sm:$0xff]
        %v6013 = vld [vmem:[#allocation8 + $0x228] sm:$0xff]
        %v6014 = vld [vmem:[#allocation8 + $0x230] sm:$0xff]
        %v6015 = vld [vmem:[#allocation8 + $0x238] sm:$0xff]
        %v6016 = vld [vmem:[#allocation8 + $0x240] sm:$0xff]
        %v6017 = vld [vmem:[#allocation8 + $0x248] sm:$0xff]
        %v6018 = vld [vmem:[#allocation8 + $0x250] sm:$0xff]
        %v6019 = vld [vmem:[#allocation8 + $0x258] sm:$0xff]
        %v6020 = vld [vmem:[#allocation8 + $0x260] sm:$0xff]
        %v6021 = vld [vmem:[#allocation8 + $0x268] sm:$0xff]
        %v6022 = vld [vmem:[#allocation8 + $0x270] sm:$0xff]
        %v6023 = vld [vmem:[#allocation8 + $0x278] sm:$0xff]
        %v6024 = vld [vmem:[#allocation8 + $0x280] sm:$0xff]
        %v6025 = vld [vmem:[#allocation8 + $0x288] sm:$0xff]
        %v6026 = vld [vmem:[#allocation8 + $0x290] sm:$0xff]
        %v6027 = vld [vmem:[#allocation8 + $0x298] sm:$0xff]
        %v6028 = vld [vmem:[#allocation8 + $0x2a0] sm:$0xff]
        %v6029 = vld [vmem:[#allocation8 + $0x2a8] sm:$0xff]
        %v6030 = vld [vmem:[#allocation8 + $0x2b0] sm:$0xff]
        %v6031 = vld [vmem:[#allocation8 + $0x2b8] sm:$0xff]
        %v6032 = vld [vmem:[#allocation8 + $0x2c0] sm:$0xff]
        %v6033 = vld [vmem:[#allocation8 + $0x2c8] sm:$0xff]
        %v6034 = vld [vmem:[#allocation8 + $0x2d0] sm:$0xff]
        %v6035 = vld [vmem:[#allocation8 + $0x2d8] sm:$0xff]
        %v6036 = vld [vmem:[#allocation8 + $0x2e0] sm:$0xff]
        %v6037 = vld [vmem:[#allocation8 + $0x2e8] sm:$0xff]
        %v6038 = vld [vmem:[#allocation8 + $0x2f0] sm:$0xff]
        %v6039 = vld [vmem:[#allocation8 + $0x2f8] sm:$0xff]
        %v6040 = vld [vmem:[#allocation8 + $0x300] sm:$0xff]
        %v6041 = vld [vmem:[#allocation8 + $0x308] sm:$0xff]
        %v6042 = vld [vmem:[#allocation8 + $0x310] sm:$0xff]
        %v6043 = vld [vmem:[#allocation8 + $0x318] sm:$0xff]
        %v6044 = vld [vmem:[#allocation8 + $0x320] sm:$0xff]
        %v6045 = vld [vmem:[#allocation8 + $0x328] sm:$0xff]
        %v6046 = vld [vmem:[#allocation8 + $0x330] sm:$0xff]
        %v6047 = vld [vmem:[#allocation8 + $0x338] sm:$0xff]
        %v6048 = vld [vmem:[#allocation8 + $0x340] sm:$0xff]
        %v6049 = vld [vmem:[#allocation8 + $0x348] sm:$0xff]
        %v6050 = vld [vmem:[#allocation8 + $0x350] sm:$0xff]
        %v6051 = vld [vmem:[#allocation8 + $0x358] sm:$0xff]
        %v6052 = vld [vmem:[#allocation8 + $0x360] sm:$0xff]
        %v6053 = vld [vmem:[#allocation8 + $0x368] sm:$0xff]
        %v6054 = vld [vmem:[#allocation8 + $0x370] sm:$0xff]
        %v6055 = vld [vmem:[#allocation8 + $0x378] sm:$0xff]
        %v6056 = vld [vmem:[#allocation8 + $0x380] sm:$0xff]
        %v6057 = vld [vmem:[#allocation8 + $0x388] sm:$0xff]
        %v6058 = vld [vmem:[#allocation8 + $0x390] sm:$0xff]
        %v6059 = vld [vmem:[#allocation8 + $0x398] sm:$0xff]
        %v6060 = vld [vmem:[#allocation8 + $0x3a0] sm:$0xff]
        %v6061 = vld [vmem:[#allocation8 + $0x3a8] sm:$0xff]
        %v6062 = vld [vmem:[#allocation8 + $0x3b0] sm:$0xff]
        %v6063 = vld [vmem:[#allocation8 + $0x3b8] sm:$0xff]
        %v6064 = vld [vmem:[#allocation8 + $0x3c0] sm:$0xff]
        %v6065 = vld [vmem:[#allocation8 + $0x3c8] sm:$0xff]
        %v6066 = vld [vmem:[#allocation8 + $0x3d0] sm:$0xff]
        %v6067 = vld [vmem:[#allocation8 + $0x3d8] sm:$0xff]
        %v6068 = vld [vmem:[#allocation8 + $0x3e0] sm:$0xff]
        %v6069 = vld [vmem:[#allocation8 + $0x3e8] sm:$0xff]
        %v6070 = vld [vmem:[#allocation8 + $0x3f0] sm:$0xff]
        %v6071 = vld [vmem:[#allocation8 + $0x3f8] sm:$0xff]
        %v6072 = vld [vmem:[#allocation8 + $0x400] sm:$0xff]
        %v6073 = vld [vmem:[#allocation8 + $0x408] sm:$0xff]
        %v6074 = vld [vmem:[#allocation8 + $0x410] sm:$0xff]
        %v6075 = vld [vmem:[#allocation8 + $0x418] sm:$0xff]
        %v6076 = vld [vmem:[#allocation8 + $0x420] sm:$0xff]
        %v6077 = vld [vmem:[#allocation8 + $0x428] sm:$0xff]
        %v6078 = vld [vmem:[#allocation8 + $0x430] sm:$0xff]
        %v6079 = vld [vmem:[#allocation8 + $0x438] sm:$0xff]
        %v6080 = vld [vmem:[#allocation8 + $0x440] sm:$0xff]
        %v6081 = vld [vmem:[#allocation8 + $0x448] sm:$0xff]
        %v6082 = vld [vmem:[#allocation8 + $0x450] sm:$0xff]
        %v6083 = vld [vmem:[#allocation8 + $0x458] sm:$0xff]
        %v6084 = vld [vmem:[#allocation8 + $0x460] sm:$0xff]
        %v6085 = vld [vmem:[#allocation8 + $0x468] sm:$0xff]
        %v6086 = vld [vmem:[#allocation8 + $0x470] sm:$0xff]
        %v6087 = vld [vmem:[#allocation8 + $0x478] sm:$0xff]
        %v6088 = vld [vmem:[#allocation8 + $0x480] sm:$0xff]
        %v6089 = vld [vmem:[#allocation8 + $0x488] sm:$0xff]
        %v6090 = vld [vmem:[#allocation8 + $0x490] sm:$0xff]
        %v6091 = vld [vmem:[#allocation8 + $0x498] sm:$0xff]
        %v6092 = vld [vmem:[#allocation8 + $0x4a0] sm:$0xff]
        %v6093 = vld [vmem:[#allocation8 + $0x4a8] sm:$0xff]
        %v6094 = vld [vmem:[#allocation8 + $0x4b0] sm:$0xff]
        %v6095 = vld [vmem:[#allocation8 + $0x4b8] sm:$0xff]
        %v6096 = vld [vmem:[#allocation8 + $0x4c0] sm:$0xff]
        %v6097 = vld [vmem:[#allocation8 + $0x4c8] sm:$0xff]
        %v6098 = vld [vmem:[#allocation8 + $0x4d0] sm:$0xff]
        %v6099 = vld [vmem:[#allocation8 + $0x4d8] sm:$0xff]
        %v6100 = vld [vmem:[#allocation8 + $0x4e0] sm:$0xff]
        %v6101 = vld [vmem:[#allocation8 + $0x4e8] sm:$0xff]
        %v6102 = vld [vmem:[#allocation8 + $0x4f0] sm:$0xff]
        %v6103 = vld [vmem:[#allocation8 + $0x4f8] sm:$0xff]
        %v6104 = vld [vmem:[#allocation8 + $0x500] sm:$0xff]
        %v6105 = vld [vmem:[#allocation8 + $0x508] sm:$0xff]
        %v6106 = vld [vmem:[#allocation8 + $0x510] sm:$0xff]
        %v6107 = vld [vmem:[#allocation8 + $0x518] sm:$0xff]
        %v6108 = vld [vmem:[#allocation8 + $0x520] sm:$0xff]
        %v6109 = vld [vmem:[#allocation8 + $0x528] sm:$0xff]
        %v6110 = vld [vmem:[#allocation8 + $0x530] sm:$0xff]
        %v6111 = vld [vmem:[#allocation8 + $0x538] sm:$0xff]
        %v6112 = vld [vmem:[#allocation8 + $0x540] sm:$0xff]
        %v6113 = vld [vmem:[#allocation8 + $0x548] sm:$0xff]
        %v6114 = vld [vmem:[#allocation8 + $0x550] sm:$0xff]
        %v6115 = vld [vmem:[#allocation8 + $0x558] sm:$0xff]
        %v6116 = vld [vmem:[#allocation8 + $0x560] sm:$0xff]
        %v6117 = vld [vmem:[#allocation8 + $0x568] sm:$0xff]
        %v6118 = vld [vmem:[#allocation8 + $0x570] sm:$0xff]
        %v6119 = vld [vmem:[#allocation8 + $0x578] sm:$0xff]
        %v6120 = vld [vmem:[#allocation8 + $0x580] sm:$0xff]
        %v6121 = vld [vmem:[#allocation8 + $0x588] sm:$0xff]
        %v6122 = vld [vmem:[#allocation8 + $0x590] sm:$0xff]
        %v6123 = vld [vmem:[#allocation8 + $0x598] sm:$0xff]
        %v6124 = vld [vmem:[#allocation8 + $0x5a0] sm:$0xff]
        %v6125 = vld [vmem:[#allocation8 + $0x5a8] sm:$0xff]
        %v6126 = vld [vmem:[#allocation8 + $0x5b0] sm:$0xff]
        %v6127 = vld [vmem:[#allocation8 + $0x5b8] sm:$0xff]
        %v6128 = vld [vmem:[#allocation8 + $0x5c0] sm:$0xff]
        %v6129 = vld [vmem:[#allocation8 + $0x5c8] sm:$0xff]
        %v6130 = vld [vmem:[#allocation8 + $0x5d0] sm:$0xff]
        %v6131 = vld [vmem:[#allocation8 + $0x5d8] sm:$0xff]
        %v6132 = vld [vmem:[#allocation8 + $0x5e0] sm:$0xff]
        %v6133 = vld [vmem:[#allocation8 + $0x5e8] sm:$0xff]
        %v6134 = vld [vmem:[#allocation8 + $0x5f0] sm:$0xff]
        %v6135 = vld [vmem:[#allocation8 + $0x5f8] sm:$0xff]
        %v6136 = vld [vmem:[#allocation8 + $0x600] sm:$0xff]
        %v6137 = vld [vmem:[#allocation8 + $0x608] sm:$0xff]
        %v6138 = vld [vmem:[#allocation8 + $0x610] sm:$0xff]
        %v6139 = vld [vmem:[#allocation8 + $0x618] sm:$0xff]
        %v6140 = vld [vmem:[#allocation8 + $0x620] sm:$0xff]
        %v6141 = vld [vmem:[#allocation8 + $0x628] sm:$0xff]
        %v6142 = vld [vmem:[#allocation8 + $0x630] sm:$0xff]
        %v6143 = vld [vmem:[#allocation8 + $0x638] sm:$0xff]
        %v6144 = vld [vmem:[#allocation8 + $0x640] sm:$0xff]
        %v6145 = vld [vmem:[#allocation8 + $0x648] sm:$0xff]
        %v6146 = vld [vmem:[#allocation8 + $0x650] sm:$0xff]
        %v6147 = vld [vmem:[#allocation8 + $0x658] sm:$0xff]
        %v6148 = vld [vmem:[#allocation8 + $0x660] sm:$0xff]
        %v6149 = vld [vmem:[#allocation8 + $0x668] sm:$0xff]
        %v6150 = vld [vmem:[#allocation8 + $0x670] sm:$0xff]
        %v6151 = vld [vmem:[#allocation8 + $0x678] sm:$0xff]
        %v6152 = vld [vmem:[#allocation8 + $0x680] sm:$0xff]
        %v6153 = vld [vmem:[#allocation8 + $0x688] sm:$0xff]
        %v6154 = vld [vmem:[#allocation8 + $0x690] sm:$0xff]
        %v6155 = vld [vmem:[#allocation8 + $0x698] sm:$0xff]
        %v6156 = vld [vmem:[#allocation8 + $0x6a0] sm:$0xff]
        %v6157 = vld [vmem:[#allocation8 + $0x6a8] sm:$0xff]
        %v6158 = vld [vmem:[#allocation8 + $0x6b0] sm:$0xff]
        %v6159 = vld [vmem:[#allocation8 + $0x6b8] sm:$0xff]
        %v6160 = vld [vmem:[#allocation8 + $0x6c0] sm:$0xff]
        %v6161 = vld [vmem:[#allocation8 + $0x6c8] sm:$0xff]
        %v6162 = vld [vmem:[#allocation8 + $0x6d0] sm:$0xff]
        %v6163 = vld [vmem:[#allocation8 + $0x6d8] sm:$0xff]
        %v6164 = vld [vmem:[#allocation8 + $0x6e0] sm:$0xff]
        %v6165 = vld [vmem:[#allocation8 + $0x6e8] sm:$0xff]
        %v6166 = vld [vmem:[#allocation8 + $0x6f0] sm:$0xff]
        %v6167 = vld [vmem:[#allocation8 + $0x6f8] sm:$0xff]
        %v6168 = vld [vmem:[#allocation8 + $0x700] sm:$0xff]
        %v6169 = vld [vmem:[#allocation8 + $0x708] sm:$0xff]
        %v6170 = vld [vmem:[#allocation8 + $0x710] sm:$0xff]
        %v6171 = vld [vmem:[#allocation8 + $0x718] sm:$0xff]
        %v6172 = vld [vmem:[#allocation8 + $0x720] sm:$0xff]
        %v6173 = vld [vmem:[#allocation8 + $0x728] sm:$0xff]
        %v6174 = vld [vmem:[#allocation8 + $0x730] sm:$0xff]
        %v6175 = vld [vmem:[#allocation8 + $0x738] sm:$0xff]
        %v6176 = vld [vmem:[#allocation8 + $0x740] sm:$0xff]
        %v6177 = vld [vmem:[#allocation8 + $0x748] sm:$0xff]
        %v6178 = vld [vmem:[#allocation8 + $0x750] sm:$0xff]
        %v6179 = vld [vmem:[#allocation8 + $0x758] sm:$0xff]
        %v6180 = vld [vmem:[#allocation8 + $0x760] sm:$0xff]
        %v6181 = vld [vmem:[#allocation8 + $0x768] sm:$0xff]
        %v6182 = vld [vmem:[#allocation8 + $0x770] sm:$0xff]
        %v6183 = vld [vmem:[#allocation8 + $0x778] sm:$0xff]
        %v6184 = vld [vmem:[#allocation8 + $0x780] sm:$0xff]
        %v6185 = vld [vmem:[#allocation8 + $0x788] sm:$0xff]
        %v6186 = vld [vmem:[#allocation8 + $0x790] sm:$0xff]
        %v6187 = vld [vmem:[#allocation8 + $0x798] sm:$0xff]
        %v6188 = vld [vmem:[#allocation8 + $0x7a0] sm:$0xff]
        %v6189 = vld [vmem:[#allocation8 + $0x7a8] sm:$0xff]
        %v6190 = vld [vmem:[#allocation8 + $0x7b0] sm:$0xff]
        %v6191 = vld [vmem:[#allocation8 + $0x7b8] sm:$0xff]
        %v6192 = vld [vmem:[#allocation8 + $0x7c0] sm:$0xff]
        %v6193 = vld [vmem:[#allocation8 + $0x7c8] sm:$0xff]
        %v6194 = vld [vmem:[#allocation8 + $0x7d0] sm:$0xff]
        %v6195 = vld [vmem:[#allocation8 + $0x7d8] sm:$0xff]
        %v6196 = vld [vmem:[#allocation8 + $0x7e0] sm:$0xff]
        %v6197 = vld [vmem:[#allocation8 + $0x7e8] sm:$0xff]
        %v6198 = vld [vmem:[#allocation8 + $0x7f0] sm:$0xff]
        %v6199 = vld [vmem:[#allocation8 + $0x7f8] sm:$0xff]
        %v6200 = vld [vmem:[#allocation8 + $0x800] sm:$0xff]
        %v6201 = vld [vmem:[#allocation8 + $0x808] sm:$0xff]
        %v6202 = vld [vmem:[#allocation8 + $0x810] sm:$0xff]
        %v6203 = vld [vmem:[#allocation8 + $0x818] sm:$0xff]
        %v6204 = vld [vmem:[#allocation8 + $0x820] sm:$0xff]
        %v6205 = vld [vmem:[#allocation8 + $0x828] sm:$0xff]
        %v6206 = vld [vmem:[#allocation8 + $0x830] sm:$0xff]
        %v6207 = vld [vmem:[#allocation8 + $0x838] sm:$0xff]
        %v6208 = vld [vmem:[#allocation8 + $0x840] sm:$0xff]
        %v6209 = vld [vmem:[#allocation8 + $0x848] sm:$0xff]
        %v6210 = vld [vmem:[#allocation8 + $0x850] sm:$0xff]
        %v6211 = vld [vmem:[#allocation8 + $0x858] sm:$0xff]
        %v6212 = vld [vmem:[#allocation8 + $0x860] sm:$0xff]
        %v6213 = vld [vmem:[#allocation8 + $0x868] sm:$0xff]
        %v6214 = vld [vmem:[#allocation8 + $0x870] sm:$0xff]
        %v6215 = vld [vmem:[#allocation8 + $0x878] sm:$0xff]
        %v6216 = vld [vmem:[#allocation8 + $0x880] sm:$0xff]
        %v6217 = vld [vmem:[#allocation8 + $0x888] sm:$0xff]
        %v6218 = vld [vmem:[#allocation8 + $0x890] sm:$0xff]
        %v6219 = vld [vmem:[#allocation8 + $0x898] sm:$0xff]
        %v6220 = vld [vmem:[#allocation8 + $0x8a0] sm:$0xff]
        %v6221 = vld [vmem:[#allocation8 + $0x8a8] sm:$0xff]
        %v6222 = vld [vmem:[#allocation8 + $0x8b0] sm:$0xff]
        %v6223 = vld [vmem:[#allocation8 + $0x8b8] sm:$0xff]
        %v6224 = vld [vmem:[#allocation8 + $0x8c0] sm:$0xff]
        %v6225 = vld [vmem:[#allocation8 + $0x8c8] sm:$0xff]
        %v6226 = vld [vmem:[#allocation8 + $0x8d0] sm:$0xff]
        %v6227 = vld [vmem:[#allocation8 + $0x8d8] sm:$0xff]
        %v6228 = vld [vmem:[#allocation8 + $0x8e0] sm:$0xff]
        %v6229 = vld [vmem:[#allocation8 + $0x8e8] sm:$0xff]
        %v6230 = vld [vmem:[#allocation8 + $0x8f0] sm:$0xff]
        %v6231 = vld [vmem:[#allocation8 + $0x8f8] sm:$0xff]
        %v6232 = vld [vmem:[#allocation8 + $0x900] sm:$0xff]
        %v6233 = vld [vmem:[#allocation8 + $0x908] sm:$0xff]
        %v6234 = vld [vmem:[#allocation8 + $0x910] sm:$0xff]
        %v6235 = vld [vmem:[#allocation8 + $0x918] sm:$0xff]
        %v6236 = vld [vmem:[#allocation8 + $0x920] sm:$0xff]
        %v6237 = vld [vmem:[#allocation8 + $0x928] sm:$0xff]
        %v6238 = vld [vmem:[#allocation8 + $0x930] sm:$0xff]
        %v6239 = vld [vmem:[#allocation8 + $0x938] sm:$0xff]
        %v6240 = vld [vmem:[#allocation8 + $0x940] sm:$0xff]
        %v6241 = vld [vmem:[#allocation8 + $0x948] sm:$0xff]
        %v6242 = vld [vmem:[#allocation8 + $0x950] sm:$0xff]
        %v6243 = vld [vmem:[#allocation8 + $0x958] sm:$0xff]
        %v6244 = vld [vmem:[#allocation8 + $0x960] sm:$0xff]
        %v6245 = vld [vmem:[#allocation8 + $0x968] sm:$0xff]
        %v6246 = vld [vmem:[#allocation8 + $0x970] sm:$0xff]
        %v6247 = vld [vmem:[#allocation8 + $0x978] sm:$0xff]
        %v6248 = vld [vmem:[#allocation8 + $0x980] sm:$0xff]
        %v6249 = vld [vmem:[#allocation8 + $0x988] sm:$0xff]
        %v6250 = vld [vmem:[#allocation8 + $0x990] sm:$0xff]
        %v6251 = vld [vmem:[#allocation8 + $0x998] sm:$0xff]
        %v6252 = vld [vmem:[#allocation8 + $0x9a0] sm:$0xff]
        %v6253 = vld [vmem:[#allocation8 + $0x9a8] sm:$0xff]
        %v6254 = vld [vmem:[#allocation8 + $0x9b0] sm:$0xff]
        %v6255 = vld [vmem:[#allocation8 + $0x9b8] sm:$0xff]
        %v6256 = vld [vmem:[#allocation8 + $0x9c0] sm:$0xff]
        %v6257 = vld [vmem:[#allocation8 + $0x9c8] sm:$0xff]
        %v6258 = vld [vmem:[#allocation8 + $0x9d0] sm:$0xff]
        %v6259 = vld [vmem:[#allocation8 + $0x9d8] sm:$0xff]
        %v6260 = vld [vmem:[#allocation8 + $0x9e0] sm:$0xff]
        %v6261 = vld [vmem:[#allocation8 + $0x9e8] sm:$0xff]
        %v6262 = vld [vmem:[#allocation8 + $0x9f0] sm:$0xff]
        %v6263 = vld [vmem:[#allocation8 + $0x9f8] sm:$0xff]
        %v6264 = vld [vmem:[#allocation8 + $0xa00] sm:$0xff]
        %v6265 = vld [vmem:[#allocation8 + $0xa08] sm:$0xff]
        %v6266 = vld [vmem:[#allocation8 + $0xa10] sm:$0xff]
        %v6267 = vld [vmem:[#allocation8 + $0xa18] sm:$0xff]
        %v6268 = vld [vmem:[#allocation8 + $0xa20] sm:$0xff]
        %v6269 = vld [vmem:[#allocation8 + $0xa28] sm:$0xff]
        %v6270 = vld [vmem:[#allocation8 + $0xa30] sm:$0xff]
        %v6271 = vld [vmem:[#allocation8 + $0xa38] sm:$0xff]
        %v6272 = vld [vmem:[#allocation8 + $0xa40] sm:$0xff]
        %v6273 = vld [vmem:[#allocation8 + $0xa48] sm:$0xff]
        %v6274 = vld [vmem:[#allocation8 + $0xa50] sm:$0xff]
        %v6275 = vld [vmem:[#allocation8 + $0xa58] sm:$0xff]
        %v6276 = vld [vmem:[#allocation8 + $0xa60] sm:$0xff]
        %v6277 = vld [vmem:[#allocation8 + $0xa68] sm:$0xff]
        %v6278 = vld [vmem:[#allocation8 + $0xa70] sm:$0xff]
        %v6279 = vld [vmem:[#allocation8 + $0xa78] sm:$0xff]
        %v6280 = vld [vmem:[#allocation8 + $0xa80] sm:$0xff]
        %v6281 = vld [vmem:[#allocation8 + $0xa88] sm:$0xff]
        %v6282 = vld [vmem:[#allocation8 + $0xa90] sm:$0xff]
        %v6283 = vld [vmem:[#allocation8 + $0xa98] sm:$0xff]
        %v6284 = vld [vmem:[#allocation8 + $0xaa0] sm:$0xff]
        %v6285 = vld [vmem:[#allocation8 + $0xaa8] sm:$0xff]
        %v6286 = vld [vmem:[#allocation8 + $0xab0] sm:$0xff]
        %v6287 = vld [vmem:[#allocation8 + $0xab8] sm:$0xff]
        %v6288 = vld [vmem:[#allocation8 + $0xac0] sm:$0xff]
        %v6289 = vld [vmem:[#allocation8 + $0xac8] sm:$0xff]
        %v6290 = vld [vmem:[#allocation8 + $0xad0] sm:$0xff]
        %v6291 = vld [vmem:[#allocation8 + $0xad8] sm:$0xff]
        %v6292 = vld [vmem:[#allocation8 + $0xae0] sm:$0xff]
        %v6293 = vld [vmem:[#allocation8 + $0xae8] sm:$0xff]
        %v6294 = vld [vmem:[#allocation8 + $0xaf0] sm:$0xff]
        %v6295 = vld [vmem:[#allocation8 + $0xaf8] sm:$0xff]
        %v6296 = vld [vmem:[#allocation8 + $0xb00] sm:$0xff]
        %v6297 = vld [vmem:[#allocation8 + $0xb08] sm:$0xff]
        %v6298 = vld [vmem:[#allocation8 + $0xb10] sm:$0xff]
        %v6299 = vld [vmem:[#allocation8 + $0xb18] sm:$0xff]
        %v6300 = vld [vmem:[#allocation8 + $0xb20] sm:$0xff]
        %v6301 = vld [vmem:[#allocation8 + $0xb28] sm:$0xff]
        %v6302 = vld [vmem:[#allocation8 + $0xb30] sm:$0xff]
        %v6303 = vld [vmem:[#allocation8 + $0xb38] sm:$0xff]
        %v6304 = vld [vmem:[#allocation8 + $0xb40] sm:$0xff]
        %v6305 = vld [vmem:[#allocation8 + $0xb48] sm:$0xff]
        %v6306 = vld [vmem:[#allocation8 + $0xb50] sm:$0xff]
        %v6307 = vld [vmem:[#allocation8 + $0xb58] sm:$0xff]
        %v6308 = vld [vmem:[#allocation8 + $0xb60] sm:$0xff]
        %v6309 = vld [vmem:[#allocation8 + $0xb68] sm:$0xff]
        %v6310 = vld [vmem:[#allocation8 + $0xb70] sm:$0xff]
        %v6311 = vld [vmem:[#allocation8 + $0xb78] sm:$0xff]
        %v6312 = vld [vmem:[#allocation8 + $0xb80] sm:$0xff]
        %v6313 = vld [vmem:[#allocation8 + $0xb88] sm:$0xff]
        %v6314 = vld [vmem:[#allocation8 + $0xb90] sm:$0xff]
        %v6315 = vld [vmem:[#allocation8 + $0xb98] sm:$0xff]
        %v6316 = vld [vmem:[#allocation8 + $0xba0] sm:$0xff]
        %v6317 = vld [vmem:[#allocation8 + $0xba8] sm:$0xff]
        %v6318 = vld [vmem:[#allocation8 + $0xbb0] sm:$0xff]
        %v6319 = vld [vmem:[#allocation8 + $0xbb8] sm:$0xff]
        %v6320 = vld [vmem:[#allocation8 + $0xbc0] sm:$0xff]
        %v6321 = vld [vmem:[#allocation8 + $0xbc8] sm:$0xff]
        %v6322 = vld [vmem:[#allocation8 + $0xbd0] sm:$0xff]
        %v6323 = vld [vmem:[#allocation8 + $0xbd8] sm:$0xff]
        %v6324 = vld [vmem:[#allocation8 + $0xbe0] sm:$0xff]
        %v6325 = vld [vmem:[#allocation8 + $0xbe8] sm:$0xff]
        %v6326 = vld [vmem:[#allocation8 + $0xbf0] sm:$0xff]
        %v6327 = vld [vmem:[#allocation8 + $0xbf8] sm:$0xff]
        %v6328 = vld [vmem:[#allocation8 + $0xc00] sm:$0xff]
        %v6329 = vld [vmem:[#allocation8 + $0xc08] sm:$0xff]
        %v6330 = vld [vmem:[#allocation8 + $0xc10] sm:$0xff]
        %v6331 = vld [vmem:[#allocation8 + $0xc18] sm:$0xff]
        %v6332 = vld [vmem:[#allocation8 + $0xc20] sm:$0xff]
        %v6333 = vld [vmem:[#allocation8 + $0xc28] sm:$0xff]
        %v6334 = vld [vmem:[#allocation8 + $0xc30] sm:$0xff]
        %v6335 = vld [vmem:[#allocation8 + $0xc38] sm:$0xff]
        %v6336 = vld [vmem:[#allocation8 + $0xc40] sm:$0xff]
        %v6337 = vld [vmem:[#allocation8 + $0xc48] sm:$0xff]
        %v6338 = vld [vmem:[#allocation8 + $0xc50] sm:$0xff]
        %v6339 = vld [vmem:[#allocation8 + $0xc58] sm:$0xff]
        %v6340 = vld [vmem:[#allocation8 + $0xc60] sm:$0xff]
        %v6341 = vld [vmem:[#allocation8 + $0xc68] sm:$0xff]
        %v6342 = vld [vmem:[#allocation8 + $0xc70] sm:$0xff]
        %v6343 = vld [vmem:[#allocation8 + $0xc78] sm:$0xff]
        %v6344 = vld [vmem:[#allocation8 + $0xc80] sm:$0xff]
        %v6345 = vld [vmem:[#allocation8 + $0xc88] sm:$0xff]
        %v6346 = vld [vmem:[#allocation8 + $0xc90] sm:$0xff]
        %v6347 = vld [vmem:[#allocation8 + $0xc98] sm:$0xff]
        %v6348 = vld [vmem:[#allocation8 + $0xca0] sm:$0xff]
        %v6349 = vld [vmem:[#allocation8 + $0xca8] sm:$0xff]
        %v6350 = vld [vmem:[#allocation8 + $0xcb0] sm:$0xff]
        %v6351 = vld [vmem:[#allocation8 + $0xcb8] sm:$0xff]
        %v6352 = vld [vmem:[#allocation8 + $0xcc0] sm:$0xff]
        %v6353 = vld [vmem:[#allocation8 + $0xcc8] sm:$0xff]
        %v6354 = vld [vmem:[#allocation8 + $0xcd0] sm:$0xff]
        %v6355 = vld [vmem:[#allocation8 + $0xcd8] sm:$0xff]
        %v6356 = vld [vmem:[#allocation8 + $0xce0] sm:$0xff]
        %v6357 = vld [vmem:[#allocation8 + $0xce8] sm:$0xff]
        %v6358 = vld [vmem:[#allocation8 + $0xcf0] sm:$0xff]
        %v6359 = vld [vmem:[#allocation8 + $0xcf8] sm:$0xff]
        %v6360 = vld [vmem:[#allocation8 + $0xd00] sm:$0xff]
        %v6361 = vld [vmem:[#allocation8 + $0xd08] sm:$0xff]
        %v6362 = vld [vmem:[#allocation8 + $0xd10] sm:$0xff]
        %v6363 = vld [vmem:[#allocation8 + $0xd18] sm:$0xff]
        %v6364 = vld [vmem:[#allocation8 + $0xd20] sm:$0xff]
        %v6365 = vld [vmem:[#allocation8 + $0xd28] sm:$0xff]
        %v6366 = vld [vmem:[#allocation8 + $0xd30] sm:$0xff]
        %v6367 = vld [vmem:[#allocation8 + $0xd38] sm:$0xff]
        %v6368 = vld [vmem:[#allocation8 + $0xd40] sm:$0xff]
        %v6369 = vld [vmem:[#allocation8 + $0xd48] sm:$0xff]
        %v6370 = vld [vmem:[#allocation8 + $0xd50] sm:$0xff]
        %v6371 = vld [vmem:[#allocation8 + $0xd58] sm:$0xff]
        %v6372 = vld [vmem:[#allocation8 + $0xd60] sm:$0xff]
        %v6373 = vld [vmem:[#allocation8 + $0xd68] sm:$0xff]
        %v6374 = vld [vmem:[#allocation8 + $0xd70] sm:$0xff]
        %v6375 = vld [vmem:[#allocation8 + $0xd78] sm:$0xff]
        %v6376 = vld [vmem:[#allocation8 + $0xd80] sm:$0xff]
        %v6377 = vld [vmem:[#allocation8 + $0xd88] sm:$0xff]
        %v6378 = vld [vmem:[#allocation8 + $0xd90] sm:$0xff]
        %v6379 = vld [vmem:[#allocation8 + $0xd98] sm:$0xff]
        %v6380 = vld [vmem:[#allocation8 + $0xda0] sm:$0xff]
        %v6381 = vld [vmem:[#allocation8 + $0xda8] sm:$0xff]
        %v6382 = vld [vmem:[#allocation8 + $0xdb0] sm:$0xff]
        %v6383 = vld [vmem:[#allocation8 + $0xdb8] sm:$0xff]
        %v6384 = vld [vmem:[#allocation8 + $0xdc0] sm:$0xff]
        %v6385 = vld [vmem:[#allocation8 + $0xdc8] sm:$0xff]
        %v6386 = vld [vmem:[#allocation8 + $0xdd0] sm:$0xff]
        %v6387 = vld [vmem:[#allocation8 + $0xdd8] sm:$0xff]
        %v6388 = vld [vmem:[#allocation8 + $0xde0] sm:$0xff]
        %v6389 = vld [vmem:[#allocation8 + $0xde8] sm:$0xff]
        %v6390 = vld [vmem:[#allocation8 + $0xdf0] sm:$0xff]
        %v6391 = vld [vmem:[#allocation8 + $0xdf8] sm:$0xff]
        %v6392 = vld [vmem:[#allocation8 + $0xe00] sm:$0xff]
        %v6393 = vld [vmem:[#allocation8 + $0xe08] sm:$0xff]
        %v6394 = vld [vmem:[#allocation8 + $0xe10] sm:$0xff]
        %v6395 = vld [vmem:[#allocation8 + $0xe18] sm:$0xff]
        %v6396 = vld [vmem:[#allocation8 + $0xe20] sm:$0xff]
        %v6397 = vld [vmem:[#allocation8 + $0xe28] sm:$0xff]
        %v6398 = vld [vmem:[#allocation8 + $0xe30] sm:$0xff]
        %v6399 = vld [vmem:[#allocation8 + $0xe38] sm:$0xff]
        %v6400 = vld [vmem:[#allocation8 + $0xe40] sm:$0xff]
        %v6401 = vld [vmem:[#allocation8 + $0xe48] sm:$0xff]
        %v6402 = vld [vmem:[#allocation8 + $0xe50] sm:$0xff]
        %v6403 = vld [vmem:[#allocation8 + $0xe58] sm:$0xff]
        %v6404 = vld [vmem:[#allocation8 + $0xe60] sm:$0xff]
        %v6405 = vld [vmem:[#allocation8 + $0xe68] sm:$0xff]
        %v6406 = vld [vmem:[#allocation8 + $0xe70] sm:$0xff]
        %v6407 = vld [vmem:[#allocation8 + $0xe78] sm:$0xff]
        %v6408 = vld [vmem:[#allocation8 + $0xe80] sm:$0xff]
        %v6409 = vld [vmem:[#allocation8 + $0xe88] sm:$0xff]
        %v6410 = vld [vmem:[#allocation8 + $0xe90] sm:$0xff]
        %v6411 = vld [vmem:[#allocation8 + $0xe98] sm:$0xff]
        %v6412 = vld [vmem:[#allocation8 + $0xea0] sm:$0xff]
        %v6413 = vld [vmem:[#allocation8 + $0xea8] sm:$0xff]
        %v6414 = vld [vmem:[#allocation8 + $0xeb0] sm:$0xff]
        %v6415 = vld [vmem:[#allocation8 + $0xeb8] sm:$0xff]
        %v6416 = vld [vmem:[#allocation8 + $0xec0] sm:$0xff]
        %v6417 = vld [vmem:[#allocation8 + $0xec8] sm:$0xff]
        %v6418 = vld [vmem:[#allocation8 + $0xed0] sm:$0xff]
        %v6419 = vld [vmem:[#allocation8 + $0xed8] sm:$0xff]
        %v6420 = vld [vmem:[#allocation8 + $0xee0] sm:$0xff]
        %v6421 = vld [vmem:[#allocation8 + $0xee8] sm:$0xff]
        %v6422 = vld [vmem:[#allocation8 + $0xef0] sm:$0xff]
        %v6423 = vld [vmem:[#allocation8 + $0xef8] sm:$0xff]
        %v6424 = vld [vmem:[#allocation8 + $0xf00] sm:$0xff]
        %v6425 = vld [vmem:[#allocation8 + $0xf08] sm:$0xff]
        %v6426 = vld [vmem:[#allocation8 + $0xf10] sm:$0xff]
        %v6427 = vld [vmem:[#allocation8 + $0xf18] sm:$0xff]
        %v6428 = vld [vmem:[#allocation8 + $0xf20] sm:$0xff]
        %v6429 = vld [vmem:[#allocation8 + $0xf28] sm:$0xff]
        %v6430 = vld [vmem:[#allocation8 + $0xf30] sm:$0xff]
        %v6431 = vld [vmem:[#allocation8 + $0xf38] sm:$0xff]
        %v6432 = vld [vmem:[#allocation8 + $0xf40] sm:$0xff]
        %v6433 = vld [vmem:[#allocation8 + $0xf48] sm:$0xff]
        %v6434 = vld [vmem:[#allocation8 + $0xf50] sm:$0xff]
        %v6435 = vld [vmem:[#allocation8 + $0xf58] sm:$0xff]
        %v6436 = vld [vmem:[#allocation8 + $0xf60] sm:$0xff]
        %v6437 = vld [vmem:[#allocation8 + $0xf68] sm:$0xff]
        %v6438 = vld [vmem:[#allocation8 + $0xf70] sm:$0xff]
        %v6439 = vld [vmem:[#allocation8 + $0xf78] sm:$0xff]
        %v6440 = vld [vmem:[#allocation8 + $0xf80] sm:$0xff]
        %v6441 = vld [vmem:[#allocation8 + $0xf88] sm:$0xff]
        %v6442 = vld [vmem:[#allocation8 + $0xf90] sm:$0xff]
        %v6443 = vld [vmem:[#allocation8 + $0xf98] sm:$0xff]
        %v6444 = vld [vmem:[#allocation8 + $0xfa0] sm:$0xff]
        %v6445 = vld [vmem:[#allocation8 + $0xfa8] sm:$0xff]
        %v6446 = vld [vmem:[#allocation8 + $0xfb0] sm:$0xff]
        %v6447 = vld [vmem:[#allocation8 + $0xfb8] sm:$0xff]
        %v6448 = vld [vmem:[#allocation8 + $0xfc0] sm:$0xff]
        %v6449 = vld [vmem:[#allocation8 + $0xfc8] sm:$0xff]
        %v6450 = vld [vmem:[#allocation8 + $0xfd0] sm:$0xff]
        %v6451 = vld [vmem:[#allocation8 + $0xfd8] sm:$0xff]
        %v6452 = vld [vmem:[#allocation8 + $0xfe0] sm:$0xff]
        %v6453 = vld [vmem:[#allocation8 + $0xfe8] sm:$0xff]
        %v6454 = vld [vmem:[#allocation8 + $0xff0] sm:$0xff]
        %v6455 = vld [vmem:[#allocation8 + $0xff8] sm:$0xff]
        %v6456 = vld [vmem:[#allocation10] sm:$0xff]
        %v6458 = vlaneseq
        %v6459 = vshrl.u32 %v6458, 7
        %v6460 = vsub.s32 0, %v6459
        %v6461 = vrot.slane %v6456, %v6460
        %v6462 = vlaneseq
        %v6463 = vshrl.u32 %v6462, 7
        %v6464 = vsub.s32 1, %v6463
        %v6465 = vrot.slane %v6456, %v6464
        %v6466 = vlaneseq
        %v6467 = vshrl.u32 %v6466, 7
        %v6468 = vsub.s32 2, %v6467
        %v6469 = vrot.slane %v6456, %v6468
        %v6470 = vlaneseq
        %v6471 = vshrl.u32 %v6470, 7
        %v6472 = vsub.s32 3, %v6471
        %v6473 = vrot.slane %v6456, %v6472
        %v6474 = vlaneseq
        %v6475 = vshrl.u32 %v6474, 7
        %v6476 = vsub.s32 4, %v6475
        %v6477 = vrot.slane %v6456, %v6476
        %v6478 = vlaneseq
        %v6479 = vshrl.u32 %v6478, 7
        %v6480 = vsub.s32 5, %v6479
        %v6481 = vrot.slane %v6456, %v6480
        %v6482 = vlaneseq
        %v6483 = vshrl.u32 %v6482, 7
        %v6484 = vsub.s32 6, %v6483
        %v6485 = vrot.slane %v6456, %v6484
        %v6486 = vlaneseq
        %v6487 = vshrl.u32 %v6486, 7
        %v6488 = vsub.s32 7, %v6487
        %v6489 = vrot.slane %v6456, %v6488
        %v7010 = vunpack.c.l.b16 %v5944
        %v7011 = vunpack.c.h.b16 %v5944
        %v7012 = vunpack.c.l.b16 %v5945
        %v7013 = vunpack.c.h.b16 %v5945
        %v7014 = vunpack.c.l.b16 %v5946
        %v7015 = vunpack.c.h.b16 %v5946
        %v7016 = vunpack.c.l.b16 %v5947
        %v7017 = vunpack.c.h.b16 %v5947
        %v7018 = vunpack.c.l.b16 %v5948
        %v7019 = vunpack.c.h.b16 %v5948
        %v7020 = vunpack.c.l.b16 %v5949
        %v7021 = vunpack.c.h.b16 %v5949
        %v7022 = vunpack.c.l.b16 %v5950
        %v7023 = vunpack.c.h.b16 %v5950
        %v7024 = vunpack.c.l.b16 %v5951
        %v7025 = vunpack.c.h.b16 %v5951
        %v7026 = vunpack.c.l.b16 %v5952
        %v7027 = vunpack.c.h.b16 %v5952
        %v7028 = vunpack.c.l.b16 %v5953
        %v7029 = vunpack.c.h.b16 %v5953
        %v7030 = vunpack.c.l.b16 %v5954
        %v7031 = vunpack.c.h.b16 %v5954
        %v7032 = vunpack.c.l.b16 %v5955
        %v7033 = vunpack.c.h.b16 %v5955
        %v7034 = vunpack.c.l.b16 %v5956
        %v7035 = vunpack.c.h.b16 %v5956
        %v7036 = vunpack.c.l.b16 %v5957
        %v7037 = vunpack.c.h.b16 %v5957
        %v7038 = vunpack.c.l.b16 %v5958
        %v7039 = vunpack.c.h.b16 %v5958
        %v7040 = vunpack.c.l.b16 %v5959
        %v7041 = vunpack.c.h.b16 %v5959
        %v7042 = vunpack.c.l.b16 %v5960
        %v7043 = vunpack.c.h.b16 %v5960
        %v7044 = vunpack.c.l.b16 %v5961
        %v7045 = vunpack.c.h.b16 %v5961
        %v7046 = vunpack.c.l.b16 %v5962
        %v7047 = vunpack.c.h.b16 %v5962
        %v7048 = vunpack.c.l.b16 %v5963
        %v7049 = vunpack.c.h.b16 %v5963
        %v7050 = vunpack.c.l.b16 %v5964
        %v7051 = vunpack.c.h.b16 %v5964
        %v7052 = vunpack.c.l.b16 %v5965
        %v7053 = vunpack.c.h.b16 %v5965
        %v7054 = vunpack.c.l.b16 %v5966
        %v7055 = vunpack.c.h.b16 %v5966
        %v7056 = vunpack.c.l.b16 %v5967
        %v7057 = vunpack.c.h.b16 %v5967
        %v7058 = vunpack.c.l.b16 %v5968
        %v7059 = vunpack.c.h.b16 %v5968
        %v7060 = vunpack.c.l.b16 %v5969
        %v7061 = vunpack.c.h.b16 %v5969
        %v7062 = vunpack.c.l.b16 %v5970
        %v7063 = vunpack.c.h.b16 %v5970
        %v7064 = vunpack.c.l.b16 %v5971
        %v7065 = vunpack.c.h.b16 %v5971
        %v7066 = vunpack.c.l.b16 %v5972
        %v7067 = vunpack.c.h.b16 %v5972
        %v7068 = vunpack.c.l.b16 %v5973
        %v7069 = vunpack.c.h.b16 %v5973
        %v7070 = vunpack.c.l.b16 %v5974
        %v7071 = vunpack.c.h.b16 %v5974
        %v7072 = vunpack.c.l.b16 %v5975
        %v7073 = vunpack.c.h.b16 %v5975
        %v7074 = vunpack.c.l.b16 %v5976
        %v7075 = vunpack.c.h.b16 %v5976
        %v7076 = vunpack.c.l.b16 %v5977
        %v7077 = vunpack.c.h.b16 %v5977
        %v7078 = vunpack.c.l.b16 %v5978
        %v7079 = vunpack.c.h.b16 %v5978
        %v7080 = vunpack.c.l.b16 %v5979
        %v7081 = vunpack.c.h.b16 %v5979
        %v7082 = vunpack.c.l.b16 %v5980
        %v7083 = vunpack.c.h.b16 %v5980
        %v7084 = vunpack.c.l.b16 %v5981
        %v7085 = vunpack.c.h.b16 %v5981
        %v7086 = vunpack.c.l.b16 %v5982
        %v7087 = vunpack.c.h.b16 %v5982
        %v7088 = vunpack.c.l.b16 %v5983
        %v7089 = vunpack.c.h.b16 %v5983
        %v7090 = vunpack.c.l.b16 %v5984
        %v7091 = vunpack.c.h.b16 %v5984
        %v7092 = vunpack.c.l.b16 %v5985
        %v7093 = vunpack.c.h.b16 %v5985
        %v7094 = vunpack.c.l.b16 %v5986
        %v7095 = vunpack.c.h.b16 %v5986
        %v7096 = vunpack.c.l.b16 %v5987
        %v7097 = vunpack.c.h.b16 %v5987
        %v7098 = vunpack.c.l.b16 %v5988
        %v7099 = vunpack.c.h.b16 %v5988
        %v7100 = vunpack.c.l.b16 %v5989
        %v7101 = vunpack.c.h.b16 %v5989
        %v7102 = vunpack.c.l.b16 %v5990
        %v7103 = vunpack.c.h.b16 %v5990
        %v7104 = vunpack.c.l.b16 %v5991
        %v7105 = vunpack.c.h.b16 %v5991
        %v7106 = vunpack.c.l.b16 %v5992
        %v7107 = vunpack.c.h.b16 %v5992
        %v7108 = vunpack.c.l.b16 %v5993
        %v7109 = vunpack.c.h.b16 %v5993
        %v7110 = vunpack.c.l.b16 %v5994
        %v7111 = vunpack.c.h.b16 %v5994
        %v7112 = vunpack.c.l.b16 %v5995
        %v7113 = vunpack.c.h.b16 %v5995
        %v7114 = vunpack.c.l.b16 %v5996
        %v7115 = vunpack.c.h.b16 %v5996
        %v7116 = vunpack.c.l.b16 %v5997
        %v7117 = vunpack.c.h.b16 %v5997
        %v7118 = vunpack.c.l.b16 %v5998
        %v7119 = vunpack.c.h.b16 %v5998
        %v7120 = vunpack.c.l.b16 %v5999
        %v7121 = vunpack.c.h.b16 %v5999
        %v7122 = vunpack.c.l.b16 %v6000
        %v7123 = vunpack.c.h.b16 %v6000
        %v7124 = vunpack.c.l.b16 %v6001
        %v7125 = vunpack.c.h.b16 %v6001
        %v7126 = vunpack.c.l.b16 %v6002
        %v7127 = vunpack.c.h.b16 %v6002
        %v7128 = vunpack.c.l.b16 %v6003
        %v7129 = vunpack.c.h.b16 %v6003
        %v7130 = vunpack.c.l.b16 %v6004
        %v7131 = vunpack.c.h.b16 %v6004
        %v7132 = vunpack.c.l.b16 %v6005
        %v7133 = vunpack.c.h.b16 %v6005
        %v7134 = vunpack.c.l.b16 %v6006
        %v7135 = vunpack.c.h.b16 %v6006
        %v7136 = vunpack.c.l.b16 %v6007
        %v7137 = vunpack.c.h.b16 %v6007
        %v7138 = vunpack.c.l.b16 %v6008
        %v7139 = vunpack.c.h.b16 %v6008
        %v7140 = vunpack.c.l.b16 %v6009
        %v7141 = vunpack.c.h.b16 %v6009
        %v7142 = vunpack.c.l.b16 %v6010
        %v7143 = vunpack.c.h.b16 %v6010
        %v7144 = vunpack.c.l.b16 %v6011
        %v7145 = vunpack.c.h.b16 %v6011
        %v7146 = vunpack.c.l.b16 %v6012
        %v7147 = vunpack.c.h.b16 %v6012
        %v7148 = vunpack.c.l.b16 %v6013
        %v7149 = vunpack.c.h.b16 %v6013
        %v7150 = vunpack.c.l.b16 %v6014
        %v7151 = vunpack.c.h.b16 %v6014
        %v7152 = vunpack.c.l.b16 %v6015
        %v7153 = vunpack.c.h.b16 %v6015
        %v7154 = vunpack.c.l.b16 %v6016
        %v7155 = vunpack.c.h.b16 %v6016
        %v7156 = vunpack.c.l.b16 %v6017
        %v7157 = vunpack.c.h.b16 %v6017
        %v7158 = vunpack.c.l.b16 %v6018
        %v7159 = vunpack.c.h.b16 %v6018
        %v7160 = vunpack.c.l.b16 %v6019
        %v7161 = vunpack.c.h.b16 %v6019
        %v7162 = vunpack.c.l.b16 %v6020
        %v7163 = vunpack.c.h.b16 %v6020
        %v7164 = vunpack.c.l.b16 %v6021
        %v7165 = vunpack.c.h.b16 %v6021
        %v7166 = vunpack.c.l.b16 %v6022
        %v7167 = vunpack.c.h.b16 %v6022
        %v7168 = vunpack.c.l.b16 %v6023
        %v7169 = vunpack.c.h.b16 %v6023
        %v7170 = vunpack.c.l.b16 %v6024
        %v7171 = vunpack.c.h.b16 %v6024
        %v7172 = vunpack.c.l.b16 %v6025
        %v7173 = vunpack.c.h.b16 %v6025
        %v7174 = vunpack.c.l.b16 %v6026
        %v7175 = vunpack.c.h.b16 %v6026
        %v7176 = vunpack.c.l.b16 %v6027
        %v7177 = vunpack.c.h.b16 %v6027
        %v7178 = vunpack.c.l.b16 %v6028
        %v7179 = vunpack.c.h.b16 %v6028
        %v7180 = vunpack.c.l.b16 %v6029
        %v7181 = vunpack.c.h.b16 %v6029
        %v7182 = vunpack.c.l.b16 %v6030
        %v7183 = vunpack.c.h.b16 %v6030
        %v7184 = vunpack.c.l.b16 %v6031
        %v7185 = vunpack.c.h.b16 %v6031
        %v7186 = vunpack.c.l.b16 %v6032
        %v7187 = vunpack.c.h.b16 %v6032
        %v7188 = vunpack.c.l.b16 %v6033
        %v7189 = vunpack.c.h.b16 %v6033
        %v7190 = vunpack.c.l.b16 %v6034
        %v7191 = vunpack.c.h.b16 %v6034
        %v7192 = vunpack.c.l.b16 %v6035
        %v7193 = vunpack.c.h.b16 %v6035
        %v7194 = vunpack.c.l.b16 %v6036
        %v7195 = vunpack.c.h.b16 %v6036
        %v7196 = vunpack.c.l.b16 %v6037
        %v7197 = vunpack.c.h.b16 %v6037
        %v7198 = vunpack.c.l.b16 %v6038
        %v7199 = vunpack.c.h.b16 %v6038
        %v7200 = vunpack.c.l.b16 %v6039
        %v7201 = vunpack.c.h.b16 %v6039
        %v7202 = vunpack.c.l.b16 %v6040
        %v7203 = vunpack.c.h.b16 %v6040
        %v7204 = vunpack.c.l.b16 %v6041
        %v7205 = vunpack.c.h.b16 %v6041
        %v7206 = vunpack.c.l.b16 %v6042
        %v7207 = vunpack.c.h.b16 %v6042
        %v7208 = vunpack.c.l.b16 %v6043
        %v7209 = vunpack.c.h.b16 %v6043
        %v7210 = vunpack.c.l.b16 %v6044
        %v7211 = vunpack.c.h.b16 %v6044
        %v7212 = vunpack.c.l.b16 %v6045
        %v7213 = vunpack.c.h.b16 %v6045
        %v7214 = vunpack.c.l.b16 %v6046
        %v7215 = vunpack.c.h.b16 %v6046
        %v7216 = vunpack.c.l.b16 %v6047
        %v7217 = vunpack.c.h.b16 %v6047
        %v7218 = vunpack.c.l.b16 %v6048
        %v7219 = vunpack.c.h.b16 %v6048
        %v7220 = vunpack.c.l.b16 %v6049
        %v7221 = vunpack.c.h.b16 %v6049
        %v7222 = vunpack.c.l.b16 %v6050
        %v7223 = vunpack.c.h.b16 %v6050
        %v7224 = vunpack.c.l.b16 %v6051
        %v7225 = vunpack.c.h.b16 %v6051
        %v7226 = vunpack.c.l.b16 %v6052
        %v7227 = vunpack.c.h.b16 %v6052
        %v7228 = vunpack.c.l.b16 %v6053
        %v7229 = vunpack.c.h.b16 %v6053
        %v7230 = vunpack.c.l.b16 %v6054
        %v7231 = vunpack.c.h.b16 %v6054
        %v7232 = vunpack.c.l.b16 %v6055
        %v7233 = vunpack.c.h.b16 %v6055
        %v7234 = vunpack.c.l.b16 %v6056
        %v7235 = vunpack.c.h.b16 %v6056
        %v7236 = vunpack.c.l.b16 %v6057
        %v7237 = vunpack.c.h.b16 %v6057
        %v7238 = vunpack.c.l.b16 %v6058
        %v7239 = vunpack.c.h.b16 %v6058
        %v7240 = vunpack.c.l.b16 %v6059
        %v7241 = vunpack.c.h.b16 %v6059
        %v7242 = vunpack.c.l.b16 %v6060
        %v7243 = vunpack.c.h.b16 %v6060
        %v7244 = vunpack.c.l.b16 %v6061
        %v7245 = vunpack.c.h.b16 %v6061
        %v7246 = vunpack.c.l.b16 %v6062
        %v7247 = vunpack.c.h.b16 %v6062
        %v7248 = vunpack.c.l.b16 %v6063
        %v7249 = vunpack.c.h.b16 %v6063
        %v7250 = vunpack.c.l.b16 %v6064
        %v7251 = vunpack.c.h.b16 %v6064
        %v7252 = vunpack.c.l.b16 %v6065
        %v7253 = vunpack.c.h.b16 %v6065
        %v7254 = vunpack.c.l.b16 %v6066
        %v7255 = vunpack.c.h.b16 %v6066
        %v7256 = vunpack.c.l.b16 %v6067
        %v7257 = vunpack.c.h.b16 %v6067
        %v7258 = vunpack.c.l.b16 %v6068
        %v7259 = vunpack.c.h.b16 %v6068
        %v7260 = vunpack.c.l.b16 %v6069
        %v7261 = vunpack.c.h.b16 %v6069
        %v7262 = vunpack.c.l.b16 %v6070
        %v7263 = vunpack.c.h.b16 %v6070
        %v7264 = vunpack.c.l.b16 %v6071
        %v7265 = vunpack.c.h.b16 %v6071
        %v7266 = vunpack.c.l.b16 %v6072
        %v7267 = vunpack.c.h.b16 %v6072
        %v7268 = vunpack.c.l.b16 %v6073
        %v7269 = vunpack.c.h.b16 %v6073
        %v7270 = vunpack.c.l.b16 %v6074
        %v7271 = vunpack.c.h.b16 %v6074
        %v7272 = vunpack.c.l.b16 %v6075
        %v7273 = vunpack.c.h.b16 %v6075
        %v7274 = vunpack.c.l.b16 %v6076
        %v7275 = vunpack.c.h.b16 %v6076
        %v7276 = vunpack.c.l.b16 %v6077
        %v7277 = vunpack.c.h.b16 %v6077
        %v7278 = vunpack.c.l.b16 %v6078
        %v7279 = vunpack.c.h.b16 %v6078
        %v7280 = vunpack.c.l.b16 %v6079
        %v7281 = vunpack.c.h.b16 %v6079
        %v7282 = vunpack.c.l.b16 %v6080
        %v7283 = vunpack.c.h.b16 %v6080
        %v7284 = vunpack.c.l.b16 %v6081
        %v7285 = vunpack.c.h.b16 %v6081
        %v7286 = vunpack.c.l.b16 %v6082
        %v7287 = vunpack.c.h.b16 %v6082
        %v7288 = vunpack.c.l.b16 %v6083
        %v7289 = vunpack.c.h.b16 %v6083
        %v7290 = vunpack.c.l.b16 %v6084
        %v7291 = vunpack.c.h.b16 %v6084
        %v7292 = vunpack.c.l.b16 %v6085
        %v7293 = vunpack.c.h.b16 %v6085
        %v7294 = vunpack.c.l.b16 %v6086
        %v7295 = vunpack.c.h.b16 %v6086
        %v7296 = vunpack.c.l.b16 %v6087
        %v7297 = vunpack.c.h.b16 %v6087
        %v7298 = vunpack.c.l.b16 %v6088
        %v7299 = vunpack.c.h.b16 %v6088
        %v7300 = vunpack.c.l.b16 %v6089
        %v7301 = vunpack.c.h.b16 %v6089
        %v7302 = vunpack.c.l.b16 %v6090
        %v7303 = vunpack.c.h.b16 %v6090
        %v7304 = vunpack.c.l.b16 %v6091
        %v7305 = vunpack.c.h.b16 %v6091
        %v7306 = vunpack.c.l.b16 %v6092
        %v7307 = vunpack.c.h.b16 %v6092
        %v7308 = vunpack.c.l.b16 %v6093
        %v7309 = vunpack.c.h.b16 %v6093
        %v7310 = vunpack.c.l.b16 %v6094
        %v7311 = vunpack.c.h.b16 %v6094
        %v7312 = vunpack.c.l.b16 %v6095
        %v7313 = vunpack.c.h.b16 %v6095
        %v7314 = vunpack.c.l.b16 %v6096
        %v7315 = vunpack.c.h.b16 %v6096
        %v7316 = vunpack.c.l.b16 %v6097
        %v7317 = vunpack.c.h.b16 %v6097
        %v7318 = vunpack.c.l.b16 %v6098
        %v7319 = vunpack.c.h.b16 %v6098
        %v7320 = vunpack.c.l.b16 %v6099
        %v7321 = vunpack.c.h.b16 %v6099
        %v7322 = vunpack.c.l.b16 %v6100
        %v7323 = vunpack.c.h.b16 %v6100
        %v7324 = vunpack.c.l.b16 %v6101
        %v7325 = vunpack.c.h.b16 %v6101
        %v7326 = vunpack.c.l.b16 %v6102
        %v7327 = vunpack.c.h.b16 %v6102
        %v7328 = vunpack.c.l.b16 %v6103
        %v7329 = vunpack.c.h.b16 %v6103
        %v7330 = vunpack.c.l.b16 %v6104
        %v7331 = vunpack.c.h.b16 %v6104
        %v7332 = vunpack.c.l.b16 %v6105
        %v7333 = vunpack.c.h.b16 %v6105
        %v7334 = vunpack.c.l.b16 %v6106
        %v7335 = vunpack.c.h.b16 %v6106
        %v7336 = vunpack.c.l.b16 %v6107
        %v7337 = vunpack.c.h.b16 %v6107
        %v7338 = vunpack.c.l.b16 %v6108
        %v7339 = vunpack.c.h.b16 %v6108
        %v7340 = vunpack.c.l.b16 %v6109
        %v7341 = vunpack.c.h.b16 %v6109
        %v7342 = vunpack.c.l.b16 %v6110
        %v7343 = vunpack.c.h.b16 %v6110
        %v7344 = vunpack.c.l.b16 %v6111
        %v7345 = vunpack.c.h.b16 %v6111
        %v7346 = vunpack.c.l.b16 %v6112
        %v7347 = vunpack.c.h.b16 %v6112
        %v7348 = vunpack.c.l.b16 %v6113
        %v7349 = vunpack.c.h.b16 %v6113
        %v7350 = vunpack.c.l.b16 %v6114
        %v7351 = vunpack.c.h.b16 %v6114
        %v7352 = vunpack.c.l.b16 %v6115
        %v7353 = vunpack.c.h.b16 %v6115
        %v7354 = vunpack.c.l.b16 %v6116
        %v7355 = vunpack.c.h.b16 %v6116
        %v7356 = vunpack.c.l.b16 %v6117
        %v7357 = vunpack.c.h.b16 %v6117
        %v7358 = vunpack.c.l.b16 %v6118
        %v7359 = vunpack.c.h.b16 %v6118
        %v7360 = vunpack.c.l.b16 %v6119
        %v7361 = vunpack.c.h.b16 %v6119
        %v7362 = vunpack.c.l.b16 %v6120
        %v7363 = vunpack.c.h.b16 %v6120
        %v7364 = vunpack.c.l.b16 %v6121
        %v7365 = vunpack.c.h.b16 %v6121
        %v7366 = vunpack.c.l.b16 %v6122
        %v7367 = vunpack.c.h.b16 %v6122
        %v7368 = vunpack.c.l.b16 %v6123
        %v7369 = vunpack.c.h.b16 %v6123
        %v7370 = vunpack.c.l.b16 %v6124
        %v7371 = vunpack.c.h.b16 %v6124
        %v7372 = vunpack.c.l.b16 %v6125
        %v7373 = vunpack.c.h.b16 %v6125
        %v7374 = vunpack.c.l.b16 %v6126
        %v7375 = vunpack.c.h.b16 %v6126
        %v7376 = vunpack.c.l.b16 %v6127
        %v7377 = vunpack.c.h.b16 %v6127
        %v7378 = vunpack.c.l.b16 %v6128
        %v7379 = vunpack.c.h.b16 %v6128
        %v7380 = vunpack.c.l.b16 %v6129
        %v7381 = vunpack.c.h.b16 %v6129
        %v7382 = vunpack.c.l.b16 %v6130
        %v7383 = vunpack.c.h.b16 %v6130
        %v7384 = vunpack.c.l.b16 %v6131
        %v7385 = vunpack.c.h.b16 %v6131
        %v7386 = vunpack.c.l.b16 %v6132
        %v7387 = vunpack.c.h.b16 %v6132
        %v7388 = vunpack.c.l.b16 %v6133
        %v7389 = vunpack.c.h.b16 %v6133
        %v7390 = vunpack.c.l.b16 %v6134
        %v7391 = vunpack.c.h.b16 %v6134
        %v7392 = vunpack.c.l.b16 %v6135
        %v7393 = vunpack.c.h.b16 %v6135
        %v7394 = vunpack.c.l.b16 %v6136
        %v7395 = vunpack.c.h.b16 %v6136
        %v7396 = vunpack.c.l.b16 %v6137
        %v7397 = vunpack.c.h.b16 %v6137
        %v7398 = vunpack.c.l.b16 %v6138
        %v7399 = vunpack.c.h.b16 %v6138
        %v7400 = vunpack.c.l.b16 %v6139
        %v7401 = vunpack.c.h.b16 %v6139
        %v7402 = vunpack.c.l.b16 %v6140
        %v7403 = vunpack.c.h.b16 %v6140
        %v7404 = vunpack.c.l.b16 %v6141
        %v7405 = vunpack.c.h.b16 %v6141
        %v7406 = vunpack.c.l.b16 %v6142
        %v7407 = vunpack.c.h.b16 %v6142
        %v7408 = vunpack.c.l.b16 %v6143
        %v7409 = vunpack.c.h.b16 %v6143
        %v7410 = vunpack.c.l.b16 %v6144
        %v7411 = vunpack.c.h.b16 %v6144
        %v7412 = vunpack.c.l.b16 %v6145
        %v7413 = vunpack.c.h.b16 %v6145
        %v7414 = vunpack.c.l.b16 %v6146
        %v7415 = vunpack.c.h.b16 %v6146
        %v7416 = vunpack.c.l.b16 %v6147
        %v7417 = vunpack.c.h.b16 %v6147
        %v7418 = vunpack.c.l.b16 %v6148
        %v7419 = vunpack.c.h.b16 %v6148
        %v7420 = vunpack.c.l.b16 %v6149
        %v7421 = vunpack.c.h.b16 %v6149
        %v7422 = vunpack.c.l.b16 %v6150
        %v7423 = vunpack.c.h.b16 %v6150
        %v7424 = vunpack.c.l.b16 %v6151
        %v7425 = vunpack.c.h.b16 %v6151
        %v7426 = vunpack.c.l.b16 %v6152
        %v7427 = vunpack.c.h.b16 %v6152
        %v7428 = vunpack.c.l.b16 %v6153
        %v7429 = vunpack.c.h.b16 %v6153
        %v7430 = vunpack.c.l.b16 %v6154
        %v7431 = vunpack.c.h.b16 %v6154
        %v7432 = vunpack.c.l.b16 %v6155
        %v7433 = vunpack.c.h.b16 %v6155
        %v7434 = vunpack.c.l.b16 %v6156
        %v7435 = vunpack.c.h.b16 %v6156
        %v7436 = vunpack.c.l.b16 %v6157
        %v7437 = vunpack.c.h.b16 %v6157
        %v7438 = vunpack.c.l.b16 %v6158
        %v7439 = vunpack.c.h.b16 %v6158
        %v7440 = vunpack.c.l.b16 %v6159
        %v7441 = vunpack.c.h.b16 %v6159
        %v7442 = vunpack.c.l.b16 %v6160
        %v7443 = vunpack.c.h.b16 %v6160
        %v7444 = vunpack.c.l.b16 %v6161
        %v7445 = vunpack.c.h.b16 %v6161
        %v7446 = vunpack.c.l.b16 %v6162
        %v7447 = vunpack.c.h.b16 %v6162
        %v7448 = vunpack.c.l.b16 %v6163
        %v7449 = vunpack.c.h.b16 %v6163
        %v7450 = vunpack.c.l.b16 %v6164
        %v7451 = vunpack.c.h.b16 %v6164
        %v7452 = vunpack.c.l.b16 %v6165
        %v7453 = vunpack.c.h.b16 %v6165
        %v7454 = vunpack.c.l.b16 %v6166
        %v7455 = vunpack.c.h.b16 %v6166
        %v7456 = vunpack.c.l.b16 %v6167
        %v7457 = vunpack.c.h.b16 %v6167
        %v7458 = vunpack.c.l.b16 %v6168
        %v7459 = vunpack.c.h.b16 %v6168
        %v7460 = vunpack.c.l.b16 %v6169
        %v7461 = vunpack.c.h.b16 %v6169
        %v7462 = vunpack.c.l.b16 %v6170
        %v7463 = vunpack.c.h.b16 %v6170
        %v7464 = vunpack.c.l.b16 %v6171
        %v7465 = vunpack.c.h.b16 %v6171
        %v7466 = vunpack.c.l.b16 %v6172
        %v7467 = vunpack.c.h.b16 %v6172
        %v7468 = vunpack.c.l.b16 %v6173
        %v7469 = vunpack.c.h.b16 %v6173
        %v7470 = vunpack.c.l.b16 %v6174
        %v7471 = vunpack.c.h.b16 %v6174
        %v7472 = vunpack.c.l.b16 %v6175
        %v7473 = vunpack.c.h.b16 %v6175
        %v7474 = vunpack.c.l.b16 %v6176
        %v7475 = vunpack.c.h.b16 %v6176
        %v7476 = vunpack.c.l.b16 %v6177
        %v7477 = vunpack.c.h.b16 %v6177
        %v7478 = vunpack.c.l.b16 %v6178
        %v7479 = vunpack.c.h.b16 %v6178
        %v7480 = vunpack.c.l.b16 %v6179
        %v7481 = vunpack.c.h.b16 %v6179
        %v7482 = vunpack.c.l.b16 %v6180
        %v7483 = vunpack.c.h.b16 %v6180
        %v7484 = vunpack.c.l.b16 %v6181
        %v7485 = vunpack.c.h.b16 %v6181
        %v7486 = vunpack.c.l.b16 %v6182
        %v7487 = vunpack.c.h.b16 %v6182
        %v7488 = vunpack.c.l.b16 %v6183
        %v7489 = vunpack.c.h.b16 %v6183
        %v7490 = vunpack.c.l.b16 %v6184
        %v7491 = vunpack.c.h.b16 %v6184
        %v7492 = vunpack.c.l.b16 %v6185
        %v7493 = vunpack.c.h.b16 %v6185
        %v7494 = vunpack.c.l.b16 %v6186
        %v7495 = vunpack.c.h.b16 %v6186
        %v7496 = vunpack.c.l.b16 %v6187
        %v7497 = vunpack.c.h.b16 %v6187
        %v7498 = vunpack.c.l.b16 %v6188
        %v7499 = vunpack.c.h.b16 %v6188
        %v7500 = vunpack.c.l.b16 %v6189
        %v7501 = vunpack.c.h.b16 %v6189
        %v7502 = vunpack.c.l.b16 %v6190
        %v7503 = vunpack.c.h.b16 %v6190
        %v7504 = vunpack.c.l.b16 %v6191
        %v7505 = vunpack.c.h.b16 %v6191
        %v7506 = vunpack.c.l.b16 %v6192
        %v7507 = vunpack.c.h.b16 %v6192
        %v7508 = vunpack.c.l.b16 %v6193
        %v7509 = vunpack.c.h.b16 %v6193
        %v7510 = vunpack.c.l.b16 %v6194
        %v7511 = vunpack.c.h.b16 %v6194
        %v7512 = vunpack.c.l.b16 %v6195
        %v7513 = vunpack.c.h.b16 %v6195
        %v7514 = vunpack.c.l.b16 %v6196
        %v7515 = vunpack.c.h.b16 %v6196
        %v7516 = vunpack.c.l.b16 %v6197
        %v7517 = vunpack.c.h.b16 %v6197
        %v7518 = vunpack.c.l.b16 %v6198
        %v7519 = vunpack.c.h.b16 %v6198
        %v7520 = vunpack.c.l.b16 %v6199
        %v7521 = vunpack.c.h.b16 %v6199
        %v7522 = vunpack.c.l.b16 %v6200
        %v7523 = vunpack.c.h.b16 %v6200
        %v7524 = vunpack.c.l.b16 %v6201
        %v7525 = vunpack.c.h.b16 %v6201
        %v7526 = vunpack.c.l.b16 %v6202
        %v7527 = vunpack.c.h.b16 %v6202
        %v7528 = vunpack.c.l.b16 %v6203
        %v7529 = vunpack.c.h.b16 %v6203
        %v7530 = vunpack.c.l.b16 %v6204
        %v7531 = vunpack.c.h.b16 %v6204
        %v7532 = vunpack.c.l.b16 %v6205
        %v7533 = vunpack.c.h.b16 %v6205
        %v7534 = vunpack.c.l.b16 %v6206
        %v7535 = vunpack.c.h.b16 %v6206
        %v7536 = vunpack.c.l.b16 %v6207
        %v7537 = vunpack.c.h.b16 %v6207
        %v7538 = vunpack.c.l.b16 %v6208
        %v7539 = vunpack.c.h.b16 %v6208
        %v7540 = vunpack.c.l.b16 %v6209
        %v7541 = vunpack.c.h.b16 %v6209
        %v7542 = vunpack.c.l.b16 %v6210
        %v7543 = vunpack.c.h.b16 %v6210
        %v7544 = vunpack.c.l.b16 %v6211
        %v7545 = vunpack.c.h.b16 %v6211
        %v7546 = vunpack.c.l.b16 %v6212
        %v7547 = vunpack.c.h.b16 %v6212
        %v7548 = vunpack.c.l.b16 %v6213
        %v7549 = vunpack.c.h.b16 %v6213
        %v7550 = vunpack.c.l.b16 %v6214
        %v7551 = vunpack.c.h.b16 %v6214
        %v7552 = vunpack.c.l.b16 %v6215
        %v7553 = vunpack.c.h.b16 %v6215
        %v7554 = vunpack.c.l.b16 %v6216
        %v7555 = vunpack.c.h.b16 %v6216
        %v7556 = vunpack.c.l.b16 %v6217
        %v7557 = vunpack.c.h.b16 %v6217
        %v7558 = vunpack.c.l.b16 %v6218
        %v7559 = vunpack.c.h.b16 %v6218
        %v7560 = vunpack.c.l.b16 %v6219
        %v7561 = vunpack.c.h.b16 %v6219
        %v7562 = vunpack.c.l.b16 %v6220
        %v7563 = vunpack.c.h.b16 %v6220
        %v7564 = vunpack.c.l.b16 %v6221
        %v7565 = vunpack.c.h.b16 %v6221
        %v7566 = vunpack.c.l.b16 %v6222
        %v7567 = vunpack.c.h.b16 %v6222
        %v7568 = vunpack.c.l.b16 %v6223
        %v7569 = vunpack.c.h.b16 %v6223
        %v7570 = vunpack.c.l.b16 %v6224
        %v7571 = vunpack.c.h.b16 %v6224
        %v7572 = vunpack.c.l.b16 %v6225
        %v7573 = vunpack.c.h.b16 %v6225
        %v7574 = vunpack.c.l.b16 %v6226
        %v7575 = vunpack.c.h.b16 %v6226
        %v7576 = vunpack.c.l.b16 %v6227
        %v7577 = vunpack.c.h.b16 %v6227
        %v7578 = vunpack.c.l.b16 %v6228
        %v7579 = vunpack.c.h.b16 %v6228
        %v7580 = vunpack.c.l.b16 %v6229
        %v7581 = vunpack.c.h.b16 %v6229
        %v7582 = vunpack.c.l.b16 %v6230
        %v7583 = vunpack.c.h.b16 %v6230
        %v7584 = vunpack.c.l.b16 %v6231
        %v7585 = vunpack.c.h.b16 %v6231
        %v7586 = vunpack.c.l.b16 %v6232
        %v7587 = vunpack.c.h.b16 %v6232
        %v7588 = vunpack.c.l.b16 %v6233
        %v7589 = vunpack.c.h.b16 %v6233
        %v7590 = vunpack.c.l.b16 %v6234
        %v7591 = vunpack.c.h.b16 %v6234
        %v7592 = vunpack.c.l.b16 %v6235
        %v7593 = vunpack.c.h.b16 %v6235
        %v7594 = vunpack.c.l.b16 %v6236
        %v7595 = vunpack.c.h.b16 %v6236
        %v7596 = vunpack.c.l.b16 %v6237
        %v7597 = vunpack.c.h.b16 %v6237
        %v7598 = vunpack.c.l.b16 %v6238
        %v7599 = vunpack.c.h.b16 %v6238
        %v7600 = vunpack.c.l.b16 %v6239
        %v7601 = vunpack.c.h.b16 %v6239
        %v7602 = vunpack.c.l.b16 %v6240
        %v7603 = vunpack.c.h.b16 %v6240
        %v7604 = vunpack.c.l.b16 %v6241
        %v7605 = vunpack.c.h.b16 %v6241
        %v7606 = vunpack.c.l.b16 %v6242
        %v7607 = vunpack.c.h.b16 %v6242
        %v7608 = vunpack.c.l.b16 %v6243
        %v7609 = vunpack.c.h.b16 %v6243
        %v7610 = vunpack.c.l.b16 %v6244
        %v7611 = vunpack.c.h.b16 %v6244
        %v7612 = vunpack.c.l.b16 %v6245
        %v7613 = vunpack.c.h.b16 %v6245
        %v7614 = vunpack.c.l.b16 %v6246
        %v7615 = vunpack.c.h.b16 %v6246
        %v7616 = vunpack.c.l.b16 %v6247
        %v7617 = vunpack.c.h.b16 %v6247
        %v7618 = vunpack.c.l.b16 %v6248
        %v7619 = vunpack.c.h.b16 %v6248
        %v7620 = vunpack.c.l.b16 %v6249
        %v7621 = vunpack.c.h.b16 %v6249
        %v7622 = vunpack.c.l.b16 %v6250
        %v7623 = vunpack.c.h.b16 %v6250
        %v7624 = vunpack.c.l.b16 %v6251
        %v7625 = vunpack.c.h.b16 %v6251
        %v7626 = vunpack.c.l.b16 %v6252
        %v7627 = vunpack.c.h.b16 %v6252
        %v7628 = vunpack.c.l.b16 %v6253
        %v7629 = vunpack.c.h.b16 %v6253
        %v7630 = vunpack.c.l.b16 %v6254
        %v7631 = vunpack.c.h.b16 %v6254
        %v7632 = vunpack.c.l.b16 %v6255
        %v7633 = vunpack.c.h.b16 %v6255
        %v7634 = vunpack.c.l.b16 %v6256
        %v7635 = vunpack.c.h.b16 %v6256
        %v7636 = vunpack.c.l.b16 %v6257
        %v7637 = vunpack.c.h.b16 %v6257
        %v7638 = vunpack.c.l.b16 %v6258
        %v7639 = vunpack.c.h.b16 %v6258
        %v7640 = vunpack.c.l.b16 %v6259
        %v7641 = vunpack.c.h.b16 %v6259
        %v7642 = vunpack.c.l.b16 %v6260
        %v7643 = vunpack.c.h.b16 %v6260
        %v7644 = vunpack.c.l.b16 %v6261
        %v7645 = vunpack.c.h.b16 %v6261
        %v7646 = vunpack.c.l.b16 %v6262
        %v7647 = vunpack.c.h.b16 %v6262
        %v7648 = vunpack.c.l.b16 %v6263
        %v7649 = vunpack.c.h.b16 %v6263
        %v7650 = vunpack.c.l.b16 %v6264
        %v7651 = vunpack.c.h.b16 %v6264
        %v7652 = vunpack.c.l.b16 %v6265
        %v7653 = vunpack.c.h.b16 %v6265
        %v7654 = vunpack.c.l.b16 %v6266
        %v7655 = vunpack.c.h.b16 %v6266
        %v7656 = vunpack.c.l.b16 %v6267
        %v7657 = vunpack.c.h.b16 %v6267
        %v7658 = vunpack.c.l.b16 %v6268
        %v7659 = vunpack.c.h.b16 %v6268
        %v7660 = vunpack.c.l.b16 %v6269
        %v7661 = vunpack.c.h.b16 %v6269
        %v7662 = vunpack.c.l.b16 %v6270
        %v7663 = vunpack.c.h.b16 %v6270
        %v7664 = vunpack.c.l.b16 %v6271
        %v7665 = vunpack.c.h.b16 %v6271
        %v7666 = vunpack.c.l.b16 %v6272
        %v7667 = vunpack.c.h.b16 %v6272
        %v7668 = vunpack.c.l.b16 %v6273
        %v7669 = vunpack.c.h.b16 %v6273
        %v7670 = vunpack.c.l.b16 %v6274
        %v7671 = vunpack.c.h.b16 %v6274
        %v7672 = vunpack.c.l.b16 %v6275
        %v7673 = vunpack.c.h.b16 %v6275
        %v7674 = vunpack.c.l.b16 %v6276
        %v7675 = vunpack.c.h.b16 %v6276
        %v7676 = vunpack.c.l.b16 %v6277
        %v7677 = vunpack.c.h.b16 %v6277
        %v7678 = vunpack.c.l.b16 %v6278
        %v7679 = vunpack.c.h.b16 %v6278
        %v7680 = vunpack.c.l.b16 %v6279
        %v7681 = vunpack.c.h.b16 %v6279
        %v7682 = vunpack.c.l.b16 %v6280
        %v7683 = vunpack.c.h.b16 %v6280
        %v7684 = vunpack.c.l.b16 %v6281
        %v7685 = vunpack.c.h.b16 %v6281
        %v7686 = vunpack.c.l.b16 %v6282
        %v7687 = vunpack.c.h.b16 %v6282
        %v7688 = vunpack.c.l.b16 %v6283
        %v7689 = vunpack.c.h.b16 %v6283
        %v7690 = vunpack.c.l.b16 %v6284
        %v7691 = vunpack.c.h.b16 %v6284
        %v7692 = vunpack.c.l.b16 %v6285
        %v7693 = vunpack.c.h.b16 %v6285
        %v7694 = vunpack.c.l.b16 %v6286
        %v7695 = vunpack.c.h.b16 %v6286
        %v7696 = vunpack.c.l.b16 %v6287
        %v7697 = vunpack.c.h.b16 %v6287
        %v7698 = vunpack.c.l.b16 %v6288
        %v7699 = vunpack.c.h.b16 %v6288
        %v7700 = vunpack.c.l.b16 %v6289
        %v7701 = vunpack.c.h.b16 %v6289
        %v7702 = vunpack.c.l.b16 %v6290
        %v7703 = vunpack.c.h.b16 %v6290
        %v7704 = vunpack.c.l.b16 %v6291
        %v7705 = vunpack.c.h.b16 %v6291
        %v7706 = vunpack.c.l.b16 %v6292
        %v7707 = vunpack.c.h.b16 %v6292
        %v7708 = vunpack.c.l.b16 %v6293
        %v7709 = vunpack.c.h.b16 %v6293
        %v7710 = vunpack.c.l.b16 %v6294
        %v7711 = vunpack.c.h.b16 %v6294
        %v7712 = vunpack.c.l.b16 %v6295
        %v7713 = vunpack.c.h.b16 %v6295
        %v7714 = vunpack.c.l.b16 %v6296
        %v7715 = vunpack.c.h.b16 %v6296
        %v7716 = vunpack.c.l.b16 %v6297
        %v7717 = vunpack.c.h.b16 %v6297
        %v7718 = vunpack.c.l.b16 %v6298
        %v7719 = vunpack.c.h.b16 %v6298
        %v7720 = vunpack.c.l.b16 %v6299
        %v7721 = vunpack.c.h.b16 %v6299
        %v7722 = vunpack.c.l.b16 %v6300
        %v7723 = vunpack.c.h.b16 %v6300
        %v7724 = vunpack.c.l.b16 %v6301
        %v7725 = vunpack.c.h.b16 %v6301
        %v7726 = vunpack.c.l.b16 %v6302
        %v7727 = vunpack.c.h.b16 %v6302
        %v7728 = vunpack.c.l.b16 %v6303
        %v7729 = vunpack.c.h.b16 %v6303
        %v7730 = vunpack.c.l.b16 %v6304
        %v7731 = vunpack.c.h.b16 %v6304
        %v7732 = vunpack.c.l.b16 %v6305
        %v7733 = vunpack.c.h.b16 %v6305
        %v7734 = vunpack.c.l.b16 %v6306
        %v7735 = vunpack.c.h.b16 %v6306
        %v7736 = vunpack.c.l.b16 %v6307
        %v7737 = vunpack.c.h.b16 %v6307
        %v7738 = vunpack.c.l.b16 %v6308
        %v7739 = vunpack.c.h.b16 %v6308
        %v7740 = vunpack.c.l.b16 %v6309
        %v7741 = vunpack.c.h.b16 %v6309
        %v7742 = vunpack.c.l.b16 %v6310
        %v7743 = vunpack.c.h.b16 %v6310
        %v7744 = vunpack.c.l.b16 %v6311
        %v7745 = vunpack.c.h.b16 %v6311
        %v7746 = vunpack.c.l.b16 %v6312
        %v7747 = vunpack.c.h.b16 %v6312
        %v7748 = vunpack.c.l.b16 %v6313
        %v7749 = vunpack.c.h.b16 %v6313
        %v7750 = vunpack.c.l.b16 %v6314
        %v7751 = vunpack.c.h.b16 %v6314
        %v7752 = vunpack.c.l.b16 %v6315
        %v7753 = vunpack.c.h.b16 %v6315
        %v7754 = vunpack.c.l.b16 %v6316
        %v7755 = vunpack.c.h.b16 %v6316
        %v7756 = vunpack.c.l.b16 %v6317
        %v7757 = vunpack.c.h.b16 %v6317
        %v7758 = vunpack.c.l.b16 %v6318
        %v7759 = vunpack.c.h.b16 %v6318
        %v7760 = vunpack.c.l.b16 %v6319
        %v7761 = vunpack.c.h.b16 %v6319
        %v7762 = vunpack.c.l.b16 %v6320
        %v7763 = vunpack.c.h.b16 %v6320
        %v7764 = vunpack.c.l.b16 %v6321
        %v7765 = vunpack.c.h.b16 %v6321
        %v7766 = vunpack.c.l.b16 %v6322
        %v7767 = vunpack.c.h.b16 %v6322
        %v7768 = vunpack.c.l.b16 %v6323
        %v7769 = vunpack.c.h.b16 %v6323
        %v7770 = vunpack.c.l.b16 %v6324
        %v7771 = vunpack.c.h.b16 %v6324
        %v7772 = vunpack.c.l.b16 %v6325
        %v7773 = vunpack.c.h.b16 %v6325
        %v7774 = vunpack.c.l.b16 %v6326
        %v7775 = vunpack.c.h.b16 %v6326
        %v7776 = vunpack.c.l.b16 %v6327
        %v7777 = vunpack.c.h.b16 %v6327
        %v7778 = vunpack.c.l.b16 %v6328
        %v7779 = vunpack.c.h.b16 %v6328
        %v7780 = vunpack.c.l.b16 %v6329
        %v7781 = vunpack.c.h.b16 %v6329
        %v7782 = vunpack.c.l.b16 %v6330
        %v7783 = vunpack.c.h.b16 %v6330
        %v7784 = vunpack.c.l.b16 %v6331
        %v7785 = vunpack.c.h.b16 %v6331
        %v7786 = vunpack.c.l.b16 %v6332
        %v7787 = vunpack.c.h.b16 %v6332
        %v7788 = vunpack.c.l.b16 %v6333
        %v7789 = vunpack.c.h.b16 %v6333
        %v7790 = vunpack.c.l.b16 %v6334
        %v7791 = vunpack.c.h.b16 %v6334
        %v7792 = vunpack.c.l.b16 %v6335
        %v7793 = vunpack.c.h.b16 %v6335
        %v7794 = vunpack.c.l.b16 %v6336
        %v7795 = vunpack.c.h.b16 %v6336
        %v7796 = vunpack.c.l.b16 %v6337
        %v7797 = vunpack.c.h.b16 %v6337
        %v7798 = vunpack.c.l.b16 %v6338
        %v7799 = vunpack.c.h.b16 %v6338
        %v7800 = vunpack.c.l.b16 %v6339
        %v7801 = vunpack.c.h.b16 %v6339
        %v7802 = vunpack.c.l.b16 %v6340
        %v7803 = vunpack.c.h.b16 %v6340
        %v7804 = vunpack.c.l.b16 %v6341
        %v7805 = vunpack.c.h.b16 %v6341
        %v7806 = vunpack.c.l.b16 %v6342
        %v7807 = vunpack.c.h.b16 %v6342
        %v7808 = vunpack.c.l.b16 %v6343
        %v7809 = vunpack.c.h.b16 %v6343
        %v7810 = vunpack.c.l.b16 %v6344
        %v7811 = vunpack.c.h.b16 %v6344
        %v7812 = vunpack.c.l.b16 %v6345
        %v7813 = vunpack.c.h.b16 %v6345
        %v7814 = vunpack.c.l.b16 %v6346
        %v7815 = vunpack.c.h.b16 %v6346
        %v7816 = vunpack.c.l.b16 %v6347
        %v7817 = vunpack.c.h.b16 %v6347
        %v7818 = vunpack.c.l.b16 %v6348
        %v7819 = vunpack.c.h.b16 %v6348
        %v7820 = vunpack.c.l.b16 %v6349
        %v7821 = vunpack.c.h.b16 %v6349
        %v7822 = vunpack.c.l.b16 %v6350
        %v7823 = vunpack.c.h.b16 %v6350
        %v7824 = vunpack.c.l.b16 %v6351
        %v7825 = vunpack.c.h.b16 %v6351
        %v7826 = vunpack.c.l.b16 %v6352
        %v7827 = vunpack.c.h.b16 %v6352
        %v7828 = vunpack.c.l.b16 %v6353
        %v7829 = vunpack.c.h.b16 %v6353
        %v7830 = vunpack.c.l.b16 %v6354
        %v7831 = vunpack.c.h.b16 %v6354
        %v7832 = vunpack.c.l.b16 %v6355
        %v7833 = vunpack.c.h.b16 %v6355
        %v7834 = vunpack.c.l.b16 %v6356
        %v7835 = vunpack.c.h.b16 %v6356
        %v7836 = vunpack.c.l.b16 %v6357
        %v7837 = vunpack.c.h.b16 %v6357
        %v7838 = vunpack.c.l.b16 %v6358
        %v7839 = vunpack.c.h.b16 %v6358
        %v7840 = vunpack.c.l.b16 %v6359
        %v7841 = vunpack.c.h.b16 %v6359
        %v7842 = vunpack.c.l.b16 %v6360
        %v7843 = vunpack.c.h.b16 %v6360
        %v7844 = vunpack.c.l.b16 %v6361
        %v7845 = vunpack.c.h.b16 %v6361
        %v7846 = vunpack.c.l.b16 %v6362
        %v7847 = vunpack.c.h.b16 %v6362
        %v7848 = vunpack.c.l.b16 %v6363
        %v7849 = vunpack.c.h.b16 %v6363
        %v7850 = vunpack.c.l.b16 %v6364
        %v7851 = vunpack.c.h.b16 %v6364
        %v7852 = vunpack.c.l.b16 %v6365
        %v7853 = vunpack.c.h.b16 %v6365
        %v7854 = vunpack.c.l.b16 %v6366
        %v7855 = vunpack.c.h.b16 %v6366
        %v7856 = vunpack.c.l.b16 %v6367
        %v7857 = vunpack.c.h.b16 %v6367
        %v7858 = vunpack.c.l.b16 %v6368
        %v7859 = vunpack.c.h.b16 %v6368
        %v7860 = vunpack.c.l.b16 %v6369
        %v7861 = vunpack.c.h.b16 %v6369
        %v7862 = vunpack.c.l.b16 %v6370
        %v7863 = vunpack.c.h.b16 %v6370
        %v7864 = vunpack.c.l.b16 %v6371
        %v7865 = vunpack.c.h.b16 %v6371
        %v7866 = vunpack.c.l.b16 %v6372
        %v7867 = vunpack.c.h.b16 %v6372
        %v7868 = vunpack.c.l.b16 %v6373
        %v7869 = vunpack.c.h.b16 %v6373
        %v7870 = vunpack.c.l.b16 %v6374
        %v7871 = vunpack.c.h.b16 %v6374
        %v7872 = vunpack.c.l.b16 %v6375
        %v7873 = vunpack.c.h.b16 %v6375
        %v7874 = vunpack.c.l.b16 %v6376
        %v7875 = vunpack.c.h.b16 %v6376
        %v7876 = vunpack.c.l.b16 %v6377
        %v7877 = vunpack.c.h.b16 %v6377
        %v7878 = vunpack.c.l.b16 %v6378
        %v7879 = vunpack.c.h.b16 %v6378
        %v7880 = vunpack.c.l.b16 %v6379
        %v7881 = vunpack.c.h.b16 %v6379
        %v7882 = vunpack.c.l.b16 %v6380
        %v7883 = vunpack.c.h.b16 %v6380
        %v7884 = vunpack.c.l.b16 %v6381
        %v7885 = vunpack.c.h.b16 %v6381
        %v7886 = vunpack.c.l.b16 %v6382
        %v7887 = vunpack.c.h.b16 %v6382
        %v7888 = vunpack.c.l.b16 %v6383
        %v7889 = vunpack.c.h.b16 %v6383
        %v7890 = vunpack.c.l.b16 %v6384
        %v7891 = vunpack.c.h.b16 %v6384
        %v7892 = vunpack.c.l.b16 %v6385
        %v7893 = vunpack.c.h.b16 %v6385
        %v7894 = vunpack.c.l.b16 %v6386
        %v7895 = vunpack.c.h.b16 %v6386
        %v7896 = vunpack.c.l.b16 %v6387
        %v7897 = vunpack.c.h.b16 %v6387
        %v7898 = vunpack.c.l.b16 %v6388
        %v7899 = vunpack.c.h.b16 %v6388
        %v7900 = vunpack.c.l.b16 %v6389
        %v7901 = vunpack.c.h.b16 %v6389
        %v7902 = vunpack.c.l.b16 %v6390
        %v7903 = vunpack.c.h.b16 %v6390
        %v7904 = vunpack.c.l.b16 %v6391
        %v7905 = vunpack.c.h.b16 %v6391
        %v7906 = vunpack.c.l.b16 %v6392
        %v7907 = vunpack.c.h.b16 %v6392
        %v7908 = vunpack.c.l.b16 %v6393
        %v7909 = vunpack.c.h.b16 %v6393
        %v7910 = vunpack.c.l.b16 %v6394
        %v7911 = vunpack.c.h.b16 %v6394
        %v7912 = vunpack.c.l.b16 %v6395
        %v7913 = vunpack.c.h.b16 %v6395
        %v7914 = vunpack.c.l.b16 %v6396
        %v7915 = vunpack.c.h.b16 %v6396
        %v7916 = vunpack.c.l.b16 %v6397
        %v7917 = vunpack.c.h.b16 %v6397
        %v7918 = vunpack.c.l.b16 %v6398
        %v7919 = vunpack.c.h.b16 %v6398
        %v7920 = vunpack.c.l.b16 %v6399
        %v7921 = vunpack.c.h.b16 %v6399
        %v7922 = vunpack.c.l.b16 %v6400
        %v7923 = vunpack.c.h.b16 %v6400
        %v7924 = vunpack.c.l.b16 %v6401
        %v7925 = vunpack.c.h.b16 %v6401
        %v7926 = vunpack.c.l.b16 %v6402
        %v7927 = vunpack.c.h.b16 %v6402
        %v7928 = vunpack.c.l.b16 %v6403
        %v7929 = vunpack.c.h.b16 %v6403
        %v7930 = vunpack.c.l.b16 %v6404
        %v7931 = vunpack.c.h.b16 %v6404
        %v7932 = vunpack.c.l.b16 %v6405
        %v7933 = vunpack.c.h.b16 %v6405
        %v7934 = vunpack.c.l.b16 %v6406
        %v7935 = vunpack.c.h.b16 %v6406
        %v7936 = vunpack.c.l.b16 %v6407
        %v7937 = vunpack.c.h.b16 %v6407
        %v7938 = vunpack.c.l.b16 %v6408
        %v7939 = vunpack.c.h.b16 %v6408
        %v7940 = vunpack.c.l.b16 %v6409
        %v7941 = vunpack.c.h.b16 %v6409
        %v7942 = vunpack.c.l.b16 %v6410
        %v7943 = vunpack.c.h.b16 %v6410
        %v7944 = vunpack.c.l.b16 %v6411
        %v7945 = vunpack.c.h.b16 %v6411
        %v7946 = vunpack.c.l.b16 %v6412
        %v7947 = vunpack.c.h.b16 %v6412
        %v7948 = vunpack.c.l.b16 %v6413
        %v7949 = vunpack.c.h.b16 %v6413
        %v7950 = vunpack.c.l.b16 %v6414
        %v7951 = vunpack.c.h.b16 %v6414
        %v7952 = vunpack.c.l.b16 %v6415
        %v7953 = vunpack.c.h.b16 %v6415
        %v7954 = vunpack.c.l.b16 %v6416
        %v7955 = vunpack.c.h.b16 %v6416
        %v7956 = vunpack.c.l.b16 %v6417
        %v7957 = vunpack.c.h.b16 %v6417
        %v7958 = vunpack.c.l.b16 %v6418
        %v7959 = vunpack.c.h.b16 %v6418
        %v7960 = vunpack.c.l.b16 %v6419
        %v7961 = vunpack.c.h.b16 %v6419
        %v7962 = vunpack.c.l.b16 %v6420
        %v7963 = vunpack.c.h.b16 %v6420
        %v7964 = vunpack.c.l.b16 %v6421
        %v7965 = vunpack.c.h.b16 %v6421
        %v7966 = vunpack.c.l.b16 %v6422
        %v7967 = vunpack.c.h.b16 %v6422
        %v7968 = vunpack.c.l.b16 %v6423
        %v7969 = vunpack.c.h.b16 %v6423
        %v7970 = vunpack.c.l.b16 %v6424
        %v7971 = vunpack.c.h.b16 %v6424
        %v7972 = vunpack.c.l.b16 %v6425
        %v7973 = vunpack.c.h.b16 %v6425
        %v7974 = vunpack.c.l.b16 %v6426
        %v7975 = vunpack.c.h.b16 %v6426
        %v7976 = vunpack.c.l.b16 %v6427
        %v7977 = vunpack.c.h.b16 %v6427
        %v7978 = vunpack.c.l.b16 %v6428
        %v7979 = vunpack.c.h.b16 %v6428
        %v7980 = vunpack.c.l.b16 %v6429
        %v7981 = vunpack.c.h.b16 %v6429
        %v7982 = vunpack.c.l.b16 %v6430
        %v7983 = vunpack.c.h.b16 %v6430
        %v7984 = vunpack.c.l.b16 %v6431
        %v7985 = vunpack.c.h.b16 %v6431
        %v7986 = vunpack.c.l.b16 %v6432
        %v7987 = vunpack.c.h.b16 %v6432
        %v7988 = vunpack.c.l.b16 %v6433
        %v7989 = vunpack.c.h.b16 %v6433
        %v7990 = vunpack.c.l.b16 %v6434
        %v7991 = vunpack.c.h.b16 %v6434
        %v7992 = vunpack.c.l.b16 %v6435
        %v7993 = vunpack.c.h.b16 %v6435
        %v7994 = vunpack.c.l.b16 %v6436
        %v7995 = vunpack.c.h.b16 %v6436
        %v7996 = vunpack.c.l.b16 %v6437
        %v7997 = vunpack.c.h.b16 %v6437
        %v7998 = vunpack.c.l.b16 %v6438
        %v7999 = vunpack.c.h.b16 %v6438
        %v8000 = vunpack.c.l.b16 %v6439
        %v8001 = vunpack.c.h.b16 %v6439
        %v8002 = vunpack.c.l.b16 %v6440
        %v8003 = vunpack.c.h.b16 %v6440
        %v8004 = vunpack.c.l.b16 %v6441
        %v8005 = vunpack.c.h.b16 %v6441
        %v8006 = vunpack.c.l.b16 %v6442
        %v8007 = vunpack.c.h.b16 %v6442
        %v8008 = vunpack.c.l.b16 %v6443
        %v8009 = vunpack.c.h.b16 %v6443
        %v8010 = vunpack.c.l.b16 %v6444
        %v8011 = vunpack.c.h.b16 %v6444
        %v8012 = vunpack.c.l.b16 %v6445
        %v8013 = vunpack.c.h.b16 %v6445
        %v8014 = vunpack.c.l.b16 %v6446
        %v8015 = vunpack.c.h.b16 %v6446
        %v8016 = vunpack.c.l.b16 %v6447
        %v8017 = vunpack.c.h.b16 %v6447
        %v8018 = vunpack.c.l.b16 %v6448
        %v8019 = vunpack.c.h.b16 %v6448
        %v8020 = vunpack.c.l.b16 %v6449
        %v8021 = vunpack.c.h.b16 %v6449
        %v8022 = vunpack.c.l.b16 %v6450
        %v8023 = vunpack.c.h.b16 %v6450
        %v8024 = vunpack.c.l.b16 %v6451
        %v8025 = vunpack.c.h.b16 %v6451
        %v8026 = vunpack.c.l.b16 %v6452
        %v8027 = vunpack.c.h.b16 %v6452
        %v8028 = vunpack.c.l.b16 %v6453
        %v8029 = vunpack.c.h.b16 %v6453
        %v8030 = vunpack.c.l.b16 %v6454
        %v8031 = vunpack.c.h.b16 %v6454
        %v8032 = vunpack.c.l.b16 %v6455
        %v8033 = vunpack.c.h.b16 %v6455
        %v8034 = vpack.c.b16 %v7018, %v7010
        %v8035 = vpack.c.b16 %v7019, %v7011
        %v8036 = vpack.c.b16 %v7020, %v7012
        %v8037 = vpack.c.b16 %v7021, %v7013
        %v8038 = vpack.c.b16 %v7022, %v7014
        %v8039 = vpack.c.b16 %v7023, %v7015
        %v8040 = vpack.c.b16 %v7024, %v7016
        %v8041 = vpack.c.b16 %v7025, %v7017
        %v8042 = vpack.c.b16 %v7034, %v7026
        %v8043 = vpack.c.b16 %v7035, %v7027
        %v8044 = vpack.c.b16 %v7036, %v7028
        %v8045 = vpack.c.b16 %v7037, %v7029
        %v8046 = vpack.c.b16 %v7038, %v7030
        %v8047 = vpack.c.b16 %v7039, %v7031
        %v8048 = vpack.c.b16 %v7040, %v7032
        %v8049 = vpack.c.b16 %v7041, %v7033
        %v8050 = vpack.c.b16 %v7050, %v7042
        %v8051 = vpack.c.b16 %v7051, %v7043
        %v8052 = vpack.c.b16 %v7052, %v7044
        %v8053 = vpack.c.b16 %v7053, %v7045
        %v8054 = vpack.c.b16 %v7054, %v7046
        %v8055 = vpack.c.b16 %v7055, %v7047
        %v8056 = vpack.c.b16 %v7056, %v7048
        %v8057 = vpack.c.b16 %v7057, %v7049
        %v8058 = vpack.c.b16 %v7066, %v7058
        %v8059 = vpack.c.b16 %v7067, %v7059
        %v8060 = vpack.c.b16 %v7068, %v7060
        %v8061 = vpack.c.b16 %v7069, %v7061
        %v8062 = vpack.c.b16 %v7070, %v7062
        %v8063 = vpack.c.b16 %v7071, %v7063
        %v8064 = vpack.c.b16 %v7072, %v7064
        %v8065 = vpack.c.b16 %v7073, %v7065
        %v8066 = vpack.c.b16 %v7082, %v7074
        %v8067 = vpack.c.b16 %v7083, %v7075
        %v8068 = vpack.c.b16 %v7084, %v7076
        %v8069 = vpack.c.b16 %v7085, %v7077
        %v8070 = vpack.c.b16 %v7086, %v7078
        %v8071 = vpack.c.b16 %v7087, %v7079
        %v8072 = vpack.c.b16 %v7088, %v7080
        %v8073 = vpack.c.b16 %v7089, %v7081
        %v8074 = vpack.c.b16 %v7098, %v7090
        %v8075 = vpack.c.b16 %v7099, %v7091
        %v8076 = vpack.c.b16 %v7100, %v7092
        %v8077 = vpack.c.b16 %v7101, %v7093
        %v8078 = vpack.c.b16 %v7102, %v7094
        %v8079 = vpack.c.b16 %v7103, %v7095
        %v8080 = vpack.c.b16 %v7104, %v7096
        %v8081 = vpack.c.b16 %v7105, %v7097
        %v8082 = vpack.c.b16 %v7114, %v7106
        %v8083 = vpack.c.b16 %v7115, %v7107
        %v8084 = vpack.c.b16 %v7116, %v7108
        %v8085 = vpack.c.b16 %v7117, %v7109
        %v8086 = vpack.c.b16 %v7118, %v7110
        %v8087 = vpack.c.b16 %v7119, %v7111
        %v8088 = vpack.c.b16 %v7120, %v7112
        %v8089 = vpack.c.b16 %v7121, %v7113
        %v8090 = vpack.c.b16 %v7130, %v7122
        %v8091 = vpack.c.b16 %v7131, %v7123
        %v8092 = vpack.c.b16 %v7132, %v7124
        %v8093 = vpack.c.b16 %v7133, %v7125
        %v8094 = vpack.c.b16 %v7134, %v7126
        %v8095 = vpack.c.b16 %v7135, %v7127
        %v8096 = vpack.c.b16 %v7136, %v7128
        %v8097 = vpack.c.b16 %v7137, %v7129
        %v8098 = vpack.c.b16 %v7146, %v7138
        %v8099 = vpack.c.b16 %v7147, %v7139
        %v8100 = vpack.c.b16 %v7148, %v7140
        %v8101 = vpack.c.b16 %v7149, %v7141
        %v8102 = vpack.c.b16 %v7150, %v7142
        %v8103 = vpack.c.b16 %v7151, %v7143
        %v8104 = vpack.c.b16 %v7152, %v7144
        %v8105 = vpack.c.b16 %v7153, %v7145
        %v8106 = vpack.c.b16 %v7162, %v7154
        %v8107 = vpack.c.b16 %v7163, %v7155
        %v8108 = vpack.c.b16 %v7164, %v7156
        %v8109 = vpack.c.b16 %v7165, %v7157
        %v8110 = vpack.c.b16 %v7166, %v7158
        %v8111 = vpack.c.b16 %v7167, %v7159
        %v8112 = vpack.c.b16 %v7168, %v7160
        %v8113 = vpack.c.b16 %v7169, %v7161
        %v8114 = vpack.c.b16 %v7178, %v7170
        %v8115 = vpack.c.b16 %v7179, %v7171
        %v8116 = vpack.c.b16 %v7180, %v7172
        %v8117 = vpack.c.b16 %v7181, %v7173
        %v8118 = vpack.c.b16 %v7182, %v7174
        %v8119 = vpack.c.b16 %v7183, %v7175
        %v8120 = vpack.c.b16 %v7184, %v7176
        %v8121 = vpack.c.b16 %v7185, %v7177
        %v8122 = vpack.c.b16 %v7194, %v7186
        %v8123 = vpack.c.b16 %v7195, %v7187
        %v8124 = vpack.c.b16 %v7196, %v7188
        %v8125 = vpack.c.b16 %v7197, %v7189
        %v8126 = vpack.c.b16 %v7198, %v7190
        %v8127 = vpack.c.b16 %v7199, %v7191
        %v8128 = vpack.c.b16 %v7200, %v7192
        %v8129 = vpack.c.b16 %v7201, %v7193
        %v8130 = vpack.c.b16 %v7210, %v7202
        %v8131 = vpack.c.b16 %v7211, %v7203
        %v8132 = vpack.c.b16 %v7212, %v7204
        %v8133 = vpack.c.b16 %v7213, %v7205
        %v8134 = vpack.c.b16 %v7214, %v7206
        %v8135 = vpack.c.b16 %v7215, %v7207
        %v8136 = vpack.c.b16 %v7216, %v7208
        %v8137 = vpack.c.b16 %v7217, %v7209
        %v8138 = vpack.c.b16 %v7226, %v7218
        %v8139 = vpack.c.b16 %v7227, %v7219
        %v8140 = vpack.c.b16 %v7228, %v7220
        %v8141 = vpack.c.b16 %v7229, %v7221
        %v8142 = vpack.c.b16 %v7230, %v7222
        %v8143 = vpack.c.b16 %v7231, %v7223
        %v8144 = vpack.c.b16 %v7232, %v7224
        %v8145 = vpack.c.b16 %v7233, %v7225
        %v8146 = vpack.c.b16 %v7242, %v7234
        %v8147 = vpack.c.b16 %v7243, %v7235
        %v8148 = vpack.c.b16 %v7244, %v7236
        %v8149 = vpack.c.b16 %v7245, %v7237
        %v8150 = vpack.c.b16 %v7246, %v7238
        %v8151 = vpack.c.b16 %v7247, %v7239
        %v8152 = vpack.c.b16 %v7248, %v7240
        %v8153 = vpack.c.b16 %v7249, %v7241
        %v8154 = vpack.c.b16 %v7258, %v7250
        %v8155 = vpack.c.b16 %v7259, %v7251
        %v8156 = vpack.c.b16 %v7260, %v7252
        %v8157 = vpack.c.b16 %v7261, %v7253
        %v8158 = vpack.c.b16 %v7262, %v7254
        %v8159 = vpack.c.b16 %v7263, %v7255
        %v8160 = vpack.c.b16 %v7264, %v7256
        %v8161 = vpack.c.b16 %v7265, %v7257
        %v8162 = vpack.c.b16 %v7274, %v7266
        %v8163 = vpack.c.b16 %v7275, %v7267
        %v8164 = vpack.c.b16 %v7276, %v7268
        %v8165 = vpack.c.b16 %v7277, %v7269
        %v8166 = vpack.c.b16 %v7278, %v7270
        %v8167 = vpack.c.b16 %v7279, %v7271
        %v8168 = vpack.c.b16 %v7280, %v7272
        %v8169 = vpack.c.b16 %v7281, %v7273
        %v8170 = vpack.c.b16 %v7290, %v7282
        %v8171 = vpack.c.b16 %v7291, %v7283
        %v8172 = vpack.c.b16 %v7292, %v7284
        %v8173 = vpack.c.b16 %v7293, %v7285
        %v8174 = vpack.c.b16 %v7294, %v7286
        %v8175 = vpack.c.b16 %v7295, %v7287
        %v8176 = vpack.c.b16 %v7296, %v7288
        %v8177 = vpack.c.b16 %v7297, %v7289
        %v8178 = vpack.c.b16 %v7306, %v7298
        %v8179 = vpack.c.b16 %v7307, %v7299
        %v8180 = vpack.c.b16 %v7308, %v7300
        %v8181 = vpack.c.b16 %v7309, %v7301
        %v8182 = vpack.c.b16 %v7310, %v7302
        %v8183 = vpack.c.b16 %v7311, %v7303
        %v8184 = vpack.c.b16 %v7312, %v7304
        %v8185 = vpack.c.b16 %v7313, %v7305
        %v8186 = vpack.c.b16 %v7322, %v7314
        %v8187 = vpack.c.b16 %v7323, %v7315
        %v8188 = vpack.c.b16 %v7324, %v7316
        %v8189 = vpack.c.b16 %v7325, %v7317
        %v8190 = vpack.c.b16 %v7326, %v7318
        %v8191 = vpack.c.b16 %v7327, %v7319
        %v8192 = vpack.c.b16 %v7328, %v7320
        %v8193 = vpack.c.b16 %v7329, %v7321
        %v8194 = vpack.c.b16 %v7338, %v7330
        %v8195 = vpack.c.b16 %v7339, %v7331
        %v8196 = vpack.c.b16 %v7340, %v7332
        %v8197 = vpack.c.b16 %v7341, %v7333
        %v8198 = vpack.c.b16 %v7342, %v7334
        %v8199 = vpack.c.b16 %v7343, %v7335
        %v8200 = vpack.c.b16 %v7344, %v7336
        %v8201 = vpack.c.b16 %v7345, %v7337
        %v8202 = vpack.c.b16 %v7354, %v7346
        %v8203 = vpack.c.b16 %v7355, %v7347
        %v8204 = vpack.c.b16 %v7356, %v7348
        %v8205 = vpack.c.b16 %v7357, %v7349
        %v8206 = vpack.c.b16 %v7358, %v7350
        %v8207 = vpack.c.b16 %v7359, %v7351
        %v8208 = vpack.c.b16 %v7360, %v7352
        %v8209 = vpack.c.b16 %v7361, %v7353
        %v8210 = vpack.c.b16 %v7370, %v7362
        %v8211 = vpack.c.b16 %v7371, %v7363
        %v8212 = vpack.c.b16 %v7372, %v7364
        %v8213 = vpack.c.b16 %v7373, %v7365
        %v8214 = vpack.c.b16 %v7374, %v7366
        %v8215 = vpack.c.b16 %v7375, %v7367
        %v8216 = vpack.c.b16 %v7376, %v7368
        %v8217 = vpack.c.b16 %v7377, %v7369
        %v8218 = vpack.c.b16 %v7386, %v7378
        %v8219 = vpack.c.b16 %v7387, %v7379
        %v8220 = vpack.c.b16 %v7388, %v7380
        %v8221 = vpack.c.b16 %v7389, %v7381
        %v8222 = vpack.c.b16 %v7390, %v7382
        %v8223 = vpack.c.b16 %v7391, %v7383
        %v8224 = vpack.c.b16 %v7392, %v7384
        %v8225 = vpack.c.b16 %v7393, %v7385
        %v8226 = vpack.c.b16 %v7402, %v7394
        %v8227 = vpack.c.b16 %v7403, %v7395
        %v8228 = vpack.c.b16 %v7404, %v7396
        %v8229 = vpack.c.b16 %v7405, %v7397
        %v8230 = vpack.c.b16 %v7406, %v7398
        %v8231 = vpack.c.b16 %v7407, %v7399
        %v8232 = vpack.c.b16 %v7408, %v7400
        %v8233 = vpack.c.b16 %v7409, %v7401
        %v8234 = vpack.c.b16 %v7418, %v7410
        %v8235 = vpack.c.b16 %v7419, %v7411
        %v8236 = vpack.c.b16 %v7420, %v7412
        %v8237 = vpack.c.b16 %v7421, %v7413
        %v8238 = vpack.c.b16 %v7422, %v7414
        %v8239 = vpack.c.b16 %v7423, %v7415
        %v8240 = vpack.c.b16 %v7424, %v7416
        %v8241 = vpack.c.b16 %v7425, %v7417
        %v8242 = vpack.c.b16 %v7434, %v7426
        %v8243 = vpack.c.b16 %v7435, %v7427
        %v8244 = vpack.c.b16 %v7436, %v7428
        %v8245 = vpack.c.b16 %v7437, %v7429
        %v8246 = vpack.c.b16 %v7438, %v7430
        %v8247 = vpack.c.b16 %v7439, %v7431
        %v8248 = vpack.c.b16 %v7440, %v7432
        %v8249 = vpack.c.b16 %v7441, %v7433
        %v8250 = vpack.c.b16 %v7450, %v7442
        %v8251 = vpack.c.b16 %v7451, %v7443
        %v8252 = vpack.c.b16 %v7452, %v7444
        %v8253 = vpack.c.b16 %v7453, %v7445
        %v8254 = vpack.c.b16 %v7454, %v7446
        %v8255 = vpack.c.b16 %v7455, %v7447
        %v8256 = vpack.c.b16 %v7456, %v7448
        %v8257 = vpack.c.b16 %v7457, %v7449
        %v8258 = vpack.c.b16 %v7466, %v7458
        %v8259 = vpack.c.b16 %v7467, %v7459
        %v8260 = vpack.c.b16 %v7468, %v7460
        %v8261 = vpack.c.b16 %v7469, %v7461
        %v8262 = vpack.c.b16 %v7470, %v7462
        %v8263 = vpack.c.b16 %v7471, %v7463
        %v8264 = vpack.c.b16 %v7472, %v7464
        %v8265 = vpack.c.b16 %v7473, %v7465
        %v8266 = vpack.c.b16 %v7482, %v7474
        %v8267 = vpack.c.b16 %v7483, %v7475
        %v8268 = vpack.c.b16 %v7484, %v7476
        %v8269 = vpack.c.b16 %v7485, %v7477
        %v8270 = vpack.c.b16 %v7486, %v7478
        %v8271 = vpack.c.b16 %v7487, %v7479
        %v8272 = vpack.c.b16 %v7488, %v7480
        %v8273 = vpack.c.b16 %v7489, %v7481
        %v8274 = vpack.c.b16 %v7498, %v7490
        %v8275 = vpack.c.b16 %v7499, %v7491
        %v8276 = vpack.c.b16 %v7500, %v7492
        %v8277 = vpack.c.b16 %v7501, %v7493
        %v8278 = vpack.c.b16 %v7502, %v7494
        %v8279 = vpack.c.b16 %v7503, %v7495
        %v8280 = vpack.c.b16 %v7504, %v7496
        %v8281 = vpack.c.b16 %v7505, %v7497
        %v8282 = vpack.c.b16 %v7514, %v7506
        %v8283 = vpack.c.b16 %v7515, %v7507
        %v8284 = vpack.c.b16 %v7516, %v7508
        %v8285 = vpack.c.b16 %v7517, %v7509
        %v8286 = vpack.c.b16 %v7518, %v7510
        %v8287 = vpack.c.b16 %v7519, %v7511
        %v8288 = vpack.c.b16 %v7520, %v7512
        %v8289 = vpack.c.b16 %v7521, %v7513
        %v8290 = vpack.c.b16 %v7530, %v7522
        %v8291 = vpack.c.b16 %v7531, %v7523
        %v8292 = vpack.c.b16 %v7532, %v7524
        %v8293 = vpack.c.b16 %v7533, %v7525
        %v8294 = vpack.c.b16 %v7534, %v7526
        %v8295 = vpack.c.b16 %v7535, %v7527
        %v8296 = vpack.c.b16 %v7536, %v7528
        %v8297 = vpack.c.b16 %v7537, %v7529
        %v8298 = vpack.c.b16 %v7546, %v7538
        %v8299 = vpack.c.b16 %v7547, %v7539
        %v8300 = vpack.c.b16 %v7548, %v7540
        %v8301 = vpack.c.b16 %v7549, %v7541
        %v8302 = vpack.c.b16 %v7550, %v7542
        %v8303 = vpack.c.b16 %v7551, %v7543
        %v8304 = vpack.c.b16 %v7552, %v7544
        %v8305 = vpack.c.b16 %v7553, %v7545
        %v8306 = vpack.c.b16 %v7562, %v7554
        %v8307 = vpack.c.b16 %v7563, %v7555
        %v8308 = vpack.c.b16 %v7564, %v7556
        %v8309 = vpack.c.b16 %v7565, %v7557
        %v8310 = vpack.c.b16 %v7566, %v7558
        %v8311 = vpack.c.b16 %v7567, %v7559
        %v8312 = vpack.c.b16 %v7568, %v7560
        %v8313 = vpack.c.b16 %v7569, %v7561
        %v8314 = vpack.c.b16 %v7578, %v7570
        %v8315 = vpack.c.b16 %v7579, %v7571
        %v8316 = vpack.c.b16 %v7580, %v7572
        %v8317 = vpack.c.b16 %v7581, %v7573
        %v8318 = vpack.c.b16 %v7582, %v7574
        %v8319 = vpack.c.b16 %v7583, %v7575
        %v8320 = vpack.c.b16 %v7584, %v7576
        %v8321 = vpack.c.b16 %v7585, %v7577
        %v8322 = vpack.c.b16 %v7594, %v7586
        %v8323 = vpack.c.b16 %v7595, %v7587
        %v8324 = vpack.c.b16 %v7596, %v7588
        %v8325 = vpack.c.b16 %v7597, %v7589
        %v8326 = vpack.c.b16 %v7598, %v7590
        %v8327 = vpack.c.b16 %v7599, %v7591
        %v8328 = vpack.c.b16 %v7600, %v7592
        %v8329 = vpack.c.b16 %v7601, %v7593
        %v8330 = vpack.c.b16 %v7610, %v7602
        %v8331 = vpack.c.b16 %v7611, %v7603
        %v8332 = vpack.c.b16 %v7612, %v7604
        %v8333 = vpack.c.b16 %v7613, %v7605
        %v8334 = vpack.c.b16 %v7614, %v7606
        %v8335 = vpack.c.b16 %v7615, %v7607
        %v8336 = vpack.c.b16 %v7616, %v7608
        %v8337 = vpack.c.b16 %v7617, %v7609
        %v8338 = vpack.c.b16 %v7626, %v7618
        %v8339 = vpack.c.b16 %v7627, %v7619
        %v8340 = vpack.c.b16 %v7628, %v7620
        %v8341 = vpack.c.b16 %v7629, %v7621
        %v8342 = vpack.c.b16 %v7630, %v7622
        %v8343 = vpack.c.b16 %v7631, %v7623
        %v8344 = vpack.c.b16 %v7632, %v7624
        %v8345 = vpack.c.b16 %v7633, %v7625
        %v8346 = vpack.c.b16 %v7642, %v7634
        %v8347 = vpack.c.b16 %v7643, %v7635
        %v8348 = vpack.c.b16 %v7644, %v7636
        %v8349 = vpack.c.b16 %v7645, %v7637
        %v8350 = vpack.c.b16 %v7646, %v7638
        %v8351 = vpack.c.b16 %v7647, %v7639
        %v8352 = vpack.c.b16 %v7648, %v7640
        %v8353 = vpack.c.b16 %v7649, %v7641
        %v8354 = vpack.c.b16 %v7658, %v7650
        %v8355 = vpack.c.b16 %v7659, %v7651
        %v8356 = vpack.c.b16 %v7660, %v7652
        %v8357 = vpack.c.b16 %v7661, %v7653
        %v8358 = vpack.c.b16 %v7662, %v7654
        %v8359 = vpack.c.b16 %v7663, %v7655
        %v8360 = vpack.c.b16 %v7664, %v7656
        %v8361 = vpack.c.b16 %v7665, %v7657
        %v8362 = vpack.c.b16 %v7674, %v7666
        %v8363 = vpack.c.b16 %v7675, %v7667
        %v8364 = vpack.c.b16 %v7676, %v7668
        %v8365 = vpack.c.b16 %v7677, %v7669
        %v8366 = vpack.c.b16 %v7678, %v7670
        %v8367 = vpack.c.b16 %v7679, %v7671
        %v8368 = vpack.c.b16 %v7680, %v7672
        %v8369 = vpack.c.b16 %v7681, %v7673
        %v8370 = vpack.c.b16 %v7690, %v7682
        %v8371 = vpack.c.b16 %v7691, %v7683
        %v8372 = vpack.c.b16 %v7692, %v7684
        %v8373 = vpack.c.b16 %v7693, %v7685
        %v8374 = vpack.c.b16 %v7694, %v7686
        %v8375 = vpack.c.b16 %v7695, %v7687
        %v8376 = vpack.c.b16 %v7696, %v7688
        %v8377 = vpack.c.b16 %v7697, %v7689
        %v8378 = vpack.c.b16 %v7706, %v7698
        %v8379 = vpack.c.b16 %v7707, %v7699
        %v8380 = vpack.c.b16 %v7708, %v7700
        %v8381 = vpack.c.b16 %v7709, %v7701
        %v8382 = vpack.c.b16 %v7710, %v7702
        %v8383 = vpack.c.b16 %v7711, %v7703
        %v8384 = vpack.c.b16 %v7712, %v7704
        %v8385 = vpack.c.b16 %v7713, %v7705
        %v8386 = vpack.c.b16 %v7722, %v7714
        %v8387 = vpack.c.b16 %v7723, %v7715
        %v8388 = vpack.c.b16 %v7724, %v7716
        %v8389 = vpack.c.b16 %v7725, %v7717
        %v8390 = vpack.c.b16 %v7726, %v7718
        %v8391 = vpack.c.b16 %v7727, %v7719
        %v8392 = vpack.c.b16 %v7728, %v7720
        %v8393 = vpack.c.b16 %v7729, %v7721
        %v8394 = vpack.c.b16 %v7738, %v7730
        %v8395 = vpack.c.b16 %v7739, %v7731
        %v8396 = vpack.c.b16 %v7740, %v7732
        %v8397 = vpack.c.b16 %v7741, %v7733
        %v8398 = vpack.c.b16 %v7742, %v7734
        %v8399 = vpack.c.b16 %v7743, %v7735
        %v8400 = vpack.c.b16 %v7744, %v7736
        %v8401 = vpack.c.b16 %v7745, %v7737
        %v8402 = vpack.c.b16 %v7754, %v7746
        %v8403 = vpack.c.b16 %v7755, %v7747
        %v8404 = vpack.c.b16 %v7756, %v7748
        %v8405 = vpack.c.b16 %v7757, %v7749
        %v8406 = vpack.c.b16 %v7758, %v7750
        %v8407 = vpack.c.b16 %v7759, %v7751
        %v8408 = vpack.c.b16 %v7760, %v7752
        %v8409 = vpack.c.b16 %v7761, %v7753
        %v8410 = vpack.c.b16 %v7770, %v7762
        %v8411 = vpack.c.b16 %v7771, %v7763
        %v8412 = vpack.c.b16 %v7772, %v7764
        %v8413 = vpack.c.b16 %v7773, %v7765
        %v8414 = vpack.c.b16 %v7774, %v7766
        %v8415 = vpack.c.b16 %v7775, %v7767
        %v8416 = vpack.c.b16 %v7776, %v7768
        %v8417 = vpack.c.b16 %v7777, %v7769
        %v8418 = vpack.c.b16 %v7786, %v7778
        %v8419 = vpack.c.b16 %v7787, %v7779
        %v8420 = vpack.c.b16 %v7788, %v7780
        %v8421 = vpack.c.b16 %v7789, %v7781
        %v8422 = vpack.c.b16 %v7790, %v7782
        %v8423 = vpack.c.b16 %v7791, %v7783
        %v8424 = vpack.c.b16 %v7792, %v7784
        %v8425 = vpack.c.b16 %v7793, %v7785
        %v8426 = vpack.c.b16 %v7802, %v7794
        %v8427 = vpack.c.b16 %v7803, %v7795
        %v8428 = vpack.c.b16 %v7804, %v7796
        %v8429 = vpack.c.b16 %v7805, %v7797
        %v8430 = vpack.c.b16 %v7806, %v7798
        %v8431 = vpack.c.b16 %v7807, %v7799
        %v8432 = vpack.c.b16 %v7808, %v7800
        %v8433 = vpack.c.b16 %v7809, %v7801
        %v8434 = vpack.c.b16 %v7818, %v7810
        %v8435 = vpack.c.b16 %v7819, %v7811
        %v8436 = vpack.c.b16 %v7820, %v7812
        %v8437 = vpack.c.b16 %v7821, %v7813
        %v8438 = vpack.c.b16 %v7822, %v7814
        %v8439 = vpack.c.b16 %v7823, %v7815
        %v8440 = vpack.c.b16 %v7824, %v7816
        %v8441 = vpack.c.b16 %v7825, %v7817
        %v8442 = vpack.c.b16 %v7834, %v7826
        %v8443 = vpack.c.b16 %v7835, %v7827
        %v8444 = vpack.c.b16 %v7836, %v7828
        %v8445 = vpack.c.b16 %v7837, %v7829
        %v8446 = vpack.c.b16 %v7838, %v7830
        %v8447 = vpack.c.b16 %v7839, %v7831
        %v8448 = vpack.c.b16 %v7840, %v7832
        %v8449 = vpack.c.b16 %v7841, %v7833
        %v8450 = vpack.c.b16 %v7850, %v7842
        %v8451 = vpack.c.b16 %v7851, %v7843
        %v8452 = vpack.c.b16 %v7852, %v7844
        %v8453 = vpack.c.b16 %v7853, %v7845
        %v8454 = vpack.c.b16 %v7854, %v7846
        %v8455 = vpack.c.b16 %v7855, %v7847
        %v8456 = vpack.c.b16 %v7856, %v7848
        %v8457 = vpack.c.b16 %v7857, %v7849
        %v8458 = vpack.c.b16 %v7866, %v7858
        %v8459 = vpack.c.b16 %v7867, %v7859
        %v8460 = vpack.c.b16 %v7868, %v7860
        %v8461 = vpack.c.b16 %v7869, %v7861
        %v8462 = vpack.c.b16 %v7870, %v7862
        %v8463 = vpack.c.b16 %v7871, %v7863
        %v8464 = vpack.c.b16 %v7872, %v7864
        %v8465 = vpack.c.b16 %v7873, %v7865
        %v8466 = vpack.c.b16 %v7882, %v7874
        %v8467 = vpack.c.b16 %v7883, %v7875
        %v8468 = vpack.c.b16 %v7884, %v7876
        %v8469 = vpack.c.b16 %v7885, %v7877
        %v8470 = vpack.c.b16 %v7886, %v7878
        %v8471 = vpack.c.b16 %v7887, %v7879
        %v8472 = vpack.c.b16 %v7888, %v7880
        %v8473 = vpack.c.b16 %v7889, %v7881
        %v8474 = vpack.c.b16 %v7898, %v7890
        %v8475 = vpack.c.b16 %v7899, %v7891
        %v8476 = vpack.c.b16 %v7900, %v7892
        %v8477 = vpack.c.b16 %v7901, %v7893
        %v8478 = vpack.c.b16 %v7902, %v7894
        %v8479 = vpack.c.b16 %v7903, %v7895
        %v8480 = vpack.c.b16 %v7904, %v7896
        %v8481 = vpack.c.b16 %v7905, %v7897
        %v8482 = vpack.c.b16 %v7914, %v7906
        %v8483 = vpack.c.b16 %v7915, %v7907
        %v8484 = vpack.c.b16 %v7916, %v7908
        %v8485 = vpack.c.b16 %v7917, %v7909
        %v8486 = vpack.c.b16 %v7918, %v7910
        %v8487 = vpack.c.b16 %v7919, %v7911
        %v8488 = vpack.c.b16 %v7920, %v7912
        %v8489 = vpack.c.b16 %v7921, %v7913
        %v8490 = vpack.c.b16 %v7930, %v7922
        %v8491 = vpack.c.b16 %v7931, %v7923
        %v8492 = vpack.c.b16 %v7932, %v7924
        %v8493 = vpack.c.b16 %v7933, %v7925
        %v8494 = vpack.c.b16 %v7934, %v7926
        %v8495 = vpack.c.b16 %v7935, %v7927
        %v8496 = vpack.c.b16 %v7936, %v7928
        %v8497 = vpack.c.b16 %v7937, %v7929
        %v8498 = vpack.c.b16 %v7946, %v7938
        %v8499 = vpack.c.b16 %v7947, %v7939
        %v8500 = vpack.c.b16 %v7948, %v7940
        %v8501 = vpack.c.b16 %v7949, %v7941
        %v8502 = vpack.c.b16 %v7950, %v7942
        %v8503 = vpack.c.b16 %v7951, %v7943
        %v8504 = vpack.c.b16 %v7952, %v7944
        %v8505 = vpack.c.b16 %v7953, %v7945
        %v8506 = vpack.c.b16 %v7962, %v7954
        %v8507 = vpack.c.b16 %v7963, %v7955
        %v8508 = vpack.c.b16 %v7964, %v7956
        %v8509 = vpack.c.b16 %v7965, %v7957
        %v8510 = vpack.c.b16 %v7966, %v7958
        %v8511 = vpack.c.b16 %v7967, %v7959
        %v8512 = vpack.c.b16 %v7968, %v7960
        %v8513 = vpack.c.b16 %v7969, %v7961
        %v8514 = vpack.c.b16 %v7978, %v7970
        %v8515 = vpack.c.b16 %v7979, %v7971
        %v8516 = vpack.c.b16 %v7980, %v7972
        %v8517 = vpack.c.b16 %v7981, %v7973
        %v8518 = vpack.c.b16 %v7982, %v7974
        %v8519 = vpack.c.b16 %v7983, %v7975
        %v8520 = vpack.c.b16 %v7984, %v7976
        %v8521 = vpack.c.b16 %v7985, %v7977
        %v8522 = vpack.c.b16 %v7994, %v7986
        %v8523 = vpack.c.b16 %v7995, %v7987
        %v8524 = vpack.c.b16 %v7996, %v7988
        %v8525 = vpack.c.b16 %v7997, %v7989
        %v8526 = vpack.c.b16 %v7998, %v7990
        %v8527 = vpack.c.b16 %v7999, %v7991
        %v8528 = vpack.c.b16 %v8000, %v7992
        %v8529 = vpack.c.b16 %v8001, %v7993
        %v8530 = vpack.c.b16 %v8010, %v8002
        %v8531 = vpack.c.b16 %v8011, %v8003
        %v8532 = vpack.c.b16 %v8012, %v8004
        %v8533 = vpack.c.b16 %v8013, %v8005
        %v8534 = vpack.c.b16 %v8014, %v8006
        %v8535 = vpack.c.b16 %v8015, %v8007
        %v8536 = vpack.c.b16 %v8016, %v8008
        %v8537 = vpack.c.b16 %v8017, %v8009
        %v8538 = vpack.c.b16 %v8026, %v8018
        %v8539 = vpack.c.b16 %v8027, %v8019
        %v8540 = vpack.c.b16 %v8028, %v8020
        %v8541 = vpack.c.b16 %v8029, %v8021
        %v8542 = vpack.c.b16 %v8030, %v8022
        %v8543 = vpack.c.b16 %v8031, %v8023
        %v8544 = vpack.c.b16 %v8032, %v8024
        %v8545 = vpack.c.b16 %v8033, %v8025
        %9058 = vmatprep.subr.bf16.mxu0 %v8091
        %9059 = vmatpush1.bf16.msra.mxu0 %v8090
        %9060 = vmatprep.subr.bf16.mxu0 %v8083
        %9061 = vmatpush1.bf16.msra.mxu0 %v8082
        %9062 = vmatprep.subr.bf16.mxu0 %v8075
        %9063 = vmatpush1.bf16.msra.mxu0 %v8074
        %9064 = vmatprep.subr.bf16.mxu0 %v8067
        %9065 = vmatpush1.bf16.msra.mxu0 %v8066
        %9066 = vmatprep.subr.bf16.mxu0 %v8059
        %9067 = vmatpush1.bf16.msra.mxu0 %v8058
        %9068 = vmatprep.subr.bf16.mxu0 %v8051
        %9069 = vmatpush1.bf16.msra.mxu0 %v8050
        %9070 = vmatprep.subr.bf16.mxu0 %v8043
        %9071 = vmatpush1.bf16.msra.mxu0 %v8042
        %9072 = vmatprep.subr.bf16.mxu0 %v8035
        %9073 = vmatpush1.bf16.msra.mxu0 %v8034
        %9074 = vmatprep.subr.bf16.mxu0 %v8155
        %9075 = vmatpush2.bf16.msra.mxu0 %v8154
        %9076 = vmatprep.subr.bf16.mxu0 %v8147
        %9077 = vmatpush2.bf16.msra.mxu0 %v8146
        %9078 = vmatprep.subr.bf16.mxu0 %v8139
        %9079 = vmatpush2.bf16.msra.mxu0 %v8138
        %9080 = vmatprep.subr.bf16.mxu0 %v8131
        %9081 = vmatpush2.bf16.msra.mxu0 %v8130
        %9082 = vmatprep.subr.bf16.mxu0 %v8123
        %9083 = vmatpush2.bf16.msra.mxu0 %v8122
        %9084 = vmatprep.subr.bf16.mxu0 %v8115
        %9085 = vmatpush2.bf16.msra.mxu0 %v8114
        %9086 = vmatprep.subr.bf16.mxu0 %v8107
        %9087 = vmatpush2.bf16.msra.mxu0 %v8106
        %9088 = vmatprep.subr.bf16.mxu0 %v8099
        %9089 = vmatpush2.bf16.msra.mxu0 %v8098
        %9090 = vmatprep.mubr.bf16.mxu0 %v5881
        %9091 = vmatmul.mubr.bf16.gmra.mxu0 %v5880
        %v9092 = vpop.f32.mrf.mxu0
        %v9093 = vadd.f32 %v6461, %v9092
        %v9094 = vpop.f32.mrf.mxu0
        %v9095 = vadd.f32 %v6465, %v9094
        %v9096 = vpop.f32.mrf.mxu0
        %v9097 = vadd.f32 %v6461, %v9096
        %v9098 = vpop.f32.mrf.mxu0
        %v9099 = vadd.f32 %v6465, %v9098
        %9100 = vmatprep.mubr.bf16.mxu0 %v5889
        %9101 = vmatmul.mubr.bf16.gmra.mxu0 %v5888
        %v9102 = vpop.f32.mrf.mxu0
        %v9103 = vadd.f32 %v6461, %v9102
        %v9104 = vpop.f32.mrf.mxu0
        %v9105 = vadd.f32 %v6465, %v9104
        %v9106 = vpop.f32.mrf.mxu0
        %v9107 = vadd.f32 %v6461, %v9106
        %v9108 = vpop.f32.mrf.mxu0
        %v9109 = vadd.f32 %v6465, %v9108
        %9110 = vmatprep.mubr.bf16.mxu0 %v5897
        %9111 = vmatmul.mubr.bf16.gmra.mxu0 %v5896
        %v9112 = vpop.f32.mrf.mxu0
        %v9113 = vadd.f32 %v6461, %v9112
        %v9114 = vpop.f32.mrf.mxu0
        %v9115 = vadd.f32 %v6465, %v9114
        %v9116 = vpop.f32.mrf.mxu0
        %v9117 = vadd.f32 %v6461, %v9116
        %v9118 = vpop.f32.mrf.mxu0
        %v9119 = vadd.f32 %v6465, %v9118
        %9120 = vmatprep.mubr.bf16.mxu0 %v5905
        %9121 = vmatmul.mubr.bf16.gmra.mxu0 %v5904
        %v9122 = vpop.f32.mrf.mxu0
        %v9123 = vadd.f32 %v6461, %v9122
        %v9124 = vpop.f32.mrf.mxu0
        %v9125 = vadd.f32 %v6465, %v9124
        %v9126 = vpop.f32.mrf.mxu0
        %v9127 = vadd.f32 %v6461, %v9126
        %v9128 = vpop.f32.mrf.mxu0
        %v9129 = vadd.f32 %v6465, %v9128
        %9130 = vmatprep.mubr.bf16.mxu0 %v5913
        %9131 = vmatmul.mubr.bf16.gmra.mxu0 %v5912
        %v9132 = vpop.f32.mrf.mxu0
        %v9133 = vadd.f32 %v6461, %v9132
        %v9134 = vpop.f32.mrf.mxu0
        %v9135 = vadd.f32 %v6465, %v9134
        %v9136 = vpop.f32.mrf.mxu0
        %v9137 = vadd.f32 %v6461, %v9136
        %v9138 = vpop.f32.mrf.mxu0
        %v9139 = vadd.f32 %v6465, %v9138
        %9140 = vmatprep.mubr.bf16.mxu0 %v5921
        %9141 = vmatmul.mubr.bf16.gmra.mxu0 %v5920
        %v9142 = vpop.f32.mrf.mxu0
        %v9143 = vadd.f32 %v6461, %v9142
        %v9144 = vpop.f32.mrf.mxu0
        %v9145 = vadd.f32 %v6465, %v9144
        %v9146 = vpop.f32.mrf.mxu0
        %v9147 = vadd.f32 %v6461, %v9146
        %v9148 = vpop.f32.mrf.mxu0
        %v9149 = vadd.f32 %v6465, %v9148
        %9150 = vmatprep.mubr.bf16.mxu0 %v5929
        %9151 = vmatmul.mubr.bf16.gmra.mxu0 %v5928
        %v9152 = vpop.f32.mrf.mxu0
        %v9153 = vadd.f32 %v6461, %v9152
        %v9154 = vpop.f32.mrf.mxu0
        %v9155 = vadd.f32 %v6465, %v9154
        %v9156 = vpop.f32.mrf.mxu0
        %v9157 = vadd.f32 %v6461, %v9156
        %v9158 = vpop.f32.mrf.mxu0
        %v9159 = vadd.f32 %v6465, %v9158
        %9160 = vmatprep.mubr.bf16.mxu0 %v5937
        %9161 = vmatmul.mubr.bf16.gmra.mxu0 %v5936
        %v9162 = vpop.f32.mrf.mxu0
        %v9163 = vadd.f32 %v6461, %v9162
        %v9164 = vpop.f32.mrf.mxu0
        %v9165 = vadd.f32 %v6465, %v9164
        %v9166 = vpop.f32.mrf.mxu0
        %v9167 = vadd.f32 %v6461, %v9166
        %v9168 = vpop.f32.mrf.mxu0
        %v9169 = vadd.f32 %v6465, %v9168
        %9170 = vdwg.mxu0
        %9171 = vmatprep.subr.bf16.mxu0 %v8219
        %9172 = vmatpush1.bf16.msra.mxu0 %v8218
        %9173 = vmatprep.subr.bf16.mxu0 %v8211
        %9174 = vmatpush1.bf16.msra.mxu0 %v8210
        %9175 = vmatprep.subr.bf16.mxu0 %v8203
        %9176 = vmatpush1.bf16.msra.mxu0 %v8202
        %9177 = vmatprep.subr.bf16.mxu0 %v8195
        %9178 = vmatpush1.bf16.msra.mxu0 %v8194
        %9179 = vmatprep.subr.bf16.mxu0 %v8187
        %9180 = vmatpush1.bf16.msra.mxu0 %v8186
        %9181 = vmatprep.subr.bf16.mxu0 %v8179
        %9182 = vmatpush1.bf16.msra.mxu0 %v8178
        %9183 = vmatprep.subr.bf16.mxu0 %v8171
        %9184 = vmatpush1.bf16.msra.mxu0 %v8170
        %9185 = vmatprep.subr.bf16.mxu0 %v8163
        %9186 = vmatpush1.bf16.msra.mxu0 %v8162
        %9187 = vmatprep.subr.bf16.mxu0 %v8283
        %9188 = vmatpush2.bf16.msra.mxu0 %v8282
        %9189 = vmatprep.subr.bf16.mxu0 %v8275
        %9190 = vmatpush2.bf16.msra.mxu0 %v8274
        %9191 = vmatprep.subr.bf16.mxu0 %v8267
        %9192 = vmatpush2.bf16.msra.mxu0 %v8266
        %9193 = vmatprep.subr.bf16.mxu0 %v8259
        %9194 = vmatpush2.bf16.msra.mxu0 %v8258
        %9195 = vmatprep.subr.bf16.mxu0 %v8251
        %9196 = vmatpush2.bf16.msra.mxu0 %v8250
        %9197 = vmatprep.subr.bf16.mxu0 %v8243
        %9198 = vmatpush2.bf16.msra.mxu0 %v8242
        %9199 = vmatprep.subr.bf16.mxu0 %v8235
        %9200 = vmatpush2.bf16.msra.mxu0 %v8234
        %9201 = vmatprep.subr.bf16.mxu0 %v8227
        %9202 = vmatpush2.bf16.msra.mxu0 %v8226
        %9203 = vmatprep.mubr.bf16.mxu0 %v5883
        %9204 = vmatmul.mubr.bf16.gmra.mxu0 %v5882
        %v9205 = vpop.f32.mrf.mxu0
        %v9206 = vadd.f32 %v9093, %v9205
        %v9207 = vpop.f32.mrf.mxu0
        %v9208 = vadd.f32 %v9095, %v9207
        %v9209 = vpop.f32.mrf.mxu0
        %v9210 = vadd.f32 %v9097, %v9209
        %v9211 = vpop.f32.mrf.mxu0
        %v9212 = vadd.f32 %v9099, %v9211
        %9213 = vmatprep.mubr.bf16.mxu0 %v5891
        %9214 = vmatmul.mubr.bf16.gmra.mxu0 %v5890
        %v9215 = vpop.f32.mrf.mxu0
        %v9216 = vadd.f32 %v9103, %v9215
        %v9217 = vpop.f32.mrf.mxu0
        %v9218 = vadd.f32 %v9105, %v9217
        %v9219 = vpop.f32.mrf.mxu0
        %v9220 = vadd.f32 %v9107, %v9219
        %v9221 = vpop.f32.mrf.mxu0
        %v9222 = vadd.f32 %v9109, %v9221
        %9223 = vmatprep.mubr.bf16.mxu0 %v5899
        %9224 = vmatmul.mubr.bf16.gmra.mxu0 %v5898
        %v9225 = vpop.f32.mrf.mxu0
        %v9226 = vadd.f32 %v9113, %v9225
        %v9227 = vpop.f32.mrf.mxu0
        %v9228 = vadd.f32 %v9115, %v9227
        %v9229 = vpop.f32.mrf.mxu0
        %v9230 = vadd.f32 %v9117, %v9229
        %v9231 = vpop.f32.mrf.mxu0
        %v9232 = vadd.f32 %v9119, %v9231
        %9233 = vmatprep.mubr.bf16.mxu0 %v5907
        %9234 = vmatmul.mubr.bf16.gmra.mxu0 %v5906
        %v9235 = vpop.f32.mrf.mxu0
        %v9236 = vadd.f32 %v9123, %v9235
        %v9237 = vpop.f32.mrf.mxu0
        %v9238 = vadd.f32 %v9125, %v9237
        %v9239 = vpop.f32.mrf.mxu0
        %v9240 = vadd.f32 %v9127, %v9239
        %v9241 = vpop.f32.mrf.mxu0
        %v9242 = vadd.f32 %v9129, %v9241
        %9243 = vmatprep.mubr.bf16.mxu0 %v5915
        %9244 = vmatmul.mubr.bf16.gmra.mxu0 %v5914
        %v9245 = vpop.f32.mrf.mxu0
        %v9246 = vadd.f32 %v9133, %v9245
        %v9247 = vpop.f32.mrf.mxu0
        %v9248 = vadd.f32 %v9135, %v9247
        %v9249 = vpop.f32.mrf.mxu0
        %v9250 = vadd.f32 %v9137, %v9249
        %v9251 = vpop.f32.mrf.mxu0
        %v9252 = vadd.f32 %v9139, %v9251
        %9253 = vmatprep.mubr.bf16.mxu0 %v5923
        %9254 = vmatmul.mubr.bf16.gmra.mxu0 %v5922
        %v9255 = vpop.f32.mrf.mxu0
        %v9256 = vadd.f32 %v9143, %v9255
        %v9257 = vpop.f32.mrf.mxu0
        %v9258 = vadd.f32 %v9145, %v9257
        %v9259 = vpop.f32.mrf.mxu0
        %v9260 = vadd.f32 %v9147, %v9259
        %v9261 = vpop.f32.mrf.mxu0
        %v9262 = vadd.f32 %v9149, %v9261
        %9263 = vmatprep.mubr.bf16.mxu0 %v5931
        %9264 = vmatmul.mubr.bf16.gmra.mxu0 %v5930
        %v9265 = vpop.f32.mrf.mxu0
        %v9266 = vadd.f32 %v9153, %v9265
        %v9267 = vpop.f32.mrf.mxu0
        %v9268 = vadd.f32 %v9155, %v9267
        %v9269 = vpop.f32.mrf.mxu0
        %v9270 = vadd.f32 %v9157, %v9269
        %v9271 = vpop.f32.mrf.mxu0
        %v9272 = vadd.f32 %v9159, %v9271
        %9273 = vmatprep.mubr.bf16.mxu0 %v5939
        %9274 = vmatmul.mubr.bf16.gmra.mxu0 %v5938
        %v9275 = vpop.f32.mrf.mxu0
        %v9276 = vadd.f32 %v9163, %v9275
        %v9277 = vpop.f32.mrf.mxu0
        %v9278 = vadd.f32 %v9165, %v9277
        %v9279 = vpop.f32.mrf.mxu0
        %v9280 = vadd.f32 %v9167, %v9279
        %v9281 = vpop.f32.mrf.mxu0
        %v9282 = vadd.f32 %v9169, %v9281
        %9283 = vdwg.mxu0
        %9284 = vmatprep.subr.bf16.mxu0 %v8347
        %9285 = vmatpush1.bf16.msra.mxu0 %v8346
        %9286 = vmatprep.subr.bf16.mxu0 %v8339
        %9287 = vmatpush1.bf16.msra.mxu0 %v8338
        %9288 = vmatprep.subr.bf16.mxu0 %v8331
        %9289 = vmatpush1.bf16.msra.mxu0 %v8330
        %9290 = vmatprep.subr.bf16.mxu0 %v8323
        %9291 = vmatpush1.bf16.msra.mxu0 %v8322
        %9292 = vmatprep.subr.bf16.mxu0 %v8315
        %9293 = vmatpush1.bf16.msra.mxu0 %v8314
        %9294 = vmatprep.subr.bf16.mxu0 %v8307
        %9295 = vmatpush1.bf16.msra.mxu0 %v8306
        %9296 = vmatprep.subr.bf16.mxu0 %v8299
        %9297 = vmatpush1.bf16.msra.mxu0 %v8298
        %9298 = vmatprep.subr.bf16.mxu0 %v8291
        %9299 = vmatpush1.bf16.msra.mxu0 %v8290
        %9300 = vmatprep.subr.bf16.mxu0 %v8411
        %9301 = vmatpush2.bf16.msra.mxu0 %v8410
        %9302 = vmatprep.subr.bf16.mxu0 %v8403
        %9303 = vmatpush2.bf16.msra.mxu0 %v8402
        %9304 = vmatprep.subr.bf16.mxu0 %v8395
        %9305 = vmatpush2.bf16.msra.mxu0 %v8394
        %9306 = vmatprep.subr.bf16.mxu0 %v8387
        %9307 = vmatpush2.bf16.msra.mxu0 %v8386
        %9308 = vmatprep.subr.bf16.mxu0 %v8379
        %9309 = vmatpush2.bf16.msra.mxu0 %v8378
        %9310 = vmatprep.subr.bf16.mxu0 %v8371
        %9311 = vmatpush2.bf16.msra.mxu0 %v8370
        %9312 = vmatprep.subr.bf16.mxu0 %v8363
        %9313 = vmatpush2.bf16.msra.mxu0 %v8362
        %9314 = vmatprep.subr.bf16.mxu0 %v8355
        %9315 = vmatpush2.bf16.msra.mxu0 %v8354
        %9316 = vmatprep.mubr.bf16.mxu0 %v5885
        %9317 = vmatmul.mubr.bf16.gmra.mxu0 %v5884
        %v9318 = vpop.f32.mrf.mxu0
        %v9319 = vadd.f32 %v9206, %v9318
        %v9320 = vpop.f32.mrf.mxu0
        %v9321 = vadd.f32 %v9208, %v9320
        %v9322 = vpop.f32.mrf.mxu0
        %v9323 = vadd.f32 %v9210, %v9322
        %v9324 = vpop.f32.mrf.mxu0
        %v9325 = vadd.f32 %v9212, %v9324
        %9326 = vmatprep.mubr.bf16.mxu0 %v5893
        %9327 = vmatmul.mubr.bf16.gmra.mxu0 %v5892
        %v9328 = vpop.f32.mrf.mxu0
        %v9329 = vadd.f32 %v9216, %v9328
        %v9330 = vpop.f32.mrf.mxu0
        %v9331 = vadd.f32 %v9218, %v9330
        %v9332 = vpop.f32.mrf.mxu0
        %v9333 = vadd.f32 %v9220, %v9332
        %v9334 = vpop.f32.mrf.mxu0
        %v9335 = vadd.f32 %v9222, %v9334
        %9336 = vmatprep.mubr.bf16.mxu0 %v5901
        %9337 = vmatmul.mubr.bf16.gmra.mxu0 %v5900
        %v9338 = vpop.f32.mrf.mxu0
        %v9339 = vadd.f32 %v9226, %v9338
        %v9340 = vpop.f32.mrf.mxu0
        %v9341 = vadd.f32 %v9228, %v9340
        %v9342 = vpop.f32.mrf.mxu0
        %v9343 = vadd.f32 %v9230, %v9342
        %v9344 = vpop.f32.mrf.mxu0
        %v9345 = vadd.f32 %v9232, %v9344
        %9346 = vmatprep.mubr.bf16.mxu0 %v5909
        %9347 = vmatmul.mubr.bf16.gmra.mxu0 %v5908
        %v9348 = vpop.f32.mrf.mxu0
        %v9349 = vadd.f32 %v9236, %v9348
        %v9350 = vpop.f32.mrf.mxu0
        %v9351 = vadd.f32 %v9238, %v9350
        %v9352 = vpop.f32.mrf.mxu0
        %v9353 = vadd.f32 %v9240, %v9352
        %v9354 = vpop.f32.mrf.mxu0
        %v9355 = vadd.f32 %v9242, %v9354
        %9356 = vmatprep.mubr.bf16.mxu0 %v5917
        %9357 = vmatmul.mubr.bf16.gmra.mxu0 %v5916
        %v9358 = vpop.f32.mrf.mxu0
        %v9359 = vadd.f32 %v9246, %v9358
        %v9360 = vpop.f32.mrf.mxu0
        %v9361 = vadd.f32 %v9248, %v9360
        %v9362 = vpop.f32.mrf.mxu0
        %v9363 = vadd.f32 %v9250, %v9362
        %v9364 = vpop.f32.mrf.mxu0
        %v9365 = vadd.f32 %v9252, %v9364
        %9366 = vmatprep.mubr.bf16.mxu0 %v5925
        %9367 = vmatmul.mubr.bf16.gmra.mxu0 %v5924
        %v9368 = vpop.f32.mrf.mxu0
        %v9369 = vadd.f32 %v9256, %v9368
        %v9370 = vpop.f32.mrf.mxu0
        %v9371 = vadd.f32 %v9258, %v9370
        %v9372 = vpop.f32.mrf.mxu0
        %v9373 = vadd.f32 %v9260, %v9372
        %v9374 = vpop.f32.mrf.mxu0
        %v9375 = vadd.f32 %v9262, %v9374
        %9376 = vmatprep.mubr.bf16.mxu0 %v5933
        %9377 = vmatmul.mubr.bf16.gmra.mxu0 %v5932
        %v9378 = vpop.f32.mrf.mxu0
        %v9379 = vadd.f32 %v9266, %v9378
        %v9380 = vpop.f32.mrf.mxu0
        %v9381 = vadd.f32 %v9268, %v9380
        %v9382 = vpop.f32.mrf.mxu0
        %v9383 = vadd.f32 %v9270, %v9382
        %v9384 = vpop.f32.mrf.mxu0
        %v9385 = vadd.f32 %v9272, %v9384
        %9386 = vmatprep.mubr.bf16.mxu0 %v5941
        %9387 = vmatmul.mubr.bf16.gmra.mxu0 %v5940
        %v9388 = vpop.f32.mrf.mxu0
        %v9389 = vadd.f32 %v9276, %v9388
        %v9390 = vpop.f32.mrf.mxu0
        %v9391 = vadd.f32 %v9278, %v9390
        %v9392 = vpop.f32.mrf.mxu0
        %v9393 = vadd.f32 %v9280, %v9392
        %v9394 = vpop.f32.mrf.mxu0
        %v9395 = vadd.f32 %v9282, %v9394
        %9396 = vdwg.mxu0
        %9397 = vmatprep.subr.bf16.mxu0 %v8475
        %9398 = vmatpush1.bf16.msra.mxu0 %v8474
        %9399 = vmatprep.subr.bf16.mxu0 %v8467
        %9400 = vmatpush1.bf16.msra.mxu0 %v8466
        %9401 = vmatprep.subr.bf16.mxu0 %v8459
        %9402 = vmatpush1.bf16.msra.mxu0 %v8458
        %9403 = vmatprep.subr.bf16.mxu0 %v8451
        %9404 = vmatpush1.bf16.msra.mxu0 %v8450
        %9405 = vmatprep.subr.bf16.mxu0 %v8443
        %9406 = vmatpush1.bf16.msra.mxu0 %v8442
        %9407 = vmatprep.subr.bf16.mxu0 %v8435
        %9408 = vmatpush1.bf16.msra.mxu0 %v8434
        %9409 = vmatprep.subr.bf16.mxu0 %v8427
        %9410 = vmatpush1.bf16.msra.mxu0 %v8426
        %9411 = vmatprep.subr.bf16.mxu0 %v8419
        %9412 = vmatpush1.bf16.msra.mxu0 %v8418
        %9413 = vmatprep.subr.bf16.mxu0 %v8539
        %9414 = vmatpush2.bf16.msra.mxu0 %v8538
        %9415 = vmatprep.subr.bf16.mxu0 %v8531
        %9416 = vmatpush2.bf16.msra.mxu0 %v8530
        %9417 = vmatprep.subr.bf16.mxu0 %v8523
        %9418 = vmatpush2.bf16.msra.mxu0 %v8522
        %9419 = vmatprep.subr.bf16.mxu0 %v8515
        %9420 = vmatpush2.bf16.msra.mxu0 %v8514
        %9421 = vmatprep.subr.bf16.mxu0 %v8507
        %9422 = vmatpush2.bf16.msra.mxu0 %v8506
        %9423 = vmatprep.subr.bf16.mxu0 %v8499
        %9424 = vmatpush2.bf16.msra.mxu0 %v8498
        %9425 = vmatprep.subr.bf16.mxu0 %v8491
        %9426 = vmatpush2.bf16.msra.mxu0 %v8490
        %9427 = vmatprep.subr.bf16.mxu0 %v8483
        %9428 = vmatpush2.bf16.msra.mxu0 %v8482
        %9429 = vmatprep.mubr.bf16.mxu0 %v5887
        %9430 = vmatmul.mubr.bf16.gmra.mxu0 %v5886
        %v9431 = vpop.f32.mrf.mxu0
        %v9432 = vadd.f32 %v9319, %v9431
        %v9433 = vpop.f32.mrf.mxu0
        %v9434 = vadd.f32 %v9321, %v9433
        %v9435 = vpop.f32.mrf.mxu0
        %v9436 = vadd.f32 %v9323, %v9435
        %v9437 = vpop.f32.mrf.mxu0
        %v9438 = vadd.f32 %v9325, %v9437
        %9439 = vmatprep.mubr.bf16.mxu0 %v5895
        %9440 = vmatmul.mubr.bf16.gmra.mxu0 %v5894
        %v9441 = vpop.f32.mrf.mxu0
        %v9442 = vadd.f32 %v9329, %v9441
        %v9443 = vpop.f32.mrf.mxu0
        %v9444 = vadd.f32 %v9331, %v9443
        %v9445 = vpop.f32.mrf.mxu0
        %v9446 = vadd.f32 %v9333, %v9445
        %v9447 = vpop.f32.mrf.mxu0
        %v9448 = vadd.f32 %v9335, %v9447
        %9449 = vmatprep.mubr.bf16.mxu0 %v5903
        %9450 = vmatmul.mubr.bf16.gmra.mxu0 %v5902
        %v9451 = vpop.f32.mrf.mxu0
        %v9452 = vadd.f32 %v9339, %v9451
        %v9453 = vpop.f32.mrf.mxu0
        %v9454 = vadd.f32 %v9341, %v9453
        %v9455 = vpop.f32.mrf.mxu0
        %v9456 = vadd.f32 %v9343, %v9455
        %v9457 = vpop.f32.mrf.mxu0
        %v9458 = vadd.f32 %v9345, %v9457
        %9459 = vmatprep.mubr.bf16.mxu0 %v5911
        %9460 = vmatmul.mubr.bf16.gmra.mxu0 %v5910
        %v9461 = vpop.f32.mrf.mxu0
        %v9462 = vadd.f32 %v9349, %v9461
        %v9463 = vpop.f32.mrf.mxu0
        %v9464 = vadd.f32 %v9351, %v9463
        %v9465 = vpop.f32.mrf.mxu0
        %v9466 = vadd.f32 %v9353, %v9465
        %v9467 = vpop.f32.mrf.mxu0
        %v9468 = vadd.f32 %v9355, %v9467
        %9469 = vmatprep.mubr.bf16.mxu0 %v5919
        %9470 = vmatmul.mubr.bf16.gmra.mxu0 %v5918
        %v9471 = vpop.f32.mrf.mxu0
        %v9472 = vadd.f32 %v9359, %v9471
        %v9473 = vpop.f32.mrf.mxu0
        %v9474 = vadd.f32 %v9361, %v9473
        %v9475 = vpop.f32.mrf.mxu0
        %v9476 = vadd.f32 %v9363, %v9475
        %v9477 = vpop.f32.mrf.mxu0
        %v9478 = vadd.f32 %v9365, %v9477
        %9479 = vmatprep.mubr.bf16.mxu0 %v5927
        %9480 = vmatmul.mubr.bf16.gmra.mxu0 %v5926
        %v9481 = vpop.f32.mrf.mxu0
        %v9482 = vadd.f32 %v9369, %v9481
        %v9483 = vpop.f32.mrf.mxu0
        %v9484 = vadd.f32 %v9371, %v9483
        %v9485 = vpop.f32.mrf.mxu0
        %v9486 = vadd.f32 %v9373, %v9485
        %v9487 = vpop.f32.mrf.mxu0
        %v9488 = vadd.f32 %v9375, %v9487
        %9489 = vmatprep.mubr.bf16.mxu0 %v5935
        %9490 = vmatmul.mubr.bf16.gmra.mxu0 %v5934
        %v9491 = vpop.f32.mrf.mxu0
        %v9492 = vadd.f32 %v9379, %v9491
        %v9493 = vpop.f32.mrf.mxu0
        %v9494 = vadd.f32 %v9381, %v9493
        %v9495 = vpop.f32.mrf.mxu0
        %v9496 = vadd.f32 %v9383, %v9495
        %v9497 = vpop.f32.mrf.mxu0
        %v9498 = vadd.f32 %v9385, %v9497
        %9499 = vmatprep.mubr.bf16.mxu0 %v5943
        %9500 = vmatmul.mubr.bf16.gmra.mxu0 %v5942
        %v9501 = vpop.f32.mrf.mxu0
        %v9502 = vadd.f32 %v9389, %v9501
        %v9503 = vpop.f32.mrf.mxu0
        %v9504 = vadd.f32 %v9391, %v9503
        %v9505 = vpop.f32.mrf.mxu0
        %v9506 = vadd.f32 %v9393, %v9505
        %v9507 = vpop.f32.mrf.mxu0
        %v9508 = vadd.f32 %v9395, %v9507
        %9509 = vdwg.mxu0
        %9510 = vmatprep.subr.bf16.mxu0 %v8093
        %9511 = vmatpush1.bf16.msra.mxu0 %v8092
        %9512 = vmatprep.subr.bf16.mxu0 %v8085
        %9513 = vmatpush1.bf16.msra.mxu0 %v8084
        %9514 = vmatprep.subr.bf16.mxu0 %v8077
        %9515 = vmatpush1.bf16.msra.mxu0 %v8076
        %9516 = vmatprep.subr.bf16.mxu0 %v8069
        %9517 = vmatpush1.bf16.msra.mxu0 %v8068
        %9518 = vmatprep.subr.bf16.mxu0 %v8061
        %9519 = vmatpush1.bf16.msra.mxu0 %v8060
        %9520 = vmatprep.subr.bf16.mxu0 %v8053
        %9521 = vmatpush1.bf16.msra.mxu0 %v8052
        %9522 = vmatprep.subr.bf16.mxu0 %v8045
        %9523 = vmatpush1.bf16.msra.mxu0 %v8044
        %9524 = vmatprep.subr.bf16.mxu0 %v8037
        %9525 = vmatpush1.bf16.msra.mxu0 %v8036
        %9526 = vmatprep.subr.bf16.mxu0 %v8157
        %9527 = vmatpush2.bf16.msra.mxu0 %v8156
        %9528 = vmatprep.subr.bf16.mxu0 %v8149
        %9529 = vmatpush2.bf16.msra.mxu0 %v8148
        %9530 = vmatprep.subr.bf16.mxu0 %v8141
        %9531 = vmatpush2.bf16.msra.mxu0 %v8140
        %9532 = vmatprep.subr.bf16.mxu0 %v8133
        %9533 = vmatpush2.bf16.msra.mxu0 %v8132
        %9534 = vmatprep.subr.bf16.mxu0 %v8125
        %9535 = vmatpush2.bf16.msra.mxu0 %v8124
        %9536 = vmatprep.subr.bf16.mxu0 %v8117
        %9537 = vmatpush2.bf16.msra.mxu0 %v8116
        %9538 = vmatprep.subr.bf16.mxu0 %v8109
        %9539 = vmatpush2.bf16.msra.mxu0 %v8108
        %9540 = vmatprep.subr.bf16.mxu0 %v8101
        %9541 = vmatpush2.bf16.msra.mxu0 %v8100
        %9542 = vmatprep.mubr.bf16.mxu0 %v5881
        %9543 = vmatmul.mubr.bf16.gmra.mxu0 %v5880
        %v9544 = vpop.f32.mrf.mxu0
        %v9545 = vadd.f32 %v6469, %v9544
        %v9546 = vpop.f32.mrf.mxu0
        %v9547 = vadd.f32 %v6473, %v9546
        %v9548 = vpop.f32.mrf.mxu0
        %v9549 = vadd.f32 %v6469, %v9548
        %v9550 = vpop.f32.mrf.mxu0
        %v9551 = vadd.f32 %v6473, %v9550
        %9552 = vmatprep.mubr.bf16.mxu0 %v5889
        %9553 = vmatmul.mubr.bf16.gmra.mxu0 %v5888
        %v9554 = vpop.f32.mrf.mxu0
        %v9555 = vadd.f32 %v6469, %v9554
        %v9556 = vpop.f32.mrf.mxu0
        %v9557 = vadd.f32 %v6473, %v9556
        %v9558 = vpop.f32.mrf.mxu0
        %v9559 = vadd.f32 %v6469, %v9558
        %v9560 = vpop.f32.mrf.mxu0
        %v9561 = vadd.f32 %v6473, %v9560
        %9562 = vmatprep.mubr.bf16.mxu0 %v5897
        %9563 = vmatmul.mubr.bf16.gmra.mxu0 %v5896
        %v9564 = vpop.f32.mrf.mxu0
        %v9565 = vadd.f32 %v6469, %v9564
        %v9566 = vpop.f32.mrf.mxu0
        %v9567 = vadd.f32 %v6473, %v9566
        %v9568 = vpop.f32.mrf.mxu0
        %v9569 = vadd.f32 %v6469, %v9568
        %v9570 = vpop.f32.mrf.mxu0
        %v9571 = vadd.f32 %v6473, %v9570
        %9572 = vmatprep.mubr.bf16.mxu0 %v5905
        %9573 = vmatmul.mubr.bf16.gmra.mxu0 %v5904
        %v9574 = vpop.f32.mrf.mxu0
        %v9575 = vadd.f32 %v6469, %v9574
        %v9576 = vpop.f32.mrf.mxu0
        %v9577 = vadd.f32 %v6473, %v9576
        %v9578 = vpop.f32.mrf.mxu0
        %v9579 = vadd.f32 %v6469, %v9578
        %v9580 = vpop.f32.mrf.mxu0
        %v9581 = vadd.f32 %v6473, %v9580
        %9582 = vmatprep.mubr.bf16.mxu0 %v5913
        %9583 = vmatmul.mubr.bf16.gmra.mxu0 %v5912
        %v9584 = vpop.f32.mrf.mxu0
        %v9585 = vadd.f32 %v6469, %v9584
        %v9586 = vpop.f32.mrf.mxu0
        %v9587 = vadd.f32 %v6473, %v9586
        %v9588 = vpop.f32.mrf.mxu0
        %v9589 = vadd.f32 %v6469, %v9588
        %v9590 = vpop.f32.mrf.mxu0
        %v9591 = vadd.f32 %v6473, %v9590
        %9592 = vmatprep.mubr.bf16.mxu0 %v5921
        %9593 = vmatmul.mubr.bf16.gmra.mxu0 %v5920
        %v9594 = vpop.f32.mrf.mxu0
        %v9595 = vadd.f32 %v6469, %v9594
        %v9596 = vpop.f32.mrf.mxu0
        %v9597 = vadd.f32 %v6473, %v9596
        %v9598 = vpop.f32.mrf.mxu0
        %v9599 = vadd.f32 %v6469, %v9598
        %v9600 = vpop.f32.mrf.mxu0
        %v9601 = vadd.f32 %v6473, %v9600
        %9602 = vmatprep.mubr.bf16.mxu0 %v5929
        %9603 = vmatmul.mubr.bf16.gmra.mxu0 %v5928
        %v9604 = vpop.f32.mrf.mxu0
        %v9605 = vadd.f32 %v6469, %v9604
        %v9606 = vpop.f32.mrf.mxu0
        %v9607 = vadd.f32 %v6473, %v9606
        %v9608 = vpop.f32.mrf.mxu0
        %v9609 = vadd.f32 %v6469, %v9608
        %v9610 = vpop.f32.mrf.mxu0
        %v9611 = vadd.f32 %v6473, %v9610
        %9612 = vmatprep.mubr.bf16.mxu0 %v5937
        %9613 = vmatmul.mubr.bf16.gmra.mxu0 %v5936
        %v9614 = vpop.f32.mrf.mxu0
        %v9615 = vadd.f32 %v6469, %v9614
        %v9616 = vpop.f32.mrf.mxu0
        %v9617 = vadd.f32 %v6473, %v9616
        %v9618 = vpop.f32.mrf.mxu0
        %v9619 = vadd.f32 %v6469, %v9618
        %v9620 = vpop.f32.mrf.mxu0
        %v9621 = vadd.f32 %v6473, %v9620
        %9622 = vdwg.mxu0
        %9623 = vmatprep.subr.bf16.mxu0 %v8221
        %9624 = vmatpush1.bf16.msra.mxu0 %v8220
        %9625 = vmatprep.subr.bf16.mxu0 %v8213
        %9626 = vmatpush1.bf16.msra.mxu0 %v8212
        %9627 = vmatprep.subr.bf16.mxu0 %v8205
        %9628 = vmatpush1.bf16.msra.mxu0 %v8204
        %9629 = vmatprep.subr.bf16.mxu0 %v8197
        %9630 = vmatpush1.bf16.msra.mxu0 %v8196
        %9631 = vmatprep.subr.bf16.mxu0 %v8189
        %9632 = vmatpush1.bf16.msra.mxu0 %v8188
        %9633 = vmatprep.subr.bf16.mxu0 %v8181
        %9634 = vmatpush1.bf16.msra.mxu0 %v8180
        %9635 = vmatprep.subr.bf16.mxu0 %v8173
        %9636 = vmatpush1.bf16.msra.mxu0 %v8172
        %9637 = vmatprep.subr.bf16.mxu0 %v8165
        %9638 = vmatpush1.bf16.msra.mxu0 %v8164
        %9639 = vmatprep.subr.bf16.mxu0 %v8285
        %9640 = vmatpush2.bf16.msra.mxu0 %v8284
        %9641 = vmatprep.subr.bf16.mxu0 %v8277
        %9642 = vmatpush2.bf16.msra.mxu0 %v8276
        %9643 = vmatprep.subr.bf16.mxu0 %v8269
        %9644 = vmatpush2.bf16.msra.mxu0 %v8268
        %9645 = vmatprep.subr.bf16.mxu0 %v8261
        %9646 = vmatpush2.bf16.msra.mxu0 %v8260
        %9647 = vmatprep.subr.bf16.mxu0 %v8253
        %9648 = vmatpush2.bf16.msra.mxu0 %v8252
        %9649 = vmatprep.subr.bf16.mxu0 %v8245
        %9650 = vmatpush2.bf16.msra.mxu0 %v8244
        %9651 = vmatprep.subr.bf16.mxu0 %v8237
        %9652 = vmatpush2.bf16.msra.mxu0 %v8236
        %9653 = vmatprep.subr.bf16.mxu0 %v8229
        %9654 = vmatpush2.bf16.msra.mxu0 %v8228
        %9655 = vmatprep.mubr.bf16.mxu0 %v5883
        %9656 = vmatmul.mubr.bf16.gmra.mxu0 %v5882
        %v9657 = vpop.f32.mrf.mxu0
        %v9658 = vadd.f32 %v9545, %v9657
        %v9659 = vpop.f32.mrf.mxu0
        %v9660 = vadd.f32 %v9547, %v9659
        %v9661 = vpop.f32.mrf.mxu0
        %v9662 = vadd.f32 %v9549, %v9661
        %v9663 = vpop.f32.mrf.mxu0
        %v9664 = vadd.f32 %v9551, %v9663
        %9665 = vmatprep.mubr.bf16.mxu0 %v5891
        %9666 = vmatmul.mubr.bf16.gmra.mxu0 %v5890
        %v9667 = vpop.f32.mrf.mxu0
        %v9668 = vadd.f32 %v9555, %v9667
        %v9669 = vpop.f32.mrf.mxu0
        %v9670 = vadd.f32 %v9557, %v9669
        %v9671 = vpop.f32.mrf.mxu0
        %v9672 = vadd.f32 %v9559, %v9671
        %v9673 = vpop.f32.mrf.mxu0
        %v9674 = vadd.f32 %v9561, %v9673
        %9675 = vmatprep.mubr.bf16.mxu0 %v5899
        %9676 = vmatmul.mubr.bf16.gmra.mxu0 %v5898
        %v9677 = vpop.f32.mrf.mxu0
        %v9678 = vadd.f32 %v9565, %v9677
        %v9679 = vpop.f32.mrf.mxu0
        %v9680 = vadd.f32 %v9567, %v9679
        %v9681 = vpop.f32.mrf.mxu0
        %v9682 = vadd.f32 %v9569, %v9681
        %v9683 = vpop.f32.mrf.mxu0
        %v9684 = vadd.f32 %v9571, %v9683
        %9685 = vmatprep.mubr.bf16.mxu0 %v5907
        %9686 = vmatmul.mubr.bf16.gmra.mxu0 %v5906
        %v9687 = vpop.f32.mrf.mxu0
        %v9688 = vadd.f32 %v9575, %v9687
        %v9689 = vpop.f32.mrf.mxu0
        %v9690 = vadd.f32 %v9577, %v9689
        %v9691 = vpop.f32.mrf.mxu0
        %v9692 = vadd.f32 %v9579, %v9691
        %v9693 = vpop.f32.mrf.mxu0
        %v9694 = vadd.f32 %v9581, %v9693
        %9695 = vmatprep.mubr.bf16.mxu0 %v5915
        %9696 = vmatmul.mubr.bf16.gmra.mxu0 %v5914
        %v9697 = vpop.f32.mrf.mxu0
        %v9698 = vadd.f32 %v9585, %v9697
        %v9699 = vpop.f32.mrf.mxu0
        %v9700 = vadd.f32 %v9587, %v9699
        %v9701 = vpop.f32.mrf.mxu0
        %v9702 = vadd.f32 %v9589, %v9701
        %v9703 = vpop.f32.mrf.mxu0
        %v9704 = vadd.f32 %v9591, %v9703
        %9705 = vmatprep.mubr.bf16.mxu0 %v5923
        %9706 = vmatmul.mubr.bf16.gmra.mxu0 %v5922
        %v9707 = vpop.f32.mrf.mxu0
        %v9708 = vadd.f32 %v9595, %v9707
        %v9709 = vpop.f32.mrf.mxu0
        %v9710 = vadd.f32 %v9597, %v9709
        %v9711 = vpop.f32.mrf.mxu0
        %v9712 = vadd.f32 %v9599, %v9711
        %v9713 = vpop.f32.mrf.mxu0
        %v9714 = vadd.f32 %v9601, %v9713
        %9715 = vmatprep.mubr.bf16.mxu0 %v5931
        %9716 = vmatmul.mubr.bf16.gmra.mxu0 %v5930
        %v9717 = vpop.f32.mrf.mxu0
        %v9718 = vadd.f32 %v9605, %v9717
        %v9719 = vpop.f32.mrf.mxu0
        %v9720 = vadd.f32 %v9607, %v9719
        %v9721 = vpop.f32.mrf.mxu0
        %v9722 = vadd.f32 %v9609, %v9721
        %v9723 = vpop.f32.mrf.mxu0
        %v9724 = vadd.f32 %v9611, %v9723
        %9725 = vmatprep.mubr.bf16.mxu0 %v5939
        %9726 = vmatmul.mubr.bf16.gmra.mxu0 %v5938
        %v9727 = vpop.f32.mrf.mxu0
        %v9728 = vadd.f32 %v9615, %v9727
        %v9729 = vpop.f32.mrf.mxu0
        %v9730 = vadd.f32 %v9617, %v9729
        %v9731 = vpop.f32.mrf.mxu0
        %v9732 = vadd.f32 %v9619, %v9731
        %v9733 = vpop.f32.mrf.mxu0
        %v9734 = vadd.f32 %v9621, %v9733
        %9735 = vdwg.mxu0
        %9736 = vmatprep.subr.bf16.mxu0 %v8349
        %9737 = vmatpush1.bf16.msra.mxu0 %v8348
        %9738 = vmatprep.subr.bf16.mxu0 %v8341
        %9739 = vmatpush1.bf16.msra.mxu0 %v8340
        %9740 = vmatprep.subr.bf16.mxu0 %v8333
        %9741 = vmatpush1.bf16.msra.mxu0 %v8332
        %9742 = vmatprep.subr.bf16.mxu0 %v8325
        %9743 = vmatpush1.bf16.msra.mxu0 %v8324
        %9744 = vmatprep.subr.bf16.mxu0 %v8317
        %9745 = vmatpush1.bf16.msra.mxu0 %v8316
        %9746 = vmatprep.subr.bf16.mxu0 %v8309
        %9747 = vmatpush1.bf16.msra.mxu0 %v8308
        %9748 = vmatprep.subr.bf16.mxu0 %v8301
        %9749 = vmatpush1.bf16.msra.mxu0 %v8300
        %9750 = vmatprep.subr.bf16.mxu0 %v8293
        %9751 = vmatpush1.bf16.msra.mxu0 %v8292
        %9752 = vmatprep.subr.bf16.mxu0 %v8413
        %9753 = vmatpush2.bf16.msra.mxu0 %v8412
        %9754 = vmatprep.subr.bf16.mxu0 %v8405
        %9755 = vmatpush2.bf16.msra.mxu0 %v8404
        %9756 = vmatprep.subr.bf16.mxu0 %v8397
        %9757 = vmatpush2.bf16.msra.mxu0 %v8396
        %9758 = vmatprep.subr.bf16.mxu0 %v8389
        %9759 = vmatpush2.bf16.msra.mxu0 %v8388
        %9760 = vmatprep.subr.bf16.mxu0 %v8381
        %9761 = vmatpush2.bf16.msra.mxu0 %v8380
        %9762 = vmatprep.subr.bf16.mxu0 %v8373
        %9763 = vmatpush2.bf16.msra.mxu0 %v8372
        %9764 = vmatprep.subr.bf16.mxu0 %v8365
        %9765 = vmatpush2.bf16.msra.mxu0 %v8364
        %9766 = vmatprep.subr.bf16.mxu0 %v8357
        %9767 = vmatpush2.bf16.msra.mxu0 %v8356
        %9768 = vmatprep.mubr.bf16.mxu0 %v5885
        %9769 = vmatmul.mubr.bf16.gmra.mxu0 %v5884
        %v9770 = vpop.f32.mrf.mxu0
        %v9771 = vadd.f32 %v9658, %v9770
        %v9772 = vpop.f32.mrf.mxu0
        %v9773 = vadd.f32 %v9660, %v9772
        %v9774 = vpop.f32.mrf.mxu0
        %v9775 = vadd.f32 %v9662, %v9774
        %v9776 = vpop.f32.mrf.mxu0
        %v9777 = vadd.f32 %v9664, %v9776
        %9778 = vmatprep.mubr.bf16.mxu0 %v5893
        %9779 = vmatmul.mubr.bf16.gmra.mxu0 %v5892
        %v9780 = vpop.f32.mrf.mxu0
        %v9781 = vadd.f32 %v9668, %v9780
        %v9782 = vpop.f32.mrf.mxu0
        %v9783 = vadd.f32 %v9670, %v9782
        %v9784 = vpop.f32.mrf.mxu0
        %v9785 = vadd.f32 %v9672, %v9784
        %v9786 = vpop.f32.mrf.mxu0
        %v9787 = vadd.f32 %v9674, %v9786
        %9788 = vmatprep.mubr.bf16.mxu0 %v5901
        %9789 = vmatmul.mubr.bf16.gmra.mxu0 %v5900
        %v9790 = vpop.f32.mrf.mxu0
        %v9791 = vadd.f32 %v9678, %v9790
        %v9792 = vpop.f32.mrf.mxu0
        %v9793 = vadd.f32 %v9680, %v9792
        %v9794 = vpop.f32.mrf.mxu0
        %v9795 = vadd.f32 %v9682, %v9794
        %v9796 = vpop.f32.mrf.mxu0
        %v9797 = vadd.f32 %v9684, %v9796
        %9798 = vmatprep.mubr.bf16.mxu0 %v5909
        %9799 = vmatmul.mubr.bf16.gmra.mxu0 %v5908
        %v9800 = vpop.f32.mrf.mxu0
        %v9801 = vadd.f32 %v9688, %v9800
        %v9802 = vpop.f32.mrf.mxu0
        %v9803 = vadd.f32 %v9690, %v9802
        %v9804 = vpop.f32.mrf.mxu0
        %v9805 = vadd.f32 %v9692, %v9804
        %v9806 = vpop.f32.mrf.mxu0
        %v9807 = vadd.f32 %v9694, %v9806
        %9808 = vmatprep.mubr.bf16.mxu0 %v5917
        %9809 = vmatmul.mubr.bf16.gmra.mxu0 %v5916
        %v9810 = vpop.f32.mrf.mxu0
        %v9811 = vadd.f32 %v9698, %v9810
        %v9812 = vpop.f32.mrf.mxu0
        %v9813 = vadd.f32 %v9700, %v9812
        %v9814 = vpop.f32.mrf.mxu0
        %v9815 = vadd.f32 %v9702, %v9814
        %v9816 = vpop.f32.mrf.mxu0
        %v9817 = vadd.f32 %v9704, %v9816
        %9818 = vmatprep.mubr.bf16.mxu0 %v5925
        %9819 = vmatmul.mubr.bf16.gmra.mxu0 %v5924
        %v9820 = vpop.f32.mrf.mxu0
        %v9821 = vadd.f32 %v9708, %v9820
        %v9822 = vpop.f32.mrf.mxu0
        %v9823 = vadd.f32 %v9710, %v9822
        %v9824 = vpop.f32.mrf.mxu0
        %v9825 = vadd.f32 %v9712, %v9824
        %v9826 = vpop.f32.mrf.mxu0
        %v9827 = vadd.f32 %v9714, %v9826
        %9828 = vmatprep.mubr.bf16.mxu0 %v5933
        %9829 = vmatmul.mubr.bf16.gmra.mxu0 %v5932
        %v9830 = vpop.f32.mrf.mxu0
        %v9831 = vadd.f32 %v9718, %v9830
        %v9832 = vpop.f32.mrf.mxu0
        %v9833 = vadd.f32 %v9720, %v9832
        %v9834 = vpop.f32.mrf.mxu0
        %v9835 = vadd.f32 %v9722, %v9834
        %v9836 = vpop.f32.mrf.mxu0
        %v9837 = vadd.f32 %v9724, %v9836
        %9838 = vmatprep.mubr.bf16.mxu0 %v5941
        %9839 = vmatmul.mubr.bf16.gmra.mxu0 %v5940
        %v9840 = vpop.f32.mrf.mxu0
        %v9841 = vadd.f32 %v9728, %v9840
        %v9842 = vpop.f32.mrf.mxu0
        %v9843 = vadd.f32 %v9730, %v9842
        %v9844 = vpop.f32.mrf.mxu0
        %v9845 = vadd.f32 %v9732, %v9844
        %v9846 = vpop.f32.mrf.mxu0
        %v9847 = vadd.f32 %v9734, %v9846
        %9848 = vdwg.mxu0
        %9849 = vmatprep.subr.bf16.mxu0 %v8477
        %9850 = vmatpush1.bf16.msra.mxu0 %v8476
        %9851 = vmatprep.subr.bf16.mxu0 %v8469
        %9852 = vmatpush1.bf16.msra.mxu0 %v8468
        %9853 = vmatprep.subr.bf16.mxu0 %v8461
        %9854 = vmatpush1.bf16.msra.mxu0 %v8460
        %9855 = vmatprep.subr.bf16.mxu0 %v8453
        %9856 = vmatpush1.bf16.msra.mxu0 %v8452
        %9857 = vmatprep.subr.bf16.mxu0 %v8445
        %9858 = vmatpush1.bf16.msra.mxu0 %v8444
        %9859 = vmatprep.subr.bf16.mxu0 %v8437
        %9860 = vmatpush1.bf16.msra.mxu0 %v8436
        %9861 = vmatprep.subr.bf16.mxu0 %v8429
        %9862 = vmatpush1.bf16.msra.mxu0 %v8428
        %9863 = vmatprep.subr.bf16.mxu0 %v8421
        %9864 = vmatpush1.bf16.msra.mxu0 %v8420
        %9865 = vmatprep.subr.bf16.mxu0 %v8541
        %9866 = vmatpush2.bf16.msra.mxu0 %v8540
        %9867 = vmatprep.subr.bf16.mxu0 %v8533
        %9868 = vmatpush2.bf16.msra.mxu0 %v8532
        %9869 = vmatprep.subr.bf16.mxu0 %v8525
        %9870 = vmatpush2.bf16.msra.mxu0 %v8524
        %9871 = vmatprep.subr.bf16.mxu0 %v8517
        %9872 = vmatpush2.bf16.msra.mxu0 %v8516
        %9873 = vmatprep.subr.bf16.mxu0 %v8509
        %9874 = vmatpush2.bf16.msra.mxu0 %v8508
        %9875 = vmatprep.subr.bf16.mxu0 %v8501
        %9876 = vmatpush2.bf16.msra.mxu0 %v8500
        %9877 = vmatprep.subr.bf16.mxu0 %v8493
        %9878 = vmatpush2.bf16.msra.mxu0 %v8492
        %9879 = vmatprep.subr.bf16.mxu0 %v8485
        %9880 = vmatpush2.bf16.msra.mxu0 %v8484
        %9881 = vmatprep.mubr.bf16.mxu0 %v5887
        %9882 = vmatmul.mubr.bf16.gmra.mxu0 %v5886
        %v9883 = vpop.f32.mrf.mxu0
        %v9884 = vadd.f32 %v9771, %v9883
        %v9885 = vpop.f32.mrf.mxu0
        %v9886 = vadd.f32 %v9773, %v9885
        %v9887 = vpop.f32.mrf.mxu0
        %v9888 = vadd.f32 %v9775, %v9887
        %v9889 = vpop.f32.mrf.mxu0
        %v9890 = vadd.f32 %v9777, %v9889
        %9891 = vmatprep.mubr.bf16.mxu0 %v5895
        %9892 = vmatmul.mubr.bf16.gmra.mxu0 %v5894
        %v9893 = vpop.f32.mrf.mxu0
        %v9894 = vadd.f32 %v9781, %v9893
        %v9895 = vpop.f32.mrf.mxu0
        %v9896 = vadd.f32 %v9783, %v9895
        %v9897 = vpop.f32.mrf.mxu0
        %v9898 = vadd.f32 %v9785, %v9897
        %v9899 = vpop.f32.mrf.mxu0
        %v9900 = vadd.f32 %v9787, %v9899
        %9901 = vmatprep.mubr.bf16.mxu0 %v5903
        %9902 = vmatmul.mubr.bf16.gmra.mxu0 %v5902
        %v9903 = vpop.f32.mrf.mxu0
        %v9904 = vadd.f32 %v9791, %v9903
        %v9905 = vpop.f32.mrf.mxu0
        %v9906 = vadd.f32 %v9793, %v9905
        %v9907 = vpop.f32.mrf.mxu0
        %v9908 = vadd.f32 %v9795, %v9907
        %v9909 = vpop.f32.mrf.mxu0
        %v9910 = vadd.f32 %v9797, %v9909
        %9911 = vmatprep.mubr.bf16.mxu0 %v5911
        %9912 = vmatmul.mubr.bf16.gmra.mxu0 %v5910
        %v9913 = vpop.f32.mrf.mxu0
        %v9914 = vadd.f32 %v9801, %v9913
        %v9915 = vpop.f32.mrf.mxu0
        %v9916 = vadd.f32 %v9803, %v9915
        %v9917 = vpop.f32.mrf.mxu0
        %v9918 = vadd.f32 %v9805, %v9917
        %v9919 = vpop.f32.mrf.mxu0
        %v9920 = vadd.f32 %v9807, %v9919
        %9921 = vmatprep.mubr.bf16.mxu0 %v5919
        %9922 = vmatmul.mubr.bf16.gmra.mxu0 %v5918
        %v9923 = vpop.f32.mrf.mxu0
        %v9924 = vadd.f32 %v9811, %v9923
        %v9925 = vpop.f32.mrf.mxu0
        %v9926 = vadd.f32 %v9813, %v9925
        %v9927 = vpop.f32.mrf.mxu0
        %v9928 = vadd.f32 %v9815, %v9927
        %v9929 = vpop.f32.mrf.mxu0
        %v9930 = vadd.f32 %v9817, %v9929
        %9931 = vmatprep.mubr.bf16.mxu0 %v5927
        %9932 = vmatmul.mubr.bf16.gmra.mxu0 %v5926
        %v9933 = vpop.f32.mrf.mxu0
        %v9934 = vadd.f32 %v9821, %v9933
        %v9935 = vpop.f32.mrf.mxu0
        %v9936 = vadd.f32 %v9823, %v9935
        %v9937 = vpop.f32.mrf.mxu0
        %v9938 = vadd.f32 %v9825, %v9937
        %v9939 = vpop.f32.mrf.mxu0
        %v9940 = vadd.f32 %v9827, %v9939
        %9941 = vmatprep.mubr.bf16.mxu0 %v5935
        %9942 = vmatmul.mubr.bf16.gmra.mxu0 %v5934
        %v9943 = vpop.f32.mrf.mxu0
        %v9944 = vadd.f32 %v9831, %v9943
        %v9945 = vpop.f32.mrf.mxu0
        %v9946 = vadd.f32 %v9833, %v9945
        %v9947 = vpop.f32.mrf.mxu0
        %v9948 = vadd.f32 %v9835, %v9947
        %v9949 = vpop.f32.mrf.mxu0
        %v9950 = vadd.f32 %v9837, %v9949
        %9951 = vmatprep.mubr.bf16.mxu0 %v5943
        %9952 = vmatmul.mubr.bf16.gmra.mxu0 %v5942
        %v9953 = vpop.f32.mrf.mxu0
        %v9954 = vadd.f32 %v9841, %v9953
        %v9955 = vpop.f32.mrf.mxu0
        %v9956 = vadd.f32 %v9843, %v9955
        %v9957 = vpop.f32.mrf.mxu0
        %v9958 = vadd.f32 %v9845, %v9957
        %v9959 = vpop.f32.mrf.mxu0
        %v9960 = vadd.f32 %v9847, %v9959
        %9961 = vdwg.mxu0
        %9962 = vmatprep.subr.bf16.mxu0 %v8095
        %9963 = vmatpush1.bf16.msra.mxu0 %v8094
        %9964 = vmatprep.subr.bf16.mxu0 %v8087
        %9965 = vmatpush1.bf16.msra.mxu0 %v8086
        %9966 = vmatprep.subr.bf16.mxu0 %v8079
        %9967 = vmatpush1.bf16.msra.mxu0 %v8078
        %9968 = vmatprep.subr.bf16.mxu0 %v8071
        %9969 = vmatpush1.bf16.msra.mxu0 %v8070
        %9970 = vmatprep.subr.bf16.mxu0 %v8063
        %9971 = vmatpush1.bf16.msra.mxu0 %v8062
        %9972 = vmatprep.subr.bf16.mxu0 %v8055
        %9973 = vmatpush1.bf16.msra.mxu0 %v8054
        %9974 = vmatprep.subr.bf16.mxu0 %v8047
        %9975 = vmatpush1.bf16.msra.mxu0 %v8046
        %9976 = vmatprep.subr.bf16.mxu0 %v8039
        %9977 = vmatpush1.bf16.msra.mxu0 %v8038
        %9978 = vmatprep.subr.bf16.mxu0 %v8159
        %9979 = vmatpush2.bf16.msra.mxu0 %v8158
        %9980 = vmatprep.subr.bf16.mxu0 %v8151
        %9981 = vmatpush2.bf16.msra.mxu0 %v8150
        %9982 = vmatprep.subr.bf16.mxu0 %v8143
        %9983 = vmatpush2.bf16.msra.mxu0 %v8142
        %9984 = vmatprep.subr.bf16.mxu0 %v8135
        %9985 = vmatpush2.bf16.msra.mxu0 %v8134
        %9986 = vmatprep.subr.bf16.mxu0 %v8127
        %9987 = vmatpush2.bf16.msra.mxu0 %v8126
        %9988 = vmatprep.subr.bf16.mxu0 %v8119
        %9989 = vmatpush2.bf16.msra.mxu0 %v8118
        %9990 = vmatprep.subr.bf16.mxu0 %v8111
        %9991 = vmatpush2.bf16.msra.mxu0 %v8110
        %9992 = vmatprep.subr.bf16.mxu0 %v8103
        %9993 = vmatpush2.bf16.msra.mxu0 %v8102
        %9994 = vmatprep.mubr.bf16.mxu0 %v5881
        %9995 = vmatmul.mubr.bf16.gmra.mxu0 %v5880
        %v9996 = vpop.f32.mrf.mxu0
        %v9997 = vadd.f32 %v6477, %v9996
        %v9998 = vpop.f32.mrf.mxu0
        %v9999 = vadd.f32 %v6481, %v9998
        %v10000 = vpop.f32.mrf.mxu0
        %v10001 = vadd.f32 %v6477, %v10000
        %v10002 = vpop.f32.mrf.mxu0
        %v10003 = vadd.f32 %v6481, %v10002
        %10004 = vmatprep.mubr.bf16.mxu0 %v5889
        %10005 = vmatmul.mubr.bf16.gmra.mxu0 %v5888
        %v10006 = vpop.f32.mrf.mxu0
        %v10007 = vadd.f32 %v6477, %v10006
        %v10008 = vpop.f32.mrf.mxu0
        %v10009 = vadd.f32 %v6481, %v10008
        %v10010 = vpop.f32.mrf.mxu0
        %v10011 = vadd.f32 %v6477, %v10010
        %v10012 = vpop.f32.mrf.mxu0
        %v10013 = vadd.f32 %v6481, %v10012
        %10014 = vmatprep.mubr.bf16.mxu0 %v5897
        %10015 = vmatmul.mubr.bf16.gmra.mxu0 %v5896
        %v10016 = vpop.f32.mrf.mxu0
        %v10017 = vadd.f32 %v6477, %v10016
        %v10018 = vpop.f32.mrf.mxu0
        %v10019 = vadd.f32 %v6481, %v10018
        %v10020 = vpop.f32.mrf.mxu0
        %v10021 = vadd.f32 %v6477, %v10020
        %v10022 = vpop.f32.mrf.mxu0
        %v10023 = vadd.f32 %v6481, %v10022
        %10024 = vmatprep.mubr.bf16.mxu0 %v5905
        %10025 = vmatmul.mubr.bf16.gmra.mxu0 %v5904
        %v10026 = vpop.f32.mrf.mxu0
        %v10027 = vadd.f32 %v6477, %v10026
        %v10028 = vpop.f32.mrf.mxu0
        %v10029 = vadd.f32 %v6481, %v10028
        %v10030 = vpop.f32.mrf.mxu0
        %v10031 = vadd.f32 %v6477, %v10030
        %v10032 = vpop.f32.mrf.mxu0
        %v10033 = vadd.f32 %v6481, %v10032
        %10034 = vmatprep.mubr.bf16.mxu0 %v5913
        %10035 = vmatmul.mubr.bf16.gmra.mxu0 %v5912
        %v10036 = vpop.f32.mrf.mxu0
        %v10037 = vadd.f32 %v6477, %v10036
        %v10038 = vpop.f32.mrf.mxu0
        %v10039 = vadd.f32 %v6481, %v10038
        %v10040 = vpop.f32.mrf.mxu0
        %v10041 = vadd.f32 %v6477, %v10040
        %v10042 = vpop.f32.mrf.mxu0
        %v10043 = vadd.f32 %v6481, %v10042
        %10044 = vmatprep.mubr.bf16.mxu0 %v5921
        %10045 = vmatmul.mubr.bf16.gmra.mxu0 %v5920
        %v10046 = vpop.f32.mrf.mxu0
        %v10047 = vadd.f32 %v6477, %v10046
        %v10048 = vpop.f32.mrf.mxu0
        %v10049 = vadd.f32 %v6481, %v10048
        %v10050 = vpop.f32.mrf.mxu0
        %v10051 = vadd.f32 %v6477, %v10050
        %v10052 = vpop.f32.mrf.mxu0
        %v10053 = vadd.f32 %v6481, %v10052
        %10054 = vmatprep.mubr.bf16.mxu0 %v5929
        %10055 = vmatmul.mubr.bf16.gmra.mxu0 %v5928
        %v10056 = vpop.f32.mrf.mxu0
        %v10057 = vadd.f32 %v6477, %v10056
        %v10058 = vpop.f32.mrf.mxu0
        %v10059 = vadd.f32 %v6481, %v10058
        %v10060 = vpop.f32.mrf.mxu0
        %v10061 = vadd.f32 %v6477, %v10060
        %v10062 = vpop.f32.mrf.mxu0
        %v10063 = vadd.f32 %v6481, %v10062
        %10064 = vmatprep.mubr.bf16.mxu0 %v5937
        %10065 = vmatmul.mubr.bf16.gmra.mxu0 %v5936
        %v10066 = vpop.f32.mrf.mxu0
        %v10067 = vadd.f32 %v6477, %v10066
        %v10068 = vpop.f32.mrf.mxu0
        %v10069 = vadd.f32 %v6481, %v10068
        %v10070 = vpop.f32.mrf.mxu0
        %v10071 = vadd.f32 %v6477, %v10070
        %v10072 = vpop.f32.mrf.mxu0
        %v10073 = vadd.f32 %v6481, %v10072
        %10074 = vdwg.mxu0
        %10075 = vmatprep.subr.bf16.mxu0 %v8223
        %10076 = vmatpush1.bf16.msra.mxu0 %v8222
        %10077 = vmatprep.subr.bf16.mxu0 %v8215
        %10078 = vmatpush1.bf16.msra.mxu0 %v8214
        %10079 = vmatprep.subr.bf16.mxu0 %v8207
        %10080 = vmatpush1.bf16.msra.mxu0 %v8206
        %10081 = vmatprep.subr.bf16.mxu0 %v8199
        %10082 = vmatpush1.bf16.msra.mxu0 %v8198
        %10083 = vmatprep.subr.bf16.mxu0 %v8191
        %10084 = vmatpush1.bf16.msra.mxu0 %v8190
        %10085 = vmatprep.subr.bf16.mxu0 %v8183
        %10086 = vmatpush1.bf16.msra.mxu0 %v8182
        %10087 = vmatprep.subr.bf16.mxu0 %v8175
        %10088 = vmatpush1.bf16.msra.mxu0 %v8174
        %10089 = vmatprep.subr.bf16.mxu0 %v8167
        %10090 = vmatpush1.bf16.msra.mxu0 %v8166
        %10091 = vmatprep.subr.bf16.mxu0 %v8287
        %10092 = vmatpush2.bf16.msra.mxu0 %v8286
        %10093 = vmatprep.subr.bf16.mxu0 %v8279
        %10094 = vmatpush2.bf16.msra.mxu0 %v8278
        %10095 = vmatprep.subr.bf16.mxu0 %v8271
        %10096 = vmatpush2.bf16.msra.mxu0 %v8270
        %10097 = vmatprep.subr.bf16.mxu0 %v8263
        %10098 = vmatpush2.bf16.msra.mxu0 %v8262
        %10099 = vmatprep.subr.bf16.mxu0 %v8255
        %10100 = vmatpush2.bf16.msra.mxu0 %v8254
        %10101 = vmatprep.subr.bf16.mxu0 %v8247
        %10102 = vmatpush2.bf16.msra.mxu0 %v8246
        %10103 = vmatprep.subr.bf16.mxu0 %v8239
        %10104 = vmatpush2.bf16.msra.mxu0 %v8238
        %10105 = vmatprep.subr.bf16.mxu0 %v8231
        %10106 = vmatpush2.bf16.msra.mxu0 %v8230
        %10107 = vmatprep.mubr.bf16.mxu0 %v5883
        %10108 = vmatmul.mubr.bf16.gmra.mxu0 %v5882
        %v10109 = vpop.f32.mrf.mxu0
        %v10110 = vadd.f32 %v9997, %v10109
        %v10111 = vpop.f32.mrf.mxu0
        %v10112 = vadd.f32 %v9999, %v10111
        %v10113 = vpop.f32.mrf.mxu0
        %v10114 = vadd.f32 %v10001, %v10113
        %v10115 = vpop.f32.mrf.mxu0
        %v10116 = vadd.f32 %v10003, %v10115
        %10117 = vmatprep.mubr.bf16.mxu0 %v5891
        %10118 = vmatmul.mubr.bf16.gmra.mxu0 %v5890
        %v10119 = vpop.f32.mrf.mxu0
        %v10120 = vadd.f32 %v10007, %v10119
        %v10121 = vpop.f32.mrf.mxu0
        %v10122 = vadd.f32 %v10009, %v10121
        %v10123 = vpop.f32.mrf.mxu0
        %v10124 = vadd.f32 %v10011, %v10123
        %v10125 = vpop.f32.mrf.mxu0
        %v10126 = vadd.f32 %v10013, %v10125
        %10127 = vmatprep.mubr.bf16.mxu0 %v5899
        %10128 = vmatmul.mubr.bf16.gmra.mxu0 %v5898
        %v10129 = vpop.f32.mrf.mxu0
        %v10130 = vadd.f32 %v10017, %v10129
        %v10131 = vpop.f32.mrf.mxu0
        %v10132 = vadd.f32 %v10019, %v10131
        %v10133 = vpop.f32.mrf.mxu0
        %v10134 = vadd.f32 %v10021, %v10133
        %v10135 = vpop.f32.mrf.mxu0
        %v10136 = vadd.f32 %v10023, %v10135
        %10137 = vmatprep.mubr.bf16.mxu0 %v5907
        %10138 = vmatmul.mubr.bf16.gmra.mxu0 %v5906
        %v10139 = vpop.f32.mrf.mxu0
        %v10140 = vadd.f32 %v10027, %v10139
        %v10141 = vpop.f32.mrf.mxu0
        %v10142 = vadd.f32 %v10029, %v10141
        %v10143 = vpop.f32.mrf.mxu0
        %v10144 = vadd.f32 %v10031, %v10143
        %v10145 = vpop.f32.mrf.mxu0
        %v10146 = vadd.f32 %v10033, %v10145
        %10147 = vmatprep.mubr.bf16.mxu0 %v5915
        %10148 = vmatmul.mubr.bf16.gmra.mxu0 %v5914
        %v10149 = vpop.f32.mrf.mxu0
        %v10150 = vadd.f32 %v10037, %v10149
        %v10151 = vpop.f32.mrf.mxu0
        %v10152 = vadd.f32 %v10039, %v10151
        %v10153 = vpop.f32.mrf.mxu0
        %v10154 = vadd.f32 %v10041, %v10153
        %v10155 = vpop.f32.mrf.mxu0
        %v10156 = vadd.f32 %v10043, %v10155
        %10157 = vmatprep.mubr.bf16.mxu0 %v5923
        %10158 = vmatmul.mubr.bf16.gmra.mxu0 %v5922
        %v10159 = vpop.f32.mrf.mxu0
        %v10160 = vadd.f32 %v10047, %v10159
        %v10161 = vpop.f32.mrf.mxu0
        %v10162 = vadd.f32 %v10049, %v10161
        %v10163 = vpop.f32.mrf.mxu0
        %v10164 = vadd.f32 %v10051, %v10163
        %v10165 = vpop.f32.mrf.mxu0
        %v10166 = vadd.f32 %v10053, %v10165
        %10167 = vmatprep.mubr.bf16.mxu0 %v5931
        %10168 = vmatmul.mubr.bf16.gmra.mxu0 %v5930
        %v10169 = vpop.f32.mrf.mxu0
        %v10170 = vadd.f32 %v10057, %v10169
        %v10171 = vpop.f32.mrf.mxu0
        %v10172 = vadd.f32 %v10059, %v10171
        %v10173 = vpop.f32.mrf.mxu0
        %v10174 = vadd.f32 %v10061, %v10173
        %v10175 = vpop.f32.mrf.mxu0
        %v10176 = vadd.f32 %v10063, %v10175
        %10177 = vmatprep.mubr.bf16.mxu0 %v5939
        %10178 = vmatmul.mubr.bf16.gmra.mxu0 %v5938
        %v10179 = vpop.f32.mrf.mxu0
        %v10180 = vadd.f32 %v10067, %v10179
        %v10181 = vpop.f32.mrf.mxu0
        %v10182 = vadd.f32 %v10069, %v10181
        %v10183 = vpop.f32.mrf.mxu0
        %v10184 = vadd.f32 %v10071, %v10183
        %v10185 = vpop.f32.mrf.mxu0
        %v10186 = vadd.f32 %v10073, %v10185
        %10187 = vdwg.mxu0
        %10188 = vmatprep.subr.bf16.mxu0 %v8351
        %10189 = vmatpush1.bf16.msra.mxu0 %v8350
        %10190 = vmatprep.subr.bf16.mxu0 %v8343
        %10191 = vmatpush1.bf16.msra.mxu0 %v8342
        %10192 = vmatprep.subr.bf16.mxu0 %v8335
        %10193 = vmatpush1.bf16.msra.mxu0 %v8334
        %10194 = vmatprep.subr.bf16.mxu0 %v8327
        %10195 = vmatpush1.bf16.msra.mxu0 %v8326
        %10196 = vmatprep.subr.bf16.mxu0 %v8319
        %10197 = vmatpush1.bf16.msra.mxu0 %v8318
        %10198 = vmatprep.subr.bf16.mxu0 %v8311
        %10199 = vmatpush1.bf16.msra.mxu0 %v8310
        %10200 = vmatprep.subr.bf16.mxu0 %v8303
        %10201 = vmatpush1.bf16.msra.mxu0 %v8302
        %10202 = vmatprep.subr.bf16.mxu0 %v8295
        %10203 = vmatpush1.bf16.msra.mxu0 %v8294
        %10204 = vmatprep.subr.bf16.mxu0 %v8415
        %10205 = vmatpush2.bf16.msra.mxu0 %v8414
        %10206 = vmatprep.subr.bf16.mxu0 %v8407
        %10207 = vmatpush2.bf16.msra.mxu0 %v8406
        %10208 = vmatprep.subr.bf16.mxu0 %v8399
        %10209 = vmatpush2.bf16.msra.mxu0 %v8398
        %10210 = vmatprep.subr.bf16.mxu0 %v8391
        %10211 = vmatpush2.bf16.msra.mxu0 %v8390
        %10212 = vmatprep.subr.bf16.mxu0 %v8383
        %10213 = vmatpush2.bf16.msra.mxu0 %v8382
        %10214 = vmatprep.subr.bf16.mxu0 %v8375
        %10215 = vmatpush2.bf16.msra.mxu0 %v8374
        %10216 = vmatprep.subr.bf16.mxu0 %v8367
        %10217 = vmatpush2.bf16.msra.mxu0 %v8366
        %10218 = vmatprep.subr.bf16.mxu0 %v8359
        %10219 = vmatpush2.bf16.msra.mxu0 %v8358
        %10220 = vmatprep.mubr.bf16.mxu0 %v5885
        %10221 = vmatmul.mubr.bf16.gmra.mxu0 %v5884
        %v10222 = vpop.f32.mrf.mxu0
        %v10223 = vadd.f32 %v10110, %v10222
        %v10224 = vpop.f32.mrf.mxu0
        %v10225 = vadd.f32 %v10112, %v10224
        %v10226 = vpop.f32.mrf.mxu0
        %v10227 = vadd.f32 %v10114, %v10226
        %v10228 = vpop.f32.mrf.mxu0
        %v10229 = vadd.f32 %v10116, %v10228
        %10230 = vmatprep.mubr.bf16.mxu0 %v5893
        %10231 = vmatmul.mubr.bf16.gmra.mxu0 %v5892
        %v10232 = vpop.f32.mrf.mxu0
        %v10233 = vadd.f32 %v10120, %v10232
        %v10234 = vpop.f32.mrf.mxu0
        %v10235 = vadd.f32 %v10122, %v10234
        %v10236 = vpop.f32.mrf.mxu0
        %v10237 = vadd.f32 %v10124, %v10236
        %v10238 = vpop.f32.mrf.mxu0
        %v10239 = vadd.f32 %v10126, %v10238
        %10240 = vmatprep.mubr.bf16.mxu0 %v5901
        %10241 = vmatmul.mubr.bf16.gmra.mxu0 %v5900
        %v10242 = vpop.f32.mrf.mxu0
        %v10243 = vadd.f32 %v10130, %v10242
        %v10244 = vpop.f32.mrf.mxu0
        %v10245 = vadd.f32 %v10132, %v10244
        %v10246 = vpop.f32.mrf.mxu0
        %v10247 = vadd.f32 %v10134, %v10246
        %v10248 = vpop.f32.mrf.mxu0
        %v10249 = vadd.f32 %v10136, %v10248
        %10250 = vmatprep.mubr.bf16.mxu0 %v5909
        %10251 = vmatmul.mubr.bf16.gmra.mxu0 %v5908
        %v10252 = vpop.f32.mrf.mxu0
        %v10253 = vadd.f32 %v10140, %v10252
        %v10254 = vpop.f32.mrf.mxu0
        %v10255 = vadd.f32 %v10142, %v10254
        %v10256 = vpop.f32.mrf.mxu0
        %v10257 = vadd.f32 %v10144, %v10256
        %v10258 = vpop.f32.mrf.mxu0
        %v10259 = vadd.f32 %v10146, %v10258
        %10260 = vmatprep.mubr.bf16.mxu0 %v5917
        %10261 = vmatmul.mubr.bf16.gmra.mxu0 %v5916
        %v10262 = vpop.f32.mrf.mxu0
        %v10263 = vadd.f32 %v10150, %v10262
        %v10264 = vpop.f32.mrf.mxu0
        %v10265 = vadd.f32 %v10152, %v10264
        %v10266 = vpop.f32.mrf.mxu0
        %v10267 = vadd.f32 %v10154, %v10266
        %v10268 = vpop.f32.mrf.mxu0
        %v10269 = vadd.f32 %v10156, %v10268
        %10270 = vmatprep.mubr.bf16.mxu0 %v5925
        %10271 = vmatmul.mubr.bf16.gmra.mxu0 %v5924
        %v10272 = vpop.f32.mrf.mxu0
        %v10273 = vadd.f32 %v10160, %v10272
        %v10274 = vpop.f32.mrf.mxu0
        %v10275 = vadd.f32 %v10162, %v10274
        %v10276 = vpop.f32.mrf.mxu0
        %v10277 = vadd.f32 %v10164, %v10276
        %v10278 = vpop.f32.mrf.mxu0
        %v10279 = vadd.f32 %v10166, %v10278
        %10280 = vmatprep.mubr.bf16.mxu0 %v5933
        %10281 = vmatmul.mubr.bf16.gmra.mxu0 %v5932
        %v10282 = vpop.f32.mrf.mxu0
        %v10283 = vadd.f32 %v10170, %v10282
        %v10284 = vpop.f32.mrf.mxu0
        %v10285 = vadd.f32 %v10172, %v10284
        %v10286 = vpop.f32.mrf.mxu0
        %v10287 = vadd.f32 %v10174, %v10286
        %v10288 = vpop.f32.mrf.mxu0
        %v10289 = vadd.f32 %v10176, %v10288
        %10290 = vmatprep.mubr.bf16.mxu0 %v5941
        %10291 = vmatmul.mubr.bf16.gmra.mxu0 %v5940
        %v10292 = vpop.f32.mrf.mxu0
        %v10293 = vadd.f32 %v10180, %v10292
        %v10294 = vpop.f32.mrf.mxu0
        %v10295 = vadd.f32 %v10182, %v10294
        %v10296 = vpop.f32.mrf.mxu0
        %v10297 = vadd.f32 %v10184, %v10296
        %v10298 = vpop.f32.mrf.mxu0
        %v10299 = vadd.f32 %v10186, %v10298
        %10300 = vdwg.mxu0
        %10301 = vmatprep.subr.bf16.mxu0 %v8479
        %10302 = vmatpush1.bf16.msra.mxu0 %v8478
        %10303 = vmatprep.subr.bf16.mxu0 %v8471
        %10304 = vmatpush1.bf16.msra.mxu0 %v8470
        %10305 = vmatprep.subr.bf16.mxu0 %v8463
        %10306 = vmatpush1.bf16.msra.mxu0 %v8462
        %10307 = vmatprep.subr.bf16.mxu0 %v8455
        %10308 = vmatpush1.bf16.msra.mxu0 %v8454
        %10309 = vmatprep.subr.bf16.mxu0 %v8447
        %10310 = vmatpush1.bf16.msra.mxu0 %v8446
        %10311 = vmatprep.subr.bf16.mxu0 %v8439
        %10312 = vmatpush1.bf16.msra.mxu0 %v8438
        %10313 = vmatprep.subr.bf16.mxu0 %v8431
        %10314 = vmatpush1.bf16.msra.mxu0 %v8430
        %10315 = vmatprep.subr.bf16.mxu0 %v8423
        %10316 = vmatpush1.bf16.msra.mxu0 %v8422
        %10317 = vmatprep.subr.bf16.mxu0 %v8543
        %10318 = vmatpush2.bf16.msra.mxu0 %v8542
        %10319 = vmatprep.subr.bf16.mxu0 %v8535
        %10320 = vmatpush2.bf16.msra.mxu0 %v8534
        %10321 = vmatprep.subr.bf16.mxu0 %v8527
        %10322 = vmatpush2.bf16.msra.mxu0 %v8526
        %10323 = vmatprep.subr.bf16.mxu0 %v8519
        %10324 = vmatpush2.bf16.msra.mxu0 %v8518
        %10325 = vmatprep.subr.bf16.mxu0 %v8511
        %10326 = vmatpush2.bf16.msra.mxu0 %v8510
        %10327 = vmatprep.subr.bf16.mxu0 %v8503
        %10328 = vmatpush2.bf16.msra.mxu0 %v8502
        %10329 = vmatprep.subr.bf16.mxu0 %v8495
        %10330 = vmatpush2.bf16.msra.mxu0 %v8494
        %10331 = vmatprep.subr.bf16.mxu0 %v8487
        %10332 = vmatpush2.bf16.msra.mxu0 %v8486
        %10333 = vmatprep.mubr.bf16.mxu0 %v5887
        %10334 = vmatmul.mubr.bf16.gmra.mxu0 %v5886
        %v10335 = vpop.f32.mrf.mxu0
        %v10336 = vadd.f32 %v10223, %v10335
        %v10337 = vpop.f32.mrf.mxu0
        %v10338 = vadd.f32 %v10225, %v10337
        %v10339 = vpop.f32.mrf.mxu0
        %v10340 = vadd.f32 %v10227, %v10339
        %v10341 = vpop.f32.mrf.mxu0
        %v10342 = vadd.f32 %v10229, %v10341
        %10343 = vmatprep.mubr.bf16.mxu0 %v5895
        %10344 = vmatmul.mubr.bf16.gmra.mxu0 %v5894
        %v10345 = vpop.f32.mrf.mxu0
        %v10346 = vadd.f32 %v10233, %v10345
        %v10347 = vpop.f32.mrf.mxu0
        %v10348 = vadd.f32 %v10235, %v10347
        %v10349 = vpop.f32.mrf.mxu0
        %v10350 = vadd.f32 %v10237, %v10349
        %v10351 = vpop.f32.mrf.mxu0
        %v10352 = vadd.f32 %v10239, %v10351
        %10353 = vmatprep.mubr.bf16.mxu0 %v5903
        %10354 = vmatmul.mubr.bf16.gmra.mxu0 %v5902
        %v10355 = vpop.f32.mrf.mxu0
        %v10356 = vadd.f32 %v10243, %v10355
        %v10357 = vpop.f32.mrf.mxu0
        %v10358 = vadd.f32 %v10245, %v10357
        %v10359 = vpop.f32.mrf.mxu0
        %v10360 = vadd.f32 %v10247, %v10359
        %v10361 = vpop.f32.mrf.mxu0
        %v10362 = vadd.f32 %v10249, %v10361
        %10363 = vmatprep.mubr.bf16.mxu0 %v5911
        %10364 = vmatmul.mubr.bf16.gmra.mxu0 %v5910
        %v10365 = vpop.f32.mrf.mxu0
        %v10366 = vadd.f32 %v10253, %v10365
        %v10367 = vpop.f32.mrf.mxu0
        %v10368 = vadd.f32 %v10255, %v10367
        %v10369 = vpop.f32.mrf.mxu0
        %v10370 = vadd.f32 %v10257, %v10369
        %v10371 = vpop.f32.mrf.mxu0
        %v10372 = vadd.f32 %v10259, %v10371
        %10373 = vmatprep.mubr.bf16.mxu0 %v5919
        %10374 = vmatmul.mubr.bf16.gmra.mxu0 %v5918
        %v10375 = vpop.f32.mrf.mxu0
        %v10376 = vadd.f32 %v10263, %v10375
        %v10377 = vpop.f32.mrf.mxu0
        %v10378 = vadd.f32 %v10265, %v10377
        %v10379 = vpop.f32.mrf.mxu0
        %v10380 = vadd.f32 %v10267, %v10379
        %v10381 = vpop.f32.mrf.mxu0
        %v10382 = vadd.f32 %v10269, %v10381
        %10383 = vmatprep.mubr.bf16.mxu0 %v5927
        %10384 = vmatmul.mubr.bf16.gmra.mxu0 %v5926
        %v10385 = vpop.f32.mrf.mxu0
        %v10386 = vadd.f32 %v10273, %v10385
        %v10387 = vpop.f32.mrf.mxu0
        %v10388 = vadd.f32 %v10275, %v10387
        %v10389 = vpop.f32.mrf.mxu0
        %v10390 = vadd.f32 %v10277, %v10389
        %v10391 = vpop.f32.mrf.mxu0
        %v10392 = vadd.f32 %v10279, %v10391
        %10393 = vmatprep.mubr.bf16.mxu0 %v5935
        %10394 = vmatmul.mubr.bf16.gmra.mxu0 %v5934
        %v10395 = vpop.f32.mrf.mxu0
        %v10396 = vadd.f32 %v10283, %v10395
        %v10397 = vpop.f32.mrf.mxu0
        %v10398 = vadd.f32 %v10285, %v10397
        %v10399 = vpop.f32.mrf.mxu0
        %v10400 = vadd.f32 %v10287, %v10399
        %v10401 = vpop.f32.mrf.mxu0
        %v10402 = vadd.f32 %v10289, %v10401
        %10403 = vmatprep.mubr.bf16.mxu0 %v5943
        %10404 = vmatmul.mubr.bf16.gmra.mxu0 %v5942
        %v10405 = vpop.f32.mrf.mxu0
        %v10406 = vadd.f32 %v10293, %v10405
        %v10407 = vpop.f32.mrf.mxu0
        %v10408 = vadd.f32 %v10295, %v10407
        %v10409 = vpop.f32.mrf.mxu0
        %v10410 = vadd.f32 %v10297, %v10409
        %v10411 = vpop.f32.mrf.mxu0
        %v10412 = vadd.f32 %v10299, %v10411
        %10413 = vdwg.mxu0
        %10414 = vmatprep.subr.bf16.mxu0 %v8097
        %10415 = vmatpush1.bf16.msra.mxu0 %v8096
        %10416 = vmatprep.subr.bf16.mxu0 %v8089
        %10417 = vmatpush1.bf16.msra.mxu0 %v8088
        %10418 = vmatprep.subr.bf16.mxu0 %v8081
        %10419 = vmatpush1.bf16.msra.mxu0 %v8080
        %10420 = vmatprep.subr.bf16.mxu0 %v8073
        %10421 = vmatpush1.bf16.msra.mxu0 %v8072
        %10422 = vmatprep.subr.bf16.mxu0 %v8065
        %10423 = vmatpush1.bf16.msra.mxu0 %v8064
        %10424 = vmatprep.subr.bf16.mxu0 %v8057
        %10425 = vmatpush1.bf16.msra.mxu0 %v8056
        %10426 = vmatprep.subr.bf16.mxu0 %v8049
        %10427 = vmatpush1.bf16.msra.mxu0 %v8048
        %10428 = vmatprep.subr.bf16.mxu0 %v8041
        %10429 = vmatpush1.bf16.msra.mxu0 %v8040
        %10430 = vmatprep.subr.bf16.mxu0 %v8161
        %10431 = vmatpush2.bf16.msra.mxu0 %v8160
        %10432 = vmatprep.subr.bf16.mxu0 %v8153
        %10433 = vmatpush2.bf16.msra.mxu0 %v8152
        %10434 = vmatprep.subr.bf16.mxu0 %v8145
        %10435 = vmatpush2.bf16.msra.mxu0 %v8144
        %10436 = vmatprep.subr.bf16.mxu0 %v8137
        %10437 = vmatpush2.bf16.msra.mxu0 %v8136
        %10438 = vmatprep.subr.bf16.mxu0 %v8129
        %10439 = vmatpush2.bf16.msra.mxu0 %v8128
        %10440 = vmatprep.subr.bf16.mxu0 %v8121
        %10441 = vmatpush2.bf16.msra.mxu0 %v8120
        %10442 = vmatprep.subr.bf16.mxu0 %v8113
        %10443 = vmatpush2.bf16.msra.mxu0 %v8112
        %10444 = vmatprep.subr.bf16.mxu0 %v8105
        %10445 = vmatpush2.bf16.msra.mxu0 %v8104
        %10446 = vmatprep.mubr.bf16.mxu0 %v5881
        %10447 = vmatmul.mubr.bf16.gmra.mxu0 %v5880
        %v10448 = vpop.f32.mrf.mxu0
        %v10449 = vadd.f32 %v6485, %v10448
        %v10450 = vpop.f32.mrf.mxu0
        %v10451 = vadd.f32 %v6489, %v10450
        %v10452 = vpop.f32.mrf.mxu0
        %v10453 = vadd.f32 %v6485, %v10452
        %v10454 = vpop.f32.mrf.mxu0
        %v10455 = vadd.f32 %v6489, %v10454
        %10456 = vmatprep.mubr.bf16.mxu0 %v5889
        %10457 = vmatmul.mubr.bf16.gmra.mxu0 %v5888
        %v10458 = vpop.f32.mrf.mxu0
        %v10459 = vadd.f32 %v6485, %v10458
        %v10460 = vpop.f32.mrf.mxu0
        %v10461 = vadd.f32 %v6489, %v10460
        %v10462 = vpop.f32.mrf.mxu0
        %v10463 = vadd.f32 %v6485, %v10462
        %v10464 = vpop.f32.mrf.mxu0
        %v10465 = vadd.f32 %v6489, %v10464
        %10466 = vmatprep.mubr.bf16.mxu0 %v5897
        %10467 = vmatmul.mubr.bf16.gmra.mxu0 %v5896
        %v10468 = vpop.f32.mrf.mxu0
        %v10469 = vadd.f32 %v6485, %v10468
        %v10470 = vpop.f32.mrf.mxu0
        %v10471 = vadd.f32 %v6489, %v10470
        %v10472 = vpop.f32.mrf.mxu0
        %v10473 = vadd.f32 %v6485, %v10472
        %v10474 = vpop.f32.mrf.mxu0
        %v10475 = vadd.f32 %v6489, %v10474
        %10476 = vmatprep.mubr.bf16.mxu0 %v5905
        %10477 = vmatmul.mubr.bf16.gmra.mxu0 %v5904
        %v10478 = vpop.f32.mrf.mxu0
        %v10479 = vadd.f32 %v6485, %v10478
        %v10480 = vpop.f32.mrf.mxu0
        %v10481 = vadd.f32 %v6489, %v10480
        %v10482 = vpop.f32.mrf.mxu0
        %v10483 = vadd.f32 %v6485, %v10482
        %v10484 = vpop.f32.mrf.mxu0
        %v10485 = vadd.f32 %v6489, %v10484
        %10486 = vmatprep.mubr.bf16.mxu0 %v5913
        %10487 = vmatmul.mubr.bf16.gmra.mxu0 %v5912
        %v10488 = vpop.f32.mrf.mxu0
        %v10489 = vadd.f32 %v6485, %v10488
        %v10490 = vpop.f32.mrf.mxu0
        %v10491 = vadd.f32 %v6489, %v10490
        %v10492 = vpop.f32.mrf.mxu0
        %v10493 = vadd.f32 %v6485, %v10492
        %v10494 = vpop.f32.mrf.mxu0
        %v10495 = vadd.f32 %v6489, %v10494
        %10496 = vmatprep.mubr.bf16.mxu0 %v5921
        %10497 = vmatmul.mubr.bf16.gmra.mxu0 %v5920
        %v10498 = vpop.f32.mrf.mxu0
        %v10499 = vadd.f32 %v6485, %v10498
        %v10500 = vpop.f32.mrf.mxu0
        %v10501 = vadd.f32 %v6489, %v10500
        %v10502 = vpop.f32.mrf.mxu0
        %v10503 = vadd.f32 %v6485, %v10502
        %v10504 = vpop.f32.mrf.mxu0
        %v10505 = vadd.f32 %v6489, %v10504
        %10506 = vmatprep.mubr.bf16.mxu0 %v5929
        %10507 = vmatmul.mubr.bf16.gmra.mxu0 %v5928
        %v10508 = vpop.f32.mrf.mxu0
        %v10509 = vadd.f32 %v6485, %v10508
        %v10510 = vpop.f32.mrf.mxu0
        %v10511 = vadd.f32 %v6489, %v10510
        %v10512 = vpop.f32.mrf.mxu0
        %v10513 = vadd.f32 %v6485, %v10512
        %v10514 = vpop.f32.mrf.mxu0
        %v10515 = vadd.f32 %v6489, %v10514
        %10516 = vmatprep.mubr.bf16.mxu0 %v5937
        %10517 = vmatmul.mubr.bf16.gmra.mxu0 %v5936
        %v10518 = vpop.f32.mrf.mxu0
        %v10519 = vadd.f32 %v6485, %v10518
        %v10520 = vpop.f32.mrf.mxu0
        %v10521 = vadd.f32 %v6489, %v10520
        %v10522 = vpop.f32.mrf.mxu0
        %v10523 = vadd.f32 %v6485, %v10522
        %v10524 = vpop.f32.mrf.mxu0
        %v10525 = vadd.f32 %v6489, %v10524
        %10526 = vdwg.mxu0
        %10527 = vmatprep.subr.bf16.mxu0 %v8225
        %10528 = vmatpush1.bf16.msra.mxu0 %v8224
        %10529 = vmatprep.subr.bf16.mxu0 %v8217
        %10530 = vmatpush1.bf16.msra.mxu0 %v8216
        %10531 = vmatprep.subr.bf16.mxu0 %v8209
        %10532 = vmatpush1.bf16.msra.mxu0 %v8208
        %10533 = vmatprep.subr.bf16.mxu0 %v8201
        %10534 = vmatpush1.bf16.msra.mxu0 %v8200
        %10535 = vmatprep.subr.bf16.mxu0 %v8193
        %10536 = vmatpush1.bf16.msra.mxu0 %v8192
        %10537 = vmatprep.subr.bf16.mxu0 %v8185
        %10538 = vmatpush1.bf16.msra.mxu0 %v8184
        %10539 = vmatprep.subr.bf16.mxu0 %v8177
        %10540 = vmatpush1.bf16.msra.mxu0 %v8176
        %10541 = vmatprep.subr.bf16.mxu0 %v8169
        %10542 = vmatpush1.bf16.msra.mxu0 %v8168
        %10543 = vmatprep.subr.bf16.mxu0 %v8289
        %10544 = vmatpush2.bf16.msra.mxu0 %v8288
        %10545 = vmatprep.subr.bf16.mxu0 %v8281
        %10546 = vmatpush2.bf16.msra.mxu0 %v8280
        %10547 = vmatprep.subr.bf16.mxu0 %v8273
        %10548 = vmatpush2.bf16.msra.mxu0 %v8272
        %10549 = vmatprep.subr.bf16.mxu0 %v8265
        %10550 = vmatpush2.bf16.msra.mxu0 %v8264
        %10551 = vmatprep.subr.bf16.mxu0 %v8257
        %10552 = vmatpush2.bf16.msra.mxu0 %v8256
        %10553 = vmatprep.subr.bf16.mxu0 %v8249
        %10554 = vmatpush2.bf16.msra.mxu0 %v8248
        %10555 = vmatprep.subr.bf16.mxu0 %v8241
        %10556 = vmatpush2.bf16.msra.mxu0 %v8240
        %10557 = vmatprep.subr.bf16.mxu0 %v8233
        %10558 = vmatpush2.bf16.msra.mxu0 %v8232
        %10559 = vmatprep.mubr.bf16.mxu0 %v5883
        %10560 = vmatmul.mubr.bf16.gmra.mxu0 %v5882
        %v10561 = vpop.f32.mrf.mxu0
        %v10562 = vadd.f32 %v10449, %v10561
        %v10563 = vpop.f32.mrf.mxu0
        %v10564 = vadd.f32 %v10451, %v10563
        %v10565 = vpop.f32.mrf.mxu0
        %v10566 = vadd.f32 %v10453, %v10565
        %v10567 = vpop.f32.mrf.mxu0
        %v10568 = vadd.f32 %v10455, %v10567
        %10569 = vmatprep.mubr.bf16.mxu0 %v5891
        %10570 = vmatmul.mubr.bf16.gmra.mxu0 %v5890
        %v10571 = vpop.f32.mrf.mxu0
        %v10572 = vadd.f32 %v10459, %v10571
        %v10573 = vpop.f32.mrf.mxu0
        %v10574 = vadd.f32 %v10461, %v10573
        %v10575 = vpop.f32.mrf.mxu0
        %v10576 = vadd.f32 %v10463, %v10575
        %v10577 = vpop.f32.mrf.mxu0
        %v10578 = vadd.f32 %v10465, %v10577
        %10579 = vmatprep.mubr.bf16.mxu0 %v5899
        %10580 = vmatmul.mubr.bf16.gmra.mxu0 %v5898
        %v10581 = vpop.f32.mrf.mxu0
        %v10582 = vadd.f32 %v10469, %v10581
        %v10583 = vpop.f32.mrf.mxu0
        %v10584 = vadd.f32 %v10471, %v10583
        %v10585 = vpop.f32.mrf.mxu0
        %v10586 = vadd.f32 %v10473, %v10585
        %v10587 = vpop.f32.mrf.mxu0
        %v10588 = vadd.f32 %v10475, %v10587
        %10589 = vmatprep.mubr.bf16.mxu0 %v5907
        %10590 = vmatmul.mubr.bf16.gmra.mxu0 %v5906
        %v10591 = vpop.f32.mrf.mxu0
        %v10592 = vadd.f32 %v10479, %v10591
        %v10593 = vpop.f32.mrf.mxu0
        %v10594 = vadd.f32 %v10481, %v10593
        %v10595 = vpop.f32.mrf.mxu0
        %v10596 = vadd.f32 %v10483, %v10595
        %v10597 = vpop.f32.mrf.mxu0
        %v10598 = vadd.f32 %v10485, %v10597
        %10599 = vmatprep.mubr.bf16.mxu0 %v5915
        %10600 = vmatmul.mubr.bf16.gmra.mxu0 %v5914
        %v10601 = vpop.f32.mrf.mxu0
        %v10602 = vadd.f32 %v10489, %v10601
        %v10603 = vpop.f32.mrf.mxu0
        %v10604 = vadd.f32 %v10491, %v10603
        %v10605 = vpop.f32.mrf.mxu0
        %v10606 = vadd.f32 %v10493, %v10605
        %v10607 = vpop.f32.mrf.mxu0
        %v10608 = vadd.f32 %v10495, %v10607
        %10609 = vmatprep.mubr.bf16.mxu0 %v5923
        %10610 = vmatmul.mubr.bf16.gmra.mxu0 %v5922
        %v10611 = vpop.f32.mrf.mxu0
        %v10612 = vadd.f32 %v10499, %v10611
        %v10613 = vpop.f32.mrf.mxu0
        %v10614 = vadd.f32 %v10501, %v10613
        %v10615 = vpop.f32.mrf.mxu0
        %v10616 = vadd.f32 %v10503, %v10615
        %v10617 = vpop.f32.mrf.mxu0
        %v10618 = vadd.f32 %v10505, %v10617
        %10619 = vmatprep.mubr.bf16.mxu0 %v5931
        %10620 = vmatmul.mubr.bf16.gmra.mxu0 %v5930
        %v10621 = vpop.f32.mrf.mxu0
        %v10622 = vadd.f32 %v10509, %v10621
        %v10623 = vpop.f32.mrf.mxu0
        %v10624 = vadd.f32 %v10511, %v10623
        %v10625 = vpop.f32.mrf.mxu0
        %v10626 = vadd.f32 %v10513, %v10625
        %v10627 = vpop.f32.mrf.mxu0
        %v10628 = vadd.f32 %v10515, %v10627
        %10629 = vmatprep.mubr.bf16.mxu0 %v5939
        %10630 = vmatmul.mubr.bf16.gmra.mxu0 %v5938
        %v10631 = vpop.f32.mrf.mxu0
        %v10632 = vadd.f32 %v10519, %v10631
        %v10633 = vpop.f32.mrf.mxu0
        %v10634 = vadd.f32 %v10521, %v10633
        %v10635 = vpop.f32.mrf.mxu0
        %v10636 = vadd.f32 %v10523, %v10635
        %v10637 = vpop.f32.mrf.mxu0
        %v10638 = vadd.f32 %v10525, %v10637
        %10639 = vdwg.mxu0
        %10640 = vmatprep.subr.bf16.mxu0 %v8353
        %10641 = vmatpush1.bf16.msra.mxu0 %v8352
        %10642 = vmatprep.subr.bf16.mxu0 %v8345
        %10643 = vmatpush1.bf16.msra.mxu0 %v8344
        %10644 = vmatprep.subr.bf16.mxu0 %v8337
        %10645 = vmatpush1.bf16.msra.mxu0 %v8336
        %10646 = vmatprep.subr.bf16.mxu0 %v8329
        %10647 = vmatpush1.bf16.msra.mxu0 %v8328
        %10648 = vmatprep.subr.bf16.mxu0 %v8321
        %10649 = vmatpush1.bf16.msra.mxu0 %v8320
        %10650 = vmatprep.subr.bf16.mxu0 %v8313
        %10651 = vmatpush1.bf16.msra.mxu0 %v8312
        %10652 = vmatprep.subr.bf16.mxu0 %v8305
        %10653 = vmatpush1.bf16.msra.mxu0 %v8304
        %10654 = vmatprep.subr.bf16.mxu0 %v8297
        %10655 = vmatpush1.bf16.msra.mxu0 %v8296
        %10656 = vmatprep.subr.bf16.mxu0 %v8417
        %10657 = vmatpush2.bf16.msra.mxu0 %v8416
        %10658 = vmatprep.subr.bf16.mxu0 %v8409
        %10659 = vmatpush2.bf16.msra.mxu0 %v8408
        %10660 = vmatprep.subr.bf16.mxu0 %v8401
        %10661 = vmatpush2.bf16.msra.mxu0 %v8400
        %10662 = vmatprep.subr.bf16.mxu0 %v8393
        %10663 = vmatpush2.bf16.msra.mxu0 %v8392
        %10664 = vmatprep.subr.bf16.mxu0 %v8385
        %10665 = vmatpush2.bf16.msra.mxu0 %v8384
        %10666 = vmatprep.subr.bf16.mxu0 %v8377
        %10667 = vmatpush2.bf16.msra.mxu0 %v8376
        %10668 = vmatprep.subr.bf16.mxu0 %v8369
        %10669 = vmatpush2.bf16.msra.mxu0 %v8368
        %10670 = vmatprep.subr.bf16.mxu0 %v8361
        %10671 = vmatpush2.bf16.msra.mxu0 %v8360
        %10672 = vmatprep.mubr.bf16.mxu0 %v5885
        %10673 = vmatmul.mubr.bf16.gmra.mxu0 %v5884
        %v10674 = vpop.f32.mrf.mxu0
        %v10675 = vadd.f32 %v10562, %v10674
        %v10676 = vpop.f32.mrf.mxu0
        %v10677 = vadd.f32 %v10564, %v10676
        %v10678 = vpop.f32.mrf.mxu0
        %v10679 = vadd.f32 %v10566, %v10678
        %v10680 = vpop.f32.mrf.mxu0
        %v10681 = vadd.f32 %v10568, %v10680
        %10682 = vmatprep.mubr.bf16.mxu0 %v5893
        %10683 = vmatmul.mubr.bf16.gmra.mxu0 %v5892
        %v10684 = vpop.f32.mrf.mxu0
        %v10685 = vadd.f32 %v10572, %v10684
        %v10686 = vpop.f32.mrf.mxu0
        %v10687 = vadd.f32 %v10574, %v10686
        %v10688 = vpop.f32.mrf.mxu0
        %v10689 = vadd.f32 %v10576, %v10688
        %v10690 = vpop.f32.mrf.mxu0
        %v10691 = vadd.f32 %v10578, %v10690
        %10692 = vmatprep.mubr.bf16.mxu0 %v5901
        %10693 = vmatmul.mubr.bf16.gmra.mxu0 %v5900
        %v10694 = vpop.f32.mrf.mxu0
        %v10695 = vadd.f32 %v10582, %v10694
        %v10696 = vpop.f32.mrf.mxu0
        %v10697 = vadd.f32 %v10584, %v10696
        %v10698 = vpop.f32.mrf.mxu0
        %v10699 = vadd.f32 %v10586, %v10698
        %v10700 = vpop.f32.mrf.mxu0
        %v10701 = vadd.f32 %v10588, %v10700
        %10702 = vmatprep.mubr.bf16.mxu0 %v5909
        %10703 = vmatmul.mubr.bf16.gmra.mxu0 %v5908
        %v10704 = vpop.f32.mrf.mxu0
        %v10705 = vadd.f32 %v10592, %v10704
        %v10706 = vpop.f32.mrf.mxu0
        %v10707 = vadd.f32 %v10594, %v10706
        %v10708 = vpop.f32.mrf.mxu0
        %v10709 = vadd.f32 %v10596, %v10708
        %v10710 = vpop.f32.mrf.mxu0
        %v10711 = vadd.f32 %v10598, %v10710
        %10712 = vmatprep.mubr.bf16.mxu0 %v5917
        %10713 = vmatmul.mubr.bf16.gmra.mxu0 %v5916
        %v10714 = vpop.f32.mrf.mxu0
        %v10715 = vadd.f32 %v10602, %v10714
        %v10716 = vpop.f32.mrf.mxu0
        %v10717 = vadd.f32 %v10604, %v10716
        %v10718 = vpop.f32.mrf.mxu0
        %v10719 = vadd.f32 %v10606, %v10718
        %v10720 = vpop.f32.mrf.mxu0
        %v10721 = vadd.f32 %v10608, %v10720
        %10722 = vmatprep.mubr.bf16.mxu0 %v5925
        %10723 = vmatmul.mubr.bf16.gmra.mxu0 %v5924
        %v10724 = vpop.f32.mrf.mxu0
        %v10725 = vadd.f32 %v10612, %v10724
        %v10726 = vpop.f32.mrf.mxu0
        %v10727 = vadd.f32 %v10614, %v10726
        %v10728 = vpop.f32.mrf.mxu0
        %v10729 = vadd.f32 %v10616, %v10728
        %v10730 = vpop.f32.mrf.mxu0
        %v10731 = vadd.f32 %v10618, %v10730
        %10732 = vmatprep.mubr.bf16.mxu0 %v5933
        %10733 = vmatmul.mubr.bf16.gmra.mxu0 %v5932
        %v10734 = vpop.f32.mrf.mxu0
        %v10735 = vadd.f32 %v10622, %v10734
        %v10736 = vpop.f32.mrf.mxu0
        %v10737 = vadd.f32 %v10624, %v10736
        %v10738 = vpop.f32.mrf.mxu0
        %v10739 = vadd.f32 %v10626, %v10738
        %v10740 = vpop.f32.mrf.mxu0
        %v10741 = vadd.f32 %v10628, %v10740
        %10742 = vmatprep.mubr.bf16.mxu0 %v5941
        %10743 = vmatmul.mubr.bf16.gmra.mxu0 %v5940
        %v10744 = vpop.f32.mrf.mxu0
        %v10745 = vadd.f32 %v10632, %v10744
        %v10746 = vpop.f32.mrf.mxu0
        %v10747 = vadd.f32 %v10634, %v10746
        %v10748 = vpop.f32.mrf.mxu0
        %v10749 = vadd.f32 %v10636, %v10748
        %v10750 = vpop.f32.mrf.mxu0
        %v10751 = vadd.f32 %v10638, %v10750
        %10752 = vdwg.mxu0
        %10753 = vmatprep.subr.bf16.mxu0 %v8481
        %10754 = vmatpush1.bf16.msra.mxu0 %v8480
        %10755 = vmatprep.subr.bf16.mxu0 %v8473
        %10756 = vmatpush1.bf16.msra.mxu0 %v8472
        %10757 = vmatprep.subr.bf16.mxu0 %v8465
        %10758 = vmatpush1.bf16.msra.mxu0 %v8464
        %10759 = vmatprep.subr.bf16.mxu0 %v8457
        %10760 = vmatpush1.bf16.msra.mxu0 %v8456
        %10761 = vmatprep.subr.bf16.mxu0 %v8449
        %10762 = vmatpush1.bf16.msra.mxu0 %v8448
        %10763 = vmatprep.subr.bf16.mxu0 %v8441
        %10764 = vmatpush1.bf16.msra.mxu0 %v8440
        %10765 = vmatprep.subr.bf16.mxu0 %v8433
        %10766 = vmatpush1.bf16.msra.mxu0 %v8432
        %10767 = vmatprep.subr.bf16.mxu0 %v8425
        %10768 = vmatpush1.bf16.msra.mxu0 %v8424
        %10769 = vmatprep.subr.bf16.mxu0 %v8545
        %10770 = vmatpush2.bf16.msra.mxu0 %v8544
        %10771 = vmatprep.subr.bf16.mxu0 %v8537
        %10772 = vmatpush2.bf16.msra.mxu0 %v8536
        %10773 = vmatprep.subr.bf16.mxu0 %v8529
        %10774 = vmatpush2.bf16.msra.mxu0 %v8528
        %10775 = vmatprep.subr.bf16.mxu0 %v8521
        %10776 = vmatpush2.bf16.msra.mxu0 %v8520
        %10777 = vmatprep.subr.bf16.mxu0 %v8513
        %10778 = vmatpush2.bf16.msra.mxu0 %v8512
        %10779 = vmatprep.subr.bf16.mxu0 %v8505
        %10780 = vmatpush2.bf16.msra.mxu0 %v8504
        %10781 = vmatprep.subr.bf16.mxu0 %v8497
        %10782 = vmatpush2.bf16.msra.mxu0 %v8496
        %10783 = vmatprep.subr.bf16.mxu0 %v8489
        %10784 = vmatpush2.bf16.msra.mxu0 %v8488
        %10785 = vmatprep.mubr.bf16.mxu0 %v5887
        %10786 = vmatmul.mubr.bf16.gmra.mxu0 %v5886
        %v10787 = vpop.f32.mrf.mxu0
        %v10788 = vadd.f32 %v10675, %v10787
        %v10789 = vpop.f32.mrf.mxu0
        %v10790 = vadd.f32 %v10677, %v10789
        %v10791 = vpop.f32.mrf.mxu0
        %v10792 = vadd.f32 %v10679, %v10791
        %v10793 = vpop.f32.mrf.mxu0
        %v10794 = vadd.f32 %v10681, %v10793
        %10795 = vmatprep.mubr.bf16.mxu0 %v5895
        %10796 = vmatmul.mubr.bf16.gmra.mxu0 %v5894
        %v10797 = vpop.f32.mrf.mxu0
        %v10798 = vadd.f32 %v10685, %v10797
        %v10799 = vpop.f32.mrf.mxu0
        %v10800 = vadd.f32 %v10687, %v10799
        %v10801 = vpop.f32.mrf.mxu0
        %v10802 = vadd.f32 %v10689, %v10801
        %v10803 = vpop.f32.mrf.mxu0
        %v10804 = vadd.f32 %v10691, %v10803
        %10805 = vmatprep.mubr.bf16.mxu0 %v5903
        %10806 = vmatmul.mubr.bf16.gmra.mxu0 %v5902
        %v10807 = vpop.f32.mrf.mxu0
        %v10808 = vadd.f32 %v10695, %v10807
        %v10809 = vpop.f32.mrf.mxu0
        %v10810 = vadd.f32 %v10697, %v10809
        %v10811 = vpop.f32.mrf.mxu0
        %v10812 = vadd.f32 %v10699, %v10811
        %v10813 = vpop.f32.mrf.mxu0
        %v10814 = vadd.f32 %v10701, %v10813
        %10815 = vmatprep.mubr.bf16.mxu0 %v5911
        %10816 = vmatmul.mubr.bf16.gmra.mxu0 %v5910
        %v10817 = vpop.f32.mrf.mxu0
        %v10818 = vadd.f32 %v10705, %v10817
        %v10819 = vpop.f32.mrf.mxu0
        %v10820 = vadd.f32 %v10707, %v10819
        %v10821 = vpop.f32.mrf.mxu0
        %v10822 = vadd.f32 %v10709, %v10821
        %v10823 = vpop.f32.mrf.mxu0
        %v10824 = vadd.f32 %v10711, %v10823
        %10825 = vmatprep.mubr.bf16.mxu0 %v5919
        %10826 = vmatmul.mubr.bf16.gmra.mxu0 %v5918
        %v10827 = vpop.f32.mrf.mxu0
        %v10828 = vadd.f32 %v10715, %v10827
        %v10829 = vpop.f32.mrf.mxu0
        %v10830 = vadd.f32 %v10717, %v10829
        %v10831 = vpop.f32.mrf.mxu0
        %v10832 = vadd.f32 %v10719, %v10831
        %v10833 = vpop.f32.mrf.mxu0
        %v10834 = vadd.f32 %v10721, %v10833
        %10835 = vmatprep.mubr.bf16.mxu0 %v5927
        %10836 = vmatmul.mubr.bf16.gmra.mxu0 %v5926
        %v10837 = vpop.f32.mrf.mxu0
        %v10838 = vadd.f32 %v10725, %v10837
        %v10839 = vpop.f32.mrf.mxu0
        %v10840 = vadd.f32 %v10727, %v10839
        %v10841 = vpop.f32.mrf.mxu0
        %v10842 = vadd.f32 %v10729, %v10841
        %v10843 = vpop.f32.mrf.mxu0
        %v10844 = vadd.f32 %v10731, %v10843
        %10845 = vmatprep.mubr.bf16.mxu0 %v5935
        %10846 = vmatmul.mubr.bf16.gmra.mxu0 %v5934
        %v10847 = vpop.f32.mrf.mxu0
        %v10848 = vadd.f32 %v10735, %v10847
        %v10849 = vpop.f32.mrf.mxu0
        %v10850 = vadd.f32 %v10737, %v10849
        %v10851 = vpop.f32.mrf.mxu0
        %v10852 = vadd.f32 %v10739, %v10851
        %v10853 = vpop.f32.mrf.mxu0
        %v10854 = vadd.f32 %v10741, %v10853
        %10855 = vmatprep.mubr.bf16.mxu0 %v5943
        %10856 = vmatmul.mubr.bf16.gmra.mxu0 %v5942
        %v10857 = vpop.f32.mrf.mxu0
        %v10858 = vadd.f32 %v10745, %v10857
        %v10859 = vpop.f32.mrf.mxu0
        %v10860 = vadd.f32 %v10747, %v10859
        %v10861 = vpop.f32.mrf.mxu0
        %v10862 = vadd.f32 %v10749, %v10861
        %v10863 = vpop.f32.mrf.mxu0
        %v10864 = vadd.f32 %v10751, %v10863
        %10865 = vdwg.mxu0
        %vm10866 = vcmp.gt.f32.partialorder %v9432, 0.0
        %vm10867 = vcmp.gt.f32.partialorder %v9434, 0.0
        %vm10868 = vcmp.gt.f32.partialorder %v9884, 0.0
        %vm10869 = vcmp.gt.f32.partialorder %v9886, 0.0
        %vm10870 = vcmp.gt.f32.partialorder %v10336, 0.0
        %vm10871 = vcmp.gt.f32.partialorder %v10338, 0.0
        %vm10872 = vcmp.gt.f32.partialorder %v10788, 0.0
        %vm10873 = vcmp.gt.f32.partialorder %v10790, 0.0
        %vm10874 = vcmp.gt.f32.partialorder %v9436, 0.0
        %vm10875 = vcmp.gt.f32.partialorder %v9438, 0.0
        %vm10876 = vcmp.gt.f32.partialorder %v9888, 0.0
        %vm10877 = vcmp.gt.f32.partialorder %v9890, 0.0
        %vm10878 = vcmp.gt.f32.partialorder %v10340, 0.0
        %vm10879 = vcmp.gt.f32.partialorder %v10342, 0.0
        %vm10880 = vcmp.gt.f32.partialorder %v10792, 0.0
        %vm10881 = vcmp.gt.f32.partialorder %v10794, 0.0
        %vm10882 = vcmp.gt.f32.partialorder %v9442, 0.0
        %vm10883 = vcmp.gt.f32.partialorder %v9444, 0.0
        %vm10884 = vcmp.gt.f32.partialorder %v9894, 0.0
        %vm10885 = vcmp.gt.f32.partialorder %v9896, 0.0
        %vm10886 = vcmp.gt.f32.partialorder %v10346, 0.0
        %vm10887 = vcmp.gt.f32.partialorder %v10348, 0.0
        %vm10888 = vcmp.gt.f32.partialorder %v10798, 0.0
        %vm10889 = vcmp.gt.f32.partialorder %v10800, 0.0
        %vm10890 = vcmp.gt.f32.partialorder %v9446, 0.0
        %vm10891 = vcmp.gt.f32.partialorder %v9448, 0.0
        %vm10892 = vcmp.gt.f32.partialorder %v9898, 0.0
        %vm10893 = vcmp.gt.f32.partialorder %v9900, 0.0
        %vm10894 = vcmp.gt.f32.partialorder %v10350, 0.0
        %vm10895 = vcmp.gt.f32.partialorder %v10352, 0.0
        %vm10896 = vcmp.gt.f32.partialorder %v10802, 0.0
        %vm10897 = vcmp.gt.f32.partialorder %v10804, 0.0
        %vm10898 = vcmp.gt.f32.partialorder %v9452, 0.0
        %vm10899 = vcmp.gt.f32.partialorder %v9454, 0.0
        %vm10900 = vcmp.gt.f32.partialorder %v9904, 0.0
        %vm10901 = vcmp.gt.f32.partialorder %v9906, 0.0
        %vm10902 = vcmp.gt.f32.partialorder %v10356, 0.0
        %vm10903 = vcmp.gt.f32.partialorder %v10358, 0.0
        %vm10904 = vcmp.gt.f32.partialorder %v10808, 0.0
        %vm10905 = vcmp.gt.f32.partialorder %v10810, 0.0
        %vm10906 = vcmp.gt.f32.partialorder %v9456, 0.0
        %vm10907 = vcmp.gt.f32.partialorder %v9458, 0.0
        %vm10908 = vcmp.gt.f32.partialorder %v9908, 0.0
        %vm10909 = vcmp.gt.f32.partialorder %v9910, 0.0
        %vm10910 = vcmp.gt.f32.partialorder %v10360, 0.0
        %vm10911 = vcmp.gt.f32.partialorder %v10362, 0.0
        %vm10912 = vcmp.gt.f32.partialorder %v10812, 0.0
        %vm10913 = vcmp.gt.f32.partialorder %v10814, 0.0
        %vm10914 = vcmp.gt.f32.partialorder %v9462, 0.0
        %vm10915 = vcmp.gt.f32.partialorder %v9464, 0.0
        %vm10916 = vcmp.gt.f32.partialorder %v9914, 0.0
        %vm10917 = vcmp.gt.f32.partialorder %v9916, 0.0
        %vm10918 = vcmp.gt.f32.partialorder %v10366, 0.0
        %vm10919 = vcmp.gt.f32.partialorder %v10368, 0.0
        %vm10920 = vcmp.gt.f32.partialorder %v10818, 0.0
        %vm10921 = vcmp.gt.f32.partialorder %v10820, 0.0
        %vm10922 = vcmp.gt.f32.partialorder %v9466, 0.0
        %vm10923 = vcmp.gt.f32.partialorder %v9468, 0.0
        %vm10924 = vcmp.gt.f32.partialorder %v9918, 0.0
        %vm10925 = vcmp.gt.f32.partialorder %v9920, 0.0
        %vm10926 = vcmp.gt.f32.partialorder %v10370, 0.0
        %vm10927 = vcmp.gt.f32.partialorder %v10372, 0.0
        %vm10928 = vcmp.gt.f32.partialorder %v10822, 0.0
        %vm10929 = vcmp.gt.f32.partialorder %v10824, 0.0
        %vm10930 = vcmp.gt.f32.partialorder %v9472, 0.0
        %vm10931 = vcmp.gt.f32.partialorder %v9474, 0.0
        %vm10932 = vcmp.gt.f32.partialorder %v9924, 0.0
        %vm10933 = vcmp.gt.f32.partialorder %v9926, 0.0
        %vm10934 = vcmp.gt.f32.partialorder %v10376, 0.0
        %vm10935 = vcmp.gt.f32.partialorder %v10378, 0.0
        %vm10936 = vcmp.gt.f32.partialorder %v10828, 0.0
        %vm10937 = vcmp.gt.f32.partialorder %v10830, 0.0
        %vm10938 = vcmp.gt.f32.partialorder %v9476, 0.0
        %vm10939 = vcmp.gt.f32.partialorder %v9478, 0.0
        %vm10940 = vcmp.gt.f32.partialorder %v9928, 0.0
        %vm10941 = vcmp.gt.f32.partialorder %v9930, 0.0
        %vm10942 = vcmp.gt.f32.partialorder %v10380, 0.0
        %vm10943 = vcmp.gt.f32.partialorder %v10382, 0.0
        %vm10944 = vcmp.gt.f32.partialorder %v10832, 0.0
        %vm10945 = vcmp.gt.f32.partialorder %v10834, 0.0
        %vm10946 = vcmp.gt.f32.partialorder %v9482, 0.0
        %vm10947 = vcmp.gt.f32.partialorder %v9484, 0.0
        %vm10948 = vcmp.gt.f32.partialorder %v9934, 0.0
        %vm10949 = vcmp.gt.f32.partialorder %v9936, 0.0
        %vm10950 = vcmp.gt.f32.partialorder %v10386, 0.0
        %vm10951 = vcmp.gt.f32.partialorder %v10388, 0.0
        %vm10952 = vcmp.gt.f32.partialorder %v10838, 0.0
        %vm10953 = vcmp.gt.f32.partialorder %v10840, 0.0
        %vm10954 = vcmp.gt.f32.partialorder %v9486, 0.0
        %vm10955 = vcmp.gt.f32.partialorder %v9488, 0.0
        %vm10956 = vcmp.gt.f32.partialorder %v9938, 0.0
        %vm10957 = vcmp.gt.f32.partialorder %v9940, 0.0
        %vm10958 = vcmp.gt.f32.partialorder %v10390, 0.0
        %vm10959 = vcmp.gt.f32.partialorder %v10392, 0.0
        %vm10960 = vcmp.gt.f32.partialorder %v10842, 0.0
        %vm10961 = vcmp.gt.f32.partialorder %v10844, 0.0
        %vm10962 = vcmp.gt.f32.partialorder %v9492, 0.0
        %vm10963 = vcmp.gt.f32.partialorder %v9494, 0.0
        %vm10964 = vcmp.gt.f32.partialorder %v9944, 0.0
        %vm10965 = vcmp.gt.f32.partialorder %v9946, 0.0
        %vm10966 = vcmp.gt.f32.partialorder %v10396, 0.0
        %vm10967 = vcmp.gt.f32.partialorder %v10398, 0.0
        %vm10968 = vcmp.gt.f32.partialorder %v10848, 0.0
        %vm10969 = vcmp.gt.f32.partialorder %v10850, 0.0
        %vm10970 = vcmp.gt.f32.partialorder %v9496, 0.0
        %vm10971 = vcmp.gt.f32.partialorder %v9498, 0.0
        %vm10972 = vcmp.gt.f32.partialorder %v9948, 0.0
        %vm10973 = vcmp.gt.f32.partialorder %v9950, 0.0
        %vm10974 = vcmp.gt.f32.partialorder %v10400, 0.0
        %vm10975 = vcmp.gt.f32.partialorder %v10402, 0.0
        %vm10976 = vcmp.gt.f32.partialorder %v10852, 0.0
        %vm10977 = vcmp.gt.f32.partialorder %v10854, 0.0
        %vm10978 = vcmp.gt.f32.partialorder %v9502, 0.0
        %vm10979 = vcmp.gt.f32.partialorder %v9504, 0.0
        %vm10980 = vcmp.gt.f32.partialorder %v9954, 0.0
        %vm10981 = vcmp.gt.f32.partialorder %v9956, 0.0
        %vm10982 = vcmp.gt.f32.partialorder %v10406, 0.0
        %vm10983 = vcmp.gt.f32.partialorder %v10408, 0.0
        %vm10984 = vcmp.gt.f32.partialorder %v10858, 0.0
        %vm10985 = vcmp.gt.f32.partialorder %v10860, 0.0
        %vm10986 = vcmp.gt.f32.partialorder %v9506, 0.0
        %vm10987 = vcmp.gt.f32.partialorder %v9508, 0.0
        %vm10988 = vcmp.gt.f32.partialorder %v9958, 0.0
        %vm10989 = vcmp.gt.f32.partialorder %v9960, 0.0
        %vm10990 = vcmp.gt.f32.partialorder %v10410, 0.0
        %vm10991 = vcmp.gt.f32.partialorder %v10412, 0.0
        %vm10992 = vcmp.gt.f32.partialorder %v10862, 0.0
        %vm10993 = vcmp.gt.f32.partialorder %v10864, 0.0
        %v10994 = vmul.f32 %v9432, 0.1
        %v10995 = vmul.f32 %v9434, 0.1
        %v10996 = vmul.f32 %v9884, 0.1
        %v10997 = vmul.f32 %v9886, 0.1
        %v10998 = vmul.f32 %v10336, 0.1
        %v10999 = vmul.f32 %v10338, 0.1
        %v11000 = vmul.f32 %v10788, 0.1
        %v11001 = vmul.f32 %v10790, 0.1
        %v11002 = vmul.f32 %v9436, 0.1
        %v11003 = vmul.f32 %v9438, 0.1
        %v11004 = vmul.f32 %v9888, 0.1
        %v11005 = vmul.f32 %v9890, 0.1
        %v11006 = vmul.f32 %v10340, 0.1
        %v11007 = vmul.f32 %v10342, 0.1
        %v11008 = vmul.f32 %v10792, 0.1
        %v11009 = vmul.f32 %v10794, 0.1
        %v11010 = vmul.f32 %v9442, 0.1
        %v11011 = vmul.f32 %v9444, 0.1
        %v11012 = vmul.f32 %v9894, 0.1
        %v11013 = vmul.f32 %v9896, 0.1
        %v11014 = vmul.f32 %v10346, 0.1
        %v11015 = vmul.f32 %v10348, 0.1
        %v11016 = vmul.f32 %v10798, 0.1
        %v11017 = vmul.f32 %v10800, 0.1
        %v11018 = vmul.f32 %v9446, 0.1
        %v11019 = vmul.f32 %v9448, 0.1
        %v11020 = vmul.f32 %v9898, 0.1
        %v11021 = vmul.f32 %v9900, 0.1
        %v11022 = vmul.f32 %v10350, 0.1
        %v11023 = vmul.f32 %v10352, 0.1
        %v11024 = vmul.f32 %v10802, 0.1
        %v11025 = vmul.f32 %v10804, 0.1
        %v11026 = vmul.f32 %v9452, 0.1
        %v11027 = vmul.f32 %v9454, 0.1
        %v11028 = vmul.f32 %v9904, 0.1
        %v11029 = vmul.f32 %v9906, 0.1
        %v11030 = vmul.f32 %v10356, 0.1
        %v11031 = vmul.f32 %v10358, 0.1
        %v11032 = vmul.f32 %v10808, 0.1
        %v11033 = vmul.f32 %v10810, 0.1
        %v11034 = vmul.f32 %v9456, 0.1
        %v11035 = vmul.f32 %v9458, 0.1
        %v11036 = vmul.f32 %v9908, 0.1
        %v11037 = vmul.f32 %v9910, 0.1
        %v11038 = vmul.f32 %v10360, 0.1
        %v11039 = vmul.f32 %v10362, 0.1
        %v11040 = vmul.f32 %v10812, 0.1
        %v11041 = vmul.f32 %v10814, 0.1
        %v11042 = vmul.f32 %v9462, 0.1
        %v11043 = vmul.f32 %v9464, 0.1
        %v11044 = vmul.f32 %v9914, 0.1
        %v11045 = vmul.f32 %v9916, 0.1
        %v11046 = vmul.f32 %v10366, 0.1
        %v11047 = vmul.f32 %v10368, 0.1
        %v11048 = vmul.f32 %v10818, 0.1
        %v11049 = vmul.f32 %v10820, 0.1
        %v11050 = vmul.f32 %v9466, 0.1
        %v11051 = vmul.f32 %v9468, 0.1
        %v11052 = vmul.f32 %v9918, 0.1
        %v11053 = vmul.f32 %v9920, 0.1
        %v11054 = vmul.f32 %v10370, 0.1
        %v11055 = vmul.f32 %v10372, 0.1
        %v11056 = vmul.f32 %v10822, 0.1
        %v11057 = vmul.f32 %v10824, 0.1
        %v11058 = vmul.f32 %v9472, 0.1
        %v11059 = vmul.f32 %v9474, 0.1
        %v11060 = vmul.f32 %v9924, 0.1
        %v11061 = vmul.f32 %v9926, 0.1
        %v11062 = vmul.f32 %v10376, 0.1
        %v11063 = vmul.f32 %v10378, 0.1
        %v11064 = vmul.f32 %v10828, 0.1
        %v11065 = vmul.f32 %v10830, 0.1
        %v11066 = vmul.f32 %v9476, 0.1
        %v11067 = vmul.f32 %v9478, 0.1
        %v11068 = vmul.f32 %v9928, 0.1
        %v11069 = vmul.f32 %v9930, 0.1
        %v11070 = vmul.f32 %v10380, 0.1
        %v11071 = vmul.f32 %v10382, 0.1
        %v11072 = vmul.f32 %v10832, 0.1
        %v11073 = vmul.f32 %v10834, 0.1
        %v11074 = vmul.f32 %v9482, 0.1
        %v11075 = vmul.f32 %v9484, 0.1
        %v11076 = vmul.f32 %v9934, 0.1
        %v11077 = vmul.f32 %v9936, 0.1
        %v11078 = vmul.f32 %v10386, 0.1
        %v11079 = vmul.f32 %v10388, 0.1
        %v11080 = vmul.f32 %v10838, 0.1
        %v11081 = vmul.f32 %v10840, 0.1
        %v11082 = vmul.f32 %v9486, 0.1
        %v11083 = vmul.f32 %v9488, 0.1
        %v11084 = vmul.f32 %v9938, 0.1
        %v11085 = vmul.f32 %v9940, 0.1
        %v11086 = vmul.f32 %v10390, 0.1
        %v11087 = vmul.f32 %v10392, 0.1
        %v11088 = vmul.f32 %v10842, 0.1
        %v11089 = vmul.f32 %v10844, 0.1
        %v11090 = vmul.f32 %v9492, 0.1
        %v11091 = vmul.f32 %v9494, 0.1
        %v11092 = vmul.f32 %v9944, 0.1
        %v11093 = vmul.f32 %v9946, 0.1
        %v11094 = vmul.f32 %v10396, 0.1
        %v11095 = vmul.f32 %v10398, 0.1
        %v11096 = vmul.f32 %v10848, 0.1
        %v11097 = vmul.f32 %v10850, 0.1
        %v11098 = vmul.f32 %v9496, 0.1
        %v11099 = vmul.f32 %v9498, 0.1
        %v11100 = vmul.f32 %v9948, 0.1
        %v11101 = vmul.f32 %v9950, 0.1
        %v11102 = vmul.f32 %v10400, 0.1
        %v11103 = vmul.f32 %v10402, 0.1
        %v11104 = vmul.f32 %v10852, 0.1
        %v11105 = vmul.f32 %v10854, 0.1
        %v11106 = vmul.f32 %v9502, 0.1
        %v11107 = vmul.f32 %v9504, 0.1
        %v11108 = vmul.f32 %v9954, 0.1
        %v11109 = vmul.f32 %v9956, 0.1
        %v11110 = vmul.f32 %v10406, 0.1
        %v11111 = vmul.f32 %v10408, 0.1
        %v11112 = vmul.f32 %v10858, 0.1
        %v11113 = vmul.f32 %v10860, 0.1
        %v11114 = vmul.f32 %v9506, 0.1
        %v11115 = vmul.f32 %v9508, 0.1
        %v11116 = vmul.f32 %v9958, 0.1
        %v11117 = vmul.f32 %v9960, 0.1
        %v11118 = vmul.f32 %v10410, 0.1
        %v11119 = vmul.f32 %v10412, 0.1
        %v11120 = vmul.f32 %v10862, 0.1
        %v11121 = vmul.f32 %v10864, 0.1
        %v11122 = vsel %vm10866, %v9432, %v10994
        %v11123 = vsel %vm10867, %v9434, %v10995
        %v11124 = vsel %vm10868, %v9884, %v10996
        %v11125 = vsel %vm10869, %v9886, %v10997
        %v11126 = vsel %vm10870, %v10336, %v10998
        %v11127 = vsel %vm10871, %v10338, %v10999
        %v11128 = vsel %vm10872, %v10788, %v11000
        %v11129 = vsel %vm10873, %v10790, %v11001
        %v11130 = vsel %vm10874, %v9436, %v11002
        %v11131 = vsel %vm10875, %v9438, %v11003
        %v11132 = vsel %vm10876, %v9888, %v11004
        %v11133 = vsel %vm10877, %v9890, %v11005
        %v11134 = vsel %vm10878, %v10340, %v11006
        %v11135 = vsel %vm10879, %v10342, %v11007
        %v11136 = vsel %vm10880, %v10792, %v11008
        %v11137 = vsel %vm10881, %v10794, %v11009
        %v11138 = vsel %vm10882, %v9442, %v11010
        %v11139 = vsel %vm10883, %v9444, %v11011
        %v11140 = vsel %vm10884, %v9894, %v11012
        %v11141 = vsel %vm10885, %v9896, %v11013
        %v11142 = vsel %vm10886, %v10346, %v11014
        %v11143 = vsel %vm10887, %v10348, %v11015
        %v11144 = vsel %vm10888, %v10798, %v11016
        %v11145 = vsel %vm10889, %v10800, %v11017
        %v11146 = vsel %vm10890, %v9446, %v11018
        %v11147 = vsel %vm10891, %v9448, %v11019
        %v11148 = vsel %vm10892, %v9898, %v11020
        %v11149 = vsel %vm10893, %v9900, %v11021
        %v11150 = vsel %vm10894, %v10350, %v11022
        %v11151 = vsel %vm10895, %v10352, %v11023
        %v11152 = vsel %vm10896, %v10802, %v11024
        %v11153 = vsel %vm10897, %v10804, %v11025
        %v11154 = vsel %vm10898, %v9452, %v11026
        %v11155 = vsel %vm10899, %v9454, %v11027
        %v11156 = vsel %vm10900, %v9904, %v11028
        %v11157 = vsel %vm10901, %v9906, %v11029
        %v11158 = vsel %vm10902, %v10356, %v11030
        %v11159 = vsel %vm10903, %v10358, %v11031
        %v11160 = vsel %vm10904, %v10808, %v11032
        %v11161 = vsel %vm10905, %v10810, %v11033
        %v11162 = vsel %vm10906, %v9456, %v11034
        %v11163 = vsel %vm10907, %v9458, %v11035
        %v11164 = vsel %vm10908, %v9908, %v11036
        %v11165 = vsel %vm10909, %v9910, %v11037
        %v11166 = vsel %vm10910, %v10360, %v11038
        %v11167 = vsel %vm10911, %v10362, %v11039
        %v11168 = vsel %vm10912, %v10812, %v11040
        %v11169 = vsel %vm10913, %v10814, %v11041
        %v11170 = vsel %vm10914, %v9462, %v11042
        %v11171 = vsel %vm10915, %v9464, %v11043
        %v11172 = vsel %vm10916, %v9914, %v11044
        %v11173 = vsel %vm10917, %v9916, %v11045
        %v11174 = vsel %vm10918, %v10366, %v11046
        %v11175 = vsel %vm10919, %v10368, %v11047
        %v11176 = vsel %vm10920, %v10818, %v11048
        %v11177 = vsel %vm10921, %v10820, %v11049
        %v11178 = vsel %vm10922, %v9466, %v11050
        %v11179 = vsel %vm10923, %v9468, %v11051
        %v11180 = vsel %vm10924, %v9918, %v11052
        %v11181 = vsel %vm10925, %v9920, %v11053
        %v11182 = vsel %vm10926, %v10370, %v11054
        %v11183 = vsel %vm10927, %v10372, %v11055
        %v11184 = vsel %vm10928, %v10822, %v11056
        %v11185 = vsel %vm10929, %v10824, %v11057
        %v11186 = vsel %vm10930, %v9472, %v11058
        %v11187 = vsel %vm10931, %v9474, %v11059
        %v11188 = vsel %vm10932, %v9924, %v11060
        %v11189 = vsel %vm10933, %v9926, %v11061
        %v11190 = vsel %vm10934, %v10376, %v11062
        %v11191 = vsel %vm10935, %v10378, %v11063
        %v11192 = vsel %vm10936, %v10828, %v11064
        %v11193 = vsel %vm10937, %v10830, %v11065
        %v11194 = vsel %vm10938, %v9476, %v11066
        %v11195 = vsel %vm10939, %v9478, %v11067
        %v11196 = vsel %vm10940, %v9928, %v11068
        %v11197 = vsel %vm10941, %v9930, %v11069
        %v11198 = vsel %vm10942, %v10380, %v11070
        %v11199 = vsel %vm10943, %v10382, %v11071
        %v11200 = vsel %vm10944, %v10832, %v11072
        %v11201 = vsel %vm10945, %v10834, %v11073
        %v11202 = vsel %vm10946, %v9482, %v11074
        %v11203 = vsel %vm10947, %v9484, %v11075
        %v11204 = vsel %vm10948, %v9934, %v11076
        %v11205 = vsel %vm10949, %v9936, %v11077
        %v11206 = vsel %vm10950, %v10386, %v11078
        %v11207 = vsel %vm10951, %v10388, %v11079
        %v11208 = vsel %vm10952, %v10838, %v11080
        %v11209 = vsel %vm10953, %v10840, %v11081
        %v11210 = vsel %vm10954, %v9486, %v11082
        %v11211 = vsel %vm10955, %v9488, %v11083
        %v11212 = vsel %vm10956, %v9938, %v11084
        %v11213 = vsel %vm10957, %v9940, %v11085
        %v11214 = vsel %vm10958, %v10390, %v11086
        %v11215 = vsel %vm10959, %v10392, %v11087
        %v11216 = vsel %vm10960, %v10842, %v11088
        %v11217 = vsel %vm10961, %v10844, %v11089
        %v11218 = vsel %vm10962, %v9492, %v11090
        %v11219 = vsel %vm10963, %v9494, %v11091
        %v11220 = vsel %vm10964, %v9944, %v11092
        %v11221 = vsel %vm10965, %v9946, %v11093
        %v11222 = vsel %vm10966, %v10396, %v11094
        %v11223 = vsel %vm10967, %v10398, %v11095
        %v11224 = vsel %vm10968, %v10848, %v11096
        %v11225 = vsel %vm10969, %v10850, %v11097
        %v11226 = vsel %vm10970, %v9496, %v11098
        %v11227 = vsel %vm10971, %v9498, %v11099
        %v11228 = vsel %vm10972, %v9948, %v11100
        %v11229 = vsel %vm10973, %v9950, %v11101
        %v11230 = vsel %vm10974, %v10400, %v11102
        %v11231 = vsel %vm10975, %v10402, %v11103
        %v11232 = vsel %vm10976, %v10852, %v11104
        %v11233 = vsel %vm10977, %v10854, %v11105
        %v11234 = vsel %vm10978, %v9502, %v11106
        %v11235 = vsel %vm10979, %v9504, %v11107
        %v11236 = vsel %vm10980, %v9954, %v11108
        %v11237 = vsel %vm10981, %v9956, %v11109
        %v11238 = vsel %vm10982, %v10406, %v11110
        %v11239 = vsel %vm10983, %v10408, %v11111
        %v11240 = vsel %vm10984, %v10858, %v11112
        %v11241 = vsel %vm10985, %v10860, %v11113
        %v11242 = vsel %vm10986, %v9506, %v11114
        %v11243 = vsel %vm10987, %v9508, %v11115
        %v11244 = vsel %vm10988, %v9958, %v11116
        %v11245 = vsel %vm10989, %v9960, %v11117
        %v11246 = vsel %vm10990, %v10410, %v11118
        %v11247 = vsel %vm10991, %v10412, %v11119
        %v11248 = vsel %vm10992, %v10862, %v11120
        %v11249 = vsel %vm10993, %v10864, %v11121
        %v11250 = vpack.c.bf16 %v11130, %v11122
        %v11251 = vpack.c.bf16 %v11131, %v11123
        %v11252 = vpack.c.bf16 %v11132, %v11124
        %v11253 = vpack.c.bf16 %v11133, %v11125
        %v11254 = vpack.c.bf16 %v11134, %v11126
        %v11255 = vpack.c.bf16 %v11135, %v11127
        %v11256 = vpack.c.bf16 %v11136, %v11128
        %v11257 = vpack.c.bf16 %v11137, %v11129
        %v11258 = vpack.c.bf16 %v11146, %v11138
        %v11259 = vpack.c.bf16 %v11147, %v11139
        %v11260 = vpack.c.bf16 %v11148, %v11140
        %v11261 = vpack.c.bf16 %v11149, %v11141
        %v11262 = vpack.c.bf16 %v11150, %v11142
        %v11263 = vpack.c.bf16 %v11151, %v11143
        %v11264 = vpack.c.bf16 %v11152, %v11144
        %v11265 = vpack.c.bf16 %v11153, %v11145
        %v11266 = vpack.c.bf16 %v11162, %v11154
        %v11267 = vpack.c.bf16 %v11163, %v11155
        %v11268 = vpack.c.bf16 %v11164, %v11156
        %v11269 = vpack.c.bf16 %v11165, %v11157
        %v11270 = vpack.c.bf16 %v11166, %v11158
        %v11271 = vpack.c.bf16 %v11167, %v11159
        %v11272 = vpack.c.bf16 %v11168, %v11160
        %v11273 = vpack.c.bf16 %v11169, %v11161
        %v11274 = vpack.c.bf16 %v11178, %v11170
        %v11275 = vpack.c.bf16 %v11179, %v11171
        %v11276 = vpack.c.bf16 %v11180, %v11172
        %v11277 = vpack.c.bf16 %v11181, %v11173
        %v11278 = vpack.c.bf16 %v11182, %v11174
        %v11279 = vpack.c.bf16 %v11183, %v11175
        %v11280 = vpack.c.bf16 %v11184, %v11176
        %v11281 = vpack.c.bf16 %v11185, %v11177
        %v11282 = vpack.c.bf16 %v11194, %v11186
        %v11283 = vpack.c.bf16 %v11195, %v11187
        %v11284 = vpack.c.bf16 %v11196, %v11188
        %v11285 = vpack.c.bf16 %v11197, %v11189
        %v11286 = vpack.c.bf16 %v11198, %v11190
        %v11287 = vpack.c.bf16 %v11199, %v11191
        %v11288 = vpack.c.bf16 %v11200, %v11192
        %v11289 = vpack.c.bf16 %v11201, %v11193
        %v11290 = vpack.c.bf16 %v11210, %v11202
        %v11291 = vpack.c.bf16 %v11211, %v11203
        %v11292 = vpack.c.bf16 %v11212, %v11204
        %v11293 = vpack.c.bf16 %v11213, %v11205
        %v11294 = vpack.c.bf16 %v11214, %v11206
        %v11295 = vpack.c.bf16 %v11215, %v11207
        %v11296 = vpack.c.bf16 %v11216, %v11208
        %v11297 = vpack.c.bf16 %v11217, %v11209
        %v11298 = vpack.c.bf16 %v11226, %v11218
        %v11299 = vpack.c.bf16 %v11227, %v11219
        %v11300 = vpack.c.bf16 %v11228, %v11220
        %v11301 = vpack.c.bf16 %v11229, %v11221
        %v11302 = vpack.c.bf16 %v11230, %v11222
        %v11303 = vpack.c.bf16 %v11231, %v11223
        %v11304 = vpack.c.bf16 %v11232, %v11224
        %v11305 = vpack.c.bf16 %v11233, %v11225
        %v11306 = vpack.c.bf16 %v11242, %v11234
        %v11307 = vpack.c.bf16 %v11243, %v11235
        %v11308 = vpack.c.bf16 %v11244, %v11236
        %v11309 = vpack.c.bf16 %v11245, %v11237
        %v11310 = vpack.c.bf16 %v11246, %v11238
        %v11311 = vpack.c.bf16 %v11247, %v11239
        %v11312 = vpack.c.bf16 %v11248, %v11240
        %v11313 = vpack.c.bf16 %v11249, %v11241
        %v11314 = vld [vmem:[#allocation11] sm:$0xf]
        %v11315 = vld [vmem:[#allocation11 + $0x4] sm:$0xf]
        %v11316 = vld [vmem:[#allocation11 + $0x8] sm:$0xf]
        %v11317 = vld [vmem:[#allocation11 + $0xc] sm:$0xf]
        %v11318 = vld [vmem:[#allocation11 + $0x10] sm:$0xf]
        %v11319 = vld [vmem:[#allocation11 + $0x14] sm:$0xf]
        %v11320 = vld [vmem:[#allocation11 + $0x18] sm:$0xf]
        %v11321 = vld [vmem:[#allocation11 + $0x1c] sm:$0xf]
        %v11322 = vld [vmem:[#allocation11 + $0x20] sm:$0xf]
        %v11323 = vld [vmem:[#allocation11 + $0x24] sm:$0xf]
        %v11324 = vld [vmem:[#allocation11 + $0x28] sm:$0xf]
        %v11325 = vld [vmem:[#allocation11 + $0x2c] sm:$0xf]
        %v11326 = vld [vmem:[#allocation11 + $0x30] sm:$0xf]
        %v11327 = vld [vmem:[#allocation11 + $0x34] sm:$0xf]
        %v11328 = vld [vmem:[#allocation11 + $0x38] sm:$0xf]
        %v11329 = vld [vmem:[#allocation11 + $0x3c] sm:$0xf]
        %v11330 = vld [vmem:[#allocation11 + $0x40] sm:$0xf]
        %v11331 = vld [vmem:[#allocation11 + $0x44] sm:$0xf]
        %v11332 = vld [vmem:[#allocation11 + $0x48] sm:$0xf]
        %v11333 = vld [vmem:[#allocation11 + $0x4c] sm:$0xf]
        %v11334 = vld [vmem:[#allocation11 + $0x50] sm:$0xf]
        %v11335 = vld [vmem:[#allocation11 + $0x54] sm:$0xf]
        %v11336 = vld [vmem:[#allocation11 + $0x58] sm:$0xf]
        %v11337 = vld [vmem:[#allocation11 + $0x5c] sm:$0xf]
        %v11338 = vld [vmem:[#allocation11 + $0x60] sm:$0xf]
        %v11339 = vld [vmem:[#allocation11 + $0x64] sm:$0xf]
        %v11340 = vld [vmem:[#allocation11 + $0x68] sm:$0xf]
        %v11341 = vld [vmem:[#allocation11 + $0x6c] sm:$0xf]
        %v11342 = vld [vmem:[#allocation11 + $0x70] sm:$0xf]
        %v11343 = vld [vmem:[#allocation11 + $0x74] sm:$0xf]
        %v11344 = vld [vmem:[#allocation11 + $0x78] sm:$0xf]
        %v11345 = vld [vmem:[#allocation11 + $0x7c] sm:$0xf]
        %v11346 = vld [vmem:[#allocation11 + $0x80] sm:$0xf]
        %v11347 = vld [vmem:[#allocation11 + $0x84] sm:$0xf]
        %v11348 = vld [vmem:[#allocation11 + $0x88] sm:$0xf]
        %v11349 = vld [vmem:[#allocation11 + $0x8c] sm:$0xf]
        %v11350 = vld [vmem:[#allocation11 + $0x90] sm:$0xf]
        %v11351 = vld [vmem:[#allocation11 + $0x94] sm:$0xf]
        %v11352 = vld [vmem:[#allocation11 + $0x98] sm:$0xf]
        %v11353 = vld [vmem:[#allocation11 + $0x9c] sm:$0xf]
        %v11354 = vld [vmem:[#allocation11 + $0xa0] sm:$0xf]
        %v11355 = vld [vmem:[#allocation11 + $0xa4] sm:$0xf]
        %v11356 = vld [vmem:[#allocation11 + $0xa8] sm:$0xf]
        %v11357 = vld [vmem:[#allocation11 + $0xac] sm:$0xf]
        %v11358 = vld [vmem:[#allocation11 + $0xb0] sm:$0xf]
        %v11359 = vld [vmem:[#allocation11 + $0xb4] sm:$0xf]
        %v11360 = vld [vmem:[#allocation11 + $0xb8] sm:$0xf]
        %v11361 = vld [vmem:[#allocation11 + $0xbc] sm:$0xf]
        %v11362 = vld [vmem:[#allocation11 + $0xc0] sm:$0xf]
        %v11363 = vld [vmem:[#allocation11 + $0xc4] sm:$0xf]
        %v11364 = vld [vmem:[#allocation11 + $0xc8] sm:$0xf]
        %v11365 = vld [vmem:[#allocation11 + $0xcc] sm:$0xf]
        %v11366 = vld [vmem:[#allocation11 + $0xd0] sm:$0xf]
        %v11367 = vld [vmem:[#allocation11 + $0xd4] sm:$0xf]
        %v11368 = vld [vmem:[#allocation11 + $0xd8] sm:$0xf]
        %v11369 = vld [vmem:[#allocation11 + $0xdc] sm:$0xf]
        %v11370 = vld [vmem:[#allocation11 + $0xe0] sm:$0xf]
        %v11371 = vld [vmem:[#allocation11 + $0xe4] sm:$0xf]
        %v11372 = vld [vmem:[#allocation11 + $0xe8] sm:$0xf]
        %v11373 = vld [vmem:[#allocation11 + $0xec] sm:$0xf]
        %v11374 = vld [vmem:[#allocation11 + $0xf0] sm:$0xf]
        %v11375 = vld [vmem:[#allocation11 + $0xf4] sm:$0xf]
        %v11376 = vld [vmem:[#allocation11 + $0xf8] sm:$0xf]
        %v11377 = vld [vmem:[#allocation11 + $0xfc] sm:$0xf]
        %v11378 = vld [vmem:[#allocation11 + $0x100] sm:$0xf]
        %v11379 = vld [vmem:[#allocation11 + $0x104] sm:$0xf]
        %v11380 = vld [vmem:[#allocation11 + $0x108] sm:$0xf]
        %v11381 = vld [vmem:[#allocation11 + $0x10c] sm:$0xf]
        %v11382 = vld [vmem:[#allocation11 + $0x110] sm:$0xf]
        %v11383 = vld [vmem:[#allocation11 + $0x114] sm:$0xf]
        %v11384 = vld [vmem:[#allocation11 + $0x118] sm:$0xf]
        %v11385 = vld [vmem:[#allocation11 + $0x11c] sm:$0xf]
        %v11386 = vld [vmem:[#allocation11 + $0x120] sm:$0xf]
        %v11387 = vld [vmem:[#allocation11 + $0x124] sm:$0xf]
        %v11388 = vld [vmem:[#allocation11 + $0x128] sm:$0xf]
        %v11389 = vld [vmem:[#allocation11 + $0x12c] sm:$0xf]
        %v11390 = vld [vmem:[#allocation11 + $0x130] sm:$0xf]
        %v11391 = vld [vmem:[#allocation11 + $0x134] sm:$0xf]
        %v11392 = vld [vmem:[#allocation11 + $0x138] sm:$0xf]
        %v11393 = vld [vmem:[#allocation11 + $0x13c] sm:$0xf]
        %v11394 = vld [vmem:[#allocation11 + $0x140] sm:$0xf]
        %v11395 = vld [vmem:[#allocation11 + $0x144] sm:$0xf]
        %v11396 = vld [vmem:[#allocation11 + $0x148] sm:$0xf]
        %v11397 = vld [vmem:[#allocation11 + $0x14c] sm:$0xf]
        %v11398 = vld [vmem:[#allocation11 + $0x150] sm:$0xf]
        %v11399 = vld [vmem:[#allocation11 + $0x154] sm:$0xf]
        %v11400 = vld [vmem:[#allocation11 + $0x158] sm:$0xf]
        %v11401 = vld [vmem:[#allocation11 + $0x15c] sm:$0xf]
        %v11402 = vld [vmem:[#allocation11 + $0x160] sm:$0xf]
        %v11403 = vld [vmem:[#allocation11 + $0x164] sm:$0xf]
        %v11404 = vld [vmem:[#allocation11 + $0x168] sm:$0xf]
        %v11405 = vld [vmem:[#allocation11 + $0x16c] sm:$0xf]
        %v11406 = vld [vmem:[#allocation11 + $0x170] sm:$0xf]
        %v11407 = vld [vmem:[#allocation11 + $0x174] sm:$0xf]
        %v11408 = vld [vmem:[#allocation11 + $0x178] sm:$0xf]
        %v11409 = vld [vmem:[#allocation11 + $0x17c] sm:$0xf]
        %v11410 = vld [vmem:[#allocation11 + $0x180] sm:$0xf]
        %v11411 = vld [vmem:[#allocation11 + $0x184] sm:$0xf]
        %v11412 = vld [vmem:[#allocation11 + $0x188] sm:$0xf]
        %v11413 = vld [vmem:[#allocation11 + $0x18c] sm:$0xf]
        %v11414 = vld [vmem:[#allocation11 + $0x190] sm:$0xf]
        %v11415 = vld [vmem:[#allocation11 + $0x194] sm:$0xf]
        %v11416 = vld [vmem:[#allocation11 + $0x198] sm:$0xf]
        %v11417 = vld [vmem:[#allocation11 + $0x19c] sm:$0xf]
        %v11418 = vld [vmem:[#allocation11 + $0x1a0] sm:$0xf]
        %v11419 = vld [vmem:[#allocation11 + $0x1a4] sm:$0xf]
        %v11420 = vld [vmem:[#allocation11 + $0x1a8] sm:$0xf]
        %v11421 = vld [vmem:[#allocation11 + $0x1ac] sm:$0xf]
        %v11422 = vld [vmem:[#allocation11 + $0x1b0] sm:$0xf]
        %v11423 = vld [vmem:[#allocation11 + $0x1b4] sm:$0xf]
        %v11424 = vld [vmem:[#allocation11 + $0x1b8] sm:$0xf]
        %v11425 = vld [vmem:[#allocation11 + $0x1bc] sm:$0xf]
        %v11426 = vld [vmem:[#allocation11 + $0x1c0] sm:$0xf]
        %v11427 = vld [vmem:[#allocation11 + $0x1c4] sm:$0xf]
        %v11428 = vld [vmem:[#allocation11 + $0x1c8] sm:$0xf]
        %v11429 = vld [vmem:[#allocation11 + $0x1cc] sm:$0xf]
        %v11430 = vld [vmem:[#allocation11 + $0x1d0] sm:$0xf]
        %v11431 = vld [vmem:[#allocation11 + $0x1d4] sm:$0xf]
        %v11432 = vld [vmem:[#allocation11 + $0x1d8] sm:$0xf]
        %v11433 = vld [vmem:[#allocation11 + $0x1dc] sm:$0xf]
        %v11434 = vld [vmem:[#allocation11 + $0x1e0] sm:$0xf]
        %v11435 = vld [vmem:[#allocation11 + $0x1e4] sm:$0xf]
        %v11436 = vld [vmem:[#allocation11 + $0x1e8] sm:$0xf]
        %v11437 = vld [vmem:[#allocation11 + $0x1ec] sm:$0xf]
        %v11438 = vld [vmem:[#allocation11 + $0x1f0] sm:$0xf]
        %v11439 = vld [vmem:[#allocation11 + $0x1f4] sm:$0xf]
        %v11440 = vld [vmem:[#allocation11 + $0x1f8] sm:$0xf]
        %v11441 = vld [vmem:[#allocation11 + $0x1fc] sm:$0xf]
        %v11442 = vld [vmem:[#allocation13] sm:$0x1]
        %v11444 = vlaneseq
        %v11445 = vshrl.u32 %v11444, 7
        %v11446 = vsub.s32 0, %v11445
        %v11447 = vrot.slane %v11442, %v11446
        %v11577 = vunpack.c.l.b16 %v11314
        %v11578 = vunpack.c.l.b16 %v11315
        %v11579 = vunpack.c.l.b16 %v11316
        %v11580 = vunpack.c.l.b16 %v11317
        %v11581 = vunpack.c.l.b16 %v11318
        %v11582 = vunpack.c.l.b16 %v11319
        %v11583 = vunpack.c.l.b16 %v11320
        %v11584 = vunpack.c.l.b16 %v11321
        %v11585 = vunpack.c.l.b16 %v11322
        %v11586 = vunpack.c.l.b16 %v11323
        %v11587 = vunpack.c.l.b16 %v11324
        %v11588 = vunpack.c.l.b16 %v11325
        %v11589 = vunpack.c.l.b16 %v11326
        %v11590 = vunpack.c.l.b16 %v11327
        %v11591 = vunpack.c.l.b16 %v11328
        %v11592 = vunpack.c.l.b16 %v11329
        %v11593 = vunpack.c.l.b16 %v11330
        %v11594 = vunpack.c.l.b16 %v11331
        %v11595 = vunpack.c.l.b16 %v11332
        %v11596 = vunpack.c.l.b16 %v11333
        %v11597 = vunpack.c.l.b16 %v11334
        %v11598 = vunpack.c.l.b16 %v11335
        %v11599 = vunpack.c.l.b16 %v11336
        %v11600 = vunpack.c.l.b16 %v11337
        %v11601 = vunpack.c.l.b16 %v11338
        %v11602 = vunpack.c.l.b16 %v11339
        %v11603 = vunpack.c.l.b16 %v11340
        %v11604 = vunpack.c.l.b16 %v11341
        %v11605 = vunpack.c.l.b16 %v11342
        %v11606 = vunpack.c.l.b16 %v11343
        %v11607 = vunpack.c.l.b16 %v11344
        %v11608 = vunpack.c.l.b16 %v11345
        %v11609 = vunpack.c.l.b16 %v11346
        %v11610 = vunpack.c.l.b16 %v11347
        %v11611 = vunpack.c.l.b16 %v11348
        %v11612 = vunpack.c.l.b16 %v11349
        %v11613 = vunpack.c.l.b16 %v11350
        %v11614 = vunpack.c.l.b16 %v11351
        %v11615 = vunpack.c.l.b16 %v11352
        %v11616 = vunpack.c.l.b16 %v11353
        %v11617 = vunpack.c.l.b16 %v11354
        %v11618 = vunpack.c.l.b16 %v11355
        %v11619 = vunpack.c.l.b16 %v11356
        %v11620 = vunpack.c.l.b16 %v11357
        %v11621 = vunpack.c.l.b16 %v11358
        %v11622 = vunpack.c.l.b16 %v11359
        %v11623 = vunpack.c.l.b16 %v11360
        %v11624 = vunpack.c.l.b16 %v11361
        %v11625 = vunpack.c.l.b16 %v11362
        %v11626 = vunpack.c.l.b16 %v11363
        %v11627 = vunpack.c.l.b16 %v11364
        %v11628 = vunpack.c.l.b16 %v11365
        %v11629 = vunpack.c.l.b16 %v11366
        %v11630 = vunpack.c.l.b16 %v11367
        %v11631 = vunpack.c.l.b16 %v11368
        %v11632 = vunpack.c.l.b16 %v11369
        %v11633 = vunpack.c.l.b16 %v11370
        %v11634 = vunpack.c.l.b16 %v11371
        %v11635 = vunpack.c.l.b16 %v11372
        %v11636 = vunpack.c.l.b16 %v11373
        %v11637 = vunpack.c.l.b16 %v11374
        %v11638 = vunpack.c.l.b16 %v11375
        %v11639 = vunpack.c.l.b16 %v11376
        %v11640 = vunpack.c.l.b16 %v11377
        %v11641 = vunpack.c.l.b16 %v11378
        %v11642 = vunpack.c.l.b16 %v11379
        %v11643 = vunpack.c.l.b16 %v11380
        %v11644 = vunpack.c.l.b16 %v11381
        %v11645 = vunpack.c.l.b16 %v11382
        %v11646 = vunpack.c.l.b16 %v11383
        %v11647 = vunpack.c.l.b16 %v11384
        %v11648 = vunpack.c.l.b16 %v11385
        %v11649 = vunpack.c.l.b16 %v11386
        %v11650 = vunpack.c.l.b16 %v11387
        %v11651 = vunpack.c.l.b16 %v11388
        %v11652 = vunpack.c.l.b16 %v11389
        %v11653 = vunpack.c.l.b16 %v11390
        %v11654 = vunpack.c.l.b16 %v11391
        %v11655 = vunpack.c.l.b16 %v11392
        %v11656 = vunpack.c.l.b16 %v11393
        %v11657 = vunpack.c.l.b16 %v11394
        %v11658 = vunpack.c.l.b16 %v11395
        %v11659 = vunpack.c.l.b16 %v11396
        %v11660 = vunpack.c.l.b16 %v11397
        %v11661 = vunpack.c.l.b16 %v11398
        %v11662 = vunpack.c.l.b16 %v11399
        %v11663 = vunpack.c.l.b16 %v11400
        %v11664 = vunpack.c.l.b16 %v11401
        %v11665 = vunpack.c.l.b16 %v11402
        %v11666 = vunpack.c.l.b16 %v11403
        %v11667 = vunpack.c.l.b16 %v11404
        %v11668 = vunpack.c.l.b16 %v11405
        %v11669 = vunpack.c.l.b16 %v11406
        %v11670 = vunpack.c.l.b16 %v11407
        %v11671 = vunpack.c.l.b16 %v11408
        %v11672 = vunpack.c.l.b16 %v11409
        %v11673 = vunpack.c.l.b16 %v11410
        %v11674 = vunpack.c.l.b16 %v11411
        %v11675 = vunpack.c.l.b16 %v11412
        %v11676 = vunpack.c.l.b16 %v11413
        %v11677 = vunpack.c.l.b16 %v11414
        %v11678 = vunpack.c.l.b16 %v11415
        %v11679 = vunpack.c.l.b16 %v11416
        %v11680 = vunpack.c.l.b16 %v11417
        %v11681 = vunpack.c.l.b16 %v11418
        %v11682 = vunpack.c.l.b16 %v11419
        %v11683 = vunpack.c.l.b16 %v11420
        %v11684 = vunpack.c.l.b16 %v11421
        %v11685 = vunpack.c.l.b16 %v11422
        %v11686 = vunpack.c.l.b16 %v11423
        %v11687 = vunpack.c.l.b16 %v11424
        %v11688 = vunpack.c.l.b16 %v11425
        %v11689 = vunpack.c.l.b16 %v11426
        %v11690 = vunpack.c.l.b16 %v11427
        %v11691 = vunpack.c.l.b16 %v11428
        %v11692 = vunpack.c.l.b16 %v11429
        %v11693 = vunpack.c.l.b16 %v11430
        %v11694 = vunpack.c.l.b16 %v11431
        %v11695 = vunpack.c.l.b16 %v11432
        %v11696 = vunpack.c.l.b16 %v11433
        %v11697 = vunpack.c.l.b16 %v11434
        %v11698 = vunpack.c.l.b16 %v11435
        %v11699 = vunpack.c.l.b16 %v11436
        %v11700 = vunpack.c.l.b16 %v11437
        %v11701 = vunpack.c.l.b16 %v11438
        %v11702 = vunpack.c.l.b16 %v11439
        %v11703 = vunpack.c.l.b16 %v11440
        %v11704 = vunpack.c.l.b16 %v11441
        %v11705 = vpack.c.b16 %v11578, %v11577
        %v11706 = vpack.c.b16 %v11580, %v11579
        %v11707 = vpack.c.b16 %v11582, %v11581
        %v11708 = vpack.c.b16 %v11584, %v11583
        %v11709 = vpack.c.b16 %v11586, %v11585
        %v11710 = vpack.c.b16 %v11588, %v11587
        %v11711 = vpack.c.b16 %v11590, %v11589
        %v11712 = vpack.c.b16 %v11592, %v11591
        %v11713 = vpack.c.b16 %v11594, %v11593
        %v11714 = vpack.c.b16 %v11596, %v11595
        %v11715 = vpack.c.b16 %v11598, %v11597
        %v11716 = vpack.c.b16 %v11600, %v11599
        %v11717 = vpack.c.b16 %v11602, %v11601
        %v11718 = vpack.c.b16 %v11604, %v11603
        %v11719 = vpack.c.b16 %v11606, %v11605
        %v11720 = vpack.c.b16 %v11608, %v11607
        %v11721 = vpack.c.b16 %v11610, %v11609
        %v11722 = vpack.c.b16 %v11612, %v11611
        %v11723 = vpack.c.b16 %v11614, %v11613
        %v11724 = vpack.c.b16 %v11616, %v11615
        %v11725 = vpack.c.b16 %v11618, %v11617
        %v11726 = vpack.c.b16 %v11620, %v11619
        %v11727 = vpack.c.b16 %v11622, %v11621
        %v11728 = vpack.c.b16 %v11624, %v11623
        %v11729 = vpack.c.b16 %v11626, %v11625
        %v11730 = vpack.c.b16 %v11628, %v11627
        %v11731 = vpack.c.b16 %v11630, %v11629
        %v11732 = vpack.c.b16 %v11632, %v11631
        %v11733 = vpack.c.b16 %v11634, %v11633
        %v11734 = vpack.c.b16 %v11636, %v11635
        %v11735 = vpack.c.b16 %v11638, %v11637
        %v11736 = vpack.c.b16 %v11640, %v11639
        %v11737 = vpack.c.b16 %v11642, %v11641
        %v11738 = vpack.c.b16 %v11644, %v11643
        %v11739 = vpack.c.b16 %v11646, %v11645
        %v11740 = vpack.c.b16 %v11648, %v11647
        %v11741 = vpack.c.b16 %v11650, %v11649
        %v11742 = vpack.c.b16 %v11652, %v11651
        %v11743 = vpack.c.b16 %v11654, %v11653
        %v11744 = vpack.c.b16 %v11656, %v11655
        %v11745 = vpack.c.b16 %v11658, %v11657
        %v11746 = vpack.c.b16 %v11660, %v11659
        %v11747 = vpack.c.b16 %v11662, %v11661
        %v11748 = vpack.c.b16 %v11664, %v11663
        %v11749 = vpack.c.b16 %v11666, %v11665
        %v11750 = vpack.c.b16 %v11668, %v11667
        %v11751 = vpack.c.b16 %v11670, %v11669
        %v11752 = vpack.c.b16 %v11672, %v11671
        %v11753 = vpack.c.b16 %v11674, %v11673
        %v11754 = vpack.c.b16 %v11676, %v11675
        %v11755 = vpack.c.b16 %v11678, %v11677
        %v11756 = vpack.c.b16 %v11680, %v11679
        %v11757 = vpack.c.b16 %v11682, %v11681
        %v11758 = vpack.c.b16 %v11684, %v11683
        %v11759 = vpack.c.b16 %v11686, %v11685
        %v11760 = vpack.c.b16 %v11688, %v11687
        %v11761 = vpack.c.b16 %v11690, %v11689
        %v11762 = vpack.c.b16 %v11692, %v11691
        %v11763 = vpack.c.b16 %v11694, %v11693
        %v11764 = vpack.c.b16 %v11696, %v11695
        %v11765 = vpack.c.b16 %v11698, %v11697
        %v11766 = vpack.c.b16 %v11700, %v11699
        %v11767 = vpack.c.b16 %v11702, %v11701
        %v11768 = vpack.c.b16 %v11704, %v11703
        %11833 = vmatprep.subr.bf16.mxu0 0
        %11834 = vmatpush1.bf16.msra.mxu0 %v11712
        %11835 = vmatprep.subr.bf16.mxu0 0
        %11836 = vmatpush1.bf16.msra.mxu0 %v11711
        %11837 = vmatprep.subr.bf16.mxu0 0
        %11838 = vmatpush1.bf16.msra.mxu0 %v11710
        %11839 = vmatprep.subr.bf16.mxu0 0
        %11840 = vmatpush1.bf16.msra.mxu0 %v11709
        %11841 = vmatprep.subr.bf16.mxu0 0
        %11842 = vmatpush1.bf16.msra.mxu0 %v11708
        %11843 = vmatprep.subr.bf16.mxu0 0
        %11844 = vmatpush1.bf16.msra.mxu0 %v11707
        %11845 = vmatprep.subr.bf16.mxu0 0
        %11846 = vmatpush1.bf16.msra.mxu0 %v11706
        %11847 = vmatprep.subr.bf16.mxu0 0
        %11848 = vmatpush1.bf16.msra.mxu0 %v11705
        %11849 = vmatprep.subr.bf16.mxu0 0
        %11850 = vmatpush2.bf16.msra.mxu0 %v11720
        %11851 = vmatprep.subr.bf16.mxu0 0
        %11852 = vmatpush2.bf16.msra.mxu0 %v11719
        %11853 = vmatprep.subr.bf16.mxu0 0
        %11854 = vmatpush2.bf16.msra.mxu0 %v11718
        %11855 = vmatprep.subr.bf16.mxu0 0
        %11856 = vmatpush2.bf16.msra.mxu0 %v11717
        %11857 = vmatprep.subr.bf16.mxu0 0
        %11858 = vmatpush2.bf16.msra.mxu0 %v11716
        %11859 = vmatprep.subr.bf16.mxu0 0
        %11860 = vmatpush2.bf16.msra.mxu0 %v11715
        %11861 = vmatprep.subr.bf16.mxu0 0
        %11862 = vmatpush2.bf16.msra.mxu0 %v11714
        %11863 = vmatprep.subr.bf16.mxu0 0
        %11864 = vmatpush2.bf16.msra.mxu0 %v11713
        %11865 = vmatprep.mubr.bf16.mxu0 %v11251
        %11866 = vmatmul.mubr.bf16.gmra.mxu0 %v11250
        %v11867 = vpop.f32.mrf.mxu0
        %v11868 = vadd.f32 %v11447, %v11867
        %v11869 = vpop.f32.mrf.mxu0
        %v11870 = vpop.f32.mrf.mxu0
        %v11871 = vadd.f32 %v11447, %v11870
        %v11872 = vpop.f32.mrf.mxu0
        %11873 = vmatprep.mubr.bf16.mxu0 %v11259
        %11874 = vmatmul.mubr.bf16.gmra.mxu0 %v11258
        %v11875 = vpop.f32.mrf.mxu0
        %v11876 = vadd.f32 %v11447, %v11875
        %v11877 = vpop.f32.mrf.mxu0
        %v11878 = vpop.f32.mrf.mxu0
        %v11879 = vadd.f32 %v11447, %v11878
        %v11880 = vpop.f32.mrf.mxu0
        %11881 = vmatprep.mubr.bf16.mxu0 %v11267
        %11882 = vmatmul.mubr.bf16.gmra.mxu0 %v11266
        %v11883 = vpop.f32.mrf.mxu0
        %v11884 = vadd.f32 %v11447, %v11883
        %v11885 = vpop.f32.mrf.mxu0
        %v11886 = vpop.f32.mrf.mxu0
        %v11887 = vadd.f32 %v11447, %v11886
        %v11888 = vpop.f32.mrf.mxu0
        %11889 = vmatprep.mubr.bf16.mxu0 %v11275
        %11890 = vmatmul.mubr.bf16.gmra.mxu0 %v11274
        %v11891 = vpop.f32.mrf.mxu0
        %v11892 = vadd.f32 %v11447, %v11891
        %v11893 = vpop.f32.mrf.mxu0
        %v11894 = vpop.f32.mrf.mxu0
        %v11895 = vadd.f32 %v11447, %v11894
        %v11896 = vpop.f32.mrf.mxu0
        %11897 = vmatprep.mubr.bf16.mxu0 %v11283
        %11898 = vmatmul.mubr.bf16.gmra.mxu0 %v11282
        %v11899 = vpop.f32.mrf.mxu0
        %v11900 = vadd.f32 %v11447, %v11899
        %v11901 = vpop.f32.mrf.mxu0
        %v11902 = vpop.f32.mrf.mxu0
        %v11903 = vadd.f32 %v11447, %v11902
        %v11904 = vpop.f32.mrf.mxu0
        %11905 = vmatprep.mubr.bf16.mxu0 %v11291
        %11906 = vmatmul.mubr.bf16.gmra.mxu0 %v11290
        %v11907 = vpop.f32.mrf.mxu0
        %v11908 = vadd.f32 %v11447, %v11907
        %v11909 = vpop.f32.mrf.mxu0
        %v11910 = vpop.f32.mrf.mxu0
        %v11911 = vadd.f32 %v11447, %v11910
        %v11912 = vpop.f32.mrf.mxu0
        %11913 = vmatprep.mubr.bf16.mxu0 %v11299
        %11914 = vmatmul.mubr.bf16.gmra.mxu0 %v11298
        %v11915 = vpop.f32.mrf.mxu0
        %v11916 = vadd.f32 %v11447, %v11915
        %v11917 = vpop.f32.mrf.mxu0
        %v11918 = vpop.f32.mrf.mxu0
        %v11919 = vadd.f32 %v11447, %v11918
        %v11920 = vpop.f32.mrf.mxu0
        %11921 = vmatprep.mubr.bf16.mxu0 %v11307
        %11922 = vmatmul.mubr.bf16.gmra.mxu0 %v11306
        %v11923 = vpop.f32.mrf.mxu0
        %v11924 = vadd.f32 %v11447, %v11923
        %v11925 = vpop.f32.mrf.mxu0
        %v11926 = vpop.f32.mrf.mxu0
        %v11927 = vadd.f32 %v11447, %v11926
        %v11928 = vpop.f32.mrf.mxu0
        %11929 = vdwg.mxu0
        %11930 = vmatprep.subr.bf16.mxu0 0
        %11931 = vmatpush1.bf16.msra.mxu0 %v11728
        %11932 = vmatprep.subr.bf16.mxu0 0
        %11933 = vmatpush1.bf16.msra.mxu0 %v11727
        %11934 = vmatprep.subr.bf16.mxu0 0
        %11935 = vmatpush1.bf16.msra.mxu0 %v11726
        %11936 = vmatprep.subr.bf16.mxu0 0
        %11937 = vmatpush1.bf16.msra.mxu0 %v11725
        %11938 = vmatprep.subr.bf16.mxu0 0
        %11939 = vmatpush1.bf16.msra.mxu0 %v11724
        %11940 = vmatprep.subr.bf16.mxu0 0
        %11941 = vmatpush1.bf16.msra.mxu0 %v11723
        %11942 = vmatprep.subr.bf16.mxu0 0
        %11943 = vmatpush1.bf16.msra.mxu0 %v11722
        %11944 = vmatprep.subr.bf16.mxu0 0
        %11945 = vmatpush1.bf16.msra.mxu0 %v11721
        %11946 = vmatprep.subr.bf16.mxu0 0
        %11947 = vmatpush2.bf16.msra.mxu0 %v11736
        %11948 = vmatprep.subr.bf16.mxu0 0
        %11949 = vmatpush2.bf16.msra.mxu0 %v11735
        %11950 = vmatprep.subr.bf16.mxu0 0
        %11951 = vmatpush2.bf16.msra.mxu0 %v11734
        %11952 = vmatprep.subr.bf16.mxu0 0
        %11953 = vmatpush2.bf16.msra.mxu0 %v11733
        %11954 = vmatprep.subr.bf16.mxu0 0
        %11955 = vmatpush2.bf16.msra.mxu0 %v11732
        %11956 = vmatprep.subr.bf16.mxu0 0
        %11957 = vmatpush2.bf16.msra.mxu0 %v11731
        %11958 = vmatprep.subr.bf16.mxu0 0
        %11959 = vmatpush2.bf16.msra.mxu0 %v11730
        %11960 = vmatprep.subr.bf16.mxu0 0
        %11961 = vmatpush2.bf16.msra.mxu0 %v11729
        %11962 = vmatprep.mubr.bf16.mxu0 %v11253
        %11963 = vmatmul.mubr.bf16.gmra.mxu0 %v11252
        %v11964 = vpop.f32.mrf.mxu0
        %v11965 = vadd.f32 %v11868, %v11964
        %v11966 = vpop.f32.mrf.mxu0
        %v11967 = vpop.f32.mrf.mxu0
        %v11968 = vadd.f32 %v11871, %v11967
        %v11969 = vpop.f32.mrf.mxu0
        %11970 = vmatprep.mubr.bf16.mxu0 %v11261
        %11971 = vmatmul.mubr.bf16.gmra.mxu0 %v11260
        %v11972 = vpop.f32.mrf.mxu0
        %v11973 = vadd.f32 %v11876, %v11972
        %v11974 = vpop.f32.mrf.mxu0
        %v11975 = vpop.f32.mrf.mxu0
        %v11976 = vadd.f32 %v11879, %v11975
        %v11977 = vpop.f32.mrf.mxu0
        %11978 = vmatprep.mubr.bf16.mxu0 %v11269
        %11979 = vmatmul.mubr.bf16.gmra.mxu0 %v11268
        %v11980 = vpop.f32.mrf.mxu0
        %v11981 = vadd.f32 %v11884, %v11980
        %v11982 = vpop.f32.mrf.mxu0
        %v11983 = vpop.f32.mrf.mxu0
        %v11984 = vadd.f32 %v11887, %v11983
        %v11985 = vpop.f32.mrf.mxu0
        %11986 = vmatprep.mubr.bf16.mxu0 %v11277
        %11987 = vmatmul.mubr.bf16.gmra.mxu0 %v11276
        %v11988 = vpop.f32.mrf.mxu0
        %v11989 = vadd.f32 %v11892, %v11988
        %v11990 = vpop.f32.mrf.mxu0
        %v11991 = vpop.f32.mrf.mxu0
        %v11992 = vadd.f32 %v11895, %v11991
        %v11993 = vpop.f32.mrf.mxu0
        %11994 = vmatprep.mubr.bf16.mxu0 %v11285
        %11995 = vmatmul.mubr.bf16.gmra.mxu0 %v11284
        %v11996 = vpop.f32.mrf.mxu0
        %v11997 = vadd.f32 %v11900, %v11996
        %v11998 = vpop.f32.mrf.mxu0
        %v11999 = vpop.f32.mrf.mxu0
        %v12000 = vadd.f32 %v11903, %v11999
        %v12001 = vpop.f32.mrf.mxu0
        %12002 = vmatprep.mubr.bf16.mxu0 %v11293
        %12003 = vmatmul.mubr.bf16.gmra.mxu0 %v11292
        %v12004 = vpop.f32.mrf.mxu0
        %v12005 = vadd.f32 %v11908, %v12004
        %v12006 = vpop.f32.mrf.mxu0
        %v12007 = vpop.f32.mrf.mxu0
        %v12008 = vadd.f32 %v11911, %v12007
        %v12009 = vpop.f32.mrf.mxu0
        %12010 = vmatprep.mubr.bf16.mxu0 %v11301
        %12011 = vmatmul.mubr.bf16.gmra.mxu0 %v11300
        %v12012 = vpop.f32.mrf.mxu0
        %v12013 = vadd.f32 %v11916, %v12012
        %v12014 = vpop.f32.mrf.mxu0
        %v12015 = vpop.f32.mrf.mxu0
        %v12016 = vadd.f32 %v11919, %v12015
        %v12017 = vpop.f32.mrf.mxu0
        %12018 = vmatprep.mubr.bf16.mxu0 %v11309
        %12019 = vmatmul.mubr.bf16.gmra.mxu0 %v11308
        %v12020 = vpop.f32.mrf.mxu0
        %v12021 = vadd.f32 %v11924, %v12020
        %v12022 = vpop.f32.mrf.mxu0
        %v12023 = vpop.f32.mrf.mxu0
        %v12024 = vadd.f32 %v11927, %v12023
        %v12025 = vpop.f32.mrf.mxu0
        %12026 = vdwg.mxu0
        %12027 = vmatprep.subr.bf16.mxu0 0
        %12028 = vmatpush1.bf16.msra.mxu0 %v11744
        %12029 = vmatprep.subr.bf16.mxu0 0
        %12030 = vmatpush1.bf16.msra.mxu0 %v11743
        %12031 = vmatprep.subr.bf16.mxu0 0
        %12032 = vmatpush1.bf16.msra.mxu0 %v11742
        %12033 = vmatprep.subr.bf16.mxu0 0
        %12034 = vmatpush1.bf16.msra.mxu0 %v11741
        %12035 = vmatprep.subr.bf16.mxu0 0
        %12036 = vmatpush1.bf16.msra.mxu0 %v11740
        %12037 = vmatprep.subr.bf16.mxu0 0
        %12038 = vmatpush1.bf16.msra.mxu0 %v11739
        %12039 = vmatprep.subr.bf16.mxu0 0
        %12040 = vmatpush1.bf16.msra.mxu0 %v11738
        %12041 = vmatprep.subr.bf16.mxu0 0
        %12042 = vmatpush1.bf16.msra.mxu0 %v11737
        %12043 = vmatprep.subr.bf16.mxu0 0
        %12044 = vmatpush2.bf16.msra.mxu0 %v11752
        %12045 = vmatprep.subr.bf16.mxu0 0
        %12046 = vmatpush2.bf16.msra.mxu0 %v11751
        %12047 = vmatprep.subr.bf16.mxu0 0
        %12048 = vmatpush2.bf16.msra.mxu0 %v11750
        %12049 = vmatprep.subr.bf16.mxu0 0
        %12050 = vmatpush2.bf16.msra.mxu0 %v11749
        %12051 = vmatprep.subr.bf16.mxu0 0
        %12052 = vmatpush2.bf16.msra.mxu0 %v11748
        %12053 = vmatprep.subr.bf16.mxu0 0
        %12054 = vmatpush2.bf16.msra.mxu0 %v11747
        %12055 = vmatprep.subr.bf16.mxu0 0
        %12056 = vmatpush2.bf16.msra.mxu0 %v11746
        %12057 = vmatprep.subr.bf16.mxu0 0
        %12058 = vmatpush2.bf16.msra.mxu0 %v11745
        %12059 = vmatprep.mubr.bf16.mxu0 %v11255
        %12060 = vmatmul.mubr.bf16.gmra.mxu0 %v11254
        %v12061 = vpop.f32.mrf.mxu0
        %v12062 = vadd.f32 %v11965, %v12061
        %v12063 = vpop.f32.mrf.mxu0
        %v12064 = vpop.f32.mrf.mxu0
        %v12065 = vadd.f32 %v11968, %v12064
        %v12066 = vpop.f32.mrf.mxu0
        %12067 = vmatprep.mubr.bf16.mxu0 %v11263
        %12068 = vmatmul.mubr.bf16.gmra.mxu0 %v11262
        %v12069 = vpop.f32.mrf.mxu0
        %v12070 = vadd.f32 %v11973, %v12069
        %v12071 = vpop.f32.mrf.mxu0
        %v12072 = vpop.f32.mrf.mxu0
        %v12073 = vadd.f32 %v11976, %v12072
        %v12074 = vpop.f32.mrf.mxu0
        %12075 = vmatprep.mubr.bf16.mxu0 %v11271
        %12076 = vmatmul.mubr.bf16.gmra.mxu0 %v11270
        %v12077 = vpop.f32.mrf.mxu0
        %v12078 = vadd.f32 %v11981, %v12077
        %v12079 = vpop.f32.mrf.mxu0
        %v12080 = vpop.f32.mrf.mxu0
        %v12081 = vadd.f32 %v11984, %v12080
        %v12082 = vpop.f32.mrf.mxu0
        %12083 = vmatprep.mubr.bf16.mxu0 %v11279
        %12084 = vmatmul.mubr.bf16.gmra.mxu0 %v11278
        %v12085 = vpop.f32.mrf.mxu0
        %v12086 = vadd.f32 %v11989, %v12085
        %v12087 = vpop.f32.mrf.mxu0
        %v12088 = vpop.f32.mrf.mxu0
        %v12089 = vadd.f32 %v11992, %v12088
        %v12090 = vpop.f32.mrf.mxu0
        %12091 = vmatprep.mubr.bf16.mxu0 %v11287
        %12092 = vmatmul.mubr.bf16.gmra.mxu0 %v11286
        %v12093 = vpop.f32.mrf.mxu0
        %v12094 = vadd.f32 %v11997, %v12093
        %v12095 = vpop.f32.mrf.mxu0
        %v12096 = vpop.f32.mrf.mxu0
        %v12097 = vadd.f32 %v12000, %v12096
        %v12098 = vpop.f32.mrf.mxu0
        %12099 = vmatprep.mubr.bf16.mxu0 %v11295
        %12100 = vmatmul.mubr.bf16.gmra.mxu0 %v11294
        %v12101 = vpop.f32.mrf.mxu0
        %v12102 = vadd.f32 %v12005, %v12101
        %v12103 = vpop.f32.mrf.mxu0
        %v12104 = vpop.f32.mrf.mxu0
        %v12105 = vadd.f32 %v12008, %v12104
        %v12106 = vpop.f32.mrf.mxu0
        %12107 = vmatprep.mubr.bf16.mxu0 %v11303
        %12108 = vmatmul.mubr.bf16.gmra.mxu0 %v11302
        %v12109 = vpop.f32.mrf.mxu0
        %v12110 = vadd.f32 %v12013, %v12109
        %v12111 = vpop.f32.mrf.mxu0
        %v12112 = vpop.f32.mrf.mxu0
        %v12113 = vadd.f32 %v12016, %v12112
        %v12114 = vpop.f32.mrf.mxu0
        %12115 = vmatprep.mubr.bf16.mxu0 %v11311
        %12116 = vmatmul.mubr.bf16.gmra.mxu0 %v11310
        %v12117 = vpop.f32.mrf.mxu0
        %v12118 = vadd.f32 %v12021, %v12117
        %v12119 = vpop.f32.mrf.mxu0
        %v12120 = vpop.f32.mrf.mxu0
        %v12121 = vadd.f32 %v12024, %v12120
        %v12122 = vpop.f32.mrf.mxu0
        %12123 = vdwg.mxu0
        %12124 = vmatprep.subr.bf16.mxu0 0
        %12125 = vmatpush1.bf16.msra.mxu0 %v11760
        %12126 = vmatprep.subr.bf16.mxu0 0
        %12127 = vmatpush1.bf16.msra.mxu0 %v11759
        %12128 = vmatprep.subr.bf16.mxu0 0
        %12129 = vmatpush1.bf16.msra.mxu0 %v11758
        %12130 = vmatprep.subr.bf16.mxu0 0
        %12131 = vmatpush1.bf16.msra.mxu0 %v11757
        %12132 = vmatprep.subr.bf16.mxu0 0
        %12133 = vmatpush1.bf16.msra.mxu0 %v11756
        %12134 = vmatprep.subr.bf16.mxu0 0
        %12135 = vmatpush1.bf16.msra.mxu0 %v11755
        %12136 = vmatprep.subr.bf16.mxu0 0
        %12137 = vmatpush1.bf16.msra.mxu0 %v11754
        %12138 = vmatprep.subr.bf16.mxu0 0
        %12139 = vmatpush1.bf16.msra.mxu0 %v11753
        %12140 = vmatprep.subr.bf16.mxu0 0
        %12141 = vmatpush2.bf16.msra.mxu0 %v11768
        %12142 = vmatprep.subr.bf16.mxu0 0
        %12143 = vmatpush2.bf16.msra.mxu0 %v11767
        %12144 = vmatprep.subr.bf16.mxu0 0
        %12145 = vmatpush2.bf16.msra.mxu0 %v11766
        %12146 = vmatprep.subr.bf16.mxu0 0
        %12147 = vmatpush2.bf16.msra.mxu0 %v11765
        %12148 = vmatprep.subr.bf16.mxu0 0
        %12149 = vmatpush2.bf16.msra.mxu0 %v11764
        %12150 = vmatprep.subr.bf16.mxu0 0
        %12151 = vmatpush2.bf16.msra.mxu0 %v11763
        %12152 = vmatprep.subr.bf16.mxu0 0
        %12153 = vmatpush2.bf16.msra.mxu0 %v11762
        %12154 = vmatprep.subr.bf16.mxu0 0
        %12155 = vmatpush2.bf16.msra.mxu0 %v11761
        %12156 = vmatprep.mubr.bf16.mxu0 %v11257
        %12157 = vmatmul.mubr.bf16.gmra.mxu0 %v11256
        %v12158 = vpop.f32.mrf.mxu0
        %v12159 = vadd.f32 %v12062, %v12158
        %v12160 = vpop.f32.mrf.mxu0
        %v12161 = vpop.f32.mrf.mxu0
        %v12162 = vadd.f32 %v12065, %v12161
        %v12163 = vpop.f32.mrf.mxu0
        %12164 = vmatprep.mubr.bf16.mxu0 %v11265
        %12165 = vmatmul.mubr.bf16.gmra.mxu0 %v11264
        %v12166 = vpop.f32.mrf.mxu0
        %v12167 = vadd.f32 %v12070, %v12166
        %v12168 = vpop.f32.mrf.mxu0
        %v12169 = vpop.f32.mrf.mxu0
        %v12170 = vadd.f32 %v12073, %v12169
        %v12171 = vpop.f32.mrf.mxu0
        %12172 = vmatprep.mubr.bf16.mxu0 %v11273
        %12173 = vmatmul.mubr.bf16.gmra.mxu0 %v11272
        %v12174 = vpop.f32.mrf.mxu0
        %v12175 = vadd.f32 %v12078, %v12174
        %v12176 = vpop.f32.mrf.mxu0
        %v12177 = vpop.f32.mrf.mxu0
        %v12178 = vadd.f32 %v12081, %v12177
        %v12179 = vpop.f32.mrf.mxu0
        %12180 = vmatprep.mubr.bf16.mxu0 %v11281
        %12181 = vmatmul.mubr.bf16.gmra.mxu0 %v11280
        %v12182 = vpop.f32.mrf.mxu0
        %v12183 = vadd.f32 %v12086, %v12182
        %v12184 = vpop.f32.mrf.mxu0
        %v12185 = vpop.f32.mrf.mxu0
        %v12186 = vadd.f32 %v12089, %v12185
        %v12187 = vpop.f32.mrf.mxu0
        %12188 = vmatprep.mubr.bf16.mxu0 %v11289
        %12189 = vmatmul.mubr.bf16.gmra.mxu0 %v11288
        %v12190 = vpop.f32.mrf.mxu0
        %v12191 = vadd.f32 %v12094, %v12190
        %v12192 = vpop.f32.mrf.mxu0
        %v12193 = vpop.f32.mrf.mxu0
        %v12194 = vadd.f32 %v12097, %v12193
        %v12195 = vpop.f32.mrf.mxu0
        %12196 = vmatprep.mubr.bf16.mxu0 %v11297
        %12197 = vmatmul.mubr.bf16.gmra.mxu0 %v11296
        %v12198 = vpop.f32.mrf.mxu0
        %v12199 = vadd.f32 %v12102, %v12198
        %v12200 = vpop.f32.mrf.mxu0
        %v12201 = vpop.f32.mrf.mxu0
        %v12202 = vadd.f32 %v12105, %v12201
        %v12203 = vpop.f32.mrf.mxu0
        %12204 = vmatprep.mubr.bf16.mxu0 %v11305
        %12205 = vmatmul.mubr.bf16.gmra.mxu0 %v11304
        %v12206 = vpop.f32.mrf.mxu0
        %v12207 = vadd.f32 %v12110, %v12206
        %v12208 = vpop.f32.mrf.mxu0
        %v12209 = vpop.f32.mrf.mxu0
        %v12210 = vadd.f32 %v12113, %v12209
        %v12211 = vpop.f32.mrf.mxu0
        %12212 = vmatprep.mubr.bf16.mxu0 %v11313
        %12213 = vmatmul.mubr.bf16.gmra.mxu0 %v11312
        %v12214 = vpop.f32.mrf.mxu0
        %v12215 = vadd.f32 %v12118, %v12214
        %v12216 = vpop.f32.mrf.mxu0
        %v12217 = vpop.f32.mrf.mxu0
        %v12218 = vadd.f32 %v12121, %v12217
        %v12219 = vpop.f32.mrf.mxu0
        %12220 = vdwg.mxu0
        %12237 = vrot.lane.b32.xlu0 %v12159, 127
        %v12238 = vpop.permute.xlu0 %12237
        %12239 = vrot.lane.b32.xlu0 %v12162, 127
        %v12240 = vpop.permute.xlu0 %12239
        %12241 = vrot.lane.b32.xlu0 %v12167, 127
        %v12242 = vpop.permute.xlu0 %12241
        %12243 = vrot.lane.b32.xlu0 %v12170, 127
        %v12244 = vpop.permute.xlu0 %12243
        %12245 = vrot.lane.b32.xlu0 %v12175, 127
        %v12246 = vpop.permute.xlu0 %12245
        %12247 = vrot.lane.b32.xlu0 %v12178, 127
        %v12248 = vpop.permute.xlu0 %12247
        %12249 = vrot.lane.b32.xlu0 %v12183, 127
        %v12250 = vpop.permute.xlu0 %12249
        %12251 = vrot.lane.b32.xlu0 %v12186, 127
        %v12252 = vpop.permute.xlu0 %12251
        %12253 = vrot.lane.b32.xlu0 %v12191, 127
        %v12254 = vpop.permute.xlu0 %12253
        %12255 = vrot.lane.b32.xlu0 %v12194, 127
        %v12256 = vpop.permute.xlu0 %12255
        %12257 = vrot.lane.b32.xlu0 %v12199, 127
        %v12258 = vpop.permute.xlu0 %12257
        %12259 = vrot.lane.b32.xlu0 %v12202, 127
        %v12260 = vpop.permute.xlu0 %12259
        %12261 = vrot.lane.b32.xlu0 %v12207, 127
        %v12262 = vpop.permute.xlu0 %12261
        %12263 = vrot.lane.b32.xlu0 %v12210, 127
        %v12264 = vpop.permute.xlu0 %12263
        %12265 = vrot.lane.b32.xlu0 %v12215, 127
        %v12266 = vpop.permute.xlu0 %12265
        %12267 = vrot.lane.b32.xlu0 %v12218, 127
        %v12268 = vpop.permute.xlu0 %12267
        %v12285 = vsub.f32 %v12159, %v12238
        %v12286 = vsub.f32 %v12162, %v12240
        %v12287 = vsub.f32 %v12167, %v12242
        %v12288 = vsub.f32 %v12170, %v12244
        %v12289 = vsub.f32 %v12175, %v12246
        %v12290 = vsub.f32 %v12178, %v12248
        %v12291 = vsub.f32 %v12183, %v12250
        %v12292 = vsub.f32 %v12186, %v12252
        %v12293 = vsub.f32 %v12191, %v12254
        %v12294 = vsub.f32 %v12194, %v12256
        %v12295 = vsub.f32 %v12199, %v12258
        %v12296 = vsub.f32 %v12202, %v12260
        %v12297 = vsub.f32 %v12207, %v12262
        %v12298 = vsub.f32 %v12210, %v12264
        %v12299 = vsub.f32 %v12215, %v12266
        %v12300 = vsub.f32 %v12218, %v12268
        %v12301 = vmax.f32 %v12285, -30.0
        %v12302 = vmax.f32 %v12286, -30.0
        %v12303 = vmax.f32 %v12287, -30.0
        %v12304 = vmax.f32 %v12288, -30.0
        %v12305 = vmax.f32 %v12289, -30.0
        %v12306 = vmax.f32 %v12290, -30.0
        %v12307 = vmax.f32 %v12291, -30.0
        %v12308 = vmax.f32 %v12292, -30.0
        %v12309 = vmax.f32 %v12293, -30.0
        %v12310 = vmax.f32 %v12294, -30.0
        %v12311 = vmax.f32 %v12295, -30.0
        %v12312 = vmax.f32 %v12296, -30.0
        %v12313 = vmax.f32 %v12297, -30.0
        %v12314 = vmax.f32 %v12298, -30.0
        %v12315 = vmax.f32 %v12299, -30.0
        %v12316 = vmax.f32 %v12300, -30.0
        %v12317 = vmin.f32 %v12301, 30.0
        %v12318 = vmin.f32 %v12302, 30.0
        %v12319 = vmin.f32 %v12303, 30.0
        %v12320 = vmin.f32 %v12304, 30.0
        %v12321 = vmin.f32 %v12305, 30.0
        %v12322 = vmin.f32 %v12306, 30.0
        %v12323 = vmin.f32 %v12307, 30.0
        %v12324 = vmin.f32 %v12308, 30.0
        %v12325 = vmin.f32 %v12309, 30.0
        %v12326 = vmin.f32 %v12310, 30.0
        %v12327 = vmin.f32 %v12311, 30.0
        %v12328 = vmin.f32 %v12312, 30.0
        %v12329 = vmin.f32 %v12313, 30.0
        %v12330 = vmin.f32 %v12314, 30.0
        %v12331 = vmin.f32 %v12315, 30.0
        %v12332 = vmin.f32 %v12316, 30.0
        %v12333 = vmul.f32 %v12317, 1.442695
        %v12334 = vpow.pop %v12333
        %v12335 = vmul.f32 %v12318, 1.442695
        %v12336 = vpow.pop %v12335
        %v12337 = vmul.f32 %v12319, 1.442695
        %v12338 = vpow.pop %v12337
        %v12339 = vmul.f32 %v12320, 1.442695
        %v12340 = vpow.pop %v12339
        %v12341 = vmul.f32 %v12321, 1.442695
        %v12342 = vpow.pop %v12341
        %v12343 = vmul.f32 %v12322, 1.442695
        %v12344 = vpow.pop %v12343
        %v12345 = vmul.f32 %v12323, 1.442695
        %v12346 = vpow.pop %v12345
        %v12347 = vmul.f32 %v12324, 1.442695
        %v12348 = vpow.pop %v12347
        %v12349 = vmul.f32 %v12325, 1.442695
        %v12350 = vpow.pop %v12349
        %v12351 = vmul.f32 %v12326, 1.442695
        %v12352 = vpow.pop %v12351
        %v12353 = vmul.f32 %v12327, 1.442695
        %v12354 = vpow.pop %v12353
        %v12355 = vmul.f32 %v12328, 1.442695
        %v12356 = vpow.pop %v12355
        %v12357 = vmul.f32 %v12329, 1.442695
        %v12358 = vpow.pop %v12357
        %v12359 = vmul.f32 %v12330, 1.442695
        %v12360 = vpow.pop %v12359
        %v12361 = vmul.f32 %v12331, 1.442695
        %v12362 = vpow.pop %v12361
        %v12363 = vmul.f32 %v12332, 1.442695
        %v12364 = vpow.pop %v12363
        %v12365 = vadd.f32 %v12334, 1.0
        %v12366 = vadd.f32 %v12336, 1.0
        %v12367 = vadd.f32 %v12338, 1.0
        %v12368 = vadd.f32 %v12340, 1.0
        %v12369 = vadd.f32 %v12342, 1.0
        %v12370 = vadd.f32 %v12344, 1.0
        %v12371 = vadd.f32 %v12346, 1.0
        %v12372 = vadd.f32 %v12348, 1.0
        %v12373 = vadd.f32 %v12350, 1.0
        %v12374 = vadd.f32 %v12352, 1.0
        %v12375 = vadd.f32 %v12354, 1.0
        %v12376 = vadd.f32 %v12356, 1.0
        %v12377 = vadd.f32 %v12358, 1.0
        %v12378 = vadd.f32 %v12360, 1.0
        %v12379 = vadd.f32 %v12362, 1.0
        %v12380 = vadd.f32 %v12364, 1.0
        %v12381 = vrcp.pop %v12365
        %v12382 = vrcp.pop %v12366
        %v12383 = vrcp.pop %v12367
        %v12384 = vrcp.pop %v12368
        %v12385 = vrcp.pop %v12369
        %v12386 = vrcp.pop %v12370
        %v12387 = vrcp.pop %v12371
        %v12388 = vrcp.pop %v12372
        %v12389 = vrcp.pop %v12373
        %v12390 = vrcp.pop %v12374
        %v12391 = vrcp.pop %v12375
        %v12392 = vrcp.pop %v12376
        %v12393 = vrcp.pop %v12377
        %v12394 = vrcp.pop %v12378
        %v12395 = vrcp.pop %v12379
        %v12396 = vrcp.pop %v12380
        %v12397 = vsub.f32 1.0, %v12381
        %v12398 = vsub.f32 1.0, %v12382
        %v12399 = vsub.f32 1.0, %v12383
        %v12400 = vsub.f32 1.0, %v12384
        %v12401 = vsub.f32 1.0, %v12385
        %v12402 = vsub.f32 1.0, %v12386
        %v12403 = vsub.f32 1.0, %v12387
        %v12404 = vsub.f32 1.0, %v12388
        %v12405 = vsub.f32 1.0, %v12389
        %v12406 = vsub.f32 1.0, %v12390
        %v12407 = vsub.f32 1.0, %v12391
        %v12408 = vsub.f32 1.0, %v12392
        %v12409 = vsub.f32 1.0, %v12393
        %v12410 = vsub.f32 1.0, %v12394
        %v12411 = vsub.f32 1.0, %v12395
        %v12412 = vsub.f32 1.0, %v12396
        %v12413 = vlaneseq
        %v12414 = vand.u32 %v12413, 127
        %vm12415 = vcmp.eq.s32.totalorder %v12414, 0
        %vm12416 = vcmp.eq.s32.totalorder %v12414, 1
        %12418 = vset.pattern.permute.xlu0 0
        %12419 = vperm.xlu0 %12418, %v12381
        %v12420 = vpop.permute.xlu0 %12419
        %12423 = vset.pattern.permute.xlu0 0
        %12424 = vperm.xlu0 %12423, %v12382
        %v12425 = vpop.permute.xlu0 %12424
        %12428 = vset.pattern.permute.xlu0 0
        %12429 = vperm.xlu0 %12428, %v12383
        %v12430 = vpop.permute.xlu0 %12429
        %12433 = vset.pattern.permute.xlu0 0
        %12434 = vperm.xlu0 %12433, %v12384
        %v12435 = vpop.permute.xlu0 %12434
        %12438 = vset.pattern.permute.xlu0 0
        %12439 = vperm.xlu0 %12438, %v12385
        %v12440 = vpop.permute.xlu0 %12439
        %12443 = vset.pattern.permute.xlu0 0
        %12444 = vperm.xlu0 %12443, %v12386
        %v12445 = vpop.permute.xlu0 %12444
        %12448 = vset.pattern.permute.xlu0 0
        %12449 = vperm.xlu0 %12448, %v12387
        %v12450 = vpop.permute.xlu0 %12449
        %12453 = vset.pattern.permute.xlu0 0
        %12454 = vperm.xlu0 %12453, %v12388
        %v12455 = vpop.permute.xlu0 %12454
        %12458 = vset.pattern.permute.xlu0 0
        %12459 = vperm.xlu0 %12458, %v12389
        %v12460 = vpop.permute.xlu0 %12459
        %12463 = vset.pattern.permute.xlu0 0
        %12464 = vperm.xlu0 %12463, %v12390
        %v12465 = vpop.permute.xlu0 %12464
        %12468 = vset.pattern.permute.xlu0 0
        %12469 = vperm.xlu0 %12468, %v12391
        %v12470 = vpop.permute.xlu0 %12469
        %12473 = vset.pattern.permute.xlu0 0
        %12474 = vperm.xlu0 %12473, %v12392
        %v12475 = vpop.permute.xlu0 %12474
        %12478 = vset.pattern.permute.xlu0 0
        %12479 = vperm.xlu0 %12478, %v12393
        %v12480 = vpop.permute.xlu0 %12479
        %12483 = vset.pattern.permute.xlu0 0
        %12484 = vperm.xlu0 %12483, %v12394
        %v12485 = vpop.permute.xlu0 %12484
        %12488 = vset.pattern.permute.xlu0 0
        %12489 = vperm.xlu0 %12488, %v12395
        %v12490 = vpop.permute.xlu0 %12489
        %12493 = vset.pattern.permute.xlu0 0
        %12494 = vperm.xlu0 %12493, %v12396
        %v12495 = vpop.permute.xlu0 %12494
        %v12497 = vsel %vm12416, %v12420, 0.0
        %v12498 = vsel %vm12416, %v12425, 0.0
        %v12499 = vsel %vm12416, %v12430, 0.0
        %v12500 = vsel %vm12416, %v12435, 0.0
        %v12501 = vsel %vm12416, %v12440, 0.0
        %v12502 = vsel %vm12416, %v12445, 0.0
        %v12503 = vsel %vm12416, %v12450, 0.0
        %v12504 = vsel %vm12416, %v12455, 0.0
        %v12505 = vsel %vm12416, %v12460, 0.0
        %v12506 = vsel %vm12416, %v12465, 0.0
        %v12507 = vsel %vm12416, %v12470, 0.0
        %v12508 = vsel %vm12416, %v12475, 0.0
        %v12509 = vsel %vm12416, %v12480, 0.0
        %v12510 = vsel %vm12416, %v12485, 0.0
        %v12511 = vsel %vm12416, %v12490, 0.0
        %v12512 = vsel %vm12416, %v12495, 0.0
        %12514 = vset.pattern.permute.xlu0 0
        %12515 = vperm.xlu0 %12514, %v12397
        %v12516 = vpop.permute.xlu0 %12515
        %12519 = vset.pattern.permute.xlu0 0
        %12520 = vperm.xlu0 %12519, %v12398
        %v12521 = vpop.permute.xlu0 %12520
        %12524 = vset.pattern.permute.xlu0 0
        %12525 = vperm.xlu0 %12524, %v12399
        %v12526 = vpop.permute.xlu0 %12525
        %12529 = vset.pattern.permute.xlu0 0
        %12530 = vperm.xlu0 %12529, %v12400
        %v12531 = vpop.permute.xlu0 %12530
        %12534 = vset.pattern.permute.xlu0 0
        %12535 = vperm.xlu0 %12534, %v12401
        %v12536 = vpop.permute.xlu0 %12535
        %12539 = vset.pattern.permute.xlu0 0
        %12540 = vperm.xlu0 %12539, %v12402
        %v12541 = vpop.permute.xlu0 %12540
        %12544 = vset.pattern.permute.xlu0 0
        %12545 = vperm.xlu0 %12544, %v12403
        %v12546 = vpop.permute.xlu0 %12545
        %12549 = vset.pattern.permute.xlu0 0
        %12550 = vperm.xlu0 %12549, %v12404
        %v12551 = vpop.permute.xlu0 %12550
        %12554 = vset.pattern.permute.xlu0 0
        %12555 = vperm.xlu0 %12554, %v12405
        %v12556 = vpop.permute.xlu0 %12555
        %12559 = vset.pattern.permute.xlu0 0
        %12560 = vperm.xlu0 %12559, %v12406
        %v12561 = vpop.permute.xlu0 %12560
        %12564 = vset.pattern.permute.xlu0 0
        %12565 = vperm.xlu0 %12564, %v12407
        %v12566 = vpop.permute.xlu0 %12565
        %12569 = vset.pattern.permute.xlu0 0
        %12570 = vperm.xlu0 %12569, %v12408
        %v12571 = vpop.permute.xlu0 %12570
        %12574 = vset.pattern.permute.xlu0 0
        %12575 = vperm.xlu0 %12574, %v12409
        %v12576 = vpop.permute.xlu0 %12575
        %12579 = vset.pattern.permute.xlu0 0
        %12580 = vperm.xlu0 %12579, %v12410
        %v12581 = vpop.permute.xlu0 %12580
        %12584 = vset.pattern.permute.xlu0 0
        %12585 = vperm.xlu0 %12584, %v12411
        %v12586 = vpop.permute.xlu0 %12585
        %12589 = vset.pattern.permute.xlu0 0
        %12590 = vperm.xlu0 %12589, %v12412
        %v12591 = vpop.permute.xlu0 %12590
        %v12593 = vsel %vm12415, %v12516, %v12497
        %v12594 = vsel %vm12415, %v12521, %v12498
        %v12595 = vsel %vm12415, %v12526, %v12499
        %v12596 = vsel %vm12415, %v12531, %v12500
        %v12597 = vsel %vm12415, %v12536, %v12501
        %v12598 = vsel %vm12415, %v12541, %v12502
        %v12599 = vsel %vm12415, %v12546, %v12503
        %v12600 = vsel %vm12415, %v12551, %v12504
        %v12601 = vsel %vm12415, %v12556, %v12505
        %v12602 = vsel %vm12415, %v12561, %v12506
        %v12603 = vsel %vm12415, %v12566, %v12507
        %v12604 = vsel %vm12415, %v12571, %v12508
        %v12605 = vsel %vm12415, %v12576, %v12509
        %v12606 = vsel %vm12415, %v12581, %v12510
        %v12607 = vsel %vm12415, %v12586, %v12511
        %v12608 = vsel %vm12415, %v12591, %v12512
        %12609 = vst [vmem:[%s378] sm:$0xff] %v12593
        %12610 = vst [vmem:[%s378 + $0x8] sm:$0xff] %v12594
        %12611 = vst [vmem:[%s378 + $0x10] sm:$0xff] %v12595
        %12612 = vst [vmem:[%s378 + $0x18] sm:$0xff] %v12596
        %12613 = vst [vmem:[%s378 + $0x20] sm:$0xff] %v12597
        %12614 = vst [vmem:[%s378 + $0x28] sm:$0xff] %v12598
        %12615 = vst [vmem:[%s378 + $0x30] sm:$0xff] %v12599
        %12616 = vst [vmem:[%s378 + $0x38] sm:$0xff] %v12600
        %12617 = vst [vmem:[%s378 + $0x40] sm:$0xff] %v12601
        %12618 = vst [vmem:[%s378 + $0x48] sm:$0xff] %v12602
        %12619 = vst [vmem:[%s378 + $0x50] sm:$0xff] %v12603
        %12620 = vst [vmem:[%s378 + $0x58] sm:$0xff] %v12604
        %12621 = vst [vmem:[%s378 + $0x60] sm:$0xff] %v12605
        %12622 = vst [vmem:[%s378 + $0x68] sm:$0xff] %v12606
        %12623 = vst [vmem:[%s378 + $0x70] sm:$0xff] %v12607
        %12624 = vst [vmem:[%s378 + $0x78] sm:$0xff] %v12608
        %s12625 = sand.u32 %s187, 1
        %s12626 = scalar_lea.sflag [#allocation4], %s12625
        %s12627 = sand.u32 %s187, 1
        %s12628 = smul.addr %s12627, 128
        %s12629 = scalar_lea.vmem [#allocation14], %s12628
        // Predicated region
        $region77: #{tpu_custom_call.1} parent=47 // pred_check
          %p12630 = pneg %p197
        $region78: #{tpu_custom_call.1} parent=47 // pred_check_branch
          %12632 = sbr.rel (%p12630) target = $region80
        $region79: #{tpu_custom_call.1} parent=47 // pred_region
          %s12633 = smul.u32 16, %s27
          %s12635 = ssub.s32 2048, 2048
          %12636 = vsyncadd %s12626, %s12635
          %s12637 = smul.addr %s12633, 128
          %s12638 = scalar_lea.hbm %s7, %s12637
          %s12639 = sshll.u32 %s12629, 4
          %s12640 = int_to_ptr.vmem [resolvable:$true] %s12639
          %12645 = dma.vmem_to_hbm [thread:$0]  %s12640, 2048, %s12638, %s12626, 128, 128, 8
        $region80: #{tpu_custom_call.1} parent=47 // pred_fallthru
          _
      $region48: #{tpu_custom_call.1} parent=5 // pred_fallthru
        _
      %p12646 = scmp.le.s32.totalorder 2, %s22
      // Predicated region
      $region81: #{tpu_custom_call.1} parent=5 // pred_check
        %p12647 = pneg %p12646
      $region82: #{tpu_custom_call.1} parent=5 // pred_check_branch
        %12649 = sbr.rel (%p12647) target = $region84
      $region83: #{tpu_custom_call.1} parent=5 // pred_region
        %s12650 = ssub.s32 %s22, 2
        // Predicated region
        $region85: #{tpu_custom_call.1} parent=83 // pred_check
          %p12651 = pneg %p203
        $region86: #{tpu_custom_call.1} parent=83 // pred_check_branch
          %12653 = sbr.rel (%p12651) target = $region88
        $region87: #{tpu_custom_call.1} parent=83 // pred_region
          %s12654 = sand.u32 %s188, 1
          %s12655 = scalar_lea.sflag [#allocation4], %s12654
          %s12656 = sand.u32 %s188, 1
          %s12657 = smul.addr %s12656, 128
          %s12658 = scalar_lea.vmem [#allocation14], %s12657
          %12659 = dma.done %s12655, 2048
        $region88: #{tpu_custom_call.1} parent=83 // pred_fallthru
          _
      $region84: #{tpu_custom_call.1} parent=5 // pred_fallthru
        _
    $region6: #{tpu_custom_call.1} parent=1 // loop_footer
      %s26 = sadd.s32 1, %s22
    $region7: #{tpu_custom_call.1} parent=1 // loop_footer_branch
      %21 = sbr.rel target = $region3
    $region8: #{tpu_custom_call.1} parent=1 // loop_exit
      _
    %12660 = vsyncpa [#allocation3], 1
    %s12661 = scalar_lea.sflag [#allocation3], 1
    %12662 = vsyncpa %s12661, 1
    %12663 = vsyncpa [#allocation6], 1
    %12664 = vsyncpa [#allocation9], 1
    %12665 = vsyncpa [#allocation12], 1
    %12666 = vsyncpa [#allocation4], 1
    %s12667 = scalar_lea.sflag [#allocation4], 1
    %12668 = vsyncpa %s12667, 1

</llo_original>
